<compile_context>
chip_gen: v7x
topology: tpu7x:2x2x1
jax: 0.10.0
libtpu: 0.0.40
codegen_flags: <defaults>
</compile_context>

<pallas_src>
from collections import namedtuple

import jax
import jax.numpy as jnp
from jax.experimental import pallas as pl
from jax.experimental.pallas import tpu as pltpu

LANES = 128      # channel dim padded to the 128-lane vreg width
OUT_ROWS = 8     # sublane rows of the final slab (channels 0..2 are the payload)

_Geom = namedtuple("_Geom", ["pad", "ih", "iw", "oh", "ow", "wrow", "nrows"],
                   defaults=[0, 0])


def _round_up(x, m):
    return (x + m - 1) // m * m


def _make_geom(H, W):
    """Static geometry for the 4-layer chain (stride/padding of the module)."""
    oh1 = (H + 2 * 1 - 3) // 2 + 1
    ow1 = (W + 2 * 1 - 3) // 2 + 1
    geoms = [_Geom(pad=1, ih=H, iw=W, oh=oh1, ow=ow1)]
    ih, iw = oh1, ow1
    for p in (4, 3, 1):                       # layers 2, 3, 4 (stride 1)
        oh, ow = ih + 2 * p - 2, iw + 2 * p - 2
        wrow = _round_up(iw + 2 * p, 8)       # padded-row stride (sublane aligned)
        nrows = (ih + 2 * p) * wrow + 8       # + slack rows for the last tap slice
        geoms.append(_Geom(pad=p, ih=ih, iw=iw, oh=oh, ow=ow, wrow=wrow, nrows=nrows))
        ih, iw = oh, ow
    return geoms


def _fold_weight(w_oihw, cin_pad, cout_pad, k_rows=None):
    """(Cout,Cin,3,3) -> (9*cin_pad, cout_pad); feature = (kh*3+kw)*cin_pad + cin."""
    cout, cin, kh, kw = w_oihw.shape
    w = jnp.transpose(w_oihw, (2, 3, 1, 0)).astype(jnp.float32)   # (kh,kw,cin,cout)
    w = jnp.pad(w, ((0, 0), (0, 0), (0, cin_pad - cin), (0, cout_pad - cout)))
    w = w.reshape(kh * kw * cin_pad, cout_pad)
    if k_rows is not None and k_rows > w.shape[0]:
        w = jnp.pad(w, ((0, k_rows - w.shape[0]), (0, 0)))
    return w


def _fold_weight_t(w_oihw, cin_pad, cout_rows):
    """(Cout,Cin,3,3) -> (9*cout_rows, cin_pad); row = (kh*3+kw)*cout_rows + cout."""
    cout, cin, kh, kw = w_oihw.shape
    w = jnp.transpose(w_oihw, (2, 3, 0, 1)).astype(jnp.float32)   # (kh,kw,cout,cin)
    w = w[:, :, :cout_rows, :]
    w = jnp.pad(w, ((0, 0), (0, 0),
                    (0, cout_rows - min(cout, cout_rows)), (0, cin_pad - cin)))
    return w.reshape(kh * kw * cout_rows, cin_pad)


def _pad_bias(b, cout_pad):
    return jnp.pad(b.astype(jnp.float32), (0, cout_pad - b.shape[0])).reshape(1, cout_pad)


def _im2col(x_nhwc, pad, stride):
    """Layer-1 taps (glue in XLA): stride applied directly -> only needed rows."""
    N, H, W, C = x_nhwc.shape
    xp = jnp.pad(x_nhwc, ((0, 0), (pad, pad), (pad, pad), (0, 0)))
    Ho = (H + 2 * pad - 3) // stride + 1
    Wo = (W + 2 * pad - 3) // stride + 1
    cols = jnp.concatenate(
        [xp[:, kh:kh + stride * (Ho - 1) + 1:stride,
               kw:kw + stride * (Wo - 1) + 1:stride, :]
         for kh in range(3) for kw in range(3)], axis=-1)          # (N,Ho,Wo,9C)
    return cols.reshape(N, Ho * Wo, 9 * C)


def _build_kernel(g1, g2, g3, g4, p4w):
    f32 = jnp.float32
    bf16 = jnp.bfloat16

    def conv_wide(src_ref, w_ref, b_ref, wrow, oh):
        # 3x3/stride-1 conv over a zero-padded flat (nrows, 128) f32 buffer.
        # 9 accumulated (P,128)@(128,128) bf16 dots (no concat LHS materialized).
        # Row i*wrow + j of the result is valid for j < ow (rest is discarded).
        P = oh * wrow
        acc = None
        for t in range(9):
            kh, kw = divmod(t, 3)
            off = kh * wrow + kw
            lhs = src_ref[off:off + P, :].astype(bf16)
            d = jnp.dot(lhs, w_ref[t * LANES:(t + 1) * LANES, :],
                        preferred_element_type=f32)
            acc = d if acc is None else acc + d
        return acc + b_ref[...]

    def conv_last_transposed(src_ref, w_ref, b_ref, wrow):
        # Layer 4 with channels on sublanes: (8,128) @ (p4w,128)^T per tap.
        # Only out-channels 0..2 are consumed downstream; rows 3..7 are ballast.
        acc = None
        for t in range(9):
            kh, kw = divmod(t, 3)
            off = kh * wrow + kw
            tap = src_ref[off:off + p4w, :].astype(bf16)            # (p4w, 128)
            wt = w_ref[t * OUT_ROWS:(t + 1) * OUT_ROWS, :]          # (8, 128)
            d = jax.lax.dot_general(wt, tap, (((1,), (1,)), ((), ())),
                                    preferred_element_type=f32)     # (8, p4w)
            acc = d if acc is None else acc + d
        return acc + b_ref[...]                                     # (8,1) lane bcast

    def scatter_rows(dst_ref, y, n_rows, row_len, src_stride, dst_stride, dst_off):
        # Copy the valid `row_len` columns of each output row into the (padded)
        # destination buffer.  Statically unrolled (<= 18 rows); full 128-lane stores.
        for i in range(n_rows):
            s = i * src_stride
            d = dst_off + i * dst_stride
            dst_ref[d:d + row_len, :] = y[s:s + row_len, :]

    def kernel(taps1_ref, w1_ref, b1_ref, w2_ref, b2_ref, w3_ref, b3_ref,
               w4t_ref, b4t_ref, out_ref, buf2, buf3, buf4):
        # Zero the padded activation buffers ONCE: scatter_rows never touches the
        # padding/slack region, so the zeros persist across grid (batch) steps.
        # (grid axis is "arbitrary" => sequential, so program_id==0 always runs.)
        @pl.when(pl.program_id(0) == 0)
        def _init():
            buf2[...] = jnp.zeros_like(buf2)
            buf3[...] = jnp.zeros_like(buf3)
            buf4[...] = jnp.zeros_like(buf4)

        # ---- layer 1: stride-2 taps prebuilt -> one (P1, K1) @ (K1, 128) matmul.
        y1 = jnp.dot(taps1_ref[...], w1_ref[...],
                     preferred_element_type=f32) + b1_ref[...]
        scatter_rows(buf2, y1, g1.oh, g1.ow, g1.ow,
                     g2.wrow, g2.pad * g2.wrow + g2.pad)

        # ---- layer 2 (pad 4)
        y2 = conv_wide(buf2, w2_ref, b2_ref, g2.wrow, g2.oh)
        scatter_rows(buf3, y2, g2.oh, g2.ow, g2.wrow,
                     g3.wrow, g3.pad * g3.wrow + g3.pad)

        # ---- layer 3 (pad 3)
        y3 = conv_wide(buf3, w3_ref, b3_ref, g3.wrow, g3.oh)
        scatter_rows(buf4, y3, g3.oh, g3.ow, g3.wrow,
                     g4.wrow, g4.pad * g4.wrow + g4.pad)

        # ---- layer 4 (pad 1) -> lane-dense (8, p4w) f32 slab (channels on rows).
        out_ref[...] = conv_last_transposed(buf4, w4t_ref, b4t_ref, g4.wrow)

    return kernel


def model_forward(x_nchw, params):
    N, Cin, H, W = x_nchw.shape
    g1, g2, g3, g4 = _make_geom(H, W)

    # Layer-4 is evaluated on the wide grid padded to a 128-lane multiple so the
    # transposed output slab is fully lane-dense; pad buf4's slack accordingly.
    P4W = _round_up(g4.oh * g4.wrow, 128)
    nrows4 = _round_up(max(g4.nrows, 2 * g4.wrow + 2 + P4W), 8)

    x_nhwc = jnp.transpose(x_nchw, (0, 2, 3, 1)).astype(jnp.float32)
    K1 = 9 * Cin
    K1P = _round_up(K1, 32)                     # aligned K for the tiny layer-1 dot
    taps1 = _im2col(x_nhwc, pad=g1.pad, stride=2)            # (N, P1, 9*Cin) f32
    taps1 = jnp.pad(taps1, ((0, 0), (0, 0), (0, K1P - K1))).astype(jnp.bfloat16)

    (w1, b1), (w2, b2), (w3, b3), (w4, b4) = params
    bf16 = jnp.bfloat16
    w1f = _fold_weight(w1, Cin, LANES, k_rows=K1P).astype(bf16)
    w2f = _fold_weight(w2, LANES, LANES).astype(bf16)
    w3f = _fold_weight(w3, LANES, LANES).astype(bf16)
    w4t = _fold_weight_t(w4, LANES, OUT_ROWS).astype(bf16)          # (72, 128)
    b1f, b2f, b3f = (_pad_bias(b, LANES) for b in (b1, b2, b3))
    b4t = b4[:OUT_ROWS].astype(jnp.float32).reshape(OUT_ROWS, 1)    # (8, 1)

    P1 = g1.oh * g1.ow
    K = 9 * LANES

    def wspec(shape):
        return pl.BlockSpec(shape, lambda n: (0,) * len(shape))

    out = pl.pallas_call(
        _build_kernel(g1, g2, g3, g4, P4W),
        grid=(N,),
        in_specs=[
            pl.BlockSpec((None, P1, K1P), lambda n: (n, 0, 0)),   # layer-1 taps (bf16)
            wspec((K1P, LANES)), wspec((1, LANES)),               # layer-1 w/b
            wspec((K, LANES)), wspec((1, LANES)),                 # layer-2 w/b
            wspec((K, LANES)), wspec((1, LANES)),                 # layer-3 w/b
            wspec((9 * OUT_ROWS, LANES)), wspec((OUT_ROWS, 1)),   # layer-4 w^T/b
        ],
        out_specs=pl.BlockSpec((None, OUT_ROWS, P4W), lambda n: (n, 0, 0)),
        out_shape=jax.ShapeDtypeStruct((N, OUT_ROWS, P4W), jnp.float32),
        scratch_shapes=[
            pltpu.VMEM((g2.nrows, LANES), jnp.float32),   # padded act of layer-2 input
            pltpu.VMEM((g3.nrows, LANES), jnp.float32),   # padded act of layer-3 input
            pltpu.VMEM((nrows4, LANES), jnp.float32),     # padded act of layer-4 input
        ],
        compiler_params=pltpu.CompilerParams(
            # "arbitrary" (sequential) so the zero-once scratch init is valid even
            # when a chip has more than one TensorCore per pallas_call.
            dimension_semantics=("arbitrary",),
            vmem_limit_bytes=32 * 1024 * 1024),
    )(taps1, w1f, b1f, w2f, b2f, w3f, b3f, w4t, b4t)

    # out: (N, 8, P4W): rows = out-channels 0..7, lanes = wide-grid positions
    # (pos = i*wrow + j, valid for j < ow).  Tiny XLA slice/reshape to (N,3,oh,ow).
    wide = out[:, :3, :g4.oh * g4.wrow].reshape(N, 3, g4.oh, g4.wrow)
    feat3 = wide[..., :g4.ow]
    # TODO(synk): torch.split(x1, [1,1,1], dim=1) would raise in PyTorch because
    # the sizes sum to 3 while x1 has 32 channels; we emulate the evident intent
    # by splitting the first 3 channels into 1-channel tensors.
    split_tensors = tuple(feat3[:, i:i + 1] for i in range(3))
    concatenated = jnp.concatenate(split_tensors, axis=1)
    # note: self.split (MaxPool2d) is never used in the original forward.
    return concatenated, split_tensors


def init_params(key):
    """Deterministic Conv2d params (PyTorch-style uniform init)."""
    layer_io = [(32, 3), (32, 32), (32, 32), (32, 32)]
    params = []
    for cout, cin in layer_io:
        key, kw, kb = jax.random.split(key, 3)
        bound = 1.0 / float((cin * 9) ** 0.5)
        w = jax.random.uniform(kw, (cout, cin, 3, 3), jnp.float32, -bound, bound)
        bb = jax.random.uniform(kb, (cout,), jnp.float32, -bound, bound)
        params.append((w, bb))
    return params


def reference_forward(x, params):
    """Pure-XLA f32 reference (lax.conv chain) for correctness checking."""
    cfgs = [(2, 1), (1, 4), (1, 3), (1, 1)]
    h = x
    for (w, b), (s, p) in zip(params, cfgs):
        h = jax.lax.conv_general_dilated(
            h, w, window_strides=(s, s), padding=[(p, p), (p, p)],
            dimension_numbers=("NCHW", "OIHW", "NCHW"),
            precision=jax.lax.Precision.HIGHEST) + b[None, :, None, None]
    feat3 = h[:, :3]
    splits = tuple(feat3[:, i:i + 1] for i in range(3))
    return jnp.concatenate(splits, axis=1), splits


if __name__ == "__main__":
    key = jax.random.PRNGKey(0)
    key, kx = jax.random.split(key)
    x1 = jax.random.normal(kx, (2, 3, 16, 16), jnp.float32)
    params = init_params(key)

    fwd = jax.jit(model_forward)
    concatenated, splits = fwd(x1, params)
    jax.block_until_ready(concatenated)
    for s in splits:
        jax.block_until_ready(s)

    # Shape chain for 16x16 input: 16 -> 8 (s2,p1) -> 14 (p4) -> 18 (p3) -> 18 (p1)
    assert concatenated.shape == (2, 3, 18, 18), concatenated.shape
    assert all(s.shape == (2, 1, 18, 18) for s in splits)

    ref_cat, ref_splits = reference_forward(x1, params)
    # bf16 weights/MXU operands with f32 accumulation: loosen the f32 tolerance.
    err = float(jnp.max(jnp.abs(concatenated - ref_cat)))
    assert err < 3e-2, err
    for s, rs in zip(splits, ref_splits):
        assert float(jnp.max(jnp.abs(s - rs))) < 3e-2

    print("KERNEL_OK")
</pallas_src>

<mosaic_0001>
module attributes {stable_mosaic.version = 11 : i64} {
  func.func @kernel(%arg0: i32, %arg1: memref<1x64x32xbf16, #tpu.memory_space<vmem>>, %arg2: memref<32x128xbf16, #tpu.memory_space<vmem>>, %arg3: memref<1x128xf32, #tpu.memory_space<vmem>>, %arg4: memref<1152x128xbf16, #tpu.memory_space<vmem>>, %arg5: memref<1x128xf32, #tpu.memory_space<vmem>>, %arg6: memref<1152x128xbf16, #tpu.memory_space<vmem>>, %arg7: memref<1x128xf32, #tpu.memory_space<vmem>>, %arg8: memref<72x128xbf16, #tpu.memory_space<vmem>>, %arg9: memref<8x1xf32, #tpu.memory_space<vmem>>, %arg10: memref<1x8x512xf32, #tpu.memory_space<vmem>>, %arg11: memref<264x128xf32, #tpu.memory_space<vmem>>, %arg12: memref<488x128xf32, #tpu.memory_space<vmem>>, %arg13: memref<568x128xf32, #tpu.memory_space<vmem>>) attributes {dimension_semantics = [#tpu.dimension_semantics<arbitrary>], iteration_bounds = array<i64: 2>, scalar_prefetch = 0 : i64, scratch_operands = 3 : i64, tpu.core_type = #tpu.core_type<tc>, window_params = [{transform_indices = @transform_0, window_bounds = array<i64: 1, 64, 32>}, {pipeline_mode = #tpu.pipeline_mode<synchronous>, transform_indices = @transform_1, window_bounds = array<i64: 32, 128>}, {pipeline_mode = #tpu.pipeline_mode<synchronous>, transform_indices = @transform_2, window_bounds = array<i64: 1, 128>}, {pipeline_mode = #tpu.pipeline_mode<synchronous>, transform_indices = @transform_3, window_bounds = array<i64: 1152, 128>}, {pipeline_mode = #tpu.pipeline_mode<synchronous>, transform_indices = @transform_4, window_bounds = array<i64: 1, 128>}, {pipeline_mode = #tpu.pipeline_mode<synchronous>, transform_indices = @transform_5, window_bounds = array<i64: 1152, 128>}, {pipeline_mode = #tpu.pipeline_mode<synchronous>, transform_indices = @transform_6, window_bounds = array<i64: 1, 128>}, {pipeline_mode = #tpu.pipeline_mode<synchronous>, transform_indices = @transform_7, window_bounds = array<i64: 72, 128>}, {pipeline_mode = #tpu.pipeline_mode<synchronous>, transform_indices = @transform_8, window_bounds = array<i64: 8, 1>}, {transform_indices = @transform_9, window_bounds = array<i64: 1, 8, 512>}]} {
    %c0_i32 = arith.constant 0 : i32
    %0 = arith.cmpi eq, %arg0, %c0_i32 : i32
    %1 = arith.extui %0 : i1 to i32
    %c0_i32_0 = arith.constant 0 : i32
    %2 = arith.cmpi ne, %1, %c0_i32_0 : i32
    scf.if %2 {
      %cst_167 = arith.constant 0.000000e+00 : f32
      %234 = vector.broadcast %cst_167 : f32 to vector<264x128xf32>
      %c0_168 = arith.constant 0 : index
      %c0_169 = arith.constant 0 : index
      %235 = vector.load %arg11[%c0_168, %c0_169] : memref<264x128xf32, #tpu.memory_space<vmem>>, vector<264x128xf32>
      tpu.vector_store %arg11[%c0_168, %c0_169], %234 {strides = array<i32>} : memref<264x128xf32, #tpu.memory_space<vmem>>, vector<264x128xf32>,
      %cst_170 = arith.constant 0.000000e+00 : f32
      %236 = vector.broadcast %cst_170 : f32 to vector<488x128xf32>
      %c0_171 = arith.constant 0 : index
      %c0_172 = arith.constant 0 : index
      %237 = vector.load %arg12[%c0_171, %c0_172] : memref<488x128xf32, #tpu.memory_space<vmem>>, vector<488x128xf32>
      tpu.vector_store %arg12[%c0_171, %c0_172], %236 {strides = array<i32>} : memref<488x128xf32, #tpu.memory_space<vmem>>, vector<488x128xf32>,
      %cst_173 = arith.constant 0.000000e+00 : f32
      %238 = vector.broadcast %cst_173 : f32 to vector<568x128xf32>
      %c0_174 = arith.constant 0 : index
      %c0_175 = arith.constant 0 : index
      %239 = vector.load %arg13[%c0_174, %c0_175] : memref<568x128xf32, #tpu.memory_space<vmem>>, vector<568x128xf32>
      tpu.vector_store %arg13[%c0_174, %c0_175], %238 {strides = array<i32>} : memref<568x128xf32, #tpu.memory_space<vmem>>, vector<568x128xf32>,
    } else {
    }
    %c0 = arith.constant 0 : index
    %c0_1 = arith.constant 0 : index
    %c0_2 = arith.constant 0 : index
    %3 = vector.load %arg1[%c0, %c0_1, %c0_2] : memref<1x64x32xbf16, #tpu.memory_space<vmem>>, vector<1x64x32xbf16>
    %4 = vector.shape_cast %3 : vector<1x64x32xbf16> to vector<64x32xbf16>
    %c0_3 = arith.constant 0 : index
    %c0_4 = arith.constant 0 : index
    %5 = vector.load %arg2[%c0_3, %c0_4] : memref<32x128xbf16, #tpu.memory_space<vmem>>, vector<32x128xbf16>
    %cst = arith.constant dense<0.000000e+00> : vector<64x128xf32>
    %6 = tpu.matmul %4, %5, %cst {dimension_numbers = #tpu.dot_dimension_numbers<[1], [0], [0], [1], [0, 0, 1, 1], [], []>} : vector<64x32xbf16>, vector<32x128xbf16>, vector<64x128xf32> -> vector<64x128xf32>
    %c0_5 = arith.constant 0 : index
    %c0_6 = arith.constant 0 : index
    %7 = vector.load %arg3[%c0_5, %c0_6] : memref<1x128xf32, #tpu.memory_space<vmem>>, vector<1x128xf32>
    %8 = vector.broadcast %7 : vector<1x128xf32> to vector<64x128xf32>
    %9 = arith.addf %6, %8 : vector<64x128xf32>
    %10 = vector.extract_strided_slice %9 {offsets = [0, 0], sizes = [8, 128], strides = [1, 1]} : vector<64x128xf32> to vector<8x128xf32>
    %c68 = arith.constant 68 : index
    %c0_7 = arith.constant 0 : index
    %11 = vector.load %arg11[%c68, %c0_7] : memref<264x128xf32, #tpu.memory_space<vmem>>, vector<8x128xf32>
    tpu.vector_store %arg11[%c68, %c0_7], %10 {strides = array<i32>} : memref<264x128xf32, #tpu.memory_space<vmem>>, vector<8x128xf32>,
    %12 = vector.extract_strided_slice %9 {offsets = [8, 0], sizes = [8, 128], strides = [1, 1]} : vector<64x128xf32> to vector<8x128xf32>
    %c84 = arith.constant 84 : index
    %c0_8 = arith.constant 0 : index
    %13 = vector.load %arg11[%c84, %c0_8] : memref<264x128xf32, #tpu.memory_space<vmem>>, vector<8x128xf32>
    tpu.vector_store %arg11[%c84, %c0_8], %12 {strides = array<i32>} : memref<264x128xf32, #tpu.memory_space<vmem>>, vector<8x128xf32>,
    %14 = vector.extract_strided_slice %9 {offsets = [16, 0], sizes = [8, 128], strides = [1, 1]} : vector<64x128xf32> to vector<8x128xf32>
    %c100 = arith.constant 100 : index
    %c0_9 = arith.constant 0 : index
    %15 = vector.load %arg11[%c100, %c0_9] : memref<264x128xf32, #tpu.memory_space<vmem>>, vector<8x128xf32>
    tpu.vector_store %arg11[%c100, %c0_9], %14 {strides = array<i32>} : memref<264x128xf32, #tpu.memory_space<vmem>>, vector<8x128xf32>,
    %16 = vector.extract_strided_slice %9 {offsets = [24, 0], sizes = [8, 128], strides = [1, 1]} : vector<64x128xf32> to vector<8x128xf32>
    %c116 = arith.constant 116 : index
    %c0_10 = arith.constant 0 : index
    %17 = vector.load %arg11[%c116, %c0_10] : memref<264x128xf32, #tpu.memory_space<vmem>>, vector<8x128xf32>
    tpu.vector_store %arg11[%c116, %c0_10], %16 {strides = array<i32>} : memref<264x128xf32, #tpu.memory_space<vmem>>, vector<8x128xf32>,
    %18 = vector.extract_strided_slice %9 {offsets = [32, 0], sizes = [8, 128], strides = [1, 1]} : vector<64x128xf32> to vector<8x128xf32>
    %c132 = arith.constant 132 : index
    %c0_11 = arith.constant 0 : index
    %19 = vector.load %arg11[%c132, %c0_11] : memref<264x128xf32, #tpu.memory_space<vmem>>, vector<8x128xf32>
    tpu.vector_store %arg11[%c132, %c0_11], %18 {strides = array<i32>} : memref<264x128xf32, #tpu.memory_space<vmem>>, vector<8x128xf32>,
    %20 = vector.extract_strided_slice %9 {offsets = [40, 0], sizes = [8, 128], strides = [1, 1]} : vector<64x128xf32> to vector<8x128xf32>
    %c148 = arith.constant 148 : index
    %c0_12 = arith.constant 0 : index
    %21 = vector.load %arg11[%c148, %c0_12] : memref<264x128xf32, #tpu.memory_space<vmem>>, vector<8x128xf32>
    tpu.vector_store %arg11[%c148, %c0_12], %20 {strides = array<i32>} : memref<264x128xf32, #tpu.memory_space<vmem>>, vector<8x128xf32>,
    %22 = vector.extract_strided_slice %9 {offsets = [48, 0], sizes = [8, 128], strides = [1, 1]} : vector<64x128xf32> to vector<8x128xf32>
    %c164 = arith.constant 164 : index
    %c0_13 = arith.constant 0 : index
    %23 = vector.load %arg11[%c164, %c0_13] : memref<264x128xf32, #tpu.memory_space<vmem>>, vector<8x128xf32>
    tpu.vector_store %arg11[%c164, %c0_13], %22 {strides = array<i32>} : memref<264x128xf32, #tpu.memory_space<vmem>>, vector<8x128xf32>,
    %24 = vector.extract_strided_slice %9 {offsets = [56, 0], sizes = [8, 128], strides = [1, 1]} : vector<64x128xf32> to vector<8x128xf32>
    %c180 = arith.constant 180 : index
    %c0_14 = arith.constant 0 : index
    %25 = vector.load %arg11[%c180, %c0_14] : memref<264x128xf32, #tpu.memory_space<vmem>>, vector<8x128xf32>
    tpu.vector_store %arg11[%c180, %c0_14], %24 {strides = array<i32>} : memref<264x128xf32, #tpu.memory_space<vmem>>, vector<8x128xf32>,
    %c0_15 = arith.constant 0 : index
    %c0_16 = arith.constant 0 : index
    %26 = vector.load %arg11[%c0_15, %c0_16] : memref<264x128xf32, #tpu.memory_space<vmem>>, vector<224x128xf32>
    %27 = arith.truncf %26 : vector<224x128xf32> to vector<224x128xbf16>
    %c0_17 = arith.constant 0 : index
    %c0_18 = arith.constant 0 : index
    %28 = vector.load %arg4[%c0_17, %c0_18] : memref<1152x128xbf16, #tpu.memory_space<vmem>>, vector<128x128xbf16>
    %cst_19 = arith.constant dense<0.000000e+00> : vector<224x128xf32>
    %29 = tpu.matmul %27, %28, %cst_19 {dimension_numbers = #tpu.dot_dimension_numbers<[1], [0], [0], [1], [0, 0, 1, 1], [], []>} : vector<224x128xbf16>, vector<128x128xbf16>, vector<224x128xf32> -> vector<224x128xf32>
    %c1 = arith.constant 1 : index
    %c0_20 = arith.constant 0 : index
    %30 = vector.load %arg11[%c1, %c0_20] : memref<264x128xf32, #tpu.memory_space<vmem>>, vector<224x128xf32>
    %31 = arith.truncf %30 : vector<224x128xf32> to vector<224x128xbf16>
    %c128 = arith.constant 128 : index
    %c0_21 = arith.constant 0 : index
    %32 = vector.load %arg4[%c128, %c0_21] : memref<1152x128xbf16, #tpu.memory_space<vmem>>, vector<128x128xbf16>
    %cst_22 = arith.constant dense<0.000000e+00> : vector<224x128xf32>
    %33 = tpu.matmul %31, %32, %cst_22 {dimension_numbers = #tpu.dot_dimension_numbers<[1], [0], [0], [1], [0, 0, 1, 1], [], []>} : vector<224x128xbf16>, vector<128x128xbf16>, vector<224x128xf32> -> vector<224x128xf32>
    %34 = arith.addf %29, %33 : vector<224x128xf32>
    %c2 = arith.constant 2 : index
    %c0_23 = arith.constant 0 : index
    %35 = vector.load %arg11[%c2, %c0_23] : memref<264x128xf32, #tpu.memory_space<vmem>>, vector<224x128xf32>
    %36 = arith.truncf %35 : vector<224x128xf32> to vector<224x128xbf16>
    %c256 = arith.constant 256 : index
    %c0_24 = arith.constant 0 : index
    %37 = vector.load %arg4[%c256, %c0_24] : memref<1152x128xbf16, #tpu.memory_space<vmem>>, vector<128x128xbf16>
    %cst_25 = arith.constant dense<0.000000e+00> : vector<224x128xf32>
    %38 = tpu.matmul %36, %37, %cst_25 {dimension_numbers = #tpu.dot_dimension_numbers<[1], [0], [0], [1], [0, 0, 1, 1], [], []>} : vector<224x128xbf16>, vector<128x128xbf16>, vector<224x128xf32> -> vector<224x128xf32>
    %39 = arith.addf %34, %38 : vector<224x128xf32>
    %c16 = arith.constant 16 : index
    %c0_26 = arith.constant 0 : index
    %40 = vector.load %arg11[%c16, %c0_26] : memref<264x128xf32, #tpu.memory_space<vmem>>, vector<224x128xf32>
    %41 = arith.truncf %40 : vector<224x128xf32> to vector<224x128xbf16>
    %c384 = arith.constant 384 : index
    %c0_27 = arith.constant 0 : index
    %42 = vector.load %arg4[%c384, %c0_27] : memref<1152x128xbf16, #tpu.memory_space<vmem>>, vector<128x128xbf16>
    %cst_28 = arith.constant dense<0.000000e+00> : vector<224x128xf32>
    %43 = tpu.matmul %41, %42, %cst_28 {dimension_numbers = #tpu.dot_dimension_numbers<[1], [0], [0], [1], [0, 0, 1, 1], [], []>} : vector<224x128xbf16>, vector<128x128xbf16>, vector<224x128xf32> -> vector<224x128xf32>
    %44 = arith.addf %39, %43 : vector<224x128xf32>
    %c17 = arith.constant 17 : index
    %c0_29 = arith.constant 0 : index
    %45 = vector.load %arg11[%c17, %c0_29] : memref<264x128xf32, #tpu.memory_space<vmem>>, vector<224x128xf32>
    %46 = arith.truncf %45 : vector<224x128xf32> to vector<224x128xbf16>
    %c512 = arith.constant 512 : index
    %c0_30 = arith.constant 0 : index
    %47 = vector.load %arg4[%c512, %c0_30] : memref<1152x128xbf16, #tpu.memory_space<vmem>>, vector<128x128xbf16>
    %cst_31 = arith.constant dense<0.000000e+00> : vector<224x128xf32>
    %48 = tpu.matmul %46, %47, %cst_31 {dimension_numbers = #tpu.dot_dimension_numbers<[1], [0], [0], [1], [0, 0, 1, 1], [], []>} : vector<224x128xbf16>, vector<128x128xbf16>, vector<224x128xf32> -> vector<224x128xf32>
    %49 = arith.addf %44, %48 : vector<224x128xf32>
    %c18 = arith.constant 18 : index
    %c0_32 = arith.constant 0 : index
    %50 = vector.load %arg11[%c18, %c0_32] : memref<264x128xf32, #tpu.memory_space<vmem>>, vector<224x128xf32>
    %51 = arith.truncf %50 : vector<224x128xf32> to vector<224x128xbf16>
    %c640 = arith.constant 640 : index
    %c0_33 = arith.constant 0 : index
    %52 = vector.load %arg4[%c640, %c0_33] : memref<1152x128xbf16, #tpu.memory_space<vmem>>, vector<128x128xbf16>
    %cst_34 = arith.constant dense<0.000000e+00> : vector<224x128xf32>
    %53 = tpu.matmul %51, %52, %cst_34 {dimension_numbers = #tpu.dot_dimension_numbers<[1], [0], [0], [1], [0, 0, 1, 1], [], []>} : vector<224x128xbf16>, vector<128x128xbf16>, vector<224x128xf32> -> vector<224x128xf32>
    %54 = arith.addf %49, %53 : vector<224x128xf32>
    %c32 = arith.constant 32 : index
    %c0_35 = arith.constant 0 : index
    %55 = vector.load %arg11[%c32, %c0_35] : memref<264x128xf32, #tpu.memory_space<vmem>>, vector<224x128xf32>
    %56 = arith.truncf %55 : vector<224x128xf32> to vector<224x128xbf16>
    %c768 = arith.constant 768 : index
    %c0_36 = arith.constant 0 : index
    %57 = vector.load %arg4[%c768, %c0_36] : memref<1152x128xbf16, #tpu.memory_space<vmem>>, vector<128x128xbf16>
    %cst_37 = arith.constant dense<0.000000e+00> : vector<224x128xf32>
    %58 = tpu.matmul %56, %57, %cst_37 {dimension_numbers = #tpu.dot_dimension_numbers<[1], [0], [0], [1], [0, 0, 1, 1], [], []>} : vector<224x128xbf16>, vector<128x128xbf16>, vector<224x128xf32> -> vector<224x128xf32>
    %59 = arith.addf %54, %58 : vector<224x128xf32>
    %c33 = arith.constant 33 : index
    %c0_38 = arith.constant 0 : index
    %60 = vector.load %arg11[%c33, %c0_38] : memref<264x128xf32, #tpu.memory_space<vmem>>, vector<224x128xf32>
    %61 = arith.truncf %60 : vector<224x128xf32> to vector<224x128xbf16>
    %c896 = arith.constant 896 : index
    %c0_39 = arith.constant 0 : index
    %62 = vector.load %arg4[%c896, %c0_39] : memref<1152x128xbf16, #tpu.memory_space<vmem>>, vector<128x128xbf16>
    %cst_40 = arith.constant dense<0.000000e+00> : vector<224x128xf32>
    %63 = tpu.matmul %61, %62, %cst_40 {dimension_numbers = #tpu.dot_dimension_numbers<[1], [0], [0], [1], [0, 0, 1, 1], [], []>} : vector<224x128xbf16>, vector<128x128xbf16>, vector<224x128xf32> -> vector<224x128xf32>
    %64 = arith.addf %59, %63 : vector<224x128xf32>
    %c34 = arith.constant 34 : index
    %c0_41 = arith.constant 0 : index
    %65 = vector.load %arg11[%c34, %c0_41] : memref<264x128xf32, #tpu.memory_space<vmem>>, vector<224x128xf32>
    %66 = arith.truncf %65 : vector<224x128xf32> to vector<224x128xbf16>
    %c1024 = arith.constant 1024 : index
    %c0_42 = arith.constant 0 : index
    %67 = vector.load %arg4[%c1024, %c0_42] : memref<1152x128xbf16, #tpu.memory_space<vmem>>, vector<128x128xbf16>
    %cst_43 = arith.constant dense<0.000000e+00> : vector<224x128xf32>
    %68 = tpu.matmul %66, %67, %cst_43 {dimension_numbers = #tpu.dot_dimension_numbers<[1], [0], [0], [1], [0, 0, 1, 1], [], []>} : vector<224x128xbf16>, vector<128x128xbf16>, vector<224x128xf32> -> vector<224x128xf32>
    %69 = arith.addf %64, %68 : vector<224x128xf32>
    %c0_44 = arith.constant 0 : index
    %c0_45 = arith.constant 0 : index
    %70 = vector.load %arg5[%c0_44, %c0_45] : memref<1x128xf32, #tpu.memory_space<vmem>>, vector<1x128xf32>
    %71 = vector.broadcast %70 : vector<1x128xf32> to vector<224x128xf32>
    %72 = arith.addf %69, %71 : vector<224x128xf32>
    %73 = vector.extract_strided_slice %72 {offsets = [0, 0], sizes = [14, 128], strides = [1, 1]} : vector<224x128xf32> to vector<14x128xf32>
    %c75 = arith.constant 75 : index
    %c0_46 = arith.constant 0 : index
    %74 = vector.load %arg12[%c75, %c0_46] : memref<488x128xf32, #tpu.memory_space<vmem>>, vector<14x128xf32>
    tpu.vector_store %arg12[%c75, %c0_46], %73 {strides = array<i32>} : memref<488x128xf32, #tpu.memory_space<vmem>>, vector<14x128xf32>,
    %75 = vector.extract_strided_slice %72 {offsets = [16, 0], sizes = [14, 128], strides = [1, 1]} : vector<224x128xf32> to vector<14x128xf32>
    %c99 = arith.constant 99 : index
    %c0_47 = arith.constant 0 : index
    %76 = vector.load %arg12[%c99, %c0_47] : memref<488x128xf32, #tpu.memory_space<vmem>>, vector<14x128xf32>
    tpu.vector_store %arg12[%c99, %c0_47], %75 {strides = array<i32>} : memref<488x128xf32, #tpu.memory_space<vmem>>, vector<14x128xf32>,
    %77 = vector.extract_strided_slice %72 {offsets = [32, 0], sizes = [14, 128], strides = [1, 1]} : vector<224x128xf32> to vector<14x128xf32>
    %c123 = arith.constant 123 : index
    %c0_48 = arith.constant 0 : index
    %78 = vector.load %arg12[%c123, %c0_48] : memref<488x128xf32, #tpu.memory_space<vmem>>, vector<14x128xf32>
    tpu.vector_store %arg12[%c123, %c0_48], %77 {strides = array<i32>} : memref<488x128xf32, #tpu.memory_space<vmem>>, vector<14x128xf32>,
    %79 = vector.extract_strided_slice %72 {offsets = [48, 0], sizes = [14, 128], strides = [1, 1]} : vector<224x128xf32> to vector<14x128xf32>
    %c147 = arith.constant 147 : index
    %c0_49 = arith.constant 0 : index
    %80 = vector.load %arg12[%c147, %c0_49] : memref<488x128xf32, #tpu.memory_space<vmem>>, vector<14x128xf32>
    tpu.vector_store %arg12[%c147, %c0_49], %79 {strides = array<i32>} : memref<488x128xf32, #tpu.memory_space<vmem>>, vector<14x128xf32>,
    %81 = vector.extract_strided_slice %72 {offsets = [64, 0], sizes = [14, 128], strides = [1, 1]} : vector<224x128xf32> to vector<14x128xf32>
    %c171 = arith.constant 171 : index
    %c0_50 = arith.constant 0 : index
    %82 = vector.load %arg12[%c171, %c0_50] : memref<488x128xf32, #tpu.memory_space<vmem>>, vector<14x128xf32>
    tpu.vector_store %arg12[%c171, %c0_50], %81 {strides = array<i32>} : memref<488x128xf32, #tpu.memory_space<vmem>>, vector<14x128xf32>,
    %83 = vector.extract_strided_slice %72 {offsets = [80, 0], sizes = [14, 128], strides = [1, 1]} : vector<224x128xf32> to vector<14x128xf32>
    %c195 = arith.constant 195 : index
    %c0_51 = arith.constant 0 : index
    %84 = vector.load %arg12[%c195, %c0_51] : memref<488x128xf32, #tpu.memory_space<vmem>>, vector<14x128xf32>
    tpu.vector_store %arg12[%c195, %c0_51], %83 {strides = array<i32>} : memref<488x128xf32, #tpu.memory_space<vmem>>, vector<14x128xf32>,
    %85 = vector.extract_strided_slice %72 {offsets = [96, 0], sizes = [14, 128], strides = [1, 1]} : vector<224x128xf32> to vector<14x128xf32>
    %c219 = arith.constant 219 : index
    %c0_52 = arith.constant 0 : index
    %86 = vector.load %arg12[%c219, %c0_52] : memref<488x128xf32, #tpu.memory_space<vmem>>, vector<14x128xf32>
    tpu.vector_store %arg12[%c219, %c0_52], %85 {strides = array<i32>} : memref<488x128xf32, #tpu.memory_space<vmem>>, vector<14x128xf32>,
    %87 = vector.extract_strided_slice %72 {offsets = [112, 0], sizes = [14, 128], strides = [1, 1]} : vector<224x128xf32> to vector<14x128xf32>
    %c243 = arith.constant 243 : index
    %c0_53 = arith.constant 0 : index
    %88 = vector.load %arg12[%c243, %c0_53] : memref<488x128xf32, #tpu.memory_space<vmem>>, vector<14x128xf32>
    tpu.vector_store %arg12[%c243, %c0_53], %87 {strides = array<i32>} : memref<488x128xf32, #tpu.memory_space<vmem>>, vector<14x128xf32>,
    %89 = vector.extract_strided_slice %72 {offsets = [128, 0], sizes = [14, 128], strides = [1, 1]} : vector<224x128xf32> to vector<14x128xf32>
    %c267 = arith.constant 267 : index
    %c0_54 = arith.constant 0 : index
    %90 = vector.load %arg12[%c267, %c0_54] : memref<488x128xf32, #tpu.memory_space<vmem>>, vector<14x128xf32>
    tpu.vector_store %arg12[%c267, %c0_54], %89 {strides = array<i32>} : memref<488x128xf32, #tpu.memory_space<vmem>>, vector<14x128xf32>,
    %91 = vector.extract_strided_slice %72 {offsets = [144, 0], sizes = [14, 128], strides = [1, 1]} : vector<224x128xf32> to vector<14x128xf32>
    %c291 = arith.constant 291 : index
    %c0_55 = arith.constant 0 : index
    %92 = vector.load %arg12[%c291, %c0_55] : memref<488x128xf32, #tpu.memory_space<vmem>>, vector<14x128xf32>
    tpu.vector_store %arg12[%c291, %c0_55], %91 {strides = array<i32>} : memref<488x128xf32, #tpu.memory_space<vmem>>, vector<14x128xf32>,
    %93 = vector.extract_strided_slice %72 {offsets = [160, 0], sizes = [14, 128], strides = [1, 1]} : vector<224x128xf32> to vector<14x128xf32>
    %c315 = arith.constant 315 : index
    %c0_56 = arith.constant 0 : index
    %94 = vector.load %arg12[%c315, %c0_56] : memref<488x128xf32, #tpu.memory_space<vmem>>, vector<14x128xf32>
    tpu.vector_store %arg12[%c315, %c0_56], %93 {strides = array<i32>} : memref<488x128xf32, #tpu.memory_space<vmem>>, vector<14x128xf32>,
    %95 = vector.extract_strided_slice %72 {offsets = [176, 0], sizes = [14, 128], strides = [1, 1]} : vector<224x128xf32> to vector<14x128xf32>
    %c339 = arith.constant 339 : index
    %c0_57 = arith.constant 0 : index
    %96 = vector.load %arg12[%c339, %c0_57] : memref<488x128xf32, #tpu.memory_space<vmem>>, vector<14x128xf32>
    tpu.vector_store %arg12[%c339, %c0_57], %95 {strides = array<i32>} : memref<488x128xf32, #tpu.memory_space<vmem>>, vector<14x128xf32>,
    %97 = vector.extract_strided_slice %72 {offsets = [192, 0], sizes = [14, 128], strides = [1, 1]} : vector<224x128xf32> to vector<14x128xf32>
    %c363 = arith.constant 363 : index
    %c0_58 = arith.constant 0 : index
    %98 = vector.load %arg12[%c363, %c0_58] : memref<488x128xf32, #tpu.memory_space<vmem>>, vector<14x128xf32>
    tpu.vector_store %arg12[%c363, %c0_58], %97 {strides = array<i32>} : memref<488x128xf32, #tpu.memory_space<vmem>>, vector<14x128xf32>,
    %99 = vector.extract_strided_slice %72 {offsets = [208, 0], sizes = [14, 128], strides = [1, 1]} : vector<224x128xf32> to vector<14x128xf32>
    %c387 = arith.constant 387 : index
    %c0_59 = arith.constant 0 : index
    %100 = vector.load %arg12[%c387, %c0_59] : memref<488x128xf32, #tpu.memory_space<vmem>>, vector<14x128xf32>
    tpu.vector_store %arg12[%c387, %c0_59], %99 {strides = array<i32>} : memref<488x128xf32, #tpu.memory_space<vmem>>, vector<14x128xf32>,
    %c0_60 = arith.constant 0 : index
    %c0_61 = arith.constant 0 : index
    %101 = vector.load %arg12[%c0_60, %c0_61] : memref<488x128xf32, #tpu.memory_space<vmem>>, vector<432x128xf32>
    %102 = arith.truncf %101 : vector<432x128xf32> to vector<432x128xbf16>
    %c0_62 = arith.constant 0 : index
    %c0_63 = arith.constant 0 : index
    %103 = vector.load %arg6[%c0_62, %c0_63] : memref<1152x128xbf16, #tpu.memory_space<vmem>>, vector<128x128xbf16>
    %cst_64 = arith.constant dense<0.000000e+00> : vector<432x128xf32>
    %104 = tpu.matmul %102, %103, %cst_64 {dimension_numbers = #tpu.dot_dimension_numbers<[1], [0], [0], [1], [0, 0, 1, 1], [], []>} : vector<432x128xbf16>, vector<128x128xbf16>, vector<432x128xf32> -> vector<432x128xf32>
    %c1_65 = arith.constant 1 : index
    %c0_66 = arith.constant 0 : index
    %105 = vector.load %arg12[%c1_65, %c0_66] : memref<488x128xf32, #tpu.memory_space<vmem>>, vector<432x128xf32>
    %106 = arith.truncf %105 : vector<432x128xf32> to vector<432x128xbf16>
    %c128_67 = arith.constant 128 : index
    %c0_68 = arith.constant 0 : index
    %107 = vector.load %arg6[%c128_67, %c0_68] : memref<1152x128xbf16, #tpu.memory_space<vmem>>, vector<128x128xbf16>
    %cst_69 = arith.constant dense<0.000000e+00> : vector<432x128xf32>
    %108 = tpu.matmul %106, %107, %cst_69 {dimension_numbers = #tpu.dot_dimension_numbers<[1], [0], [0], [1], [0, 0, 1, 1], [], []>} : vector<432x128xbf16>, vector<128x128xbf16>, vector<432x128xf32> -> vector<432x128xf32>
    %109 = arith.addf %104, %108 : vector<432x128xf32>
    %c2_70 = arith.constant 2 : index
    %c0_71 = arith.constant 0 : index
    %110 = vector.load %arg12[%c2_70, %c0_71] : memref<488x128xf32, #tpu.memory_space<vmem>>, vector<432x128xf32>
    %111 = arith.truncf %110 : vector<432x128xf32> to vector<432x128xbf16>
    %c256_72 = arith.constant 256 : index
    %c0_73 = arith.constant 0 : index
    %112 = vector.load %arg6[%c256_72, %c0_73] : memref<1152x128xbf16, #tpu.memory_space<vmem>>, vector<128x128xbf16>
    %cst_74 = arith.constant dense<0.000000e+00> : vector<432x128xf32>
    %113 = tpu.matmul %111, %112, %cst_74 {dimension_numbers = #tpu.dot_dimension_numbers<[1], [0], [0], [1], [0, 0, 1, 1], [], []>} : vector<432x128xbf16>, vector<128x128xbf16>, vector<432x128xf32> -> vector<432x128xf32>
    %114 = arith.addf %109, %113 : vector<432x128xf32>
    %c24 = arith.constant 24 : index
    %c0_75 = arith.constant 0 : index
    %115 = vector.load %arg12[%c24, %c0_75] : memref<488x128xf32, #tpu.memory_space<vmem>>, vector<432x128xf32>
    %116 = arith.truncf %115 : vector<432x128xf32> to vector<432x128xbf16>
    %c384_76 = arith.constant 384 : index
    %c0_77 = arith.constant 0 : index
    %117 = vector.load %arg6[%c384_76, %c0_77] : memref<1152x128xbf16, #tpu.memory_space<vmem>>, vector<128x128xbf16>
    %cst_78 = arith.constant dense<0.000000e+00> : vector<432x128xf32>
    %118 = tpu.matmul %116, %117, %cst_78 {dimension_numbers = #tpu.dot_dimension_numbers<[1], [0], [0], [1], [0, 0, 1, 1], [], []>} : vector<432x128xbf16>, vector<128x128xbf16>, vector<432x128xf32> -> vector<432x128xf32>
    %119 = arith.addf %114, %118 : vector<432x128xf32>
    %c25 = arith.constant 25 : index
    %c0_79 = arith.constant 0 : index
    %120 = vector.load %arg12[%c25, %c0_79] : memref<488x128xf32, #tpu.memory_space<vmem>>, vector<432x128xf32>
    %121 = arith.truncf %120 : vector<432x128xf32> to vector<432x128xbf16>
    %c512_80 = arith.constant 512 : index
    %c0_81 = arith.constant 0 : index
    %122 = vector.load %arg6[%c512_80, %c0_81] : memref<1152x128xbf16, #tpu.memory_space<vmem>>, vector<128x128xbf16>
    %cst_82 = arith.constant dense<0.000000e+00> : vector<432x128xf32>
    %123 = tpu.matmul %121, %122, %cst_82 {dimension_numbers = #tpu.dot_dimension_numbers<[1], [0], [0], [1], [0, 0, 1, 1], [], []>} : vector<432x128xbf16>, vector<128x128xbf16>, vector<432x128xf32> -> vector<432x128xf32>
    %124 = arith.addf %119, %123 : vector<432x128xf32>
    %c26 = arith.constant 26 : index
    %c0_83 = arith.constant 0 : index
    %125 = vector.load %arg12[%c26, %c0_83] : memref<488x128xf32, #tpu.memory_space<vmem>>, vector<432x128xf32>
    %126 = arith.truncf %125 : vector<432x128xf32> to vector<432x128xbf16>
    %c640_84 = arith.constant 640 : index
    %c0_85 = arith.constant 0 : index
    %127 = vector.load %arg6[%c640_84, %c0_85] : memref<1152x128xbf16, #tpu.memory_space<vmem>>, vector<128x128xbf16>
    %cst_86 = arith.constant dense<0.000000e+00> : vector<432x128xf32>
    %128 = tpu.matmul %126, %127, %cst_86 {dimension_numbers = #tpu.dot_dimension_numbers<[1], [0], [0], [1], [0, 0, 1, 1], [], []>} : vector<432x128xbf16>, vector<128x128xbf16>, vector<432x128xf32> -> vector<432x128xf32>
    %129 = arith.addf %124, %128 : vector<432x128xf32>
    %c48 = arith.constant 48 : index
    %c0_87 = arith.constant 0 : index
    %130 = vector.load %arg12[%c48, %c0_87] : memref<488x128xf32, #tpu.memory_space<vmem>>, vector<432x128xf32>
    %131 = arith.truncf %130 : vector<432x128xf32> to vector<432x128xbf16>
    %c768_88 = arith.constant 768 : index
    %c0_89 = arith.constant 0 : index
    %132 = vector.load %arg6[%c768_88, %c0_89] : memref<1152x128xbf16, #tpu.memory_space<vmem>>, vector<128x128xbf16>
    %cst_90 = arith.constant dense<0.000000e+00> : vector<432x128xf32>
    %133 = tpu.matmul %131, %132, %cst_90 {dimension_numbers = #tpu.dot_dimension_numbers<[1], [0], [0], [1], [0, 0, 1, 1], [], []>} : vector<432x128xbf16>, vector<128x128xbf16>, vector<432x128xf32> -> vector<432x128xf32>
    %134 = arith.addf %129, %133 : vector<432x128xf32>
    %c49 = arith.constant 49 : index
    %c0_91 = arith.constant 0 : index
    %135 = vector.load %arg12[%c49, %c0_91] : memref<488x128xf32, #tpu.memory_space<vmem>>, vector<432x128xf32>
    %136 = arith.truncf %135 : vector<432x128xf32> to vector<432x128xbf16>
    %c896_92 = arith.constant 896 : index
    %c0_93 = arith.constant 0 : index
    %137 = vector.load %arg6[%c896_92, %c0_93] : memref<1152x128xbf16, #tpu.memory_space<vmem>>, vector<128x128xbf16>
    %cst_94 = arith.constant dense<0.000000e+00> : vector<432x128xf32>
    %138 = tpu.matmul %136, %137, %cst_94 {dimension_numbers = #tpu.dot_dimension_numbers<[1], [0], [0], [1], [0, 0, 1, 1], [], []>} : vector<432x128xbf16>, vector<128x128xbf16>, vector<432x128xf32> -> vector<432x128xf32>
    %139 = arith.addf %134, %138 : vector<432x128xf32>
    %c50 = arith.constant 50 : index
    %c0_95 = arith.constant 0 : index
    %140 = vector.load %arg12[%c50, %c0_95] : memref<488x128xf32, #tpu.memory_space<vmem>>, vector<432x128xf32>
    %141 = arith.truncf %140 : vector<432x128xf32> to vector<432x128xbf16>
    %c1024_96 = arith.constant 1024 : index
    %c0_97 = arith.constant 0 : index
    %142 = vector.load %arg6[%c1024_96, %c0_97] : memref<1152x128xbf16, #tpu.memory_space<vmem>>, vector<128x128xbf16>
    %cst_98 = arith.constant dense<0.000000e+00> : vector<432x128xf32>
    %143 = tpu.matmul %141, %142, %cst_98 {dimension_numbers = #tpu.dot_dimension_numbers<[1], [0], [0], [1], [0, 0, 1, 1], [], []>} : vector<432x128xbf16>, vector<128x128xbf16>, vector<432x128xf32> -> vector<432x128xf32>
    %144 = arith.addf %139, %143 : vector<432x128xf32>
    %c0_99 = arith.constant 0 : index
    %c0_100 = arith.constant 0 : index
    %145 = vector.load %arg7[%c0_99, %c0_100] : memref<1x128xf32, #tpu.memory_space<vmem>>, vector<1x128xf32>
    %146 = vector.broadcast %145 : vector<1x128xf32> to vector<432x128xf32>
    %147 = arith.addf %144, %146 : vector<432x128xf32>
    %148 = vector.extract_strided_slice %147 {offsets = [0, 0], sizes = [18, 128], strides = [1, 1]} : vector<432x128xf32> to vector<18x128xf32>
    %c25_101 = arith.constant 25 : index
    %c0_102 = arith.constant 0 : index
    %149 = vector.load %arg13[%c25_101, %c0_102] : memref<568x128xf32, #tpu.memory_space<vmem>>, vector<18x128xf32>
    tpu.vector_store %arg13[%c25_101, %c0_102], %148 {strides = array<i32>} : memref<568x128xf32, #tpu.memory_space<vmem>>, vector<18x128xf32>,
    %150 = vector.extract_strided_slice %147 {offsets = [24, 0], sizes = [18, 128], strides = [1, 1]} : vector<432x128xf32> to vector<18x128xf32>
    %c49_103 = arith.constant 49 : index
    %c0_104 = arith.constant 0 : index
    %151 = vector.load %arg13[%c49_103, %c0_104] : memref<568x128xf32, #tpu.memory_space<vmem>>, vector<18x128xf32>
    tpu.vector_store %arg13[%c49_103, %c0_104], %150 {strides = array<i32>} : memref<568x128xf32, #tpu.memory_space<vmem>>, vector<18x128xf32>,
    %152 = vector.extract_strided_slice %147 {offsets = [48, 0], sizes = [18, 128], strides = [1, 1]} : vector<432x128xf32> to vector<18x128xf32>
    %c73 = arith.constant 73 : index
    %c0_105 = arith.constant 0 : index
    %153 = vector.load %arg13[%c73, %c0_105] : memref<568x128xf32, #tpu.memory_space<vmem>>, vector<18x128xf32>
    tpu.vector_store %arg13[%c73, %c0_105], %152 {strides = array<i32>} : memref<568x128xf32, #tpu.memory_space<vmem>>, vector<18x128xf32>,
    %154 = vector.extract_strided_slice %147 {offsets = [72, 0], sizes = [18, 128], strides = [1, 1]} : vector<432x128xf32> to vector<18x128xf32>
    %c97 = arith.constant 97 : index
    %c0_106 = arith.constant 0 : index
    %155 = vector.load %arg13[%c97, %c0_106] : memref<568x128xf32, #tpu.memory_space<vmem>>, vector<18x128xf32>
    tpu.vector_store %arg13[%c97, %c0_106], %154 {strides = array<i32>} : memref<568x128xf32, #tpu.memory_space<vmem>>, vector<18x128xf32>,
    %156 = vector.extract_strided_slice %147 {offsets = [96, 0], sizes = [18, 128], strides = [1, 1]} : vector<432x128xf32> to vector<18x128xf32>
    %c121 = arith.constant 121 : index
    %c0_107 = arith.constant 0 : index
    %157 = vector.load %arg13[%c121, %c0_107] : memref<568x128xf32, #tpu.memory_space<vmem>>, vector<18x128xf32>
    tpu.vector_store %arg13[%c121, %c0_107], %156 {strides = array<i32>} : memref<568x128xf32, #tpu.memory_space<vmem>>, vector<18x128xf32>,
    %158 = vector.extract_strided_slice %147 {offsets = [120, 0], sizes = [18, 128], strides = [1, 1]} : vector<432x128xf32> to vector<18x128xf32>
    %c145 = arith.constant 145 : index
    %c0_108 = arith.constant 0 : index
    %159 = vector.load %arg13[%c145, %c0_108] : memref<568x128xf32, #tpu.memory_space<vmem>>, vector<18x128xf32>
    tpu.vector_store %arg13[%c145, %c0_108], %158 {strides = array<i32>} : memref<568x128xf32, #tpu.memory_space<vmem>>, vector<18x128xf32>,
    %160 = vector.extract_strided_slice %147 {offsets = [144, 0], sizes = [18, 128], strides = [1, 1]} : vector<432x128xf32> to vector<18x128xf32>
    %c169 = arith.constant 169 : index
    %c0_109 = arith.constant 0 : index
    %161 = vector.load %arg13[%c169, %c0_109] : memref<568x128xf32, #tpu.memory_space<vmem>>, vector<18x128xf32>
    tpu.vector_store %arg13[%c169, %c0_109], %160 {strides = array<i32>} : memref<568x128xf32, #tpu.memory_space<vmem>>, vector<18x128xf32>,
    %162 = vector.extract_strided_slice %147 {offsets = [168, 0], sizes = [18, 128], strides = [1, 1]} : vector<432x128xf32> to vector<18x128xf32>
    %c193 = arith.constant 193 : index
    %c0_110 = arith.constant 0 : index
    %163 = vector.load %arg13[%c193, %c0_110] : memref<568x128xf32, #tpu.memory_space<vmem>>, vector<18x128xf32>
    tpu.vector_store %arg13[%c193, %c0_110], %162 {strides = array<i32>} : memref<568x128xf32, #tpu.memory_space<vmem>>, vector<18x128xf32>,
    %164 = vector.extract_strided_slice %147 {offsets = [192, 0], sizes = [18, 128], strides = [1, 1]} : vector<432x128xf32> to vector<18x128xf32>
    %c217 = arith.constant 217 : index
    %c0_111 = arith.constant 0 : index
    %165 = vector.load %arg13[%c217, %c0_111] : memref<568x128xf32, #tpu.memory_space<vmem>>, vector<18x128xf32>
    tpu.vector_store %arg13[%c217, %c0_111], %164 {strides = array<i32>} : memref<568x128xf32, #tpu.memory_space<vmem>>, vector<18x128xf32>,
    %166 = vector.extract_strided_slice %147 {offsets = [216, 0], sizes = [18, 128], strides = [1, 1]} : vector<432x128xf32> to vector<18x128xf32>
    %c241 = arith.constant 241 : index
    %c0_112 = arith.constant 0 : index
    %167 = vector.load %arg13[%c241, %c0_112] : memref<568x128xf32, #tpu.memory_space<vmem>>, vector<18x128xf32>
    tpu.vector_store %arg13[%c241, %c0_112], %166 {strides = array<i32>} : memref<568x128xf32, #tpu.memory_space<vmem>>, vector<18x128xf32>,
    %168 = vector.extract_strided_slice %147 {offsets = [240, 0], sizes = [18, 128], strides = [1, 1]} : vector<432x128xf32> to vector<18x128xf32>
    %c265 = arith.constant 265 : index
    %c0_113 = arith.constant 0 : index
    %169 = vector.load %arg13[%c265, %c0_113] : memref<568x128xf32, #tpu.memory_space<vmem>>, vector<18x128xf32>
    tpu.vector_store %arg13[%c265, %c0_113], %168 {strides = array<i32>} : memref<568x128xf32, #tpu.memory_space<vmem>>, vector<18x128xf32>,
    %170 = vector.extract_strided_slice %147 {offsets = [264, 0], sizes = [18, 128], strides = [1, 1]} : vector<432x128xf32> to vector<18x128xf32>
    %c289 = arith.constant 289 : index
    %c0_114 = arith.constant 0 : index
    %171 = vector.load %arg13[%c289, %c0_114] : memref<568x128xf32, #tpu.memory_space<vmem>>, vector<18x128xf32>
    tpu.vector_store %arg13[%c289, %c0_114], %170 {strides = array<i32>} : memref<568x128xf32, #tpu.memory_space<vmem>>, vector<18x128xf32>,
    %172 = vector.extract_strided_slice %147 {offsets = [288, 0], sizes = [18, 128], strides = [1, 1]} : vector<432x128xf32> to vector<18x128xf32>
    %c313 = arith.constant 313 : index
    %c0_115 = arith.constant 0 : index
    %173 = vector.load %arg13[%c313, %c0_115] : memref<568x128xf32, #tpu.memory_space<vmem>>, vector<18x128xf32>
    tpu.vector_store %arg13[%c313, %c0_115], %172 {strides = array<i32>} : memref<568x128xf32, #tpu.memory_space<vmem>>, vector<18x128xf32>,
    %174 = vector.extract_strided_slice %147 {offsets = [312, 0], sizes = [18, 128], strides = [1, 1]} : vector<432x128xf32> to vector<18x128xf32>
    %c337 = arith.constant 337 : index
    %c0_116 = arith.constant 0 : index
    %175 = vector.load %arg13[%c337, %c0_116] : memref<568x128xf32, #tpu.memory_space<vmem>>, vector<18x128xf32>
    tpu.vector_store %arg13[%c337, %c0_116], %174 {strides = array<i32>} : memref<568x128xf32, #tpu.memory_space<vmem>>, vector<18x128xf32>,
    %176 = vector.extract_strided_slice %147 {offsets = [336, 0], sizes = [18, 128], strides = [1, 1]} : vector<432x128xf32> to vector<18x128xf32>
    %c361 = arith.constant 361 : index
    %c0_117 = arith.constant 0 : index
    %177 = vector.load %arg13[%c361, %c0_117] : memref<568x128xf32, #tpu.memory_space<vmem>>, vector<18x128xf32>
    tpu.vector_store %arg13[%c361, %c0_117], %176 {strides = array<i32>} : memref<568x128xf32, #tpu.memory_space<vmem>>, vector<18x128xf32>,
    %178 = vector.extract_strided_slice %147 {offsets = [360, 0], sizes = [18, 128], strides = [1, 1]} : vector<432x128xf32> to vector<18x128xf32>
    %c385 = arith.constant 385 : index
    %c0_118 = arith.constant 0 : index
    %179 = vector.load %arg13[%c385, %c0_118] : memref<568x128xf32, #tpu.memory_space<vmem>>, vector<18x128xf32>
    tpu.vector_store %arg13[%c385, %c0_118], %178 {strides = array<i32>} : memref<568x128xf32, #tpu.memory_space<vmem>>, vector<18x128xf32>,
    %180 = vector.extract_strided_slice %147 {offsets = [384, 0], sizes = [18, 128], strides = [1, 1]} : vector<432x128xf32> to vector<18x128xf32>
    %c409 = arith.constant 409 : index
    %c0_119 = arith.constant 0 : index
    %181 = vector.load %arg13[%c409, %c0_119] : memref<568x128xf32, #tpu.memory_space<vmem>>, vector<18x128xf32>
    tpu.vector_store %arg13[%c409, %c0_119], %180 {strides = array<i32>} : memref<568x128xf32, #tpu.memory_space<vmem>>, vector<18x128xf32>,
    %182 = vector.extract_strided_slice %147 {offsets = [408, 0], sizes = [18, 128], strides = [1, 1]} : vector<432x128xf32> to vector<18x128xf32>
    %c433 = arith.constant 433 : index
    %c0_120 = arith.constant 0 : index
    %183 = vector.load %arg13[%c433, %c0_120] : memref<568x128xf32, #tpu.memory_space<vmem>>, vector<18x128xf32>
    tpu.vector_store %arg13[%c433, %c0_120], %182 {strides = array<i32>} : memref<568x128xf32, #tpu.memory_space<vmem>>, vector<18x128xf32>,
    %c0_121 = arith.constant 0 : index
    %c0_122 = arith.constant 0 : index
    %184 = vector.load %arg13[%c0_121, %c0_122] : memref<568x128xf32, #tpu.memory_space<vmem>>, vector<512x128xf32>
    %185 = arith.truncf %184 : vector<512x128xf32> to vector<512x128xbf16>
    %c0_123 = arith.constant 0 : index
    %c0_124 = arith.constant 0 : index
    %186 = vector.load %arg8[%c0_123, %c0_124] : memref<72x128xbf16, #tpu.memory_space<vmem>>, vector<8x128xbf16>
    %cst_125 = arith.constant dense<0.000000e+00> : vector<8x512xf32>
    %187 = tpu.matmul %186, %185, %cst_125 {dimension_numbers = #tpu.dot_dimension_numbers<[1], [1], [0], [0], [0, 0, 1, 0], [], []>} : vector<8x128xbf16>, vector<512x128xbf16>, vector<8x512xf32> -> vector<8x512xf32>
    %c1_126 = arith.constant 1 : index
    %c0_127 = arith.constant 0 : index
    %188 = vector.load %arg13[%c1_126, %c0_127] : memref<568x128xf32, #tpu.memory_space<vmem>>, vector<512x128xf32>
    %189 = arith.truncf %188 : vector<512x128xf32> to vector<512x128xbf16>
    %c8 = arith.constant 8 : index
    %c0_128 = arith.constant 0 : index
    %190 = vector.load %arg8[%c8, %c0_128] : memref<72x128xbf16, #tpu.memory_space<vmem>>, vector<8x128xbf16>
    %cst_129 = arith.constant dense<0.000000e+00> : vector<8x512xf32>
    %191 = tpu.matmul %190, %189, %cst_129 {dimension_numbers = #tpu.dot_dimension_numbers<[1], [1], [0], [0], [0, 0, 1, 0], [], []>} : vector<8x128xbf16>, vector<512x128xbf16>, vector<8x512xf32> -> vector<8x512xf32>
    %192 = arith.addf %187, %191 : vector<8x512xf32>
    %c2_130 = arith.constant 2 : index
    %c0_131 = arith.constant 0 : index
    %193 = vector.load %arg13[%c2_130, %c0_131] : memref<568x128xf32, #tpu.memory_space<vmem>>, vector<512x128xf32>
    %194 = arith.truncf %193 : vector<512x128xf32> to vector<512x128xbf16>
    %c16_132 = arith.constant 16 : index
    %c0_133 = arith.constant 0 : index
    %195 = vector.load %arg8[%c16_132, %c0_133] : memref<72x128xbf16, #tpu.memory_space<vmem>>, vector<8x128xbf16>
    %cst_134 = arith.constant dense<0.000000e+00> : vector<8x512xf32>
    %196 = tpu.matmul %195, %194, %cst_134 {dimension_numbers = #tpu.dot_dimension_numbers<[1], [1], [0], [0], [0, 0, 1, 0], [], []>} : vector<8x128xbf16>, vector<512x128xbf16>, vector<8x512xf32> -> vector<8x512xf32>
    %197 = arith.addf %192, %196 : vector<8x512xf32>
    %c24_135 = arith.constant 24 : index
    %c0_136 = arith.constant 0 : index
    %198 = vector.load %arg13[%c24_135, %c0_136] : memref<568x128xf32, #tpu.memory_space<vmem>>, vector<512x128xf32>
    %199 = arith.truncf %198 : vector<512x128xf32> to vector<512x128xbf16>
    %c24_137 = arith.constant 24 : index
    %c0_138 = arith.constant 0 : index
    %200 = vector.load %arg8[%c24_137, %c0_138] : memref<72x128xbf16, #tpu.memory_space<vmem>>, vector<8x128xbf16>
    %cst_139 = arith.constant dense<0.000000e+00> : vector<8x512xf32>
    %201 = tpu.matmul %200, %199, %cst_139 {dimension_numbers = #tpu.dot_dimension_numbers<[1], [1], [0], [0], [0, 0, 1, 0], [], []>} : vector<8x128xbf16>, vector<512x128xbf16>, vector<8x512xf32> -> vector<8x512xf32>
    %202 = arith.addf %197, %201 : vector<8x512xf32>
    %c25_140 = arith.constant 25 : index
    %c0_141 = arith.constant 0 : index
    %203 = vector.load %arg13[%c25_140, %c0_141] : memref<568x128xf32, #tpu.memory_space<vmem>>, vector<512x128xf32>
    %204 = arith.truncf %203 : vector<512x128xf32> to vector<512x128xbf16>
    %c32_142 = arith.constant 32 : index
    %c0_143 = arith.constant 0 : index
    %205 = vector.load %arg8[%c32_142, %c0_143] : memref<72x128xbf16, #tpu.memory_space<vmem>>, vector<8x128xbf16>
    %cst_144 = arith.constant dense<0.000000e+00> : vector<8x512xf32>
    %206 = tpu.matmul %205, %204, %cst_144 {dimension_numbers = #tpu.dot_dimension_numbers<[1], [1], [0], [0], [0, 0, 1, 0], [], []>} : vector<8x128xbf16>, vector<512x128xbf16>, vector<8x512xf32> -> vector<8x512xf32>
    %207 = arith.addf %202, %206 : vector<8x512xf32>
    %c26_145 = arith.constant 26 : index
    %c0_146 = arith.constant 0 : index
    %208 = vector.load %arg13[%c26_145, %c0_146] : memref<568x128xf32, #tpu.memory_space<vmem>>, vector<512x128xf32>
    %209 = arith.truncf %208 : vector<512x128xf32> to vector<512x128xbf16>
    %c40 = arith.constant 40 : index
    %c0_147 = arith.constant 0 : index
    %210 = vector.load %arg8[%c40, %c0_147] : memref<72x128xbf16, #tpu.memory_space<vmem>>, vector<8x128xbf16>
    %cst_148 = arith.constant dense<0.000000e+00> : vector<8x512xf32>
    %211 = tpu.matmul %210, %209, %cst_148 {dimension_numbers = #tpu.dot_dimension_numbers<[1], [1], [0], [0], [0, 0, 1, 0], [], []>} : vector<8x128xbf16>, vector<512x128xbf16>, vector<8x512xf32> -> vector<8x512xf32>
    %212 = arith.addf %207, %211 : vector<8x512xf32>
    %c48_149 = arith.constant 48 : index
    %c0_150 = arith.constant 0 : index
    %213 = vector.load %arg13[%c48_149, %c0_150] : memref<568x128xf32, #tpu.memory_space<vmem>>, vector<512x128xf32>
    %214 = arith.truncf %213 : vector<512x128xf32> to vector<512x128xbf16>
    %c48_151 = arith.constant 48 : index
    %c0_152 = arith.constant 0 : index
    %215 = vector.load %arg8[%c48_151, %c0_152] : memref<72x128xbf16, #tpu.memory_space<vmem>>, vector<8x128xbf16>
    %cst_153 = arith.constant dense<0.000000e+00> : vector<8x512xf32>
    %216 = tpu.matmul %215, %214, %cst_153 {dimension_numbers = #tpu.dot_dimension_numbers<[1], [1], [0], [0], [0, 0, 1, 0], [], []>} : vector<8x128xbf16>, vector<512x128xbf16>, vector<8x512xf32> -> vector<8x512xf32>
    %217 = arith.addf %212, %216 : vector<8x512xf32>
    %c49_154 = arith.constant 49 : index
    %c0_155 = arith.constant 0 : index
    %218 = vector.load %arg13[%c49_154, %c0_155] : memref<568x128xf32, #tpu.memory_space<vmem>>, vector<512x128xf32>
    %219 = arith.truncf %218 : vector<512x128xf32> to vector<512x128xbf16>
    %c56 = arith.constant 56 : index
    %c0_156 = arith.constant 0 : index
    %220 = vector.load %arg8[%c56, %c0_156] : memref<72x128xbf16, #tpu.memory_space<vmem>>, vector<8x128xbf16>
    %cst_157 = arith.constant dense<0.000000e+00> : vector<8x512xf32>
    %221 = tpu.matmul %220, %219, %cst_157 {dimension_numbers = #tpu.dot_dimension_numbers<[1], [1], [0], [0], [0, 0, 1, 0], [], []>} : vector<8x128xbf16>, vector<512x128xbf16>, vector<8x512xf32> -> vector<8x512xf32>
    %222 = arith.addf %217, %221 : vector<8x512xf32>
    %c50_158 = arith.constant 50 : index
    %c0_159 = arith.constant 0 : index
    %223 = vector.load %arg13[%c50_158, %c0_159] : memref<568x128xf32, #tpu.memory_space<vmem>>, vector<512x128xf32>
    %224 = arith.truncf %223 : vector<512x128xf32> to vector<512x128xbf16>
    %c64 = arith.constant 64 : index
    %c0_160 = arith.constant 0 : index
    %225 = vector.load %arg8[%c64, %c0_160] : memref<72x128xbf16, #tpu.memory_space<vmem>>, vector<8x128xbf16>
    %cst_161 = arith.constant dense<0.000000e+00> : vector<8x512xf32>
    %226 = tpu.matmul %225, %224, %cst_161 {dimension_numbers = #tpu.dot_dimension_numbers<[1], [1], [0], [0], [0, 0, 1, 0], [], []>} : vector<8x128xbf16>, vector<512x128xbf16>, vector<8x512xf32> -> vector<8x512xf32>
    %227 = arith.addf %222, %226 : vector<8x512xf32>
    %c0_162 = arith.constant 0 : index
    %c0_163 = arith.constant 0 : index
    %228 = vector.load %arg9[%c0_162, %c0_163] : memref<8x1xf32, #tpu.memory_space<vmem>>, vector<8x1xf32>
    %229 = vector.broadcast %228 : vector<8x1xf32> to vector<8x512xf32>
    %230 = arith.addf %227, %229 : vector<8x512xf32>
    %c0_164 = arith.constant 0 : index
    %c0_165 = arith.constant 0 : index
    %c0_166 = arith.constant 0 : index
    %231 = vector.load %arg10[%c0_164, %c0_165, %c0_166] : memref<1x8x512xf32, #tpu.memory_space<vmem>>, vector<1x8x512xf32>
    %232 = vector.shape_cast %231 : vector<1x8x512xf32> to vector<8x512xf32>
    %233 = vector.shape_cast %230 : vector<8x512xf32> to vector<1x8x512xf32>
    tpu.vector_store %arg10[%c0_164, %c0_165, %c0_166], %233 {strides = array<i32>} : memref<1x8x512xf32, #tpu.memory_space<vmem>>, vector<1x8x512xf32>,
    return
  }
  func.func @transform_0(%arg0: i32) -> (i32, i32, i32) {
    %c0_i32 = arith.constant 0 : i32
    %c0_i32_0 = arith.constant 0 : i32
    %c0_i32_1 = arith.constant 0 : i32
    return %arg0, %c0_i32, %c0_i32_0 : i32, i32, i32
  }
  func.func @transform_1(%arg0: i32) -> (i32, i32) {
    %c0_i32 = arith.constant 0 : i32
    %c0_i32_0 = arith.constant 0 : i32
    %c0_i32_1 = arith.constant 0 : i32
    return %c0_i32, %c0_i32_0 : i32, i32
  }
  func.func @transform_2(%arg0: i32) -> (i32, i32) {
    %c0_i32 = arith.constant 0 : i32
    %c0_i32_0 = arith.constant 0 : i32
    %c0_i32_1 = arith.constant 0 : i32
    return %c0_i32, %c0_i32_0 : i32, i32
  }
  func.func @transform_3(%arg0: i32) -> (i32, i32) {
    %c0_i32 = arith.constant 0 : i32
    %c0_i32_0 = arith.constant 0 : i32
    %c0_i32_1 = arith.constant 0 : i32
    return %c0_i32, %c0_i32_0 : i32, i32
  }
  func.func @transform_4(%arg0: i32) -> (i32, i32) {
    %c0_i32 = arith.constant 0 : i32
    %c0_i32_0 = arith.constant 0 : i32
    %c0_i32_1 = arith.constant 0 : i32
    return %c0_i32, %c0_i32_0 : i32, i32
  }
  func.func @transform_5(%arg0: i32) -> (i32, i32) {
    %c0_i32 = arith.constant 0 : i32
    %c0_i32_0 = arith.constant 0 : i32
    %c0_i32_1 = arith.constant 0 : i32
    return %c0_i32, %c0_i32_0 : i32, i32
  }
  func.func @transform_6(%arg0: i32) -> (i32, i32) {
    %c0_i32 = arith.constant 0 : i32
    %c0_i32_0 = arith.constant 0 : i32
    %c0_i32_1 = arith.constant 0 : i32
    return %c0_i32, %c0_i32_0 : i32, i32
  }
  func.func @transform_7(%arg0: i32) -> (i32, i32) {
    %c0_i32 = arith.constant 0 : i32
    %c0_i32_0 = arith.constant 0 : i32
    %c0_i32_1 = arith.constant 0 : i32
    return %c0_i32, %c0_i32_0 : i32, i32
  }
  func.func @transform_8(%arg0: i32) -> (i32, i32) {
    %c0_i32 = arith.constant 0 : i32
    %c0_i32_0 = arith.constant 0 : i32
    %c0_i32_1 = arith.constant 0 : i32
    return %c0_i32, %c0_i32_0 : i32, i32
  }
  func.func @transform_9(%arg0: i32) -> (i32, i32, i32) {
    %c0_i32 = arith.constant 0 : i32
    %c0_i32_0 = arith.constant 0 : i32
    %c0_i32_1 = arith.constant 0 : i32
    return %arg0, %c0_i32, %c0_i32_0 : i32, i32, i32
  }
}

</mosaic_0001>

<llo_original>
// kernel: model_forward.1
$region0: #{model_forward.1}
  #allocation0 [shape = 'u32[]', space=smem, size = 0x4, offset = 0x4, fixed_abs, tag = 'smem constant byte address 0x4 - core index']
  #allocation1 [shape = 'u32[144,128]{1,0:T(1,128)}', space=vmem, size = 0x12000, scoped, tag = 'internal scratch']
  #allocation2 [shape = 'f32[264,128]{1,0:T(8,128)}', space=vmem, size = 0x21000, scoped, tag = 'scratch operand']
  #allocation3 [shape = 'f32[488,128]{1,0:T(8,128)}', space=vmem, size = 0x3d000, scoped, tag = 'scratch operand']
  #allocation4 [shape = 'f32[568,128]{1,0:T(8,128)}', space=vmem, size = 0x47000, scoped, tag = 'scratch operand']
  %s0 = inlined_call_operand.vmem [shape: bf16[2,64,32], index: 0, kind: input, shape index: {}]
  %s1 = inlined_call_operand.vmem [shape: bf16[32,128], index: 1, kind: input, shape index: {}]
  %s2 = inlined_call_operand.vmem [shape: f32[1,128], index: 2, kind: input, shape index: {}]
  %s3 = inlined_call_operand.vmem [shape: bf16[1152,128], index: 3, kind: input, shape index: {}]
  %s4 = inlined_call_operand.vmem [shape: f32[1,128], index: 4, kind: input, shape index: {}]
  %s5 = inlined_call_operand.vmem [shape: bf16[1152,128], index: 5, kind: input, shape index: {}]
  %s6 = inlined_call_operand.vmem [shape: f32[1,128], index: 6, kind: input, shape index: {}]
  %s7 = inlined_call_operand.vmem [shape: bf16[72,128], index: 7, kind: input, shape index: {}]
  %s8 = inlined_call_operand.vmem [shape: f32[8,1], index: 8, kind: input, shape index: {}]
  %s9 = inlined_call_operand.vmem [shape: f32[2,8,512], index: 9, kind: output, shape index: {}]
  %s10 = sld [smem:[#allocation0]]
  $region73: #{model_forward.1} parent=0
    _
  %s12 = ssub.s32 1, %s10
  %s13 = scalar_select 0, %s12, %s10
  loop: start=0, step=1, limit=4
  $region2: #{model_forward.1} parent=0 // loop_pre_header
    _
  $region3: #{model_forward.1} parent=0 // loop_header
    %s15 = sphi 0, %s19
    %p16 = scmp.ge.s32.totalorder %s15, 4
    %s25 = sphi 0, %s27
    %s28 = sphi 0, %s25
    %s29 = sphi 0, %s28
    %s45 = sphi 0, %s29
    %s49 = sphi 0, %s49
    %s51 = sphi 0, %s49
    %s52 = sphi 0, %s51
    %s66 = sphi 0, %s52
    %s70 = sphi 0, %s70
    %s72 = sphi 0, %s70
    %s73 = sphi 0, %s72
    %s87 = sphi 0, %s73
    %s91 = sphi 0, %s91
    %s93 = sphi 0, %s91
    %s94 = sphi 0, %s93
    %s108 = sphi 0, %s94
    %s112 = sphi 0, %s112
    %s114 = sphi 0, %s112
    %s115 = sphi 0, %s114
    %s129 = sphi 0, %s115
    %s133 = sphi 0, %s133
    %s135 = sphi 0, %s133
    %s136 = sphi 0, %s135
    %s150 = sphi 0, %s136
    %s154 = sphi 0, %s154
    %s156 = sphi 0, %s154
    %s157 = sphi 0, %s156
    %s171 = sphi 0, %s157
    %s175 = sphi 0, %s175
    %s177 = sphi 0, %s175
    %s178 = sphi 0, %s177
    %s192 = sphi 0, %s178
    %s196 = sphi 0, %s196
    %s198 = sphi 0, %s196
    %s199 = sphi 0, %s198
    %s213 = sphi 0, %s199
    %s219 = sphi 0, %s221
    %s222 = sphi 0, %s219
    %s223 = sphi 0, %s222
    %s239 = sphi 0, %s223
  $region4: #{model_forward.1} parent=0 // loop_header_branch
    %18 = sbr.rel (%p16) target = $region8
  $region5: #{model_forward.1} parent=0 // loop_body
    %s20 = ssub.s32 %s15, 1
    %s21 = ssub.s32 %s15, 2
    %s22 = sadd.s32 %s15, 1
    %s23 = ssub.s32 %s15, %s22
    %p24 = scmp.eq.s32.totalorder %s23, 0
    %s26 = sadd.s32 %s25, 1
    %s27 = scalar_select %p24, %s25, %s26
    %p30 = pneg %p24
    %p31 = scmp.eq.s32.totalorder %s15, 1
    %p32 = por %p30, %p31
    %p33 = scmp.ne.s32.totalorder %s25, %s28
    %p34 = scmp.eq.s32.totalorder %s15, 0
    %p35 = por %p33, %p34
    %p36 = scmp.ne.s32.totalorder %s25, %s28
    %p37 = scmp.eq.s32.totalorder %s20, 1
    %p38 = por %p36, %p37
    %p39 = scmp.ne.s32.totalorder %s28, %s29
    %p40 = scmp.eq.s32.totalorder %s20, 0
    %p41 = por %p39, %p40
    %p42 = scmp.ne.s32.totalorder %s28, %s29
    %p43 = scmp.eq.s32.totalorder %s21, 1
    %p44 = por %p42, %p43
    %p46 = scmp.ne.s32.totalorder %s29, %s45
    %p47 = scmp.eq.s32.totalorder %s21, 0
    %p48 = por %p46, %p47
    %s50 = sadd.s32 %s49, 1
    %p53 = scmp.eq.s32.totalorder %s15, 1
    %p54 = scmp.ne.s32.totalorder %s49, %s51
    %p55 = scmp.eq.s32.totalorder %s15, 0
    %p56 = por %p54, %p55
    %p57 = scmp.ne.s32.totalorder %s49, %s51
    %p58 = scmp.eq.s32.totalorder %s20, 1
    %p59 = por %p57, %p58
    %p60 = scmp.ne.s32.totalorder %s51, %s52
    %p61 = scmp.eq.s32.totalorder %s20, 0
    %p62 = por %p60, %p61
    %p63 = scmp.ne.s32.totalorder %s51, %s52
    %p64 = scmp.eq.s32.totalorder %s21, 1
    %p65 = por %p63, %p64
    %p67 = scmp.ne.s32.totalorder %s52, %s66
    %p68 = scmp.eq.s32.totalorder %s21, 0
    %p69 = por %p67, %p68
    %s71 = sadd.s32 %s70, 1
    %p74 = scmp.eq.s32.totalorder %s15, 1
    %p75 = scmp.ne.s32.totalorder %s70, %s72
    %p76 = scmp.eq.s32.totalorder %s15, 0
    %p77 = por %p75, %p76
    %p78 = scmp.ne.s32.totalorder %s70, %s72
    %p79 = scmp.eq.s32.totalorder %s20, 1
    %p80 = por %p78, %p79
    %p81 = scmp.ne.s32.totalorder %s72, %s73
    %p82 = scmp.eq.s32.totalorder %s20, 0
    %p83 = por %p81, %p82
    %p84 = scmp.ne.s32.totalorder %s72, %s73
    %p85 = scmp.eq.s32.totalorder %s21, 1
    %p86 = por %p84, %p85
    %p88 = scmp.ne.s32.totalorder %s73, %s87
    %p89 = scmp.eq.s32.totalorder %s21, 0
    %p90 = por %p88, %p89
    %s92 = sadd.s32 %s91, 1
    %p95 = scmp.eq.s32.totalorder %s15, 1
    %p96 = scmp.ne.s32.totalorder %s91, %s93
    %p97 = scmp.eq.s32.totalorder %s15, 0
    %p98 = por %p96, %p97
    %p99 = scmp.ne.s32.totalorder %s91, %s93
    %p100 = scmp.eq.s32.totalorder %s20, 1
    %p101 = por %p99, %p100
    %p102 = scmp.ne.s32.totalorder %s93, %s94
    %p103 = scmp.eq.s32.totalorder %s20, 0
    %p104 = por %p102, %p103
    %p105 = scmp.ne.s32.totalorder %s93, %s94
    %p106 = scmp.eq.s32.totalorder %s21, 1
    %p107 = por %p105, %p106
    %p109 = scmp.ne.s32.totalorder %s94, %s108
    %p110 = scmp.eq.s32.totalorder %s21, 0
    %p111 = por %p109, %p110
    %s113 = sadd.s32 %s112, 1
    %p116 = scmp.eq.s32.totalorder %s15, 1
    %p117 = scmp.ne.s32.totalorder %s112, %s114
    %p118 = scmp.eq.s32.totalorder %s15, 0
    %p119 = por %p117, %p118
    %p120 = scmp.ne.s32.totalorder %s112, %s114
    %p121 = scmp.eq.s32.totalorder %s20, 1
    %p122 = por %p120, %p121
    %p123 = scmp.ne.s32.totalorder %s114, %s115
    %p124 = scmp.eq.s32.totalorder %s20, 0
    %p125 = por %p123, %p124
    %p126 = scmp.ne.s32.totalorder %s114, %s115
    %p127 = scmp.eq.s32.totalorder %s21, 1
    %p128 = por %p126, %p127
    %p130 = scmp.ne.s32.totalorder %s115, %s129
    %p131 = scmp.eq.s32.totalorder %s21, 0
    %p132 = por %p130, %p131
    %s134 = sadd.s32 %s133, 1
    %p137 = scmp.eq.s32.totalorder %s15, 1
    %p138 = scmp.ne.s32.totalorder %s133, %s135
    %p139 = scmp.eq.s32.totalorder %s15, 0
    %p140 = por %p138, %p139
    %p141 = scmp.ne.s32.totalorder %s133, %s135
    %p142 = scmp.eq.s32.totalorder %s20, 1
    %p143 = por %p141, %p142
    %p144 = scmp.ne.s32.totalorder %s135, %s136
    %p145 = scmp.eq.s32.totalorder %s20, 0
    %p146 = por %p144, %p145
    %p147 = scmp.ne.s32.totalorder %s135, %s136
    %p148 = scmp.eq.s32.totalorder %s21, 1
    %p149 = por %p147, %p148
    %p151 = scmp.ne.s32.totalorder %s136, %s150
    %p152 = scmp.eq.s32.totalorder %s21, 0
    %p153 = por %p151, %p152
    %s155 = sadd.s32 %s154, 1
    %p158 = scmp.eq.s32.totalorder %s15, 1
    %p159 = scmp.ne.s32.totalorder %s154, %s156
    %p160 = scmp.eq.s32.totalorder %s15, 0
    %p161 = por %p159, %p160
    %p162 = scmp.ne.s32.totalorder %s154, %s156
    %p163 = scmp.eq.s32.totalorder %s20, 1
    %p164 = por %p162, %p163
    %p165 = scmp.ne.s32.totalorder %s156, %s157
    %p166 = scmp.eq.s32.totalorder %s20, 0
    %p167 = por %p165, %p166
    %p168 = scmp.ne.s32.totalorder %s156, %s157
    %p169 = scmp.eq.s32.totalorder %s21, 1
    %p170 = por %p168, %p169
    %p172 = scmp.ne.s32.totalorder %s157, %s171
    %p173 = scmp.eq.s32.totalorder %s21, 0
    %p174 = por %p172, %p173
    %s176 = sadd.s32 %s175, 1
    %p179 = scmp.eq.s32.totalorder %s15, 1
    %p180 = scmp.ne.s32.totalorder %s175, %s177
    %p181 = scmp.eq.s32.totalorder %s15, 0
    %p182 = por %p180, %p181
    %p183 = scmp.ne.s32.totalorder %s175, %s177
    %p184 = scmp.eq.s32.totalorder %s20, 1
    %p185 = por %p183, %p184
    %p186 = scmp.ne.s32.totalorder %s177, %s178
    %p187 = scmp.eq.s32.totalorder %s20, 0
    %p188 = por %p186, %p187
    %p189 = scmp.ne.s32.totalorder %s177, %s178
    %p190 = scmp.eq.s32.totalorder %s21, 1
    %p191 = por %p189, %p190
    %p193 = scmp.ne.s32.totalorder %s178, %s192
    %p194 = scmp.eq.s32.totalorder %s21, 0
    %p195 = por %p193, %p194
    %s197 = sadd.s32 %s196, 1
    %p200 = scmp.eq.s32.totalorder %s15, 1
    %p201 = scmp.ne.s32.totalorder %s196, %s198
    %p202 = scmp.eq.s32.totalorder %s15, 0
    %p203 = por %p201, %p202
    %p204 = scmp.ne.s32.totalorder %s196, %s198
    %p205 = scmp.eq.s32.totalorder %s20, 1
    %p206 = por %p204, %p205
    %p207 = scmp.ne.s32.totalorder %s198, %s199
    %p208 = scmp.eq.s32.totalorder %s20, 0
    %p209 = por %p207, %p208
    %p210 = scmp.ne.s32.totalorder %s198, %s199
    %p211 = scmp.eq.s32.totalorder %s21, 1
    %p212 = por %p210, %p211
    %p214 = scmp.ne.s32.totalorder %s199, %s213
    %p215 = scmp.eq.s32.totalorder %s21, 0
    %p216 = por %p214, %p215
    %s217 = ssub.s32 %s15, %s22
    %p218 = scmp.eq.s32.totalorder %s217, 0
    %s220 = sadd.s32 %s219, 1
    %s221 = scalar_select %p218, %s219, %s220
    %p224 = pneg %p218
    %p225 = scmp.eq.s32.totalorder %s15, 1
    %p226 = por %p224, %p225
    %p227 = scmp.ne.s32.totalorder %s219, %s222
    %p228 = scmp.eq.s32.totalorder %s15, 0
    %p229 = por %p227, %p228
    %p230 = scmp.ne.s32.totalorder %s219, %s222
    %p231 = scmp.eq.s32.totalorder %s20, 1
    %p232 = por %p230, %p231
    %p233 = scmp.ne.s32.totalorder %s222, %s223
    %p234 = scmp.eq.s32.totalorder %s20, 0
    %p235 = por %p233, %p234
    %p236 = scmp.ne.s32.totalorder %s222, %s223
    %p237 = scmp.eq.s32.totalorder %s21, 1
    %p238 = por %p236, %p237
    %p240 = scmp.ne.s32.totalorder %s223, %s239
    %p241 = scmp.eq.s32.totalorder %s21, 0
    %p242 = por %p240, %p241
    %p243 = scmp.le.s32.totalorder 1, %s15
    %p244 = scmp.lt.s32.totalorder %s15, 3
    %p245 = pnand %p243, %p244
    %p246 = pneg %p245
    // Predicated region
    $region9: #{model_forward.1} parent=5 // pred_check
      _
    $region10: #{model_forward.1} parent=5 // pred_check_branch
      %248 = sbr.rel (%p245) target = $region12
    $region11: #{model_forward.1} parent=5 // pred_region
      %s249 = ssub.s32 %s15, 1
      // Predicated region
      $region13: #{model_forward.1} parent=11 // pred_check
        %p250 = pneg %p62
      $region14: #{model_forward.1} parent=11 // pred_check_branch
        %252 = sbr.rel (%p250) target = $region16
      $region15: #{model_forward.1} parent=11 // pred_region
        _
      $region16: #{model_forward.1} parent=11 // pred_fallthru
        _
      // Predicated region
      $region17: #{model_forward.1} parent=11 // pred_check
        %p253 = pneg %p83
      $region18: #{model_forward.1} parent=11 // pred_check_branch
        %255 = sbr.rel (%p253) target = $region20
      $region19: #{model_forward.1} parent=11 // pred_region
        _
      $region20: #{model_forward.1} parent=11 // pred_fallthru
        _
      // Predicated region
      $region21: #{model_forward.1} parent=11 // pred_check
        %p256 = pneg %p104
      $region22: #{model_forward.1} parent=11 // pred_check_branch
        %258 = sbr.rel (%p256) target = $region24
      $region23: #{model_forward.1} parent=11 // pred_region
        _
      $region24: #{model_forward.1} parent=11 // pred_fallthru
        _
      // Predicated region
      $region25: #{model_forward.1} parent=11 // pred_check
        %p259 = pneg %p125
      $region26: #{model_forward.1} parent=11 // pred_check_branch
        %261 = sbr.rel (%p259) target = $region28
      $region27: #{model_forward.1} parent=11 // pred_region
        _
      $region28: #{model_forward.1} parent=11 // pred_fallthru
        _
      // Predicated region
      $region29: #{model_forward.1} parent=11 // pred_check
        %p262 = pneg %p146
      $region30: #{model_forward.1} parent=11 // pred_check_branch
        %264 = sbr.rel (%p262) target = $region32
      $region31: #{model_forward.1} parent=11 // pred_region
        _
      $region32: #{model_forward.1} parent=11 // pred_fallthru
        _
      // Predicated region
      $region33: #{model_forward.1} parent=11 // pred_check
        %p265 = pneg %p167
      $region34: #{model_forward.1} parent=11 // pred_check_branch
        %267 = sbr.rel (%p265) target = $region36
      $region35: #{model_forward.1} parent=11 // pred_region
        _
      $region36: #{model_forward.1} parent=11 // pred_fallthru
        _
      // Predicated region
      $region37: #{model_forward.1} parent=11 // pred_check
        %p268 = pneg %p188
      $region38: #{model_forward.1} parent=11 // pred_check_branch
        %270 = sbr.rel (%p268) target = $region40
      $region39: #{model_forward.1} parent=11 // pred_region
        _
      $region40: #{model_forward.1} parent=11 // pred_fallthru
        _
      // Predicated region
      $region41: #{model_forward.1} parent=11 // pred_check
        %p271 = pneg %p209
      $region42: #{model_forward.1} parent=11 // pred_check_branch
        %273 = sbr.rel (%p271) target = $region44
      $region43: #{model_forward.1} parent=11 // pred_region
        _
      $region44: #{model_forward.1} parent=11 // pred_fallthru
        _
    $region12: #{model_forward.1} parent=5 // pred_fallthru
      _
    %p274 = scmp.lt.s32.totalorder %s15, 2
    // Predicated region
    $region45: #{model_forward.1} parent=5 // pred_check
      %p275 = pneg %p274
    $region46: #{model_forward.1} parent=5 // pred_check_branch
      %277 = sbr.rel (%p275) target = $region48
    $region47: #{model_forward.1} parent=5 // pred_region
      // Predicated region
      $region49: #{model_forward.1} parent=47 // pred_check
        %p278 = pneg %p35
      $region50: #{model_forward.1} parent=47 // pred_check_branch
        %280 = sbr.rel (%p278) target = $region52
      $region51: #{model_forward.1} parent=47 // pred_region
        %p281 = scmp.lt.s32.totalorder %s15, 1
        %s282 = scalar_select %p281, %s15, 1
        %s283 = smul.addr %s282, 8
        %s284 = smul.addr %s283, 4
        %s285 = scalar_lea.vmem %s0, %s284
      $region52: #{model_forward.1} parent=47 // pred_fallthru
        _
    $region48: #{model_forward.1} parent=5 // pred_fallthru
      _
    %p286 = scmp.le.s32.totalorder 1, %s15
    %p287 = scmp.lt.s32.totalorder %s15, 3
    %p288 = pnand %p286, %p287
    %p289 = pneg %p288
    // Predicated region
    $region53: #{model_forward.1} parent=5 // pred_check
      _
    $region54: #{model_forward.1} parent=5 // pred_check_branch
      %291 = sbr.rel (%p288) target = $region56
    $region55: #{model_forward.1} parent=5 // pred_region
      %s292 = ssub.s32 %s15, 1
      %p293 = scmp.lt.s32.totalorder %s20, 1
      %s294 = scalar_select %p293, %s20, 1
      %s295 = smul.addr %s294, 8
      %s296 = smul.addr %s295, 4
      %s297 = scalar_lea.vmem %s0, %s296
      %p298 = pneg %p41
      %p299 = pneg %p38
      %p300 = pneg %p62
      %p301 = pneg %p59
      %p302 = pneg %p83
      %p303 = pneg %p80
      %p304 = pneg %p104
      %p305 = pneg %p101
      %p306 = pneg %p125
      %p307 = pneg %p122
      %p308 = pneg %p146
      %p309 = pneg %p143
      %p310 = pneg %p167
      %p311 = pneg %p164
      %p312 = pneg %p188
      %p313 = pneg %p185
      %p314 = pneg %p209
      %p315 = pneg %p206
      %p316 = pneg %p235
      %p317 = pneg %p232
      %p318 = scmp.lt.s32.totalorder %s20, 1
      %s319 = scalar_select %p318, %s20, 1
      %s320 = smul.addr %s319, 4
      %s321 = smul.addr %s320, 8
      %s322 = scalar_lea.vmem %s9, %s321
      %p323 = scmp.lt.s32.totalorder %s20, 1
      %s324 = scalar_select %p323, %s20, 1
      %s325 = smul.addr %s324, 8
      %s326 = smul.addr %s325, 4
      %s327 = scalar_lea.vmem %s0, %s326
      %p328 = scmp.lt.s32.totalorder %s20, 1
      %s329 = scalar_select %p328, %s20, 1
      %s330 = smul.addr %s329, 4
      %s331 = smul.addr %s330, 8
      %s332 = scalar_lea.vmem %s9, %s331
      %p334 = scmp.eq.s32.totalorder %s20, 0
      // Predicated region
      $region57: #{model_forward.1} parent=55 // pred_check
        %p335 = pneg %p334
      $region58: #{model_forward.1} parent=55 // pred_check_branch
        %337 = sbr.rel (%p335) target = $region60
      $region59: #{model_forward.1} parent=55 // pred_region
        %338 = vst [vmem:[#allocation2] sm:$0xff] 0.0
        %339 = vst [vmem:[#allocation2 + $0x8] sm:$0xff] 0.0
        %340 = vst [vmem:[#allocation2 + $0x10] sm:$0xff] 0.0
        %341 = vst [vmem:[#allocation2 + $0x18] sm:$0xff] 0.0
        %342 = vst [vmem:[#allocation2 + $0x20] sm:$0xff] 0.0
        %343 = vst [vmem:[#allocation2 + $0x28] sm:$0xff] 0.0
        %344 = vst [vmem:[#allocation2 + $0x30] sm:$0xff] 0.0
        %345 = vst [vmem:[#allocation2 + $0x38] sm:$0xff] 0.0
        %346 = vst [vmem:[#allocation2 + $0x40] sm:$0xff] 0.0
        %347 = vst [vmem:[#allocation2 + $0x48] sm:$0xff] 0.0
        %348 = vst [vmem:[#allocation2 + $0x50] sm:$0xff] 0.0
        %349 = vst [vmem:[#allocation2 + $0x58] sm:$0xff] 0.0
        %350 = vst [vmem:[#allocation2 + $0x60] sm:$0xff] 0.0
        %351 = vst [vmem:[#allocation2 + $0x68] sm:$0xff] 0.0
        %352 = vst [vmem:[#allocation2 + $0x70] sm:$0xff] 0.0
        %353 = vst [vmem:[#allocation2 + $0x78] sm:$0xff] 0.0
        %354 = vst [vmem:[#allocation2 + $0x80] sm:$0xff] 0.0
        %355 = vst [vmem:[#allocation2 + $0x88] sm:$0xff] 0.0
        %356 = vst [vmem:[#allocation2 + $0x90] sm:$0xff] 0.0
        %357 = vst [vmem:[#allocation2 + $0x98] sm:$0xff] 0.0
        %358 = vst [vmem:[#allocation2 + $0xa0] sm:$0xff] 0.0
        %359 = vst [vmem:[#allocation2 + $0xa8] sm:$0xff] 0.0
        %360 = vst [vmem:[#allocation2 + $0xb0] sm:$0xff] 0.0
        %361 = vst [vmem:[#allocation2 + $0xb8] sm:$0xff] 0.0
        %362 = vst [vmem:[#allocation2 + $0xc0] sm:$0xff] 0.0
        %363 = vst [vmem:[#allocation2 + $0xc8] sm:$0xff] 0.0
        %364 = vst [vmem:[#allocation2 + $0xd0] sm:$0xff] 0.0
        %365 = vst [vmem:[#allocation2 + $0xd8] sm:$0xff] 0.0
        %366 = vst [vmem:[#allocation2 + $0xe0] sm:$0xff] 0.0
        %367 = vst [vmem:[#allocation2 + $0xe8] sm:$0xff] 0.0
        %368 = vst [vmem:[#allocation2 + $0xf0] sm:$0xff] 0.0
        %369 = vst [vmem:[#allocation2 + $0xf8] sm:$0xff] 0.0
        %370 = vst [vmem:[#allocation2 + $0x100] sm:$0xff] 0.0
        %371 = vst [vmem:[#allocation3] sm:$0xff] 0.0
        %372 = vst [vmem:[#allocation3 + $0x8] sm:$0xff] 0.0
        %373 = vst [vmem:[#allocation3 + $0x10] sm:$0xff] 0.0
        %374 = vst [vmem:[#allocation3 + $0x18] sm:$0xff] 0.0
        %375 = vst [vmem:[#allocation3 + $0x20] sm:$0xff] 0.0
        %376 = vst [vmem:[#allocation3 + $0x28] sm:$0xff] 0.0
        %377 = vst [vmem:[#allocation3 + $0x30] sm:$0xff] 0.0
        %378 = vst [vmem:[#allocation3 + $0x38] sm:$0xff] 0.0
        %379 = vst [vmem:[#allocation3 + $0x40] sm:$0xff] 0.0
        %380 = vst [vmem:[#allocation3 + $0x48] sm:$0xff] 0.0
        %381 = vst [vmem:[#allocation3 + $0x50] sm:$0xff] 0.0
        %382 = vst [vmem:[#allocation3 + $0x58] sm:$0xff] 0.0
        %383 = vst [vmem:[#allocation3 + $0x60] sm:$0xff] 0.0
        %384 = vst [vmem:[#allocation3 + $0x68] sm:$0xff] 0.0
        %385 = vst [vmem:[#allocation3 + $0x70] sm:$0xff] 0.0
        %386 = vst [vmem:[#allocation3 + $0x78] sm:$0xff] 0.0
        %387 = vst [vmem:[#allocation3 + $0x80] sm:$0xff] 0.0
        %388 = vst [vmem:[#allocation3 + $0x88] sm:$0xff] 0.0
        %389 = vst [vmem:[#allocation3 + $0x90] sm:$0xff] 0.0
        %390 = vst [vmem:[#allocation3 + $0x98] sm:$0xff] 0.0
        %391 = vst [vmem:[#allocation3 + $0xa0] sm:$0xff] 0.0
        %392 = vst [vmem:[#allocation3 + $0xa8] sm:$0xff] 0.0
        %393 = vst [vmem:[#allocation3 + $0xb0] sm:$0xff] 0.0
        %394 = vst [vmem:[#allocation3 + $0xb8] sm:$0xff] 0.0
        %395 = vst [vmem:[#allocation3 + $0xc0] sm:$0xff] 0.0
        %396 = vst [vmem:[#allocation3 + $0xc8] sm:$0xff] 0.0
        %397 = vst [vmem:[#allocation3 + $0xd0] sm:$0xff] 0.0
        %398 = vst [vmem:[#allocation3 + $0xd8] sm:$0xff] 0.0
        %399 = vst [vmem:[#allocation3 + $0xe0] sm:$0xff] 0.0
        %400 = vst [vmem:[#allocation3 + $0xe8] sm:$0xff] 0.0
        %401 = vst [vmem:[#allocation3 + $0xf0] sm:$0xff] 0.0
        %402 = vst [vmem:[#allocation3 + $0xf8] sm:$0xff] 0.0
        %403 = vst [vmem:[#allocation3 + $0x100] sm:$0xff] 0.0
        %404 = vst [vmem:[#allocation3 + $0x108] sm:$0xff] 0.0
        %405 = vst [vmem:[#allocation3 + $0x110] sm:$0xff] 0.0
        %406 = vst [vmem:[#allocation3 + $0x118] sm:$0xff] 0.0
        %407 = vst [vmem:[#allocation3 + $0x120] sm:$0xff] 0.0
        %408 = vst [vmem:[#allocation3 + $0x128] sm:$0xff] 0.0
        %409 = vst [vmem:[#allocation3 + $0x130] sm:$0xff] 0.0
        %410 = vst [vmem:[#allocation3 + $0x138] sm:$0xff] 0.0
        %411 = vst [vmem:[#allocation3 + $0x140] sm:$0xff] 0.0
        %412 = vst [vmem:[#allocation3 + $0x148] sm:$0xff] 0.0
        %413 = vst [vmem:[#allocation3 + $0x150] sm:$0xff] 0.0
        %414 = vst [vmem:[#allocation3 + $0x158] sm:$0xff] 0.0
        %415 = vst [vmem:[#allocation3 + $0x160] sm:$0xff] 0.0
        %416 = vst [vmem:[#allocation3 + $0x168] sm:$0xff] 0.0
        %417 = vst [vmem:[#allocation3 + $0x170] sm:$0xff] 0.0
        %418 = vst [vmem:[#allocation3 + $0x178] sm:$0xff] 0.0
        %419 = vst [vmem:[#allocation3 + $0x180] sm:$0xff] 0.0
        %420 = vst [vmem:[#allocation3 + $0x188] sm:$0xff] 0.0
        %421 = vst [vmem:[#allocation3 + $0x190] sm:$0xff] 0.0
        %422 = vst [vmem:[#allocation3 + $0x198] sm:$0xff] 0.0
        %423 = vst [vmem:[#allocation3 + $0x1a0] sm:$0xff] 0.0
        %424 = vst [vmem:[#allocation3 + $0x1a8] sm:$0xff] 0.0
        %425 = vst [vmem:[#allocation3 + $0x1b0] sm:$0xff] 0.0
        %426 = vst [vmem:[#allocation3 + $0x1b8] sm:$0xff] 0.0
        %427 = vst [vmem:[#allocation3 + $0x1c0] sm:$0xff] 0.0
        %428 = vst [vmem:[#allocation3 + $0x1c8] sm:$0xff] 0.0
        %429 = vst [vmem:[#allocation3 + $0x1d0] sm:$0xff] 0.0
        %430 = vst [vmem:[#allocation3 + $0x1d8] sm:$0xff] 0.0
        %431 = vst [vmem:[#allocation3 + $0x1e0] sm:$0xff] 0.0
        %432 = vst [vmem:[#allocation4] sm:$0xff] 0.0
        %433 = vst [vmem:[#allocation4 + $0x8] sm:$0xff] 0.0
        %434 = vst [vmem:[#allocation4 + $0x10] sm:$0xff] 0.0
        %435 = vst [vmem:[#allocation4 + $0x18] sm:$0xff] 0.0
        %436 = vst [vmem:[#allocation4 + $0x20] sm:$0xff] 0.0
        %437 = vst [vmem:[#allocation4 + $0x28] sm:$0xff] 0.0
        %438 = vst [vmem:[#allocation4 + $0x30] sm:$0xff] 0.0
        %439 = vst [vmem:[#allocation4 + $0x38] sm:$0xff] 0.0
        %440 = vst [vmem:[#allocation4 + $0x40] sm:$0xff] 0.0
        %441 = vst [vmem:[#allocation4 + $0x48] sm:$0xff] 0.0
        %442 = vst [vmem:[#allocation4 + $0x50] sm:$0xff] 0.0
        %443 = vst [vmem:[#allocation4 + $0x58] sm:$0xff] 0.0
        %444 = vst [vmem:[#allocation4 + $0x60] sm:$0xff] 0.0
        %445 = vst [vmem:[#allocation4 + $0x68] sm:$0xff] 0.0
        %446 = vst [vmem:[#allocation4 + $0x70] sm:$0xff] 0.0
        %447 = vst [vmem:[#allocation4 + $0x78] sm:$0xff] 0.0
        %448 = vst [vmem:[#allocation4 + $0x80] sm:$0xff] 0.0
        %449 = vst [vmem:[#allocation4 + $0x88] sm:$0xff] 0.0
        %450 = vst [vmem:[#allocation4 + $0x90] sm:$0xff] 0.0
        %451 = vst [vmem:[#allocation4 + $0x98] sm:$0xff] 0.0
        %452 = vst [vmem:[#allocation4 + $0xa0] sm:$0xff] 0.0
        %453 = vst [vmem:[#allocation4 + $0xa8] sm:$0xff] 0.0
        %454 = vst [vmem:[#allocation4 + $0xb0] sm:$0xff] 0.0
        %455 = vst [vmem:[#allocation4 + $0xb8] sm:$0xff] 0.0
        %456 = vst [vmem:[#allocation4 + $0xc0] sm:$0xff] 0.0
        %457 = vst [vmem:[#allocation4 + $0xc8] sm:$0xff] 0.0
        %458 = vst [vmem:[#allocation4 + $0xd0] sm:$0xff] 0.0
        %459 = vst [vmem:[#allocation4 + $0xd8] sm:$0xff] 0.0
        %460 = vst [vmem:[#allocation4 + $0xe0] sm:$0xff] 0.0
        %461 = vst [vmem:[#allocation4 + $0xe8] sm:$0xff] 0.0
        %462 = vst [vmem:[#allocation4 + $0xf0] sm:$0xff] 0.0
        %463 = vst [vmem:[#allocation4 + $0xf8] sm:$0xff] 0.0
        %464 = vst [vmem:[#allocation4 + $0x100] sm:$0xff] 0.0
        %465 = vst [vmem:[#allocation4 + $0x108] sm:$0xff] 0.0
        %466 = vst [vmem:[#allocation4 + $0x110] sm:$0xff] 0.0
        %467 = vst [vmem:[#allocation4 + $0x118] sm:$0xff] 0.0
        %468 = vst [vmem:[#allocation4 + $0x120] sm:$0xff] 0.0
        %469 = vst [vmem:[#allocation4 + $0x128] sm:$0xff] 0.0
        %470 = vst [vmem:[#allocation4 + $0x130] sm:$0xff] 0.0
        %471 = vst [vmem:[#allocation4 + $0x138] sm:$0xff] 0.0
        %472 = vst [vmem:[#allocation4 + $0x140] sm:$0xff] 0.0
        %473 = vst [vmem:[#allocation4 + $0x148] sm:$0xff] 0.0
        %474 = vst [vmem:[#allocation4 + $0x150] sm:$0xff] 0.0
        %475 = vst [vmem:[#allocation4 + $0x158] sm:$0xff] 0.0
        %476 = vst [vmem:[#allocation4 + $0x160] sm:$0xff] 0.0
        %477 = vst [vmem:[#allocation4 + $0x168] sm:$0xff] 0.0
        %478 = vst [vmem:[#allocation4 + $0x170] sm:$0xff] 0.0
        %479 = vst [vmem:[#allocation4 + $0x178] sm:$0xff] 0.0
        %480 = vst [vmem:[#allocation4 + $0x180] sm:$0xff] 0.0
        %481 = vst [vmem:[#allocation4 + $0x188] sm:$0xff] 0.0
        %482 = vst [vmem:[#allocation4 + $0x190] sm:$0xff] 0.0
        %483 = vst [vmem:[#allocation4 + $0x198] sm:$0xff] 0.0
        %484 = vst [vmem:[#allocation4 + $0x1a0] sm:$0xff] 0.0
        %485 = vst [vmem:[#allocation4 + $0x1a8] sm:$0xff] 0.0
        %486 = vst [vmem:[#allocation4 + $0x1b0] sm:$0xff] 0.0
        %487 = vst [vmem:[#allocation4 + $0x1b8] sm:$0xff] 0.0
        %488 = vst [vmem:[#allocation4 + $0x1c0] sm:$0xff] 0.0
        %489 = vst [vmem:[#allocation4 + $0x1c8] sm:$0xff] 0.0
        %490 = vst [vmem:[#allocation4 + $0x1d0] sm:$0xff] 0.0
        %491 = vst [vmem:[#allocation4 + $0x1d8] sm:$0xff] 0.0
        %492 = vst [vmem:[#allocation4 + $0x1e0] sm:$0xff] 0.0
        %493 = vst [vmem:[#allocation4 + $0x1e8] sm:$0xff] 0.0
        %494 = vst [vmem:[#allocation4 + $0x1f0] sm:$0xff] 0.0
        %495 = vst [vmem:[#allocation4 + $0x1f8] sm:$0xff] 0.0
        %496 = vst [vmem:[#allocation4 + $0x200] sm:$0xff] 0.0
        %497 = vst [vmem:[#allocation4 + $0x208] sm:$0xff] 0.0
        %498 = vst [vmem:[#allocation4 + $0x210] sm:$0xff] 0.0
        %499 = vst [vmem:[#allocation4 + $0x218] sm:$0xff] 0.0
        %500 = vst [vmem:[#allocation4 + $0x220] sm:$0xff] 0.0
        %501 = vst [vmem:[#allocation4 + $0x228] sm:$0xff] 0.0
        %502 = vst [vmem:[#allocation4 + $0x230] sm:$0xff] 0.0
      $region60: #{model_forward.1} parent=55 // pred_fallthru
        _
      %v503 = vld [vmem:[%s327] sm:$0xf]
      %v504 = vld [vmem:[%s327 + $0x4] sm:$0xf]
      %v505 = vld [vmem:[%s327 + $0x8] sm:$0xf]
      %v506 = vld [vmem:[%s327 + $0xc] sm:$0xf]
      %v507 = vld [vmem:[%s327 + $0x10] sm:$0xf]
      %v508 = vld [vmem:[%s327 + $0x14] sm:$0xf]
      %v509 = vld [vmem:[%s327 + $0x18] sm:$0xf]
      %v510 = vld [vmem:[%s327 + $0x1c] sm:$0xf]
      %v511 = vld [vmem:[%s1] sm:$0xf]
      %v512 = vld [vmem:[%s1 + $0x4] sm:$0xf]
      %v513 = vld [vmem:[%s1 + $0x8] sm:$0xf]
      %v514 = vld [vmem:[%s1 + $0xc] sm:$0xf]
      %v515 = vld [vmem:[%s2] sm:$0x1]
      %v517 = vlaneseq
      %v518 = vshrl.u32 %v517, 7
      %v519 = vsub.s32 0, %v518
      %v520 = vrot.slane %v515, %v519
      %v530 = vunpack.c.l.b16 %v503
      %v531 = vunpack.c.l.b16 %v504
      %v532 = vunpack.c.l.b16 %v505
      %v533 = vunpack.c.l.b16 %v506
      %v534 = vunpack.c.l.b16 %v507
      %v535 = vunpack.c.l.b16 %v508
      %v536 = vunpack.c.l.b16 %v509
      %v537 = vunpack.c.l.b16 %v510
      %v538 = vpack.c.b16 %v531, %v530
      %v539 = vpack.c.b16 %v533, %v532
      %v540 = vpack.c.b16 %v535, %v534
      %v541 = vpack.c.b16 %v537, %v536
      %v546 = vunpack.c.l.b16 %v511
      %v547 = vunpack.c.l.b16 %v512
      %v548 = vunpack.c.l.b16 %v513
      %v549 = vunpack.c.l.b16 %v514
      %v550 = vpack.c.b16 %v547, %v546
      %v551 = vpack.c.b16 %v549, %v548
      %vm554 = vcmask 261120
      %v556 = vsel %vm554, %v538, 0
      %v559 = vsel %vm554, %v539, 0
      %v562 = vsel %vm554, %v540, 0
      %v565 = vsel %vm554, %v541, 0
      %567 = vmatprep.subr.bf16.mxu0 0
      %568 = vmatpush1.bf16.msra.mxu0 %v550
      %569 = vmatprep.subr.bf16.mxu0 0
      %570 = vmatpush1.bf16.msra.mxu0 %v551
      %571 = vmatprep.subr.bf16.mxu0 0
      %572 = vmatpush1.bf16.msra.mxu0 0
      %573 = vmatprep.subr.bf16.mxu0 0
      %574 = vmatpush1.bf16.msra.mxu0 0
      %575 = vmatprep.subr.bf16.mxu0 0
      %576 = vmatpush1.bf16.msra.mxu0 0
      %577 = vmatprep.subr.bf16.mxu0 0
      %578 = vmatpush1.bf16.msra.mxu0 0
      %579 = vmatprep.subr.bf16.mxu0 0
      %580 = vmatpush1.bf16.msra.mxu0 0
      %581 = vmatprep.subr.bf16.mxu0 0
      %582 = vmatpush1.bf16.msra.mxu0 0
      %583 = vmatprep.subr.bf16.mxu0 0
      %584 = vmatpush1.bf16.msra.mxu0 0
      %585 = vmatprep.subr.bf16.mxu0 0
      %586 = vmatpush1.bf16.msra.mxu0 0
      %587 = vmatprep.subr.bf16.mxu0 0
      %588 = vmatpush1.bf16.msra.mxu0 0
      %589 = vmatprep.subr.bf16.mxu0 0
      %590 = vmatpush1.bf16.msra.mxu0 0
      %591 = vmatprep.subr.bf16.mxu0 0
      %592 = vmatpush1.bf16.msra.mxu0 0
      %593 = vmatprep.subr.bf16.mxu0 0
      %594 = vmatpush1.bf16.msra.mxu0 0
      %595 = vmatprep.subr.bf16.mxu0 0
      %596 = vmatpush1.bf16.msra.mxu0 0
      %597 = vmatprep.subr.bf16.mxu0 0
      %598 = vmatpush1.bf16.msra.mxu0 0
      %599 = vmatprep.mubr.bf16.mxu0 0
      %600 = vmatmul.mubr.bf16.gmra.mrb[0].mxu0 %v556
      %v601 = vpop.f32.mrb[0].mxu0
      %v602 = vadd.f32 %v520, %v601
      %v603 = vpop.f32.mrb[0].mxu0
      %v604 = vpop.f32.mrb[0].mxu0
      %v605 = vadd.f32 %v520, %v604
      %v606 = vpop.f32.mrb[0].mxu0
      %607 = vmatprep.mubr.bf16.mxu0 0
      %608 = vmatmul.mubr.bf16.gmra.mrb[0].mxu0 %v559
      %v609 = vpop.f32.mrb[0].mxu0
      %v610 = vadd.f32 %v520, %v609
      %v611 = vpop.f32.mrb[0].mxu0
      %v612 = vpop.f32.mrb[0].mxu0
      %v613 = vadd.f32 %v520, %v612
      %v614 = vpop.f32.mrb[0].mxu0
      %615 = vmatprep.mubr.bf16.mxu0 0
      %616 = vmatmul.mubr.bf16.gmra.mrb[0].mxu0 %v562
      %v617 = vpop.f32.mrb[0].mxu0
      %v618 = vadd.f32 %v520, %v617
      %v619 = vpop.f32.mrb[0].mxu0
      %v620 = vpop.f32.mrb[0].mxu0
      %v621 = vadd.f32 %v520, %v620
      %v622 = vpop.f32.mrb[0].mxu0
      %623 = vmatprep.mubr.bf16.mxu0 0
      %624 = vmatmul.mubr.bf16.gmra.mrb[0].mxu0 %v565
      %v625 = vpop.f32.mrb[0].mxu0
      %v626 = vadd.f32 %v520, %v625
      %v627 = vpop.f32.mrb[0].mxu0
      %v628 = vpop.f32.mrb[0].mxu0
      %v629 = vadd.f32 %v520, %v628
      %v630 = vpop.f32.mrb[0].mxu0
      %631 = vdwg.mxu0
      %632 = vst [vmem:[#allocation2 + $0x44] sm:$0xff] %v602
      %633 = vst [vmem:[#allocation2 + $0x54] sm:$0xff] %v605
      %634 = vst [vmem:[#allocation2 + $0x64] sm:$0xff] %v610
      %635 = vst [vmem:[#allocation2 + $0x74] sm:$0xff] %v613
      %636 = vst [vmem:[#allocation2 + $0x84] sm:$0xff] %v618
      %637 = vst [vmem:[#allocation2 + $0x94] sm:$0xff] %v621
      %638 = vst [vmem:[#allocation2 + $0xa4] sm:$0xff] %v626
      %639 = vst [vmem:[#allocation2 + $0xb4] sm:$0xff] %v629
      %v640 = vld [vmem:[#allocation2] sm:$0xff]
      %v641 = vld [vmem:[#allocation2 + $0x8] sm:$0xff]
      %v642 = vld [vmem:[#allocation2 + $0x10] sm:$0xff]
      %v643 = vld [vmem:[#allocation2 + $0x18] sm:$0xff]
      %v644 = vld [vmem:[#allocation2 + $0x20] sm:$0xff]
      %v645 = vld [vmem:[#allocation2 + $0x28] sm:$0xff]
      %v646 = vld [vmem:[#allocation2 + $0x30] sm:$0xff]
      %v647 = vld [vmem:[#allocation2 + $0x38] sm:$0xff]
      %v648 = vld [vmem:[#allocation2 + $0x40] sm:$0xff]
      %v649 = vld [vmem:[#allocation2 + $0x48] sm:$0xff]
      %v650 = vld [vmem:[#allocation2 + $0x50] sm:$0xff]
      %v651 = vld [vmem:[#allocation2 + $0x58] sm:$0xff]
      %v652 = vld [vmem:[#allocation2 + $0x60] sm:$0xff]
      %v653 = vld [vmem:[#allocation2 + $0x68] sm:$0xff]
      %v654 = vld [vmem:[#allocation2 + $0x70] sm:$0xff]
      %v655 = vld [vmem:[#allocation2 + $0x78] sm:$0xff]
      %v656 = vld [vmem:[#allocation2 + $0x80] sm:$0xff]
      %v657 = vld [vmem:[#allocation2 + $0x88] sm:$0xff]
      %v658 = vld [vmem:[#allocation2 + $0x90] sm:$0xff]
      %v659 = vld [vmem:[#allocation2 + $0x98] sm:$0xff]
      %v660 = vld [vmem:[#allocation2 + $0xa0] sm:$0xff]
      %v661 = vld [vmem:[#allocation2 + $0xa8] sm:$0xff]
      %v662 = vld [vmem:[#allocation2 + $0xb0] sm:$0xff]
      %v663 = vld [vmem:[#allocation2 + $0xb8] sm:$0xff]
      %v664 = vld [vmem:[#allocation2 + $0xc0] sm:$0xff]
      %v665 = vld [vmem:[#allocation2 + $0xc8] sm:$0xff]
      %v666 = vld [vmem:[#allocation2 + $0xd0] sm:$0xff]
      %v667 = vld [vmem:[#allocation2 + $0xd8] sm:$0xff]
      %v668 = vpack.c.bf16 %v641, %v640
      %v669 = vpack.c.bf16 %v643, %v642
      %v670 = vpack.c.bf16 %v645, %v644
      %v671 = vpack.c.bf16 %v647, %v646
      %v672 = vpack.c.bf16 %v649, %v648
      %v673 = vpack.c.bf16 %v651, %v650
      %v674 = vpack.c.bf16 %v653, %v652
      %v675 = vpack.c.bf16 %v655, %v654
      %v676 = vpack.c.bf16 %v657, %v656
      %v677 = vpack.c.bf16 %v659, %v658
      %v678 = vpack.c.bf16 %v661, %v660
      %v679 = vpack.c.bf16 %v663, %v662
      %v680 = vpack.c.bf16 %v665, %v664
      %v681 = vpack.c.bf16 %v667, %v666
      %v682 = vld [vmem:[%s3] sm:$0xf]
      %v683 = vld [vmem:[%s3 + $0x4] sm:$0xf]
      %v684 = vld [vmem:[%s3 + $0x8] sm:$0xf]
      %v685 = vld [vmem:[%s3 + $0xc] sm:$0xf]
      %v686 = vld [vmem:[%s3 + $0x10] sm:$0xf]
      %v687 = vld [vmem:[%s3 + $0x14] sm:$0xf]
      %v688 = vld [vmem:[%s3 + $0x18] sm:$0xf]
      %v689 = vld [vmem:[%s3 + $0x1c] sm:$0xf]
      %v690 = vld [vmem:[%s3 + $0x20] sm:$0xf]
      %v691 = vld [vmem:[%s3 + $0x24] sm:$0xf]
      %v692 = vld [vmem:[%s3 + $0x28] sm:$0xf]
      %v693 = vld [vmem:[%s3 + $0x2c] sm:$0xf]
      %v694 = vld [vmem:[%s3 + $0x30] sm:$0xf]
      %v695 = vld [vmem:[%s3 + $0x34] sm:$0xf]
      %v696 = vld [vmem:[%s3 + $0x38] sm:$0xf]
      %v697 = vld [vmem:[%s3 + $0x3c] sm:$0xf]
      %v698 = vld [vmem:[#allocation2 + $0x1] sm:$0xff]
      %v699 = vld [vmem:[#allocation2 + $0x9] sm:$0xff]
      %v700 = vld [vmem:[#allocation2 + $0x11] sm:$0xff]
      %v701 = vld [vmem:[#allocation2 + $0x19] sm:$0xff]
      %v702 = vld [vmem:[#allocation2 + $0x21] sm:$0xff]
      %v703 = vld [vmem:[#allocation2 + $0x29] sm:$0xff]
      %v704 = vld [vmem:[#allocation2 + $0x31] sm:$0xff]
      %v705 = vld [vmem:[#allocation2 + $0x39] sm:$0xff]
      %v706 = vld [vmem:[#allocation2 + $0x41] sm:$0xff]
      %v707 = vld [vmem:[#allocation2 + $0x49] sm:$0xff]
      %v708 = vld [vmem:[#allocation2 + $0x51] sm:$0xff]
      %v709 = vld [vmem:[#allocation2 + $0x59] sm:$0xff]
      %v710 = vld [vmem:[#allocation2 + $0x61] sm:$0xff]
      %v711 = vld [vmem:[#allocation2 + $0x69] sm:$0xff]
      %v712 = vld [vmem:[#allocation2 + $0x71] sm:$0xff]
      %v713 = vld [vmem:[#allocation2 + $0x79] sm:$0xff]
      %v714 = vld [vmem:[#allocation2 + $0x81] sm:$0xff]
      %v715 = vld [vmem:[#allocation2 + $0x89] sm:$0xff]
      %v716 = vld [vmem:[#allocation2 + $0x91] sm:$0xff]
      %v717 = vld [vmem:[#allocation2 + $0x99] sm:$0xff]
      %v718 = vld [vmem:[#allocation2 + $0xa1] sm:$0xff]
      %v719 = vld [vmem:[#allocation2 + $0xa9] sm:$0xff]
      %v720 = vld [vmem:[#allocation2 + $0xb1] sm:$0xff]
      %v721 = vld [vmem:[#allocation2 + $0xb9] sm:$0xff]
      %v722 = vld [vmem:[#allocation2 + $0xc1] sm:$0xff]
      %v723 = vld [vmem:[#allocation2 + $0xc9] sm:$0xff]
      %v724 = vld [vmem:[#allocation2 + $0xd1] sm:$0xff]
      %v725 = vld [vmem:[#allocation2 + $0xd9] sm:$0xff]
      %v726 = vpack.c.bf16 %v699, %v698
      %v727 = vpack.c.bf16 %v701, %v700
      %v728 = vpack.c.bf16 %v703, %v702
      %v729 = vpack.c.bf16 %v705, %v704
      %v730 = vpack.c.bf16 %v707, %v706
      %v731 = vpack.c.bf16 %v709, %v708
      %v732 = vpack.c.bf16 %v711, %v710
      %v733 = vpack.c.bf16 %v713, %v712
      %v734 = vpack.c.bf16 %v715, %v714
      %v735 = vpack.c.bf16 %v717, %v716
      %v736 = vpack.c.bf16 %v719, %v718
      %v737 = vpack.c.bf16 %v721, %v720
      %v738 = vpack.c.bf16 %v723, %v722
      %v739 = vpack.c.bf16 %v725, %v724
      %v740 = vld [vmem:[%s3 + $0x40] sm:$0xf]
      %v741 = vld [vmem:[%s3 + $0x44] sm:$0xf]
      %v742 = vld [vmem:[%s3 + $0x48] sm:$0xf]
      %v743 = vld [vmem:[%s3 + $0x4c] sm:$0xf]
      %v744 = vld [vmem:[%s3 + $0x50] sm:$0xf]
      %v745 = vld [vmem:[%s3 + $0x54] sm:$0xf]
      %v746 = vld [vmem:[%s3 + $0x58] sm:$0xf]
      %v747 = vld [vmem:[%s3 + $0x5c] sm:$0xf]
      %v748 = vld [vmem:[%s3 + $0x60] sm:$0xf]
      %v749 = vld [vmem:[%s3 + $0x64] sm:$0xf]
      %v750 = vld [vmem:[%s3 + $0x68] sm:$0xf]
      %v751 = vld [vmem:[%s3 + $0x6c] sm:$0xf]
      %v752 = vld [vmem:[%s3 + $0x70] sm:$0xf]
      %v753 = vld [vmem:[%s3 + $0x74] sm:$0xf]
      %v754 = vld [vmem:[%s3 + $0x78] sm:$0xf]
      %v755 = vld [vmem:[%s3 + $0x7c] sm:$0xf]
      %v772 = vunpack.c.l.b16 %v740
      %v773 = vunpack.c.l.b16 %v741
      %v774 = vunpack.c.l.b16 %v742
      %v775 = vunpack.c.l.b16 %v743
      %v776 = vunpack.c.l.b16 %v744
      %v777 = vunpack.c.l.b16 %v745
      %v778 = vunpack.c.l.b16 %v746
      %v779 = vunpack.c.l.b16 %v747
      %v780 = vunpack.c.l.b16 %v748
      %v781 = vunpack.c.l.b16 %v749
      %v782 = vunpack.c.l.b16 %v750
      %v783 = vunpack.c.l.b16 %v751
      %v784 = vunpack.c.l.b16 %v752
      %v785 = vunpack.c.l.b16 %v753
      %v786 = vunpack.c.l.b16 %v754
      %v787 = vunpack.c.l.b16 %v755
      %v788 = vpack.c.b16 %v773, %v772
      %v789 = vpack.c.b16 %v775, %v774
      %v790 = vpack.c.b16 %v777, %v776
      %v791 = vpack.c.b16 %v779, %v778
      %v792 = vpack.c.b16 %v781, %v780
      %v793 = vpack.c.b16 %v783, %v782
      %v794 = vpack.c.b16 %v785, %v784
      %v795 = vpack.c.b16 %v787, %v786
      %804 = vmatprep.subr.bf16.mxu0 0
      %805 = vmatpush1.bf16.msra.mxu0 %v788
      %806 = vmatprep.subr.bf16.mxu0 0
      %807 = vmatpush1.bf16.msra.mxu0 %v789
      %808 = vmatprep.subr.bf16.mxu0 0
      %809 = vmatpush1.bf16.msra.mxu0 %v790
      %810 = vmatprep.subr.bf16.mxu0 0
      %811 = vmatpush1.bf16.msra.mxu0 %v791
      %812 = vmatprep.subr.bf16.mxu0 0
      %813 = vmatpush1.bf16.msra.mxu0 %v792
      %814 = vmatprep.subr.bf16.mxu0 0
      %815 = vmatpush1.bf16.msra.mxu0 %v793
      %816 = vmatprep.subr.bf16.mxu0 0
      %817 = vmatpush1.bf16.msra.mxu0 %v794
      %818 = vmatprep.subr.bf16.mxu0 0
      %819 = vmatpush1.bf16.msra.mxu0 %v795
      %820 = vmatprep.subr.bf16.mxu0 0
      %821 = vmatpush1.bf16.msra.mxu0 0
      %822 = vmatprep.subr.bf16.mxu0 0
      %823 = vmatpush1.bf16.msra.mxu0 0
      %824 = vmatprep.subr.bf16.mxu0 0
      %825 = vmatpush1.bf16.msra.mxu0 0
      %826 = vmatprep.subr.bf16.mxu0 0
      %827 = vmatpush1.bf16.msra.mxu0 0
      %828 = vmatprep.subr.bf16.mxu0 0
      %829 = vmatpush1.bf16.msra.mxu0 0
      %830 = vmatprep.subr.bf16.mxu0 0
      %831 = vmatpush1.bf16.msra.mxu0 0
      %832 = vmatprep.subr.bf16.mxu0 0
      %833 = vmatpush1.bf16.msra.mxu0 0
      %834 = vmatprep.subr.bf16.mxu0 0
      %835 = vmatpush1.bf16.msra.mxu0 0
      %836 = vmatprep.mubr.bf16.mxu0 0
      %837 = vmatmul.mubr.bf16.gmra.mrb[0].mxu0 %v726
      %v838 = vpop.f32.mrb[0].mxu0
      %v839 = vadd.f32 0.0, %v838
      %v840 = vpop.f32.mrb[0].mxu0
      %v841 = vpop.f32.mrb[0].mxu0
      %v842 = vadd.f32 0.0, %v841
      %v843 = vpop.f32.mrb[0].mxu0
      %844 = vmatprep.mubr.bf16.mxu0 0
      %845 = vmatmul.mubr.bf16.gmra.mrb[0].mxu0 %v727
      %v846 = vpop.f32.mrb[0].mxu0
      %v847 = vadd.f32 0.0, %v846
      %v848 = vpop.f32.mrb[0].mxu0
      %v849 = vpop.f32.mrb[0].mxu0
      %v850 = vadd.f32 0.0, %v849
      %v851 = vpop.f32.mrb[0].mxu0
      %852 = vmatprep.mubr.bf16.mxu0 0
      %853 = vmatmul.mubr.bf16.gmra.mrb[0].mxu0 %v728
      %v854 = vpop.f32.mrb[0].mxu0
      %v855 = vadd.f32 0.0, %v854
      %v856 = vpop.f32.mrb[0].mxu0
      %v857 = vpop.f32.mrb[0].mxu0
      %v858 = vadd.f32 0.0, %v857
      %v859 = vpop.f32.mrb[0].mxu0
      %860 = vmatprep.mubr.bf16.mxu0 0
      %861 = vmatmul.mubr.bf16.gmra.mrb[0].mxu0 %v729
      %v862 = vpop.f32.mrb[0].mxu0
      %v863 = vadd.f32 0.0, %v862
      %v864 = vpop.f32.mrb[0].mxu0
      %v865 = vpop.f32.mrb[0].mxu0
      %v866 = vadd.f32 0.0, %v865
      %v867 = vpop.f32.mrb[0].mxu0
      %868 = vmatprep.mubr.bf16.mxu0 0
      %869 = vmatmul.mubr.bf16.gmra.mrb[0].mxu0 %v730
      %v870 = vpop.f32.mrb[0].mxu0
      %v871 = vadd.f32 0.0, %v870
      %v872 = vpop.f32.mrb[0].mxu0
      %v873 = vpop.f32.mrb[0].mxu0
      %v874 = vadd.f32 0.0, %v873
      %v875 = vpop.f32.mrb[0].mxu0
      %876 = vmatprep.mubr.bf16.mxu0 0
      %877 = vmatmul.mubr.bf16.gmra.mrb[0].mxu0 %v731
      %v878 = vpop.f32.mrb[0].mxu0
      %v879 = vadd.f32 0.0, %v878
      %v880 = vpop.f32.mrb[0].mxu0
      %v881 = vpop.f32.mrb[0].mxu0
      %v882 = vadd.f32 0.0, %v881
      %v883 = vpop.f32.mrb[0].mxu0
      %884 = vmatprep.mubr.bf16.mxu0 0
      %885 = vmatmul.mubr.bf16.gmra.mrb[0].mxu0 %v732
      %v886 = vpop.f32.mrb[0].mxu0
      %v887 = vadd.f32 0.0, %v886
      %v888 = vpop.f32.mrb[0].mxu0
      %v889 = vpop.f32.mrb[0].mxu0
      %v890 = vadd.f32 0.0, %v889
      %v891 = vpop.f32.mrb[0].mxu0
      %892 = vmatprep.mubr.bf16.mxu0 0
      %893 = vmatmul.mubr.bf16.gmra.mrb[0].mxu0 %v733
      %v894 = vpop.f32.mrb[0].mxu0
      %v895 = vadd.f32 0.0, %v894
      %v896 = vpop.f32.mrb[0].mxu0
      %v897 = vpop.f32.mrb[0].mxu0
      %v898 = vadd.f32 0.0, %v897
      %v899 = vpop.f32.mrb[0].mxu0
      %900 = vmatprep.mubr.bf16.mxu0 0
      %901 = vmatmul.mubr.bf16.gmra.mrb[0].mxu0 %v734
      %v902 = vpop.f32.mrb[0].mxu0
      %v903 = vadd.f32 0.0, %v902
      %v904 = vpop.f32.mrb[0].mxu0
      %v905 = vpop.f32.mrb[0].mxu0
      %v906 = vadd.f32 0.0, %v905
      %v907 = vpop.f32.mrb[0].mxu0
      %908 = vmatprep.mubr.bf16.mxu0 0
      %909 = vmatmul.mubr.bf16.gmra.mrb[0].mxu0 %v735
      %v910 = vpop.f32.mrb[0].mxu0
      %v911 = vadd.f32 0.0, %v910
      %v912 = vpop.f32.mrb[0].mxu0
      %v913 = vpop.f32.mrb[0].mxu0
      %v914 = vadd.f32 0.0, %v913
      %v915 = vpop.f32.mrb[0].mxu0
      %916 = vmatprep.mubr.bf16.mxu0 0
      %917 = vmatmul.mubr.bf16.gmra.mrb[0].mxu0 %v736
      %v918 = vpop.f32.mrb[0].mxu0
      %v919 = vadd.f32 0.0, %v918
      %v920 = vpop.f32.mrb[0].mxu0
      %v921 = vpop.f32.mrb[0].mxu0
      %v922 = vadd.f32 0.0, %v921
      %v923 = vpop.f32.mrb[0].mxu0
      %924 = vmatprep.mubr.bf16.mxu0 0
      %925 = vmatmul.mubr.bf16.gmra.mrb[0].mxu0 %v737
      %v926 = vpop.f32.mrb[0].mxu0
      %v927 = vadd.f32 0.0, %v926
      %v928 = vpop.f32.mrb[0].mxu0
      %v929 = vpop.f32.mrb[0].mxu0
      %v930 = vadd.f32 0.0, %v929
      %v931 = vpop.f32.mrb[0].mxu0
      %932 = vmatprep.mubr.bf16.mxu0 0
      %933 = vmatmul.mubr.bf16.gmra.mrb[0].mxu0 %v738
      %v934 = vpop.f32.mrb[0].mxu0
      %v935 = vadd.f32 0.0, %v934
      %v936 = vpop.f32.mrb[0].mxu0
      %v937 = vpop.f32.mrb[0].mxu0
      %v938 = vadd.f32 0.0, %v937
      %v939 = vpop.f32.mrb[0].mxu0
      %940 = vmatprep.mubr.bf16.mxu0 0
      %941 = vmatmul.mubr.bf16.gmra.mrb[0].mxu0 %v739
      %v942 = vpop.f32.mrb[0].mxu0
      %v943 = vadd.f32 0.0, %v942
      %v944 = vpop.f32.mrb[0].mxu0
      %v945 = vpop.f32.mrb[0].mxu0
      %v946 = vadd.f32 0.0, %v945
      %v947 = vpop.f32.mrb[0].mxu0
      %948 = vdwg.mxu0
      %v965 = vunpack.c.l.b16 %v682
      %v966 = vunpack.c.l.b16 %v683
      %v967 = vunpack.c.l.b16 %v684
      %v968 = vunpack.c.l.b16 %v685
      %v969 = vunpack.c.l.b16 %v686
      %v970 = vunpack.c.l.b16 %v687
      %v971 = vunpack.c.l.b16 %v688
      %v972 = vunpack.c.l.b16 %v689
      %v973 = vunpack.c.l.b16 %v690
      %v974 = vunpack.c.l.b16 %v691
      %v975 = vunpack.c.l.b16 %v692
      %v976 = vunpack.c.l.b16 %v693
      %v977 = vunpack.c.l.b16 %v694
      %v978 = vunpack.c.l.b16 %v695
      %v979 = vunpack.c.l.b16 %v696
      %v980 = vunpack.c.l.b16 %v697
      %v981 = vpack.c.b16 %v966, %v965
      %v982 = vpack.c.b16 %v968, %v967
      %v983 = vpack.c.b16 %v970, %v969
      %v984 = vpack.c.b16 %v972, %v971
      %v985 = vpack.c.b16 %v974, %v973
      %v986 = vpack.c.b16 %v976, %v975
      %v987 = vpack.c.b16 %v978, %v977
      %v988 = vpack.c.b16 %v980, %v979
      %997 = vmatprep.subr.bf16.mxu0 0
      %998 = vmatpush1.bf16.msra.mxu0 %v981
      %999 = vmatprep.subr.bf16.mxu0 0
      %1000 = vmatpush1.bf16.msra.mxu0 %v982
      %1001 = vmatprep.subr.bf16.mxu0 0
      %1002 = vmatpush1.bf16.msra.mxu0 %v983
      %1003 = vmatprep.subr.bf16.mxu0 0
      %1004 = vmatpush1.bf16.msra.mxu0 %v984
      %1005 = vmatprep.subr.bf16.mxu0 0
      %1006 = vmatpush1.bf16.msra.mxu0 %v985
      %1007 = vmatprep.subr.bf16.mxu0 0
      %1008 = vmatpush1.bf16.msra.mxu0 %v986
      %1009 = vmatprep.subr.bf16.mxu0 0
      %1010 = vmatpush1.bf16.msra.mxu0 %v987
      %1011 = vmatprep.subr.bf16.mxu0 0
      %1012 = vmatpush1.bf16.msra.mxu0 %v988
      %1013 = vmatprep.subr.bf16.mxu0 0
      %1014 = vmatpush1.bf16.msra.mxu0 0
      %1015 = vmatprep.subr.bf16.mxu0 0
      %1016 = vmatpush1.bf16.msra.mxu0 0
      %1017 = vmatprep.subr.bf16.mxu0 0
      %1018 = vmatpush1.bf16.msra.mxu0 0
      %1019 = vmatprep.subr.bf16.mxu0 0
      %1020 = vmatpush1.bf16.msra.mxu0 0
      %1021 = vmatprep.subr.bf16.mxu0 0
      %1022 = vmatpush1.bf16.msra.mxu0 0
      %1023 = vmatprep.subr.bf16.mxu0 0
      %1024 = vmatpush1.bf16.msra.mxu0 0
      %1025 = vmatprep.subr.bf16.mxu0 0
      %1026 = vmatpush1.bf16.msra.mxu0 0
      %1027 = vmatprep.subr.bf16.mxu0 0
      %1028 = vmatpush1.bf16.msra.mxu0 0
      %1029 = vmatprep.mubr.bf16.mxu0 0
      %1030 = vmatmul.mubr.bf16.gmra.mrb[0].mxu0 %v668
      %v1031 = vpop.f32.mrb[0].mxu0
      %v1032 = vadd.f32 %v839, %v1031
      %v1033 = vpop.f32.mrb[0].mxu0
      %v1034 = vpop.f32.mrb[0].mxu0
      %v1035 = vadd.f32 %v842, %v1034
      %v1036 = vpop.f32.mrb[0].mxu0
      %1037 = vmatprep.mubr.bf16.mxu0 0
      %1038 = vmatmul.mubr.bf16.gmra.mrb[0].mxu0 %v669
      %v1039 = vpop.f32.mrb[0].mxu0
      %v1040 = vadd.f32 %v847, %v1039
      %v1041 = vpop.f32.mrb[0].mxu0
      %v1042 = vpop.f32.mrb[0].mxu0
      %v1043 = vadd.f32 %v850, %v1042
      %v1044 = vpop.f32.mrb[0].mxu0
      %1045 = vmatprep.mubr.bf16.mxu0 0
      %1046 = vmatmul.mubr.bf16.gmra.mrb[0].mxu0 %v670
      %v1047 = vpop.f32.mrb[0].mxu0
      %v1048 = vadd.f32 %v855, %v1047
      %v1049 = vpop.f32.mrb[0].mxu0
      %v1050 = vpop.f32.mrb[0].mxu0
      %v1051 = vadd.f32 %v858, %v1050
      %v1052 = vpop.f32.mrb[0].mxu0
      %1053 = vmatprep.mubr.bf16.mxu0 0
      %1054 = vmatmul.mubr.bf16.gmra.mrb[0].mxu0 %v671
      %v1055 = vpop.f32.mrb[0].mxu0
      %v1056 = vadd.f32 %v863, %v1055
      %v1057 = vpop.f32.mrb[0].mxu0
      %v1058 = vpop.f32.mrb[0].mxu0
      %v1059 = vadd.f32 %v866, %v1058
      %v1060 = vpop.f32.mrb[0].mxu0
      %1061 = vmatprep.mubr.bf16.mxu0 0
      %1062 = vmatmul.mubr.bf16.gmra.mrb[0].mxu0 %v672
      %v1063 = vpop.f32.mrb[0].mxu0
      %v1064 = vadd.f32 %v871, %v1063
      %v1065 = vpop.f32.mrb[0].mxu0
      %v1066 = vpop.f32.mrb[0].mxu0
      %v1067 = vadd.f32 %v874, %v1066
      %v1068 = vpop.f32.mrb[0].mxu0
      %1069 = vmatprep.mubr.bf16.mxu0 0
      %1070 = vmatmul.mubr.bf16.gmra.mrb[0].mxu0 %v673
      %v1071 = vpop.f32.mrb[0].mxu0
      %v1072 = vadd.f32 %v879, %v1071
      %v1073 = vpop.f32.mrb[0].mxu0
      %v1074 = vpop.f32.mrb[0].mxu0
      %v1075 = vadd.f32 %v882, %v1074
      %v1076 = vpop.f32.mrb[0].mxu0
      %1077 = vmatprep.mubr.bf16.mxu0 0
      %1078 = vmatmul.mubr.bf16.gmra.mrb[0].mxu0 %v674
      %v1079 = vpop.f32.mrb[0].mxu0
      %v1080 = vadd.f32 %v887, %v1079
      %v1081 = vpop.f32.mrb[0].mxu0
      %v1082 = vpop.f32.mrb[0].mxu0
      %v1083 = vadd.f32 %v890, %v1082
      %v1084 = vpop.f32.mrb[0].mxu0
      %1085 = vmatprep.mubr.bf16.mxu0 0
      %1086 = vmatmul.mubr.bf16.gmra.mrb[0].mxu0 %v675
      %v1087 = vpop.f32.mrb[0].mxu0
      %v1088 = vadd.f32 %v895, %v1087
      %v1089 = vpop.f32.mrb[0].mxu0
      %v1090 = vpop.f32.mrb[0].mxu0
      %v1091 = vadd.f32 %v898, %v1090
      %v1092 = vpop.f32.mrb[0].mxu0
      %1093 = vmatprep.mubr.bf16.mxu0 0
      %1094 = vmatmul.mubr.bf16.gmra.mrb[0].mxu0 %v676
      %v1095 = vpop.f32.mrb[0].mxu0
      %v1096 = vadd.f32 %v903, %v1095
      %v1097 = vpop.f32.mrb[0].mxu0
      %v1098 = vpop.f32.mrb[0].mxu0
      %v1099 = vadd.f32 %v906, %v1098
      %v1100 = vpop.f32.mrb[0].mxu0
      %1101 = vmatprep.mubr.bf16.mxu0 0
      %1102 = vmatmul.mubr.bf16.gmra.mrb[0].mxu0 %v677
      %v1103 = vpop.f32.mrb[0].mxu0
      %v1104 = vadd.f32 %v911, %v1103
      %v1105 = vpop.f32.mrb[0].mxu0
      %v1106 = vpop.f32.mrb[0].mxu0
      %v1107 = vadd.f32 %v914, %v1106
      %v1108 = vpop.f32.mrb[0].mxu0
      %1109 = vmatprep.mubr.bf16.mxu0 0
      %1110 = vmatmul.mubr.bf16.gmra.mrb[0].mxu0 %v678
      %v1111 = vpop.f32.mrb[0].mxu0
      %v1112 = vadd.f32 %v919, %v1111
      %v1113 = vpop.f32.mrb[0].mxu0
      %v1114 = vpop.f32.mrb[0].mxu0
      %v1115 = vadd.f32 %v922, %v1114
      %v1116 = vpop.f32.mrb[0].mxu0
      %1117 = vmatprep.mubr.bf16.mxu0 0
      %1118 = vmatmul.mubr.bf16.gmra.mrb[0].mxu0 %v679
      %v1119 = vpop.f32.mrb[0].mxu0
      %v1120 = vadd.f32 %v927, %v1119
      %v1121 = vpop.f32.mrb[0].mxu0
      %v1122 = vpop.f32.mrb[0].mxu0
      %v1123 = vadd.f32 %v930, %v1122
      %v1124 = vpop.f32.mrb[0].mxu0
      %1125 = vmatprep.mubr.bf16.mxu0 0
      %1126 = vmatmul.mubr.bf16.gmra.mrb[0].mxu0 %v680
      %v1127 = vpop.f32.mrb[0].mxu0
      %v1128 = vadd.f32 %v935, %v1127
      %v1129 = vpop.f32.mrb[0].mxu0
      %v1130 = vpop.f32.mrb[0].mxu0
      %v1131 = vadd.f32 %v938, %v1130
      %v1132 = vpop.f32.mrb[0].mxu0
      %1133 = vmatprep.mubr.bf16.mxu0 0
      %1134 = vmatmul.mubr.bf16.gmra.mrb[0].mxu0 %v681
      %v1135 = vpop.f32.mrb[0].mxu0
      %v1136 = vadd.f32 %v943, %v1135
      %v1137 = vpop.f32.mrb[0].mxu0
      %v1138 = vpop.f32.mrb[0].mxu0
      %v1139 = vadd.f32 %v946, %v1138
      %v1140 = vpop.f32.mrb[0].mxu0
      %1141 = vdwg.mxu0
      %v1142 = vld [vmem:[#allocation2 + $0x2] sm:$0xff]
      %v1143 = vld [vmem:[#allocation2 + $0xa] sm:$0xff]
      %v1144 = vld [vmem:[#allocation2 + $0x12] sm:$0xff]
      %v1145 = vld [vmem:[#allocation2 + $0x1a] sm:$0xff]
      %v1146 = vld [vmem:[#allocation2 + $0x22] sm:$0xff]
      %v1147 = vld [vmem:[#allocation2 + $0x2a] sm:$0xff]
      %v1148 = vld [vmem:[#allocation2 + $0x32] sm:$0xff]
      %v1149 = vld [vmem:[#allocation2 + $0x3a] sm:$0xff]
      %v1150 = vld [vmem:[#allocation2 + $0x42] sm:$0xff]
      %v1151 = vld [vmem:[#allocation2 + $0x4a] sm:$0xff]
      %v1152 = vld [vmem:[#allocation2 + $0x52] sm:$0xff]
      %v1153 = vld [vmem:[#allocation2 + $0x5a] sm:$0xff]
      %v1154 = vld [vmem:[#allocation2 + $0x62] sm:$0xff]
      %v1155 = vld [vmem:[#allocation2 + $0x6a] sm:$0xff]
      %v1156 = vld [vmem:[#allocation2 + $0x72] sm:$0xff]
      %v1157 = vld [vmem:[#allocation2 + $0x7a] sm:$0xff]
      %v1158 = vld [vmem:[#allocation2 + $0x82] sm:$0xff]
      %v1159 = vld [vmem:[#allocation2 + $0x8a] sm:$0xff]
      %v1160 = vld [vmem:[#allocation2 + $0x92] sm:$0xff]
      %v1161 = vld [vmem:[#allocation2 + $0x9a] sm:$0xff]
      %v1162 = vld [vmem:[#allocation2 + $0xa2] sm:$0xff]
      %v1163 = vld [vmem:[#allocation2 + $0xaa] sm:$0xff]
      %v1164 = vld [vmem:[#allocation2 + $0xb2] sm:$0xff]
      %v1165 = vld [vmem:[#allocation2 + $0xba] sm:$0xff]
      %v1166 = vld [vmem:[#allocation2 + $0xc2] sm:$0xff]
      %v1167 = vld [vmem:[#allocation2 + $0xca] sm:$0xff]
      %v1168 = vld [vmem:[#allocation2 + $0xd2] sm:$0xff]
      %v1169 = vld [vmem:[#allocation2 + $0xda] sm:$0xff]
      %v1170 = vpack.c.bf16 %v1143, %v1142
      %v1171 = vpack.c.bf16 %v1145, %v1144
      %v1172 = vpack.c.bf16 %v1147, %v1146
      %v1173 = vpack.c.bf16 %v1149, %v1148
      %v1174 = vpack.c.bf16 %v1151, %v1150
      %v1175 = vpack.c.bf16 %v1153, %v1152
      %v1176 = vpack.c.bf16 %v1155, %v1154
      %v1177 = vpack.c.bf16 %v1157, %v1156
      %v1178 = vpack.c.bf16 %v1159, %v1158
      %v1179 = vpack.c.bf16 %v1161, %v1160
      %v1180 = vpack.c.bf16 %v1163, %v1162
      %v1181 = vpack.c.bf16 %v1165, %v1164
      %v1182 = vpack.c.bf16 %v1167, %v1166
      %v1183 = vpack.c.bf16 %v1169, %v1168
      %v1184 = vld [vmem:[%s3 + $0x80] sm:$0xf]
      %v1185 = vld [vmem:[%s3 + $0x84] sm:$0xf]
      %v1186 = vld [vmem:[%s3 + $0x88] sm:$0xf]
      %v1187 = vld [vmem:[%s3 + $0x8c] sm:$0xf]
      %v1188 = vld [vmem:[%s3 + $0x90] sm:$0xf]
      %v1189 = vld [vmem:[%s3 + $0x94] sm:$0xf]
      %v1190 = vld [vmem:[%s3 + $0x98] sm:$0xf]
      %v1191 = vld [vmem:[%s3 + $0x9c] sm:$0xf]
      %v1192 = vld [vmem:[%s3 + $0xa0] sm:$0xf]
      %v1193 = vld [vmem:[%s3 + $0xa4] sm:$0xf]
      %v1194 = vld [vmem:[%s3 + $0xa8] sm:$0xf]
      %v1195 = vld [vmem:[%s3 + $0xac] sm:$0xf]
      %v1196 = vld [vmem:[%s3 + $0xb0] sm:$0xf]
      %v1197 = vld [vmem:[%s3 + $0xb4] sm:$0xf]
      %v1198 = vld [vmem:[%s3 + $0xb8] sm:$0xf]
      %v1199 = vld [vmem:[%s3 + $0xbc] sm:$0xf]
      %v1216 = vunpack.c.l.b16 %v1184
      %v1217 = vunpack.c.l.b16 %v1185
      %v1218 = vunpack.c.l.b16 %v1186
      %v1219 = vunpack.c.l.b16 %v1187
      %v1220 = vunpack.c.l.b16 %v1188
      %v1221 = vunpack.c.l.b16 %v1189
      %v1222 = vunpack.c.l.b16 %v1190
      %v1223 = vunpack.c.l.b16 %v1191
      %v1224 = vunpack.c.l.b16 %v1192
      %v1225 = vunpack.c.l.b16 %v1193
      %v1226 = vunpack.c.l.b16 %v1194
      %v1227 = vunpack.c.l.b16 %v1195
      %v1228 = vunpack.c.l.b16 %v1196
      %v1229 = vunpack.c.l.b16 %v1197
      %v1230 = vunpack.c.l.b16 %v1198
      %v1231 = vunpack.c.l.b16 %v1199
      %v1232 = vpack.c.b16 %v1217, %v1216
      %v1233 = vpack.c.b16 %v1219, %v1218
      %v1234 = vpack.c.b16 %v1221, %v1220
      %v1235 = vpack.c.b16 %v1223, %v1222
      %v1236 = vpack.c.b16 %v1225, %v1224
      %v1237 = vpack.c.b16 %v1227, %v1226
      %v1238 = vpack.c.b16 %v1229, %v1228
      %v1239 = vpack.c.b16 %v1231, %v1230
      %1248 = vmatprep.subr.bf16.mxu0 0
      %1249 = vmatpush1.bf16.msra.mxu0 %v1232
      %1250 = vmatprep.subr.bf16.mxu0 0
      %1251 = vmatpush1.bf16.msra.mxu0 %v1233
      %1252 = vmatprep.subr.bf16.mxu0 0
      %1253 = vmatpush1.bf16.msra.mxu0 %v1234
      %1254 = vmatprep.subr.bf16.mxu0 0
      %1255 = vmatpush1.bf16.msra.mxu0 %v1235
      %1256 = vmatprep.subr.bf16.mxu0 0
      %1257 = vmatpush1.bf16.msra.mxu0 %v1236
      %1258 = vmatprep.subr.bf16.mxu0 0
      %1259 = vmatpush1.bf16.msra.mxu0 %v1237
      %1260 = vmatprep.subr.bf16.mxu0 0
      %1261 = vmatpush1.bf16.msra.mxu0 %v1238
      %1262 = vmatprep.subr.bf16.mxu0 0
      %1263 = vmatpush1.bf16.msra.mxu0 %v1239
      %1264 = vmatprep.subr.bf16.mxu0 0
      %1265 = vmatpush1.bf16.msra.mxu0 0
      %1266 = vmatprep.subr.bf16.mxu0 0
      %1267 = vmatpush1.bf16.msra.mxu0 0
      %1268 = vmatprep.subr.bf16.mxu0 0
      %1269 = vmatpush1.bf16.msra.mxu0 0
      %1270 = vmatprep.subr.bf16.mxu0 0
      %1271 = vmatpush1.bf16.msra.mxu0 0
      %1272 = vmatprep.subr.bf16.mxu0 0
      %1273 = vmatpush1.bf16.msra.mxu0 0
      %1274 = vmatprep.subr.bf16.mxu0 0
      %1275 = vmatpush1.bf16.msra.mxu0 0
      %1276 = vmatprep.subr.bf16.mxu0 0
      %1277 = vmatpush1.bf16.msra.mxu0 0
      %1278 = vmatprep.subr.bf16.mxu0 0
      %1279 = vmatpush1.bf16.msra.mxu0 0
      %1280 = vmatprep.mubr.bf16.mxu0 0
      %1281 = vmatmul.mubr.bf16.gmra.mrb[0].mxu0 %v1170
      %v1282 = vpop.f32.mrb[0].mxu0
      %v1283 = vadd.f32 0.0, %v1282
      %v1284 = vpop.f32.mrb[0].mxu0
      %v1285 = vpop.f32.mrb[0].mxu0
      %v1286 = vadd.f32 0.0, %v1285
      %v1287 = vpop.f32.mrb[0].mxu0
      %1288 = vmatprep.mubr.bf16.mxu0 0
      %1289 = vmatmul.mubr.bf16.gmra.mrb[0].mxu0 %v1171
      %v1290 = vpop.f32.mrb[0].mxu0
      %v1291 = vadd.f32 0.0, %v1290
      %v1292 = vpop.f32.mrb[0].mxu0
      %v1293 = vpop.f32.mrb[0].mxu0
      %v1294 = vadd.f32 0.0, %v1293
      %v1295 = vpop.f32.mrb[0].mxu0
      %1296 = vmatprep.mubr.bf16.mxu0 0
      %1297 = vmatmul.mubr.bf16.gmra.mrb[0].mxu0 %v1172
      %v1298 = vpop.f32.mrb[0].mxu0
      %v1299 = vadd.f32 0.0, %v1298
      %v1300 = vpop.f32.mrb[0].mxu0
      %v1301 = vpop.f32.mrb[0].mxu0
      %v1302 = vadd.f32 0.0, %v1301
      %v1303 = vpop.f32.mrb[0].mxu0
      %1304 = vmatprep.mubr.bf16.mxu0 0
      %1305 = vmatmul.mubr.bf16.gmra.mrb[0].mxu0 %v1173
      %v1306 = vpop.f32.mrb[0].mxu0
      %v1307 = vadd.f32 0.0, %v1306
      %v1308 = vpop.f32.mrb[0].mxu0
      %v1309 = vpop.f32.mrb[0].mxu0
      %v1310 = vadd.f32 0.0, %v1309
      %v1311 = vpop.f32.mrb[0].mxu0
      %1312 = vmatprep.mubr.bf16.mxu0 0
      %1313 = vmatmul.mubr.bf16.gmra.mrb[0].mxu0 %v1174
      %v1314 = vpop.f32.mrb[0].mxu0
      %v1315 = vadd.f32 0.0, %v1314
      %v1316 = vpop.f32.mrb[0].mxu0
      %v1317 = vpop.f32.mrb[0].mxu0
      %v1318 = vadd.f32 0.0, %v1317
      %v1319 = vpop.f32.mrb[0].mxu0
      %1320 = vmatprep.mubr.bf16.mxu0 0
      %1321 = vmatmul.mubr.bf16.gmra.mrb[0].mxu0 %v1175
      %v1322 = vpop.f32.mrb[0].mxu0
      %v1323 = vadd.f32 0.0, %v1322
      %v1324 = vpop.f32.mrb[0].mxu0
      %v1325 = vpop.f32.mrb[0].mxu0
      %v1326 = vadd.f32 0.0, %v1325
      %v1327 = vpop.f32.mrb[0].mxu0
      %1328 = vmatprep.mubr.bf16.mxu0 0
      %1329 = vmatmul.mubr.bf16.gmra.mrb[0].mxu0 %v1176
      %v1330 = vpop.f32.mrb[0].mxu0
      %v1331 = vadd.f32 0.0, %v1330
      %v1332 = vpop.f32.mrb[0].mxu0
      %v1333 = vpop.f32.mrb[0].mxu0
      %v1334 = vadd.f32 0.0, %v1333
      %v1335 = vpop.f32.mrb[0].mxu0
      %1336 = vmatprep.mubr.bf16.mxu0 0
      %1337 = vmatmul.mubr.bf16.gmra.mrb[0].mxu0 %v1177
      %v1338 = vpop.f32.mrb[0].mxu0
      %v1339 = vadd.f32 0.0, %v1338
      %v1340 = vpop.f32.mrb[0].mxu0
      %v1341 = vpop.f32.mrb[0].mxu0
      %v1342 = vadd.f32 0.0, %v1341
      %v1343 = vpop.f32.mrb[0].mxu0
      %1344 = vmatprep.mubr.bf16.mxu0 0
      %1345 = vmatmul.mubr.bf16.gmra.mrb[0].mxu0 %v1178
      %v1346 = vpop.f32.mrb[0].mxu0
      %v1347 = vadd.f32 0.0, %v1346
      %v1348 = vpop.f32.mrb[0].mxu0
      %v1349 = vpop.f32.mrb[0].mxu0
      %v1350 = vadd.f32 0.0, %v1349
      %v1351 = vpop.f32.mrb[0].mxu0
      %1352 = vmatprep.mubr.bf16.mxu0 0
      %1353 = vmatmul.mubr.bf16.gmra.mrb[0].mxu0 %v1179
      %v1354 = vpop.f32.mrb[0].mxu0
      %v1355 = vadd.f32 0.0, %v1354
      %v1356 = vpop.f32.mrb[0].mxu0
      %v1357 = vpop.f32.mrb[0].mxu0
      %v1358 = vadd.f32 0.0, %v1357
      %v1359 = vpop.f32.mrb[0].mxu0
      %1360 = vmatprep.mubr.bf16.mxu0 0
      %1361 = vmatmul.mubr.bf16.gmra.mrb[0].mxu0 %v1180
      %v1362 = vpop.f32.mrb[0].mxu0
      %v1363 = vadd.f32 0.0, %v1362
      %v1364 = vpop.f32.mrb[0].mxu0
      %v1365 = vpop.f32.mrb[0].mxu0
      %v1366 = vadd.f32 0.0, %v1365
      %v1367 = vpop.f32.mrb[0].mxu0
      %1368 = vmatprep.mubr.bf16.mxu0 0
      %1369 = vmatmul.mubr.bf16.gmra.mrb[0].mxu0 %v1181
      %v1370 = vpop.f32.mrb[0].mxu0
      %v1371 = vadd.f32 0.0, %v1370
      %v1372 = vpop.f32.mrb[0].mxu0
      %v1373 = vpop.f32.mrb[0].mxu0
      %v1374 = vadd.f32 0.0, %v1373
      %v1375 = vpop.f32.mrb[0].mxu0
      %1376 = vmatprep.mubr.bf16.mxu0 0
      %1377 = vmatmul.mubr.bf16.gmra.mrb[0].mxu0 %v1182
      %v1378 = vpop.f32.mrb[0].mxu0
      %v1379 = vadd.f32 0.0, %v1378
      %v1380 = vpop.f32.mrb[0].mxu0
      %v1381 = vpop.f32.mrb[0].mxu0
      %v1382 = vadd.f32 0.0, %v1381
      %v1383 = vpop.f32.mrb[0].mxu0
      %1384 = vmatprep.mubr.bf16.mxu0 0
      %1385 = vmatmul.mubr.bf16.gmra.mrb[0].mxu0 %v1183
      %v1386 = vpop.f32.mrb[0].mxu0
      %v1387 = vadd.f32 0.0, %v1386
      %v1388 = vpop.f32.mrb[0].mxu0
      %v1389 = vpop.f32.mrb[0].mxu0
      %v1390 = vadd.f32 0.0, %v1389
      %v1391 = vpop.f32.mrb[0].mxu0
      %1392 = vdwg.mxu0
      %v1393 = vadd.f32 %v1032, %v1283
      %v1394 = vadd.f32 %v1035, %v1286
      %v1395 = vadd.f32 %v1040, %v1291
      %v1396 = vadd.f32 %v1043, %v1294
      %v1397 = vadd.f32 %v1048, %v1299
      %v1398 = vadd.f32 %v1051, %v1302
      %v1399 = vadd.f32 %v1056, %v1307
      %v1400 = vadd.f32 %v1059, %v1310
      %v1401 = vadd.f32 %v1064, %v1315
      %v1402 = vadd.f32 %v1067, %v1318
      %v1403 = vadd.f32 %v1072, %v1323
      %v1404 = vadd.f32 %v1075, %v1326
      %v1405 = vadd.f32 %v1080, %v1331
      %v1406 = vadd.f32 %v1083, %v1334
      %v1407 = vadd.f32 %v1088, %v1339
      %v1408 = vadd.f32 %v1091, %v1342
      %v1409 = vadd.f32 %v1096, %v1347
      %v1410 = vadd.f32 %v1099, %v1350
      %v1411 = vadd.f32 %v1104, %v1355
      %v1412 = vadd.f32 %v1107, %v1358
      %v1413 = vadd.f32 %v1112, %v1363
      %v1414 = vadd.f32 %v1115, %v1366
      %v1415 = vadd.f32 %v1120, %v1371
      %v1416 = vadd.f32 %v1123, %v1374
      %v1417 = vadd.f32 %v1128, %v1379
      %v1418 = vadd.f32 %v1131, %v1382
      %v1419 = vadd.f32 %v1136, %v1387
      %v1420 = vadd.f32 %v1139, %v1390
      %v1421 = vld [vmem:[#allocation2 + $0x10] sm:$0xff]
      %v1422 = vld [vmem:[#allocation2 + $0x18] sm:$0xff]
      %v1423 = vld [vmem:[#allocation2 + $0x20] sm:$0xff]
      %v1424 = vld [vmem:[#allocation2 + $0x28] sm:$0xff]
      %v1425 = vld [vmem:[#allocation2 + $0x30] sm:$0xff]
      %v1426 = vld [vmem:[#allocation2 + $0x38] sm:$0xff]
      %v1427 = vld [vmem:[#allocation2 + $0x40] sm:$0xff]
      %v1428 = vld [vmem:[#allocation2 + $0x48] sm:$0xff]
      %v1429 = vld [vmem:[#allocation2 + $0x50] sm:$0xff]
      %v1430 = vld [vmem:[#allocation2 + $0x58] sm:$0xff]
      %v1431 = vld [vmem:[#allocation2 + $0x60] sm:$0xff]
      %v1432 = vld [vmem:[#allocation2 + $0x68] sm:$0xff]
      %v1433 = vld [vmem:[#allocation2 + $0x70] sm:$0xff]
      %v1434 = vld [vmem:[#allocation2 + $0x78] sm:$0xff]
      %v1435 = vld [vmem:[#allocation2 + $0x80] sm:$0xff]
      %v1436 = vld [vmem:[#allocation2 + $0x88] sm:$0xff]
      %v1437 = vld [vmem:[#allocation2 + $0x90] sm:$0xff]
      %v1438 = vld [vmem:[#allocation2 + $0x98] sm:$0xff]
      %v1439 = vld [vmem:[#allocation2 + $0xa0] sm:$0xff]
      %v1440 = vld [vmem:[#allocation2 + $0xa8] sm:$0xff]
      %v1441 = vld [vmem:[#allocation2 + $0xb0] sm:$0xff]
      %v1442 = vld [vmem:[#allocation2 + $0xb8] sm:$0xff]
      %v1443 = vld [vmem:[#allocation2 + $0xc0] sm:$0xff]
      %v1444 = vld [vmem:[#allocation2 + $0xc8] sm:$0xff]
      %v1445 = vld [vmem:[#allocation2 + $0xd0] sm:$0xff]
      %v1446 = vld [vmem:[#allocation2 + $0xd8] sm:$0xff]
      %v1447 = vld [vmem:[#allocation2 + $0xe0] sm:$0xff]
      %v1448 = vld [vmem:[#allocation2 + $0xe8] sm:$0xff]
      %v1449 = vpack.c.bf16 %v1422, %v1421
      %v1450 = vpack.c.bf16 %v1424, %v1423
      %v1451 = vpack.c.bf16 %v1426, %v1425
      %v1452 = vpack.c.bf16 %v1428, %v1427
      %v1453 = vpack.c.bf16 %v1430, %v1429
      %v1454 = vpack.c.bf16 %v1432, %v1431
      %v1455 = vpack.c.bf16 %v1434, %v1433
      %v1456 = vpack.c.bf16 %v1436, %v1435
      %v1457 = vpack.c.bf16 %v1438, %v1437
      %v1458 = vpack.c.bf16 %v1440, %v1439
      %v1459 = vpack.c.bf16 %v1442, %v1441
      %v1460 = vpack.c.bf16 %v1444, %v1443
      %v1461 = vpack.c.bf16 %v1446, %v1445
      %v1462 = vpack.c.bf16 %v1448, %v1447
      %v1463 = vld [vmem:[%s3 + $0xc0] sm:$0xf]
      %v1464 = vld [vmem:[%s3 + $0xc4] sm:$0xf]
      %v1465 = vld [vmem:[%s3 + $0xc8] sm:$0xf]
      %v1466 = vld [vmem:[%s3 + $0xcc] sm:$0xf]
      %v1467 = vld [vmem:[%s3 + $0xd0] sm:$0xf]
      %v1468 = vld [vmem:[%s3 + $0xd4] sm:$0xf]
      %v1469 = vld [vmem:[%s3 + $0xd8] sm:$0xf]
      %v1470 = vld [vmem:[%s3 + $0xdc] sm:$0xf]
      %v1471 = vld [vmem:[%s3 + $0xe0] sm:$0xf]
      %v1472 = vld [vmem:[%s3 + $0xe4] sm:$0xf]
      %v1473 = vld [vmem:[%s3 + $0xe8] sm:$0xf]
      %v1474 = vld [vmem:[%s3 + $0xec] sm:$0xf]
      %v1475 = vld [vmem:[%s3 + $0xf0] sm:$0xf]
      %v1476 = vld [vmem:[%s3 + $0xf4] sm:$0xf]
      %v1477 = vld [vmem:[%s3 + $0xf8] sm:$0xf]
      %v1478 = vld [vmem:[%s3 + $0xfc] sm:$0xf]
      %v1495 = vunpack.c.l.b16 %v1463
      %v1496 = vunpack.c.l.b16 %v1464
      %v1497 = vunpack.c.l.b16 %v1465
      %v1498 = vunpack.c.l.b16 %v1466
      %v1499 = vunpack.c.l.b16 %v1467
      %v1500 = vunpack.c.l.b16 %v1468
      %v1501 = vunpack.c.l.b16 %v1469
      %v1502 = vunpack.c.l.b16 %v1470
      %v1503 = vunpack.c.l.b16 %v1471
      %v1504 = vunpack.c.l.b16 %v1472
      %v1505 = vunpack.c.l.b16 %v1473
      %v1506 = vunpack.c.l.b16 %v1474
      %v1507 = vunpack.c.l.b16 %v1475
      %v1508 = vunpack.c.l.b16 %v1476
      %v1509 = vunpack.c.l.b16 %v1477
      %v1510 = vunpack.c.l.b16 %v1478
      %v1511 = vpack.c.b16 %v1496, %v1495
      %v1512 = vpack.c.b16 %v1498, %v1497
      %v1513 = vpack.c.b16 %v1500, %v1499
      %v1514 = vpack.c.b16 %v1502, %v1501
      %v1515 = vpack.c.b16 %v1504, %v1503
      %v1516 = vpack.c.b16 %v1506, %v1505
      %v1517 = vpack.c.b16 %v1508, %v1507
      %v1518 = vpack.c.b16 %v1510, %v1509
      %1527 = vmatprep.subr.bf16.mxu0 0
      %1528 = vmatpush1.bf16.msra.mxu0 %v1511
      %1529 = vmatprep.subr.bf16.mxu0 0
      %1530 = vmatpush1.bf16.msra.mxu0 %v1512
      %1531 = vmatprep.subr.bf16.mxu0 0
      %1532 = vmatpush1.bf16.msra.mxu0 %v1513
      %1533 = vmatprep.subr.bf16.mxu0 0
      %1534 = vmatpush1.bf16.msra.mxu0 %v1514
      %1535 = vmatprep.subr.bf16.mxu0 0
      %1536 = vmatpush1.bf16.msra.mxu0 %v1515
      %1537 = vmatprep.subr.bf16.mxu0 0
      %1538 = vmatpush1.bf16.msra.mxu0 %v1516
      %1539 = vmatprep.subr.bf16.mxu0 0
      %1540 = vmatpush1.bf16.msra.mxu0 %v1517
      %1541 = vmatprep.subr.bf16.mxu0 0
      %1542 = vmatpush1.bf16.msra.mxu0 %v1518
      %1543 = vmatprep.subr.bf16.mxu0 0
      %1544 = vmatpush1.bf16.msra.mxu0 0
      %1545 = vmatprep.subr.bf16.mxu0 0
      %1546 = vmatpush1.bf16.msra.mxu0 0
      %1547 = vmatprep.subr.bf16.mxu0 0
      %1548 = vmatpush1.bf16.msra.mxu0 0
      %1549 = vmatprep.subr.bf16.mxu0 0
      %1550 = vmatpush1.bf16.msra.mxu0 0
      %1551 = vmatprep.subr.bf16.mxu0 0
      %1552 = vmatpush1.bf16.msra.mxu0 0
      %1553 = vmatprep.subr.bf16.mxu0 0
      %1554 = vmatpush1.bf16.msra.mxu0 0
      %1555 = vmatprep.subr.bf16.mxu0 0
      %1556 = vmatpush1.bf16.msra.mxu0 0
      %1557 = vmatprep.subr.bf16.mxu0 0
      %1558 = vmatpush1.bf16.msra.mxu0 0
      %1559 = vmatprep.mubr.bf16.mxu0 0
      %1560 = vmatmul.mubr.bf16.gmra.mrb[0].mxu0 %v1449
      %v1561 = vpop.f32.mrb[0].mxu0
      %v1562 = vadd.f32 0.0, %v1561
      %v1563 = vpop.f32.mrb[0].mxu0
      %v1564 = vpop.f32.mrb[0].mxu0
      %v1565 = vadd.f32 0.0, %v1564
      %v1566 = vpop.f32.mrb[0].mxu0
      %1567 = vmatprep.mubr.bf16.mxu0 0
      %1568 = vmatmul.mubr.bf16.gmra.mrb[0].mxu0 %v1450
      %v1569 = vpop.f32.mrb[0].mxu0
      %v1570 = vadd.f32 0.0, %v1569
      %v1571 = vpop.f32.mrb[0].mxu0
      %v1572 = vpop.f32.mrb[0].mxu0
      %v1573 = vadd.f32 0.0, %v1572
      %v1574 = vpop.f32.mrb[0].mxu0
      %1575 = vmatprep.mubr.bf16.mxu0 0
      %1576 = vmatmul.mubr.bf16.gmra.mrb[0].mxu0 %v1451
      %v1577 = vpop.f32.mrb[0].mxu0
      %v1578 = vadd.f32 0.0, %v1577
      %v1579 = vpop.f32.mrb[0].mxu0
      %v1580 = vpop.f32.mrb[0].mxu0
      %v1581 = vadd.f32 0.0, %v1580
      %v1582 = vpop.f32.mrb[0].mxu0
      %1583 = vmatprep.mubr.bf16.mxu0 0
      %1584 = vmatmul.mubr.bf16.gmra.mrb[0].mxu0 %v1452
      %v1585 = vpop.f32.mrb[0].mxu0
      %v1586 = vadd.f32 0.0, %v1585
      %v1587 = vpop.f32.mrb[0].mxu0
      %v1588 = vpop.f32.mrb[0].mxu0
      %v1589 = vadd.f32 0.0, %v1588
      %v1590 = vpop.f32.mrb[0].mxu0
      %1591 = vmatprep.mubr.bf16.mxu0 0
      %1592 = vmatmul.mubr.bf16.gmra.mrb[0].mxu0 %v1453
      %v1593 = vpop.f32.mrb[0].mxu0
      %v1594 = vadd.f32 0.0, %v1593
      %v1595 = vpop.f32.mrb[0].mxu0
      %v1596 = vpop.f32.mrb[0].mxu0
      %v1597 = vadd.f32 0.0, %v1596
      %v1598 = vpop.f32.mrb[0].mxu0
      %1599 = vmatprep.mubr.bf16.mxu0 0
      %1600 = vmatmul.mubr.bf16.gmra.mrb[0].mxu0 %v1454
      %v1601 = vpop.f32.mrb[0].mxu0
      %v1602 = vadd.f32 0.0, %v1601
      %v1603 = vpop.f32.mrb[0].mxu0
      %v1604 = vpop.f32.mrb[0].mxu0
      %v1605 = vadd.f32 0.0, %v1604
      %v1606 = vpop.f32.mrb[0].mxu0
      %1607 = vmatprep.mubr.bf16.mxu0 0
      %1608 = vmatmul.mubr.bf16.gmra.mrb[0].mxu0 %v1455
      %v1609 = vpop.f32.mrb[0].mxu0
      %v1610 = vadd.f32 0.0, %v1609
      %v1611 = vpop.f32.mrb[0].mxu0
      %v1612 = vpop.f32.mrb[0].mxu0
      %v1613 = vadd.f32 0.0, %v1612
      %v1614 = vpop.f32.mrb[0].mxu0
      %1615 = vmatprep.mubr.bf16.mxu0 0
      %1616 = vmatmul.mubr.bf16.gmra.mrb[0].mxu0 %v1456
      %v1617 = vpop.f32.mrb[0].mxu0
      %v1618 = vadd.f32 0.0, %v1617
      %v1619 = vpop.f32.mrb[0].mxu0
      %v1620 = vpop.f32.mrb[0].mxu0
      %v1621 = vadd.f32 0.0, %v1620
      %v1622 = vpop.f32.mrb[0].mxu0
      %1623 = vmatprep.mubr.bf16.mxu0 0
      %1624 = vmatmul.mubr.bf16.gmra.mrb[0].mxu0 %v1457
      %v1625 = vpop.f32.mrb[0].mxu0
      %v1626 = vadd.f32 0.0, %v1625
      %v1627 = vpop.f32.mrb[0].mxu0
      %v1628 = vpop.f32.mrb[0].mxu0
      %v1629 = vadd.f32 0.0, %v1628
      %v1630 = vpop.f32.mrb[0].mxu0
      %1631 = vmatprep.mubr.bf16.mxu0 0
      %1632 = vmatmul.mubr.bf16.gmra.mrb[0].mxu0 %v1458
      %v1633 = vpop.f32.mrb[0].mxu0
      %v1634 = vadd.f32 0.0, %v1633
      %v1635 = vpop.f32.mrb[0].mxu0
      %v1636 = vpop.f32.mrb[0].mxu0
      %v1637 = vadd.f32 0.0, %v1636
      %v1638 = vpop.f32.mrb[0].mxu0
      %1639 = vmatprep.mubr.bf16.mxu0 0
      %1640 = vmatmul.mubr.bf16.gmra.mrb[0].mxu0 %v1459
      %v1641 = vpop.f32.mrb[0].mxu0
      %v1642 = vadd.f32 0.0, %v1641
      %v1643 = vpop.f32.mrb[0].mxu0
      %v1644 = vpop.f32.mrb[0].mxu0
      %v1645 = vadd.f32 0.0, %v1644
      %v1646 = vpop.f32.mrb[0].mxu0
      %1647 = vmatprep.mubr.bf16.mxu0 0
      %1648 = vmatmul.mubr.bf16.gmra.mrb[0].mxu0 %v1460
      %v1649 = vpop.f32.mrb[0].mxu0
      %v1650 = vadd.f32 0.0, %v1649
      %v1651 = vpop.f32.mrb[0].mxu0
      %v1652 = vpop.f32.mrb[0].mxu0
      %v1653 = vadd.f32 0.0, %v1652
      %v1654 = vpop.f32.mrb[0].mxu0
      %1655 = vmatprep.mubr.bf16.mxu0 0
      %1656 = vmatmul.mubr.bf16.gmra.mrb[0].mxu0 %v1461
      %v1657 = vpop.f32.mrb[0].mxu0
      %v1658 = vadd.f32 0.0, %v1657
      %v1659 = vpop.f32.mrb[0].mxu0
      %v1660 = vpop.f32.mrb[0].mxu0
      %v1661 = vadd.f32 0.0, %v1660
      %v1662 = vpop.f32.mrb[0].mxu0
      %1663 = vmatprep.mubr.bf16.mxu0 0
      %1664 = vmatmul.mubr.bf16.gmra.mrb[0].mxu0 %v1462
      %v1665 = vpop.f32.mrb[0].mxu0
      %v1666 = vadd.f32 0.0, %v1665
      %v1667 = vpop.f32.mrb[0].mxu0
      %v1668 = vpop.f32.mrb[0].mxu0
      %v1669 = vadd.f32 0.0, %v1668
      %v1670 = vpop.f32.mrb[0].mxu0
      %1671 = vdwg.mxu0
      %v1672 = vadd.f32 %v1393, %v1562
      %v1673 = vadd.f32 %v1394, %v1565
      %v1674 = vadd.f32 %v1395, %v1570
      %v1675 = vadd.f32 %v1396, %v1573
      %v1676 = vadd.f32 %v1397, %v1578
      %v1677 = vadd.f32 %v1398, %v1581
      %v1678 = vadd.f32 %v1399, %v1586
      %v1679 = vadd.f32 %v1400, %v1589
      %v1680 = vadd.f32 %v1401, %v1594
      %v1681 = vadd.f32 %v1402, %v1597
      %v1682 = vadd.f32 %v1403, %v1602
      %v1683 = vadd.f32 %v1404, %v1605
      %v1684 = vadd.f32 %v1405, %v1610
      %v1685 = vadd.f32 %v1406, %v1613
      %v1686 = vadd.f32 %v1407, %v1618
      %v1687 = vadd.f32 %v1408, %v1621
      %v1688 = vadd.f32 %v1409, %v1626
      %v1689 = vadd.f32 %v1410, %v1629
      %v1690 = vadd.f32 %v1411, %v1634
      %v1691 = vadd.f32 %v1412, %v1637
      %v1692 = vadd.f32 %v1413, %v1642
      %v1693 = vadd.f32 %v1414, %v1645
      %v1694 = vadd.f32 %v1415, %v1650
      %v1695 = vadd.f32 %v1416, %v1653
      %v1696 = vadd.f32 %v1417, %v1658
      %v1697 = vadd.f32 %v1418, %v1661
      %v1698 = vadd.f32 %v1419, %v1666
      %v1699 = vadd.f32 %v1420, %v1669
      %v1700 = vld [vmem:[#allocation2 + $0x11] sm:$0xff]
      %v1701 = vld [vmem:[#allocation2 + $0x19] sm:$0xff]
      %v1702 = vld [vmem:[#allocation2 + $0x21] sm:$0xff]
      %v1703 = vld [vmem:[#allocation2 + $0x29] sm:$0xff]
      %v1704 = vld [vmem:[#allocation2 + $0x31] sm:$0xff]
      %v1705 = vld [vmem:[#allocation2 + $0x39] sm:$0xff]
      %v1706 = vld [vmem:[#allocation2 + $0x41] sm:$0xff]
      %v1707 = vld [vmem:[#allocation2 + $0x49] sm:$0xff]
      %v1708 = vld [vmem:[#allocation2 + $0x51] sm:$0xff]
      %v1709 = vld [vmem:[#allocation2 + $0x59] sm:$0xff]
      %v1710 = vld [vmem:[#allocation2 + $0x61] sm:$0xff]
      %v1711 = vld [vmem:[#allocation2 + $0x69] sm:$0xff]
      %v1712 = vld [vmem:[#allocation2 + $0x71] sm:$0xff]
      %v1713 = vld [vmem:[#allocation2 + $0x79] sm:$0xff]
      %v1714 = vld [vmem:[#allocation2 + $0x81] sm:$0xff]
      %v1715 = vld [vmem:[#allocation2 + $0x89] sm:$0xff]
      %v1716 = vld [vmem:[#allocation2 + $0x91] sm:$0xff]
      %v1717 = vld [vmem:[#allocation2 + $0x99] sm:$0xff]
      %v1718 = vld [vmem:[#allocation2 + $0xa1] sm:$0xff]
      %v1719 = vld [vmem:[#allocation2 + $0xa9] sm:$0xff]
      %v1720 = vld [vmem:[#allocation2 + $0xb1] sm:$0xff]
      %v1721 = vld [vmem:[#allocation2 + $0xb9] sm:$0xff]
      %v1722 = vld [vmem:[#allocation2 + $0xc1] sm:$0xff]
      %v1723 = vld [vmem:[#allocation2 + $0xc9] sm:$0xff]
      %v1724 = vld [vmem:[#allocation2 + $0xd1] sm:$0xff]
      %v1725 = vld [vmem:[#allocation2 + $0xd9] sm:$0xff]
      %v1726 = vld [vmem:[#allocation2 + $0xe1] sm:$0xff]
      %v1727 = vld [vmem:[#allocation2 + $0xe9] sm:$0xff]
      %v1728 = vpack.c.bf16 %v1701, %v1700
      %v1729 = vpack.c.bf16 %v1703, %v1702
      %v1730 = vpack.c.bf16 %v1705, %v1704
      %v1731 = vpack.c.bf16 %v1707, %v1706
      %v1732 = vpack.c.bf16 %v1709, %v1708
      %v1733 = vpack.c.bf16 %v1711, %v1710
      %v1734 = vpack.c.bf16 %v1713, %v1712
      %v1735 = vpack.c.bf16 %v1715, %v1714
      %v1736 = vpack.c.bf16 %v1717, %v1716
      %v1737 = vpack.c.bf16 %v1719, %v1718
      %v1738 = vpack.c.bf16 %v1721, %v1720
      %v1739 = vpack.c.bf16 %v1723, %v1722
      %v1740 = vpack.c.bf16 %v1725, %v1724
      %v1741 = vpack.c.bf16 %v1727, %v1726
      %v1742 = vld [vmem:[%s3 + $0x100] sm:$0xf]
      %v1743 = vld [vmem:[%s3 + $0x104] sm:$0xf]
      %v1744 = vld [vmem:[%s3 + $0x108] sm:$0xf]
      %v1745 = vld [vmem:[%s3 + $0x10c] sm:$0xf]
      %v1746 = vld [vmem:[%s3 + $0x110] sm:$0xf]
      %v1747 = vld [vmem:[%s3 + $0x114] sm:$0xf]
      %v1748 = vld [vmem:[%s3 + $0x118] sm:$0xf]
      %v1749 = vld [vmem:[%s3 + $0x11c] sm:$0xf]
      %v1750 = vld [vmem:[%s3 + $0x120] sm:$0xf]
      %v1751 = vld [vmem:[%s3 + $0x124] sm:$0xf]
      %v1752 = vld [vmem:[%s3 + $0x128] sm:$0xf]
      %v1753 = vld [vmem:[%s3 + $0x12c] sm:$0xf]
      %v1754 = vld [vmem:[%s3 + $0x130] sm:$0xf]
      %v1755 = vld [vmem:[%s3 + $0x134] sm:$0xf]
      %v1756 = vld [vmem:[%s3 + $0x138] sm:$0xf]
      %v1757 = vld [vmem:[%s3 + $0x13c] sm:$0xf]
      %v1774 = vunpack.c.l.b16 %v1742
      %v1775 = vunpack.c.l.b16 %v1743
      %v1776 = vunpack.c.l.b16 %v1744
      %v1777 = vunpack.c.l.b16 %v1745
      %v1778 = vunpack.c.l.b16 %v1746
      %v1779 = vunpack.c.l.b16 %v1747
      %v1780 = vunpack.c.l.b16 %v1748
      %v1781 = vunpack.c.l.b16 %v1749
      %v1782 = vunpack.c.l.b16 %v1750
      %v1783 = vunpack.c.l.b16 %v1751
      %v1784 = vunpack.c.l.b16 %v1752
      %v1785 = vunpack.c.l.b16 %v1753
      %v1786 = vunpack.c.l.b16 %v1754
      %v1787 = vunpack.c.l.b16 %v1755
      %v1788 = vunpack.c.l.b16 %v1756
      %v1789 = vunpack.c.l.b16 %v1757
      %v1790 = vpack.c.b16 %v1775, %v1774
      %v1791 = vpack.c.b16 %v1777, %v1776
      %v1792 = vpack.c.b16 %v1779, %v1778
      %v1793 = vpack.c.b16 %v1781, %v1780
      %v1794 = vpack.c.b16 %v1783, %v1782
      %v1795 = vpack.c.b16 %v1785, %v1784
      %v1796 = vpack.c.b16 %v1787, %v1786
      %v1797 = vpack.c.b16 %v1789, %v1788
      %1806 = vmatprep.subr.bf16.mxu0 0
      %1807 = vmatpush1.bf16.msra.mxu0 %v1790
      %1808 = vmatprep.subr.bf16.mxu0 0
      %1809 = vmatpush1.bf16.msra.mxu0 %v1791
      %1810 = vmatprep.subr.bf16.mxu0 0
      %1811 = vmatpush1.bf16.msra.mxu0 %v1792
      %1812 = vmatprep.subr.bf16.mxu0 0
      %1813 = vmatpush1.bf16.msra.mxu0 %v1793
      %1814 = vmatprep.subr.bf16.mxu0 0
      %1815 = vmatpush1.bf16.msra.mxu0 %v1794
      %1816 = vmatprep.subr.bf16.mxu0 0
      %1817 = vmatpush1.bf16.msra.mxu0 %v1795
      %1818 = vmatprep.subr.bf16.mxu0 0
      %1819 = vmatpush1.bf16.msra.mxu0 %v1796
      %1820 = vmatprep.subr.bf16.mxu0 0
      %1821 = vmatpush1.bf16.msra.mxu0 %v1797
      %1822 = vmatprep.subr.bf16.mxu0 0
      %1823 = vmatpush1.bf16.msra.mxu0 0
      %1824 = vmatprep.subr.bf16.mxu0 0
      %1825 = vmatpush1.bf16.msra.mxu0 0
      %1826 = vmatprep.subr.bf16.mxu0 0
      %1827 = vmatpush1.bf16.msra.mxu0 0
      %1828 = vmatprep.subr.bf16.mxu0 0
      %1829 = vmatpush1.bf16.msra.mxu0 0
      %1830 = vmatprep.subr.bf16.mxu0 0
      %1831 = vmatpush1.bf16.msra.mxu0 0
      %1832 = vmatprep.subr.bf16.mxu0 0
      %1833 = vmatpush1.bf16.msra.mxu0 0
      %1834 = vmatprep.subr.bf16.mxu0 0
      %1835 = vmatpush1.bf16.msra.mxu0 0
      %1836 = vmatprep.subr.bf16.mxu0 0
      %1837 = vmatpush1.bf16.msra.mxu0 0
      %1838 = vmatprep.mubr.bf16.mxu0 0
      %1839 = vmatmul.mubr.bf16.gmra.mrb[0].mxu0 %v1728
      %v1840 = vpop.f32.mrb[0].mxu0
      %v1841 = vadd.f32 0.0, %v1840
      %v1842 = vpop.f32.mrb[0].mxu0
      %v1843 = vpop.f32.mrb[0].mxu0
      %v1844 = vadd.f32 0.0, %v1843
      %v1845 = vpop.f32.mrb[0].mxu0
      %1846 = vmatprep.mubr.bf16.mxu0 0
      %1847 = vmatmul.mubr.bf16.gmra.mrb[0].mxu0 %v1729
      %v1848 = vpop.f32.mrb[0].mxu0
      %v1849 = vadd.f32 0.0, %v1848
      %v1850 = vpop.f32.mrb[0].mxu0
      %v1851 = vpop.f32.mrb[0].mxu0
      %v1852 = vadd.f32 0.0, %v1851
      %v1853 = vpop.f32.mrb[0].mxu0
      %1854 = vmatprep.mubr.bf16.mxu0 0
      %1855 = vmatmul.mubr.bf16.gmra.mrb[0].mxu0 %v1730
      %v1856 = vpop.f32.mrb[0].mxu0
      %v1857 = vadd.f32 0.0, %v1856
      %v1858 = vpop.f32.mrb[0].mxu0
      %v1859 = vpop.f32.mrb[0].mxu0
      %v1860 = vadd.f32 0.0, %v1859
      %v1861 = vpop.f32.mrb[0].mxu0
      %1862 = vmatprep.mubr.bf16.mxu0 0
      %1863 = vmatmul.mubr.bf16.gmra.mrb[0].mxu0 %v1731
      %v1864 = vpop.f32.mrb[0].mxu0
      %v1865 = vadd.f32 0.0, %v1864
      %v1866 = vpop.f32.mrb[0].mxu0
      %v1867 = vpop.f32.mrb[0].mxu0
      %v1868 = vadd.f32 0.0, %v1867
      %v1869 = vpop.f32.mrb[0].mxu0
      %1870 = vmatprep.mubr.bf16.mxu0 0
      %1871 = vmatmul.mubr.bf16.gmra.mrb[0].mxu0 %v1732
      %v1872 = vpop.f32.mrb[0].mxu0
      %v1873 = vadd.f32 0.0, %v1872
      %v1874 = vpop.f32.mrb[0].mxu0
      %v1875 = vpop.f32.mrb[0].mxu0
      %v1876 = vadd.f32 0.0, %v1875
      %v1877 = vpop.f32.mrb[0].mxu0
      %1878 = vmatprep.mubr.bf16.mxu0 0
      %1879 = vmatmul.mubr.bf16.gmra.mrb[0].mxu0 %v1733
      %v1880 = vpop.f32.mrb[0].mxu0
      %v1881 = vadd.f32 0.0, %v1880
      %v1882 = vpop.f32.mrb[0].mxu0
      %v1883 = vpop.f32.mrb[0].mxu0
      %v1884 = vadd.f32 0.0, %v1883
      %v1885 = vpop.f32.mrb[0].mxu0
      %1886 = vmatprep.mubr.bf16.mxu0 0
      %1887 = vmatmul.mubr.bf16.gmra.mrb[0].mxu0 %v1734
      %v1888 = vpop.f32.mrb[0].mxu0
      %v1889 = vadd.f32 0.0, %v1888
      %v1890 = vpop.f32.mrb[0].mxu0
      %v1891 = vpop.f32.mrb[0].mxu0
      %v1892 = vadd.f32 0.0, %v1891
      %v1893 = vpop.f32.mrb[0].mxu0
      %1894 = vmatprep.mubr.bf16.mxu0 0
      %1895 = vmatmul.mubr.bf16.gmra.mrb[0].mxu0 %v1735
      %v1896 = vpop.f32.mrb[0].mxu0
      %v1897 = vadd.f32 0.0, %v1896
      %v1898 = vpop.f32.mrb[0].mxu0
      %v1899 = vpop.f32.mrb[0].mxu0
      %v1900 = vadd.f32 0.0, %v1899
      %v1901 = vpop.f32.mrb[0].mxu0
      %1902 = vmatprep.mubr.bf16.mxu0 0
      %1903 = vmatmul.mubr.bf16.gmra.mrb[0].mxu0 %v1736
      %v1904 = vpop.f32.mrb[0].mxu0
      %v1905 = vadd.f32 0.0, %v1904
      %v1906 = vpop.f32.mrb[0].mxu0
      %v1907 = vpop.f32.mrb[0].mxu0
      %v1908 = vadd.f32 0.0, %v1907
      %v1909 = vpop.f32.mrb[0].mxu0
      %1910 = vmatprep.mubr.bf16.mxu0 0
      %1911 = vmatmul.mubr.bf16.gmra.mrb[0].mxu0 %v1737
      %v1912 = vpop.f32.mrb[0].mxu0
      %v1913 = vadd.f32 0.0, %v1912
      %v1914 = vpop.f32.mrb[0].mxu0
      %v1915 = vpop.f32.mrb[0].mxu0
      %v1916 = vadd.f32 0.0, %v1915
      %v1917 = vpop.f32.mrb[0].mxu0
      %1918 = vmatprep.mubr.bf16.mxu0 0
      %1919 = vmatmul.mubr.bf16.gmra.mrb[0].mxu0 %v1738
      %v1920 = vpop.f32.mrb[0].mxu0
      %v1921 = vadd.f32 0.0, %v1920
      %v1922 = vpop.f32.mrb[0].mxu0
      %v1923 = vpop.f32.mrb[0].mxu0
      %v1924 = vadd.f32 0.0, %v1923
      %v1925 = vpop.f32.mrb[0].mxu0
      %1926 = vmatprep.mubr.bf16.mxu0 0
      %1927 = vmatmul.mubr.bf16.gmra.mrb[0].mxu0 %v1739
      %v1928 = vpop.f32.mrb[0].mxu0
      %v1929 = vadd.f32 0.0, %v1928
      %v1930 = vpop.f32.mrb[0].mxu0
      %v1931 = vpop.f32.mrb[0].mxu0
      %v1932 = vadd.f32 0.0, %v1931
      %v1933 = vpop.f32.mrb[0].mxu0
      %1934 = vmatprep.mubr.bf16.mxu0 0
      %1935 = vmatmul.mubr.bf16.gmra.mrb[0].mxu0 %v1740
      %v1936 = vpop.f32.mrb[0].mxu0
      %v1937 = vadd.f32 0.0, %v1936
      %v1938 = vpop.f32.mrb[0].mxu0
      %v1939 = vpop.f32.mrb[0].mxu0
      %v1940 = vadd.f32 0.0, %v1939
      %v1941 = vpop.f32.mrb[0].mxu0
      %1942 = vmatprep.mubr.bf16.mxu0 0
      %1943 = vmatmul.mubr.bf16.gmra.mrb[0].mxu0 %v1741
      %v1944 = vpop.f32.mrb[0].mxu0
      %v1945 = vadd.f32 0.0, %v1944
      %v1946 = vpop.f32.mrb[0].mxu0
      %v1947 = vpop.f32.mrb[0].mxu0
      %v1948 = vadd.f32 0.0, %v1947
      %v1949 = vpop.f32.mrb[0].mxu0
      %1950 = vdwg.mxu0
      %v1951 = vadd.f32 %v1672, %v1841
      %v1952 = vadd.f32 %v1673, %v1844
      %v1953 = vadd.f32 %v1674, %v1849
      %v1954 = vadd.f32 %v1675, %v1852
      %v1955 = vadd.f32 %v1676, %v1857
      %v1956 = vadd.f32 %v1677, %v1860
      %v1957 = vadd.f32 %v1678, %v1865
      %v1958 = vadd.f32 %v1679, %v1868
      %v1959 = vadd.f32 %v1680, %v1873
      %v1960 = vadd.f32 %v1681, %v1876
      %v1961 = vadd.f32 %v1682, %v1881
      %v1962 = vadd.f32 %v1683, %v1884
      %v1963 = vadd.f32 %v1684, %v1889
      %v1964 = vadd.f32 %v1685, %v1892
      %v1965 = vadd.f32 %v1686, %v1897
      %v1966 = vadd.f32 %v1687, %v1900
      %v1967 = vadd.f32 %v1688, %v1905
      %v1968 = vadd.f32 %v1689, %v1908
      %v1969 = vadd.f32 %v1690, %v1913
      %v1970 = vadd.f32 %v1691, %v1916
      %v1971 = vadd.f32 %v1692, %v1921
      %v1972 = vadd.f32 %v1693, %v1924
      %v1973 = vadd.f32 %v1694, %v1929
      %v1974 = vadd.f32 %v1695, %v1932
      %v1975 = vadd.f32 %v1696, %v1937
      %v1976 = vadd.f32 %v1697, %v1940
      %v1977 = vadd.f32 %v1698, %v1945
      %v1978 = vadd.f32 %v1699, %v1948
      %v1979 = vld [vmem:[#allocation2 + $0x12] sm:$0xff]
      %v1980 = vld [vmem:[#allocation2 + $0x1a] sm:$0xff]
      %v1981 = vld [vmem:[#allocation2 + $0x22] sm:$0xff]
      %v1982 = vld [vmem:[#allocation2 + $0x2a] sm:$0xff]
      %v1983 = vld [vmem:[#allocation2 + $0x32] sm:$0xff]
      %v1984 = vld [vmem:[#allocation2 + $0x3a] sm:$0xff]
      %v1985 = vld [vmem:[#allocation2 + $0x42] sm:$0xff]
      %v1986 = vld [vmem:[#allocation2 + $0x4a] sm:$0xff]
      %v1987 = vld [vmem:[#allocation2 + $0x52] sm:$0xff]
      %v1988 = vld [vmem:[#allocation2 + $0x5a] sm:$0xff]
      %v1989 = vld [vmem:[#allocation2 + $0x62] sm:$0xff]
      %v1990 = vld [vmem:[#allocation2 + $0x6a] sm:$0xff]
      %v1991 = vld [vmem:[#allocation2 + $0x72] sm:$0xff]
      %v1992 = vld [vmem:[#allocation2 + $0x7a] sm:$0xff]
      %v1993 = vld [vmem:[#allocation2 + $0x82] sm:$0xff]
      %v1994 = vld [vmem:[#allocation2 + $0x8a] sm:$0xff]
      %v1995 = vld [vmem:[#allocation2 + $0x92] sm:$0xff]
      %v1996 = vld [vmem:[#allocation2 + $0x9a] sm:$0xff]
      %v1997 = vld [vmem:[#allocation2 + $0xa2] sm:$0xff]
      %v1998 = vld [vmem:[#allocation2 + $0xaa] sm:$0xff]
      %v1999 = vld [vmem:[#allocation2 + $0xb2] sm:$0xff]
      %v2000 = vld [vmem:[#allocation2 + $0xba] sm:$0xff]
      %v2001 = vld [vmem:[#allocation2 + $0xc2] sm:$0xff]
      %v2002 = vld [vmem:[#allocation2 + $0xca] sm:$0xff]
      %v2003 = vld [vmem:[#allocation2 + $0xd2] sm:$0xff]
      %v2004 = vld [vmem:[#allocation2 + $0xda] sm:$0xff]
      %v2005 = vld [vmem:[#allocation2 + $0xe2] sm:$0xff]
      %v2006 = vld [vmem:[#allocation2 + $0xea] sm:$0xff]
      %v2007 = vpack.c.bf16 %v1980, %v1979
      %v2008 = vpack.c.bf16 %v1982, %v1981
      %v2009 = vpack.c.bf16 %v1984, %v1983
      %v2010 = vpack.c.bf16 %v1986, %v1985
      %v2011 = vpack.c.bf16 %v1988, %v1987
      %v2012 = vpack.c.bf16 %v1990, %v1989
      %v2013 = vpack.c.bf16 %v1992, %v1991
      %v2014 = vpack.c.bf16 %v1994, %v1993
      %v2015 = vpack.c.bf16 %v1996, %v1995
      %v2016 = vpack.c.bf16 %v1998, %v1997
      %v2017 = vpack.c.bf16 %v2000, %v1999
      %v2018 = vpack.c.bf16 %v2002, %v2001
      %v2019 = vpack.c.bf16 %v2004, %v2003
      %v2020 = vpack.c.bf16 %v2006, %v2005
      %v2021 = vld [vmem:[%s3 + $0x140] sm:$0xf]
      %v2022 = vld [vmem:[%s3 + $0x144] sm:$0xf]
      %v2023 = vld [vmem:[%s3 + $0x148] sm:$0xf]
      %v2024 = vld [vmem:[%s3 + $0x14c] sm:$0xf]
      %v2025 = vld [vmem:[%s3 + $0x150] sm:$0xf]
      %v2026 = vld [vmem:[%s3 + $0x154] sm:$0xf]
      %v2027 = vld [vmem:[%s3 + $0x158] sm:$0xf]
      %v2028 = vld [vmem:[%s3 + $0x15c] sm:$0xf]
      %v2029 = vld [vmem:[%s3 + $0x160] sm:$0xf]
      %v2030 = vld [vmem:[%s3 + $0x164] sm:$0xf]
      %v2031 = vld [vmem:[%s3 + $0x168] sm:$0xf]
      %v2032 = vld [vmem:[%s3 + $0x16c] sm:$0xf]
      %v2033 = vld [vmem:[%s3 + $0x170] sm:$0xf]
      %v2034 = vld [vmem:[%s3 + $0x174] sm:$0xf]
      %v2035 = vld [vmem:[%s3 + $0x178] sm:$0xf]
      %v2036 = vld [vmem:[%s3 + $0x17c] sm:$0xf]
      %v2053 = vunpack.c.l.b16 %v2021
      %v2054 = vunpack.c.l.b16 %v2022
      %v2055 = vunpack.c.l.b16 %v2023
      %v2056 = vunpack.c.l.b16 %v2024
      %v2057 = vunpack.c.l.b16 %v2025
      %v2058 = vunpack.c.l.b16 %v2026
      %v2059 = vunpack.c.l.b16 %v2027
      %v2060 = vunpack.c.l.b16 %v2028
      %v2061 = vunpack.c.l.b16 %v2029
      %v2062 = vunpack.c.l.b16 %v2030
      %v2063 = vunpack.c.l.b16 %v2031
      %v2064 = vunpack.c.l.b16 %v2032
      %v2065 = vunpack.c.l.b16 %v2033
      %v2066 = vunpack.c.l.b16 %v2034
      %v2067 = vunpack.c.l.b16 %v2035
      %v2068 = vunpack.c.l.b16 %v2036
      %v2069 = vpack.c.b16 %v2054, %v2053
      %v2070 = vpack.c.b16 %v2056, %v2055
      %v2071 = vpack.c.b16 %v2058, %v2057
      %v2072 = vpack.c.b16 %v2060, %v2059
      %v2073 = vpack.c.b16 %v2062, %v2061
      %v2074 = vpack.c.b16 %v2064, %v2063
      %v2075 = vpack.c.b16 %v2066, %v2065
      %v2076 = vpack.c.b16 %v2068, %v2067
      %2085 = vmatprep.subr.bf16.mxu0 0
      %2086 = vmatpush1.bf16.msra.mxu0 %v2069
      %2087 = vmatprep.subr.bf16.mxu0 0
      %2088 = vmatpush1.bf16.msra.mxu0 %v2070
      %2089 = vmatprep.subr.bf16.mxu0 0
      %2090 = vmatpush1.bf16.msra.mxu0 %v2071
      %2091 = vmatprep.subr.bf16.mxu0 0
      %2092 = vmatpush1.bf16.msra.mxu0 %v2072
      %2093 = vmatprep.subr.bf16.mxu0 0
      %2094 = vmatpush1.bf16.msra.mxu0 %v2073
      %2095 = vmatprep.subr.bf16.mxu0 0
      %2096 = vmatpush1.bf16.msra.mxu0 %v2074
      %2097 = vmatprep.subr.bf16.mxu0 0
      %2098 = vmatpush1.bf16.msra.mxu0 %v2075
      %2099 = vmatprep.subr.bf16.mxu0 0
      %2100 = vmatpush1.bf16.msra.mxu0 %v2076
      %2101 = vmatprep.subr.bf16.mxu0 0
      %2102 = vmatpush1.bf16.msra.mxu0 0
      %2103 = vmatprep.subr.bf16.mxu0 0
      %2104 = vmatpush1.bf16.msra.mxu0 0
      %2105 = vmatprep.subr.bf16.mxu0 0
      %2106 = vmatpush1.bf16.msra.mxu0 0
      %2107 = vmatprep.subr.bf16.mxu0 0
      %2108 = vmatpush1.bf16.msra.mxu0 0
      %2109 = vmatprep.subr.bf16.mxu0 0
      %2110 = vmatpush1.bf16.msra.mxu0 0
      %2111 = vmatprep.subr.bf16.mxu0 0
      %2112 = vmatpush1.bf16.msra.mxu0 0
      %2113 = vmatprep.subr.bf16.mxu0 0
      %2114 = vmatpush1.bf16.msra.mxu0 0
      %2115 = vmatprep.subr.bf16.mxu0 0
      %2116 = vmatpush1.bf16.msra.mxu0 0
      %2117 = vmatprep.mubr.bf16.mxu0 0
      %2118 = vmatmul.mubr.bf16.gmra.mrb[0].mxu0 %v2007
      %v2119 = vpop.f32.mrb[0].mxu0
      %v2120 = vadd.f32 0.0, %v2119
      %v2121 = vpop.f32.mrb[0].mxu0
      %v2122 = vpop.f32.mrb[0].mxu0
      %v2123 = vadd.f32 0.0, %v2122
      %v2124 = vpop.f32.mrb[0].mxu0
      %2125 = vmatprep.mubr.bf16.mxu0 0
      %2126 = vmatmul.mubr.bf16.gmra.mrb[0].mxu0 %v2008
      %v2127 = vpop.f32.mrb[0].mxu0
      %v2128 = vadd.f32 0.0, %v2127
      %v2129 = vpop.f32.mrb[0].mxu0
      %v2130 = vpop.f32.mrb[0].mxu0
      %v2131 = vadd.f32 0.0, %v2130
      %v2132 = vpop.f32.mrb[0].mxu0
      %2133 = vmatprep.mubr.bf16.mxu0 0
      %2134 = vmatmul.mubr.bf16.gmra.mrb[0].mxu0 %v2009
      %v2135 = vpop.f32.mrb[0].mxu0
      %v2136 = vadd.f32 0.0, %v2135
      %v2137 = vpop.f32.mrb[0].mxu0
      %v2138 = vpop.f32.mrb[0].mxu0
      %v2139 = vadd.f32 0.0, %v2138
      %v2140 = vpop.f32.mrb[0].mxu0
      %2141 = vmatprep.mubr.bf16.mxu0 0
      %2142 = vmatmul.mubr.bf16.gmra.mrb[0].mxu0 %v2010
      %v2143 = vpop.f32.mrb[0].mxu0
      %v2144 = vadd.f32 0.0, %v2143
      %v2145 = vpop.f32.mrb[0].mxu0
      %v2146 = vpop.f32.mrb[0].mxu0
      %v2147 = vadd.f32 0.0, %v2146
      %v2148 = vpop.f32.mrb[0].mxu0
      %2149 = vmatprep.mubr.bf16.mxu0 0
      %2150 = vmatmul.mubr.bf16.gmra.mrb[0].mxu0 %v2011
      %v2151 = vpop.f32.mrb[0].mxu0
      %v2152 = vadd.f32 0.0, %v2151
      %v2153 = vpop.f32.mrb[0].mxu0
      %v2154 = vpop.f32.mrb[0].mxu0
      %v2155 = vadd.f32 0.0, %v2154
      %v2156 = vpop.f32.mrb[0].mxu0
      %2157 = vmatprep.mubr.bf16.mxu0 0
      %2158 = vmatmul.mubr.bf16.gmra.mrb[0].mxu0 %v2012
      %v2159 = vpop.f32.mrb[0].mxu0
      %v2160 = vadd.f32 0.0, %v2159
      %v2161 = vpop.f32.mrb[0].mxu0
      %v2162 = vpop.f32.mrb[0].mxu0
      %v2163 = vadd.f32 0.0, %v2162
      %v2164 = vpop.f32.mrb[0].mxu0
      %2165 = vmatprep.mubr.bf16.mxu0 0
      %2166 = vmatmul.mubr.bf16.gmra.mrb[0].mxu0 %v2013
      %v2167 = vpop.f32.mrb[0].mxu0
      %v2168 = vadd.f32 0.0, %v2167
      %v2169 = vpop.f32.mrb[0].mxu0
      %v2170 = vpop.f32.mrb[0].mxu0
      %v2171 = vadd.f32 0.0, %v2170
      %v2172 = vpop.f32.mrb[0].mxu0
      %2173 = vmatprep.mubr.bf16.mxu0 0
      %2174 = vmatmul.mubr.bf16.gmra.mrb[0].mxu0 %v2014
      %v2175 = vpop.f32.mrb[0].mxu0
      %v2176 = vadd.f32 0.0, %v2175
      %v2177 = vpop.f32.mrb[0].mxu0
      %v2178 = vpop.f32.mrb[0].mxu0
      %v2179 = vadd.f32 0.0, %v2178
      %v2180 = vpop.f32.mrb[0].mxu0
      %2181 = vmatprep.mubr.bf16.mxu0 0
      %2182 = vmatmul.mubr.bf16.gmra.mrb[0].mxu0 %v2015
      %v2183 = vpop.f32.mrb[0].mxu0
      %v2184 = vadd.f32 0.0, %v2183
      %v2185 = vpop.f32.mrb[0].mxu0
      %v2186 = vpop.f32.mrb[0].mxu0
      %v2187 = vadd.f32 0.0, %v2186
      %v2188 = vpop.f32.mrb[0].mxu0
      %2189 = vmatprep.mubr.bf16.mxu0 0
      %2190 = vmatmul.mubr.bf16.gmra.mrb[0].mxu0 %v2016
      %v2191 = vpop.f32.mrb[0].mxu0
      %v2192 = vadd.f32 0.0, %v2191
      %v2193 = vpop.f32.mrb[0].mxu0
      %v2194 = vpop.f32.mrb[0].mxu0
      %v2195 = vadd.f32 0.0, %v2194
      %v2196 = vpop.f32.mrb[0].mxu0
      %2197 = vmatprep.mubr.bf16.mxu0 0
      %2198 = vmatmul.mubr.bf16.gmra.mrb[0].mxu0 %v2017
      %v2199 = vpop.f32.mrb[0].mxu0
      %v2200 = vadd.f32 0.0, %v2199
      %v2201 = vpop.f32.mrb[0].mxu0
      %v2202 = vpop.f32.mrb[0].mxu0
      %v2203 = vadd.f32 0.0, %v2202
      %v2204 = vpop.f32.mrb[0].mxu0
      %2205 = vmatprep.mubr.bf16.mxu0 0
      %2206 = vmatmul.mubr.bf16.gmra.mrb[0].mxu0 %v2018
      %v2207 = vpop.f32.mrb[0].mxu0
      %v2208 = vadd.f32 0.0, %v2207
      %v2209 = vpop.f32.mrb[0].mxu0
      %v2210 = vpop.f32.mrb[0].mxu0
      %v2211 = vadd.f32 0.0, %v2210
      %v2212 = vpop.f32.mrb[0].mxu0
      %2213 = vmatprep.mubr.bf16.mxu0 0
      %2214 = vmatmul.mubr.bf16.gmra.mrb[0].mxu0 %v2019
      %v2215 = vpop.f32.mrb[0].mxu0
      %v2216 = vadd.f32 0.0, %v2215
      %v2217 = vpop.f32.mrb[0].mxu0
      %v2218 = vpop.f32.mrb[0].mxu0
      %v2219 = vadd.f32 0.0, %v2218
      %v2220 = vpop.f32.mrb[0].mxu0
      %2221 = vmatprep.mubr.bf16.mxu0 0
      %2222 = vmatmul.mubr.bf16.gmra.mrb[0].mxu0 %v2020
      %v2223 = vpop.f32.mrb[0].mxu0
      %v2224 = vadd.f32 0.0, %v2223
      %v2225 = vpop.f32.mrb[0].mxu0
      %v2226 = vpop.f32.mrb[0].mxu0
      %v2227 = vadd.f32 0.0, %v2226
      %v2228 = vpop.f32.mrb[0].mxu0
      %2229 = vdwg.mxu0
      %v2230 = vadd.f32 %v1951, %v2120
      %v2231 = vadd.f32 %v1952, %v2123
      %v2232 = vadd.f32 %v1953, %v2128
      %v2233 = vadd.f32 %v1954, %v2131
      %v2234 = vadd.f32 %v1955, %v2136
      %v2235 = vadd.f32 %v1956, %v2139
      %v2236 = vadd.f32 %v1957, %v2144
      %v2237 = vadd.f32 %v1958, %v2147
      %v2238 = vadd.f32 %v1959, %v2152
      %v2239 = vadd.f32 %v1960, %v2155
      %v2240 = vadd.f32 %v1961, %v2160
      %v2241 = vadd.f32 %v1962, %v2163
      %v2242 = vadd.f32 %v1963, %v2168
      %v2243 = vadd.f32 %v1964, %v2171
      %v2244 = vadd.f32 %v1965, %v2176
      %v2245 = vadd.f32 %v1966, %v2179
      %v2246 = vadd.f32 %v1967, %v2184
      %v2247 = vadd.f32 %v1968, %v2187
      %v2248 = vadd.f32 %v1969, %v2192
      %v2249 = vadd.f32 %v1970, %v2195
      %v2250 = vadd.f32 %v1971, %v2200
      %v2251 = vadd.f32 %v1972, %v2203
      %v2252 = vadd.f32 %v1973, %v2208
      %v2253 = vadd.f32 %v1974, %v2211
      %v2254 = vadd.f32 %v1975, %v2216
      %v2255 = vadd.f32 %v1976, %v2219
      %v2256 = vadd.f32 %v1977, %v2224
      %v2257 = vadd.f32 %v1978, %v2227
      %v2258 = vld [vmem:[#allocation2 + $0x20] sm:$0xff]
      %v2259 = vld [vmem:[#allocation2 + $0x28] sm:$0xff]
      %v2260 = vld [vmem:[#allocation2 + $0x30] sm:$0xff]
      %v2261 = vld [vmem:[#allocation2 + $0x38] sm:$0xff]
      %v2262 = vld [vmem:[#allocation2 + $0x40] sm:$0xff]
      %v2263 = vld [vmem:[#allocation2 + $0x48] sm:$0xff]
      %v2264 = vld [vmem:[#allocation2 + $0x50] sm:$0xff]
      %v2265 = vld [vmem:[#allocation2 + $0x58] sm:$0xff]
      %v2266 = vld [vmem:[#allocation2 + $0x60] sm:$0xff]
      %v2267 = vld [vmem:[#allocation2 + $0x68] sm:$0xff]
      %v2268 = vld [vmem:[#allocation2 + $0x70] sm:$0xff]
      %v2269 = vld [vmem:[#allocation2 + $0x78] sm:$0xff]
      %v2270 = vld [vmem:[#allocation2 + $0x80] sm:$0xff]
      %v2271 = vld [vmem:[#allocation2 + $0x88] sm:$0xff]
      %v2272 = vld [vmem:[#allocation2 + $0x90] sm:$0xff]
      %v2273 = vld [vmem:[#allocation2 + $0x98] sm:$0xff]
      %v2274 = vld [vmem:[#allocation2 + $0xa0] sm:$0xff]
      %v2275 = vld [vmem:[#allocation2 + $0xa8] sm:$0xff]
      %v2276 = vld [vmem:[#allocation2 + $0xb0] sm:$0xff]
      %v2277 = vld [vmem:[#allocation2 + $0xb8] sm:$0xff]
      %v2278 = vld [vmem:[#allocation2 + $0xc0] sm:$0xff]
      %v2279 = vld [vmem:[#allocation2 + $0xc8] sm:$0xff]
      %v2280 = vld [vmem:[#allocation2 + $0xd0] sm:$0xff]
      %v2281 = vld [vmem:[#allocation2 + $0xd8] sm:$0xff]
      %v2282 = vld [vmem:[#allocation2 + $0xe0] sm:$0xff]
      %v2283 = vld [vmem:[#allocation2 + $0xe8] sm:$0xff]
      %v2284 = vld [vmem:[#allocation2 + $0xf0] sm:$0xff]
      %v2285 = vld [vmem:[#allocation2 + $0xf8] sm:$0xff]
      %v2286 = vpack.c.bf16 %v2259, %v2258
      %v2287 = vpack.c.bf16 %v2261, %v2260
      %v2288 = vpack.c.bf16 %v2263, %v2262
      %v2289 = vpack.c.bf16 %v2265, %v2264
      %v2290 = vpack.c.bf16 %v2267, %v2266
      %v2291 = vpack.c.bf16 %v2269, %v2268
      %v2292 = vpack.c.bf16 %v2271, %v2270
      %v2293 = vpack.c.bf16 %v2273, %v2272
      %v2294 = vpack.c.bf16 %v2275, %v2274
      %v2295 = vpack.c.bf16 %v2277, %v2276
      %v2296 = vpack.c.bf16 %v2279, %v2278
      %v2297 = vpack.c.bf16 %v2281, %v2280
      %v2298 = vpack.c.bf16 %v2283, %v2282
      %v2299 = vpack.c.bf16 %v2285, %v2284
      %v2300 = vld [vmem:[%s3 + $0x180] sm:$0xf]
      %v2301 = vld [vmem:[%s3 + $0x184] sm:$0xf]
      %v2302 = vld [vmem:[%s3 + $0x188] sm:$0xf]
      %v2303 = vld [vmem:[%s3 + $0x18c] sm:$0xf]
      %v2304 = vld [vmem:[%s3 + $0x190] sm:$0xf]
      %v2305 = vld [vmem:[%s3 + $0x194] sm:$0xf]
      %v2306 = vld [vmem:[%s3 + $0x198] sm:$0xf]
      %v2307 = vld [vmem:[%s3 + $0x19c] sm:$0xf]
      %v2308 = vld [vmem:[%s3 + $0x1a0] sm:$0xf]
      %v2309 = vld [vmem:[%s3 + $0x1a4] sm:$0xf]
      %v2310 = vld [vmem:[%s3 + $0x1a8] sm:$0xf]
      %v2311 = vld [vmem:[%s3 + $0x1ac] sm:$0xf]
      %v2312 = vld [vmem:[%s3 + $0x1b0] sm:$0xf]
      %v2313 = vld [vmem:[%s3 + $0x1b4] sm:$0xf]
      %v2314 = vld [vmem:[%s3 + $0x1b8] sm:$0xf]
      %v2315 = vld [vmem:[%s3 + $0x1bc] sm:$0xf]
      %v2332 = vunpack.c.l.b16 %v2300
      %v2333 = vunpack.c.l.b16 %v2301
      %v2334 = vunpack.c.l.b16 %v2302
      %v2335 = vunpack.c.l.b16 %v2303
      %v2336 = vunpack.c.l.b16 %v2304
      %v2337 = vunpack.c.l.b16 %v2305
      %v2338 = vunpack.c.l.b16 %v2306
      %v2339 = vunpack.c.l.b16 %v2307
      %v2340 = vunpack.c.l.b16 %v2308
      %v2341 = vunpack.c.l.b16 %v2309
      %v2342 = vunpack.c.l.b16 %v2310
      %v2343 = vunpack.c.l.b16 %v2311
      %v2344 = vunpack.c.l.b16 %v2312
      %v2345 = vunpack.c.l.b16 %v2313
      %v2346 = vunpack.c.l.b16 %v2314
      %v2347 = vunpack.c.l.b16 %v2315
      %v2348 = vpack.c.b16 %v2333, %v2332
      %v2349 = vpack.c.b16 %v2335, %v2334
      %v2350 = vpack.c.b16 %v2337, %v2336
      %v2351 = vpack.c.b16 %v2339, %v2338
      %v2352 = vpack.c.b16 %v2341, %v2340
      %v2353 = vpack.c.b16 %v2343, %v2342
      %v2354 = vpack.c.b16 %v2345, %v2344
      %v2355 = vpack.c.b16 %v2347, %v2346
      %2364 = vmatprep.subr.bf16.mxu0 0
      %2365 = vmatpush1.bf16.msra.mxu0 %v2348
      %2366 = vmatprep.subr.bf16.mxu0 0
      %2367 = vmatpush1.bf16.msra.mxu0 %v2349
      %2368 = vmatprep.subr.bf16.mxu0 0
      %2369 = vmatpush1.bf16.msra.mxu0 %v2350
      %2370 = vmatprep.subr.bf16.mxu0 0
      %2371 = vmatpush1.bf16.msra.mxu0 %v2351
      %2372 = vmatprep.subr.bf16.mxu0 0
      %2373 = vmatpush1.bf16.msra.mxu0 %v2352
      %2374 = vmatprep.subr.bf16.mxu0 0
      %2375 = vmatpush1.bf16.msra.mxu0 %v2353
      %2376 = vmatprep.subr.bf16.mxu0 0
      %2377 = vmatpush1.bf16.msra.mxu0 %v2354
      %2378 = vmatprep.subr.bf16.mxu0 0
      %2379 = vmatpush1.bf16.msra.mxu0 %v2355
      %2380 = vmatprep.subr.bf16.mxu0 0
      %2381 = vmatpush1.bf16.msra.mxu0 0
      %2382 = vmatprep.subr.bf16.mxu0 0
      %2383 = vmatpush1.bf16.msra.mxu0 0
      %2384 = vmatprep.subr.bf16.mxu0 0
      %2385 = vmatpush1.bf16.msra.mxu0 0
      %2386 = vmatprep.subr.bf16.mxu0 0
      %2387 = vmatpush1.bf16.msra.mxu0 0
      %2388 = vmatprep.subr.bf16.mxu0 0
      %2389 = vmatpush1.bf16.msra.mxu0 0
      %2390 = vmatprep.subr.bf16.mxu0 0
      %2391 = vmatpush1.bf16.msra.mxu0 0
      %2392 = vmatprep.subr.bf16.mxu0 0
      %2393 = vmatpush1.bf16.msra.mxu0 0
      %2394 = vmatprep.subr.bf16.mxu0 0
      %2395 = vmatpush1.bf16.msra.mxu0 0
      %2396 = vmatprep.mubr.bf16.mxu0 0
      %2397 = vmatmul.mubr.bf16.gmra.mrb[0].mxu0 %v2286
      %v2398 = vpop.f32.mrb[0].mxu0
      %v2399 = vadd.f32 0.0, %v2398
      %v2400 = vpop.f32.mrb[0].mxu0
      %v2401 = vpop.f32.mrb[0].mxu0
      %v2402 = vadd.f32 0.0, %v2401
      %v2403 = vpop.f32.mrb[0].mxu0
      %2404 = vmatprep.mubr.bf16.mxu0 0
      %2405 = vmatmul.mubr.bf16.gmra.mrb[0].mxu0 %v2287
      %v2406 = vpop.f32.mrb[0].mxu0
      %v2407 = vadd.f32 0.0, %v2406
      %v2408 = vpop.f32.mrb[0].mxu0
      %v2409 = vpop.f32.mrb[0].mxu0
      %v2410 = vadd.f32 0.0, %v2409
      %v2411 = vpop.f32.mrb[0].mxu0
      %2412 = vmatprep.mubr.bf16.mxu0 0
      %2413 = vmatmul.mubr.bf16.gmra.mrb[0].mxu0 %v2288
      %v2414 = vpop.f32.mrb[0].mxu0
      %v2415 = vadd.f32 0.0, %v2414
      %v2416 = vpop.f32.mrb[0].mxu0
      %v2417 = vpop.f32.mrb[0].mxu0
      %v2418 = vadd.f32 0.0, %v2417
      %v2419 = vpop.f32.mrb[0].mxu0
      %2420 = vmatprep.mubr.bf16.mxu0 0
      %2421 = vmatmul.mubr.bf16.gmra.mrb[0].mxu0 %v2289
      %v2422 = vpop.f32.mrb[0].mxu0
      %v2423 = vadd.f32 0.0, %v2422
      %v2424 = vpop.f32.mrb[0].mxu0
      %v2425 = vpop.f32.mrb[0].mxu0
      %v2426 = vadd.f32 0.0, %v2425
      %v2427 = vpop.f32.mrb[0].mxu0
      %2428 = vmatprep.mubr.bf16.mxu0 0
      %2429 = vmatmul.mubr.bf16.gmra.mrb[0].mxu0 %v2290
      %v2430 = vpop.f32.mrb[0].mxu0
      %v2431 = vadd.f32 0.0, %v2430
      %v2432 = vpop.f32.mrb[0].mxu0
      %v2433 = vpop.f32.mrb[0].mxu0
      %v2434 = vadd.f32 0.0, %v2433
      %v2435 = vpop.f32.mrb[0].mxu0
      %2436 = vmatprep.mubr.bf16.mxu0 0
      %2437 = vmatmul.mubr.bf16.gmra.mrb[0].mxu0 %v2291
      %v2438 = vpop.f32.mrb[0].mxu0
      %v2439 = vadd.f32 0.0, %v2438
      %v2440 = vpop.f32.mrb[0].mxu0
      %v2441 = vpop.f32.mrb[0].mxu0
      %v2442 = vadd.f32 0.0, %v2441
      %v2443 = vpop.f32.mrb[0].mxu0
      %2444 = vmatprep.mubr.bf16.mxu0 0
      %2445 = vmatmul.mubr.bf16.gmra.mrb[0].mxu0 %v2292
      %v2446 = vpop.f32.mrb[0].mxu0
      %v2447 = vadd.f32 0.0, %v2446
      %v2448 = vpop.f32.mrb[0].mxu0
      %v2449 = vpop.f32.mrb[0].mxu0
      %v2450 = vadd.f32 0.0, %v2449
      %v2451 = vpop.f32.mrb[0].mxu0
      %2452 = vmatprep.mubr.bf16.mxu0 0
      %2453 = vmatmul.mubr.bf16.gmra.mrb[0].mxu0 %v2293
      %v2454 = vpop.f32.mrb[0].mxu0
      %v2455 = vadd.f32 0.0, %v2454
      %v2456 = vpop.f32.mrb[0].mxu0
      %v2457 = vpop.f32.mrb[0].mxu0
      %v2458 = vadd.f32 0.0, %v2457
      %v2459 = vpop.f32.mrb[0].mxu0
      %2460 = vmatprep.mubr.bf16.mxu0 0
      %2461 = vmatmul.mubr.bf16.gmra.mrb[0].mxu0 %v2294
      %v2462 = vpop.f32.mrb[0].mxu0
      %v2463 = vadd.f32 0.0, %v2462
      %v2464 = vpop.f32.mrb[0].mxu0
      %v2465 = vpop.f32.mrb[0].mxu0
      %v2466 = vadd.f32 0.0, %v2465
      %v2467 = vpop.f32.mrb[0].mxu0
      %2468 = vmatprep.mubr.bf16.mxu0 0
      %2469 = vmatmul.mubr.bf16.gmra.mrb[0].mxu0 %v2295
      %v2470 = vpop.f32.mrb[0].mxu0
      %v2471 = vadd.f32 0.0, %v2470
      %v2472 = vpop.f32.mrb[0].mxu0
      %v2473 = vpop.f32.mrb[0].mxu0
      %v2474 = vadd.f32 0.0, %v2473
      %v2475 = vpop.f32.mrb[0].mxu0
      %2476 = vmatprep.mubr.bf16.mxu0 0
      %2477 = vmatmul.mubr.bf16.gmra.mrb[0].mxu0 %v2296
      %v2478 = vpop.f32.mrb[0].mxu0
      %v2479 = vadd.f32 0.0, %v2478
      %v2480 = vpop.f32.mrb[0].mxu0
      %v2481 = vpop.f32.mrb[0].mxu0
      %v2482 = vadd.f32 0.0, %v2481
      %v2483 = vpop.f32.mrb[0].mxu0
      %2484 = vmatprep.mubr.bf16.mxu0 0
      %2485 = vmatmul.mubr.bf16.gmra.mrb[0].mxu0 %v2297
      %v2486 = vpop.f32.mrb[0].mxu0
      %v2487 = vadd.f32 0.0, %v2486
      %v2488 = vpop.f32.mrb[0].mxu0
      %v2489 = vpop.f32.mrb[0].mxu0
      %v2490 = vadd.f32 0.0, %v2489
      %v2491 = vpop.f32.mrb[0].mxu0
      %2492 = vmatprep.mubr.bf16.mxu0 0
      %2493 = vmatmul.mubr.bf16.gmra.mrb[0].mxu0 %v2298
      %v2494 = vpop.f32.mrb[0].mxu0
      %v2495 = vadd.f32 0.0, %v2494
      %v2496 = vpop.f32.mrb[0].mxu0
      %v2497 = vpop.f32.mrb[0].mxu0
      %v2498 = vadd.f32 0.0, %v2497
      %v2499 = vpop.f32.mrb[0].mxu0
      %2500 = vmatprep.mubr.bf16.mxu0 0
      %2501 = vmatmul.mubr.bf16.gmra.mrb[0].mxu0 %v2299
      %v2502 = vpop.f32.mrb[0].mxu0
      %v2503 = vadd.f32 0.0, %v2502
      %v2504 = vpop.f32.mrb[0].mxu0
      %v2505 = vpop.f32.mrb[0].mxu0
      %v2506 = vadd.f32 0.0, %v2505
      %v2507 = vpop.f32.mrb[0].mxu0
      %2508 = vdwg.mxu0
      %v2509 = vadd.f32 %v2230, %v2399
      %v2510 = vadd.f32 %v2231, %v2402
      %v2511 = vadd.f32 %v2232, %v2407
      %v2512 = vadd.f32 %v2233, %v2410
      %v2513 = vadd.f32 %v2234, %v2415
      %v2514 = vadd.f32 %v2235, %v2418
      %v2515 = vadd.f32 %v2236, %v2423
      %v2516 = vadd.f32 %v2237, %v2426
      %v2517 = vadd.f32 %v2238, %v2431
      %v2518 = vadd.f32 %v2239, %v2434
      %v2519 = vadd.f32 %v2240, %v2439
      %v2520 = vadd.f32 %v2241, %v2442
      %v2521 = vadd.f32 %v2242, %v2447
      %v2522 = vadd.f32 %v2243, %v2450
      %v2523 = vadd.f32 %v2244, %v2455
      %v2524 = vadd.f32 %v2245, %v2458
      %v2525 = vadd.f32 %v2246, %v2463
      %v2526 = vadd.f32 %v2247, %v2466
      %v2527 = vadd.f32 %v2248, %v2471
      %v2528 = vadd.f32 %v2249, %v2474
      %v2529 = vadd.f32 %v2250, %v2479
      %v2530 = vadd.f32 %v2251, %v2482
      %v2531 = vadd.f32 %v2252, %v2487
      %v2532 = vadd.f32 %v2253, %v2490
      %v2533 = vadd.f32 %v2254, %v2495
      %v2534 = vadd.f32 %v2255, %v2498
      %v2535 = vadd.f32 %v2256, %v2503
      %v2536 = vadd.f32 %v2257, %v2506
      %v2537 = vld [vmem:[#allocation2 + $0x21] sm:$0xff]
      %v2538 = vld [vmem:[#allocation2 + $0x29] sm:$0xff]
      %v2539 = vld [vmem:[#allocation2 + $0x31] sm:$0xff]
      %v2540 = vld [vmem:[#allocation2 + $0x39] sm:$0xff]
      %v2541 = vld [vmem:[#allocation2 + $0x41] sm:$0xff]
      %v2542 = vld [vmem:[#allocation2 + $0x49] sm:$0xff]
      %v2543 = vld [vmem:[#allocation2 + $0x51] sm:$0xff]
      %v2544 = vld [vmem:[#allocation2 + $0x59] sm:$0xff]
      %v2545 = vld [vmem:[#allocation2 + $0x61] sm:$0xff]
      %v2546 = vld [vmem:[#allocation2 + $0x69] sm:$0xff]
      %v2547 = vld [vmem:[#allocation2 + $0x71] sm:$0xff]
      %v2548 = vld [vmem:[#allocation2 + $0x79] sm:$0xff]
      %v2549 = vld [vmem:[#allocation2 + $0x81] sm:$0xff]
      %v2550 = vld [vmem:[#allocation2 + $0x89] sm:$0xff]
      %v2551 = vld [vmem:[#allocation2 + $0x91] sm:$0xff]
      %v2552 = vld [vmem:[#allocation2 + $0x99] sm:$0xff]
      %v2553 = vld [vmem:[#allocation2 + $0xa1] sm:$0xff]
      %v2554 = vld [vmem:[#allocation2 + $0xa9] sm:$0xff]
      %v2555 = vld [vmem:[#allocation2 + $0xb1] sm:$0xff]
      %v2556 = vld [vmem:[#allocation2 + $0xb9] sm:$0xff]
      %v2557 = vld [vmem:[#allocation2 + $0xc1] sm:$0xff]
      %v2558 = vld [vmem:[#allocation2 + $0xc9] sm:$0xff]
      %v2559 = vld [vmem:[#allocation2 + $0xd1] sm:$0xff]
      %v2560 = vld [vmem:[#allocation2 + $0xd9] sm:$0xff]
      %v2561 = vld [vmem:[#allocation2 + $0xe1] sm:$0xff]
      %v2562 = vld [vmem:[#allocation2 + $0xe9] sm:$0xff]
      %v2563 = vld [vmem:[#allocation2 + $0xf1] sm:$0xff]
      %v2564 = vld [vmem:[#allocation2 + $0xf9] sm:$0xff]
      %v2565 = vpack.c.bf16 %v2538, %v2537
      %v2566 = vpack.c.bf16 %v2540, %v2539
      %v2567 = vpack.c.bf16 %v2542, %v2541
      %v2568 = vpack.c.bf16 %v2544, %v2543
      %v2569 = vpack.c.bf16 %v2546, %v2545
      %v2570 = vpack.c.bf16 %v2548, %v2547
      %v2571 = vpack.c.bf16 %v2550, %v2549
      %v2572 = vpack.c.bf16 %v2552, %v2551
      %v2573 = vpack.c.bf16 %v2554, %v2553
      %v2574 = vpack.c.bf16 %v2556, %v2555
      %v2575 = vpack.c.bf16 %v2558, %v2557
      %v2576 = vpack.c.bf16 %v2560, %v2559
      %v2577 = vpack.c.bf16 %v2562, %v2561
      %v2578 = vpack.c.bf16 %v2564, %v2563
      %v2579 = vld [vmem:[%s3 + $0x1c0] sm:$0xf]
      %v2580 = vld [vmem:[%s3 + $0x1c4] sm:$0xf]
      %v2581 = vld [vmem:[%s3 + $0x1c8] sm:$0xf]
      %v2582 = vld [vmem:[%s3 + $0x1cc] sm:$0xf]
      %v2583 = vld [vmem:[%s3 + $0x1d0] sm:$0xf]
      %v2584 = vld [vmem:[%s3 + $0x1d4] sm:$0xf]
      %v2585 = vld [vmem:[%s3 + $0x1d8] sm:$0xf]
      %v2586 = vld [vmem:[%s3 + $0x1dc] sm:$0xf]
      %v2587 = vld [vmem:[%s3 + $0x1e0] sm:$0xf]
      %v2588 = vld [vmem:[%s3 + $0x1e4] sm:$0xf]
      %v2589 = vld [vmem:[%s3 + $0x1e8] sm:$0xf]
      %v2590 = vld [vmem:[%s3 + $0x1ec] sm:$0xf]
      %v2591 = vld [vmem:[%s3 + $0x1f0] sm:$0xf]
      %v2592 = vld [vmem:[%s3 + $0x1f4] sm:$0xf]
      %v2593 = vld [vmem:[%s3 + $0x1f8] sm:$0xf]
      %v2594 = vld [vmem:[%s3 + $0x1fc] sm:$0xf]
      %v2611 = vunpack.c.l.b16 %v2579
      %v2612 = vunpack.c.l.b16 %v2580
      %v2613 = vunpack.c.l.b16 %v2581
      %v2614 = vunpack.c.l.b16 %v2582
      %v2615 = vunpack.c.l.b16 %v2583
      %v2616 = vunpack.c.l.b16 %v2584
      %v2617 = vunpack.c.l.b16 %v2585
      %v2618 = vunpack.c.l.b16 %v2586
      %v2619 = vunpack.c.l.b16 %v2587
      %v2620 = vunpack.c.l.b16 %v2588
      %v2621 = vunpack.c.l.b16 %v2589
      %v2622 = vunpack.c.l.b16 %v2590
      %v2623 = vunpack.c.l.b16 %v2591
      %v2624 = vunpack.c.l.b16 %v2592
      %v2625 = vunpack.c.l.b16 %v2593
      %v2626 = vunpack.c.l.b16 %v2594
      %v2627 = vpack.c.b16 %v2612, %v2611
      %v2628 = vpack.c.b16 %v2614, %v2613
      %v2629 = vpack.c.b16 %v2616, %v2615
      %v2630 = vpack.c.b16 %v2618, %v2617
      %v2631 = vpack.c.b16 %v2620, %v2619
      %v2632 = vpack.c.b16 %v2622, %v2621
      %v2633 = vpack.c.b16 %v2624, %v2623
      %v2634 = vpack.c.b16 %v2626, %v2625
      %2643 = vmatprep.subr.bf16.mxu0 0
      %2644 = vmatpush1.bf16.msra.mxu0 %v2627
      %2645 = vmatprep.subr.bf16.mxu0 0
      %2646 = vmatpush1.bf16.msra.mxu0 %v2628
      %2647 = vmatprep.subr.bf16.mxu0 0
      %2648 = vmatpush1.bf16.msra.mxu0 %v2629
      %2649 = vmatprep.subr.bf16.mxu0 0
      %2650 = vmatpush1.bf16.msra.mxu0 %v2630
      %2651 = vmatprep.subr.bf16.mxu0 0
      %2652 = vmatpush1.bf16.msra.mxu0 %v2631
      %2653 = vmatprep.subr.bf16.mxu0 0
      %2654 = vmatpush1.bf16.msra.mxu0 %v2632
      %2655 = vmatprep.subr.bf16.mxu0 0
      %2656 = vmatpush1.bf16.msra.mxu0 %v2633
      %2657 = vmatprep.subr.bf16.mxu0 0
      %2658 = vmatpush1.bf16.msra.mxu0 %v2634
      %2659 = vmatprep.subr.bf16.mxu0 0
      %2660 = vmatpush1.bf16.msra.mxu0 0
      %2661 = vmatprep.subr.bf16.mxu0 0
      %2662 = vmatpush1.bf16.msra.mxu0 0
      %2663 = vmatprep.subr.bf16.mxu0 0
      %2664 = vmatpush1.bf16.msra.mxu0 0
      %2665 = vmatprep.subr.bf16.mxu0 0
      %2666 = vmatpush1.bf16.msra.mxu0 0
      %2667 = vmatprep.subr.bf16.mxu0 0
      %2668 = vmatpush1.bf16.msra.mxu0 0
      %2669 = vmatprep.subr.bf16.mxu0 0
      %2670 = vmatpush1.bf16.msra.mxu0 0
      %2671 = vmatprep.subr.bf16.mxu0 0
      %2672 = vmatpush1.bf16.msra.mxu0 0
      %2673 = vmatprep.subr.bf16.mxu0 0
      %2674 = vmatpush1.bf16.msra.mxu0 0
      %2675 = vmatprep.mubr.bf16.mxu0 0
      %2676 = vmatmul.mubr.bf16.gmra.mrb[0].mxu0 %v2565
      %v2677 = vpop.f32.mrb[0].mxu0
      %v2678 = vadd.f32 0.0, %v2677
      %v2679 = vpop.f32.mrb[0].mxu0
      %v2680 = vpop.f32.mrb[0].mxu0
      %v2681 = vadd.f32 0.0, %v2680
      %v2682 = vpop.f32.mrb[0].mxu0
      %2683 = vmatprep.mubr.bf16.mxu0 0
      %2684 = vmatmul.mubr.bf16.gmra.mrb[0].mxu0 %v2566
      %v2685 = vpop.f32.mrb[0].mxu0
      %v2686 = vadd.f32 0.0, %v2685
      %v2687 = vpop.f32.mrb[0].mxu0
      %v2688 = vpop.f32.mrb[0].mxu0
      %v2689 = vadd.f32 0.0, %v2688
      %v2690 = vpop.f32.mrb[0].mxu0
      %2691 = vmatprep.mubr.bf16.mxu0 0
      %2692 = vmatmul.mubr.bf16.gmra.mrb[0].mxu0 %v2567
      %v2693 = vpop.f32.mrb[0].mxu0
      %v2694 = vadd.f32 0.0, %v2693
      %v2695 = vpop.f32.mrb[0].mxu0
      %v2696 = vpop.f32.mrb[0].mxu0
      %v2697 = vadd.f32 0.0, %v2696
      %v2698 = vpop.f32.mrb[0].mxu0
      %2699 = vmatprep.mubr.bf16.mxu0 0
      %2700 = vmatmul.mubr.bf16.gmra.mrb[0].mxu0 %v2568
      %v2701 = vpop.f32.mrb[0].mxu0
      %v2702 = vadd.f32 0.0, %v2701
      %v2703 = vpop.f32.mrb[0].mxu0
      %v2704 = vpop.f32.mrb[0].mxu0
      %v2705 = vadd.f32 0.0, %v2704
      %v2706 = vpop.f32.mrb[0].mxu0
      %2707 = vmatprep.mubr.bf16.mxu0 0
      %2708 = vmatmul.mubr.bf16.gmra.mrb[0].mxu0 %v2569
      %v2709 = vpop.f32.mrb[0].mxu0
      %v2710 = vadd.f32 0.0, %v2709
      %v2711 = vpop.f32.mrb[0].mxu0
      %v2712 = vpop.f32.mrb[0].mxu0
      %v2713 = vadd.f32 0.0, %v2712
      %v2714 = vpop.f32.mrb[0].mxu0
      %2715 = vmatprep.mubr.bf16.mxu0 0
      %2716 = vmatmul.mubr.bf16.gmra.mrb[0].mxu0 %v2570
      %v2717 = vpop.f32.mrb[0].mxu0
      %v2718 = vadd.f32 0.0, %v2717
      %v2719 = vpop.f32.mrb[0].mxu0
      %v2720 = vpop.f32.mrb[0].mxu0
      %v2721 = vadd.f32 0.0, %v2720
      %v2722 = vpop.f32.mrb[0].mxu0
      %2723 = vmatprep.mubr.bf16.mxu0 0
      %2724 = vmatmul.mubr.bf16.gmra.mrb[0].mxu0 %v2571
      %v2725 = vpop.f32.mrb[0].mxu0
      %v2726 = vadd.f32 0.0, %v2725
      %v2727 = vpop.f32.mrb[0].mxu0
      %v2728 = vpop.f32.mrb[0].mxu0
      %v2729 = vadd.f32 0.0, %v2728
      %v2730 = vpop.f32.mrb[0].mxu0
      %2731 = vmatprep.mubr.bf16.mxu0 0
      %2732 = vmatmul.mubr.bf16.gmra.mrb[0].mxu0 %v2572
      %v2733 = vpop.f32.mrb[0].mxu0
      %v2734 = vadd.f32 0.0, %v2733
      %v2735 = vpop.f32.mrb[0].mxu0
      %v2736 = vpop.f32.mrb[0].mxu0
      %v2737 = vadd.f32 0.0, %v2736
      %v2738 = vpop.f32.mrb[0].mxu0
      %2739 = vmatprep.mubr.bf16.mxu0 0
      %2740 = vmatmul.mubr.bf16.gmra.mrb[0].mxu0 %v2573
      %v2741 = vpop.f32.mrb[0].mxu0
      %v2742 = vadd.f32 0.0, %v2741
      %v2743 = vpop.f32.mrb[0].mxu0
      %v2744 = vpop.f32.mrb[0].mxu0
      %v2745 = vadd.f32 0.0, %v2744
      %v2746 = vpop.f32.mrb[0].mxu0
      %2747 = vmatprep.mubr.bf16.mxu0 0
      %2748 = vmatmul.mubr.bf16.gmra.mrb[0].mxu0 %v2574
      %v2749 = vpop.f32.mrb[0].mxu0
      %v2750 = vadd.f32 0.0, %v2749
      %v2751 = vpop.f32.mrb[0].mxu0
      %v2752 = vpop.f32.mrb[0].mxu0
      %v2753 = vadd.f32 0.0, %v2752
      %v2754 = vpop.f32.mrb[0].mxu0
      %2755 = vmatprep.mubr.bf16.mxu0 0
      %2756 = vmatmul.mubr.bf16.gmra.mrb[0].mxu0 %v2575
      %v2757 = vpop.f32.mrb[0].mxu0
      %v2758 = vadd.f32 0.0, %v2757
      %v2759 = vpop.f32.mrb[0].mxu0
      %v2760 = vpop.f32.mrb[0].mxu0
      %v2761 = vadd.f32 0.0, %v2760
      %v2762 = vpop.f32.mrb[0].mxu0
      %2763 = vmatprep.mubr.bf16.mxu0 0
      %2764 = vmatmul.mubr.bf16.gmra.mrb[0].mxu0 %v2576
      %v2765 = vpop.f32.mrb[0].mxu0
      %v2766 = vadd.f32 0.0, %v2765
      %v2767 = vpop.f32.mrb[0].mxu0
      %v2768 = vpop.f32.mrb[0].mxu0
      %v2769 = vadd.f32 0.0, %v2768
      %v2770 = vpop.f32.mrb[0].mxu0
      %2771 = vmatprep.mubr.bf16.mxu0 0
      %2772 = vmatmul.mubr.bf16.gmra.mrb[0].mxu0 %v2577
      %v2773 = vpop.f32.mrb[0].mxu0
      %v2774 = vadd.f32 0.0, %v2773
      %v2775 = vpop.f32.mrb[0].mxu0
      %v2776 = vpop.f32.mrb[0].mxu0
      %v2777 = vadd.f32 0.0, %v2776
      %v2778 = vpop.f32.mrb[0].mxu0
      %2779 = vmatprep.mubr.bf16.mxu0 0
      %2780 = vmatmul.mubr.bf16.gmra.mrb[0].mxu0 %v2578
      %v2781 = vpop.f32.mrb[0].mxu0
      %v2782 = vadd.f32 0.0, %v2781
      %v2783 = vpop.f32.mrb[0].mxu0
      %v2784 = vpop.f32.mrb[0].mxu0
      %v2785 = vadd.f32 0.0, %v2784
      %v2786 = vpop.f32.mrb[0].mxu0
      %2787 = vdwg.mxu0
      %v2788 = vadd.f32 %v2509, %v2678
      %v2789 = vadd.f32 %v2510, %v2681
      %v2790 = vadd.f32 %v2511, %v2686
      %v2791 = vadd.f32 %v2512, %v2689
      %v2792 = vadd.f32 %v2513, %v2694
      %v2793 = vadd.f32 %v2514, %v2697
      %v2794 = vadd.f32 %v2515, %v2702
      %v2795 = vadd.f32 %v2516, %v2705
      %v2796 = vadd.f32 %v2517, %v2710
      %v2797 = vadd.f32 %v2518, %v2713
      %v2798 = vadd.f32 %v2519, %v2718
      %v2799 = vadd.f32 %v2520, %v2721
      %v2800 = vadd.f32 %v2521, %v2726
      %v2801 = vadd.f32 %v2522, %v2729
      %v2802 = vadd.f32 %v2523, %v2734
      %v2803 = vadd.f32 %v2524, %v2737
      %v2804 = vadd.f32 %v2525, %v2742
      %v2805 = vadd.f32 %v2526, %v2745
      %v2806 = vadd.f32 %v2527, %v2750
      %v2807 = vadd.f32 %v2528, %v2753
      %v2808 = vadd.f32 %v2529, %v2758
      %v2809 = vadd.f32 %v2530, %v2761
      %v2810 = vadd.f32 %v2531, %v2766
      %v2811 = vadd.f32 %v2532, %v2769
      %v2812 = vadd.f32 %v2533, %v2774
      %v2813 = vadd.f32 %v2534, %v2777
      %v2814 = vadd.f32 %v2535, %v2782
      %v2815 = vadd.f32 %v2536, %v2785
      %v2816 = vld [vmem:[#allocation2 + $0x22] sm:$0xff]
      %v2817 = vld [vmem:[#allocation2 + $0x2a] sm:$0xff]
      %v2818 = vld [vmem:[#allocation2 + $0x32] sm:$0xff]
      %v2819 = vld [vmem:[#allocation2 + $0x3a] sm:$0xff]
      %v2820 = vld [vmem:[#allocation2 + $0x42] sm:$0xff]
      %v2821 = vld [vmem:[#allocation2 + $0x4a] sm:$0xff]
      %v2822 = vld [vmem:[#allocation2 + $0x52] sm:$0xff]
      %v2823 = vld [vmem:[#allocation2 + $0x5a] sm:$0xff]
      %v2824 = vld [vmem:[#allocation2 + $0x62] sm:$0xff]
      %v2825 = vld [vmem:[#allocation2 + $0x6a] sm:$0xff]
      %v2826 = vld [vmem:[#allocation2 + $0x72] sm:$0xff]
      %v2827 = vld [vmem:[#allocation2 + $0x7a] sm:$0xff]
      %v2828 = vld [vmem:[#allocation2 + $0x82] sm:$0xff]
      %v2829 = vld [vmem:[#allocation2 + $0x8a] sm:$0xff]
      %v2830 = vld [vmem:[#allocation2 + $0x92] sm:$0xff]
      %v2831 = vld [vmem:[#allocation2 + $0x9a] sm:$0xff]
      %v2832 = vld [vmem:[#allocation2 + $0xa2] sm:$0xff]
      %v2833 = vld [vmem:[#allocation2 + $0xaa] sm:$0xff]
      %v2834 = vld [vmem:[#allocation2 + $0xb2] sm:$0xff]
      %v2835 = vld [vmem:[#allocation2 + $0xba] sm:$0xff]
      %v2836 = vld [vmem:[#allocation2 + $0xc2] sm:$0xff]
      %v2837 = vld [vmem:[#allocation2 + $0xca] sm:$0xff]
      %v2838 = vld [vmem:[#allocation2 + $0xd2] sm:$0xff]
      %v2839 = vld [vmem:[#allocation2 + $0xda] sm:$0xff]
      %v2840 = vld [vmem:[#allocation2 + $0xe2] sm:$0xff]
      %v2841 = vld [vmem:[#allocation2 + $0xea] sm:$0xff]
      %v2842 = vld [vmem:[#allocation2 + $0xf2] sm:$0xff]
      %v2843 = vld [vmem:[#allocation2 + $0xfa] sm:$0xff]
      %v2844 = vpack.c.bf16 %v2817, %v2816
      %v2845 = vpack.c.bf16 %v2819, %v2818
      %v2846 = vpack.c.bf16 %v2821, %v2820
      %v2847 = vpack.c.bf16 %v2823, %v2822
      %v2848 = vpack.c.bf16 %v2825, %v2824
      %v2849 = vpack.c.bf16 %v2827, %v2826
      %v2850 = vpack.c.bf16 %v2829, %v2828
      %v2851 = vpack.c.bf16 %v2831, %v2830
      %v2852 = vpack.c.bf16 %v2833, %v2832
      %v2853 = vpack.c.bf16 %v2835, %v2834
      %v2854 = vpack.c.bf16 %v2837, %v2836
      %v2855 = vpack.c.bf16 %v2839, %v2838
      %v2856 = vpack.c.bf16 %v2841, %v2840
      %v2857 = vpack.c.bf16 %v2843, %v2842
      %v2858 = vld [vmem:[%s3 + $0x200] sm:$0xf]
      %v2859 = vld [vmem:[%s3 + $0x204] sm:$0xf]
      %v2860 = vld [vmem:[%s3 + $0x208] sm:$0xf]
      %v2861 = vld [vmem:[%s3 + $0x20c] sm:$0xf]
      %v2862 = vld [vmem:[%s3 + $0x210] sm:$0xf]
      %v2863 = vld [vmem:[%s3 + $0x214] sm:$0xf]
      %v2864 = vld [vmem:[%s3 + $0x218] sm:$0xf]
      %v2865 = vld [vmem:[%s3 + $0x21c] sm:$0xf]
      %v2866 = vld [vmem:[%s3 + $0x220] sm:$0xf]
      %v2867 = vld [vmem:[%s3 + $0x224] sm:$0xf]
      %v2868 = vld [vmem:[%s3 + $0x228] sm:$0xf]
      %v2869 = vld [vmem:[%s3 + $0x22c] sm:$0xf]
      %v2870 = vld [vmem:[%s3 + $0x230] sm:$0xf]
      %v2871 = vld [vmem:[%s3 + $0x234] sm:$0xf]
      %v2872 = vld [vmem:[%s3 + $0x238] sm:$0xf]
      %v2873 = vld [vmem:[%s3 + $0x23c] sm:$0xf]
      %v2890 = vunpack.c.l.b16 %v2858
      %v2891 = vunpack.c.l.b16 %v2859
      %v2892 = vunpack.c.l.b16 %v2860
      %v2893 = vunpack.c.l.b16 %v2861
      %v2894 = vunpack.c.l.b16 %v2862
      %v2895 = vunpack.c.l.b16 %v2863
      %v2896 = vunpack.c.l.b16 %v2864
      %v2897 = vunpack.c.l.b16 %v2865
      %v2898 = vunpack.c.l.b16 %v2866
      %v2899 = vunpack.c.l.b16 %v2867
      %v2900 = vunpack.c.l.b16 %v2868
      %v2901 = vunpack.c.l.b16 %v2869
      %v2902 = vunpack.c.l.b16 %v2870
      %v2903 = vunpack.c.l.b16 %v2871
      %v2904 = vunpack.c.l.b16 %v2872
      %v2905 = vunpack.c.l.b16 %v2873
      %v2906 = vpack.c.b16 %v2891, %v2890
      %v2907 = vpack.c.b16 %v2893, %v2892
      %v2908 = vpack.c.b16 %v2895, %v2894
      %v2909 = vpack.c.b16 %v2897, %v2896
      %v2910 = vpack.c.b16 %v2899, %v2898
      %v2911 = vpack.c.b16 %v2901, %v2900
      %v2912 = vpack.c.b16 %v2903, %v2902
      %v2913 = vpack.c.b16 %v2905, %v2904
      %2922 = vmatprep.subr.bf16.mxu0 0
      %2923 = vmatpush1.bf16.msra.mxu0 %v2906
      %2924 = vmatprep.subr.bf16.mxu0 0
      %2925 = vmatpush1.bf16.msra.mxu0 %v2907
      %2926 = vmatprep.subr.bf16.mxu0 0
      %2927 = vmatpush1.bf16.msra.mxu0 %v2908
      %2928 = vmatprep.subr.bf16.mxu0 0
      %2929 = vmatpush1.bf16.msra.mxu0 %v2909
      %2930 = vmatprep.subr.bf16.mxu0 0
      %2931 = vmatpush1.bf16.msra.mxu0 %v2910
      %2932 = vmatprep.subr.bf16.mxu0 0
      %2933 = vmatpush1.bf16.msra.mxu0 %v2911
      %2934 = vmatprep.subr.bf16.mxu0 0
      %2935 = vmatpush1.bf16.msra.mxu0 %v2912
      %2936 = vmatprep.subr.bf16.mxu0 0
      %2937 = vmatpush1.bf16.msra.mxu0 %v2913
      %2938 = vmatprep.subr.bf16.mxu0 0
      %2939 = vmatpush1.bf16.msra.mxu0 0
      %2940 = vmatprep.subr.bf16.mxu0 0
      %2941 = vmatpush1.bf16.msra.mxu0 0
      %2942 = vmatprep.subr.bf16.mxu0 0
      %2943 = vmatpush1.bf16.msra.mxu0 0
      %2944 = vmatprep.subr.bf16.mxu0 0
      %2945 = vmatpush1.bf16.msra.mxu0 0
      %2946 = vmatprep.subr.bf16.mxu0 0
      %2947 = vmatpush1.bf16.msra.mxu0 0
      %2948 = vmatprep.subr.bf16.mxu0 0
      %2949 = vmatpush1.bf16.msra.mxu0 0
      %2950 = vmatprep.subr.bf16.mxu0 0
      %2951 = vmatpush1.bf16.msra.mxu0 0
      %2952 = vmatprep.subr.bf16.mxu0 0
      %2953 = vmatpush1.bf16.msra.mxu0 0
      %2954 = vmatprep.mubr.bf16.mxu0 0
      %2955 = vmatmul.mubr.bf16.gmra.mrb[0].mxu0 %v2844
      %v2956 = vpop.f32.mrb[0].mxu0
      %v2957 = vadd.f32 0.0, %v2956
      %v2958 = vpop.f32.mrb[0].mxu0
      %v2959 = vpop.f32.mrb[0].mxu0
      %v2960 = vadd.f32 0.0, %v2959
      %v2961 = vpop.f32.mrb[0].mxu0
      %2962 = vmatprep.mubr.bf16.mxu0 0
      %2963 = vmatmul.mubr.bf16.gmra.mrb[0].mxu0 %v2845
      %v2964 = vpop.f32.mrb[0].mxu0
      %v2965 = vadd.f32 0.0, %v2964
      %v2966 = vpop.f32.mrb[0].mxu0
      %v2967 = vpop.f32.mrb[0].mxu0
      %v2968 = vadd.f32 0.0, %v2967
      %v2969 = vpop.f32.mrb[0].mxu0
      %2970 = vmatprep.mubr.bf16.mxu0 0
      %2971 = vmatmul.mubr.bf16.gmra.mrb[0].mxu0 %v2846
      %v2972 = vpop.f32.mrb[0].mxu0
      %v2973 = vadd.f32 0.0, %v2972
      %v2974 = vpop.f32.mrb[0].mxu0
      %v2975 = vpop.f32.mrb[0].mxu0
      %v2976 = vadd.f32 0.0, %v2975
      %v2977 = vpop.f32.mrb[0].mxu0
      %2978 = vmatprep.mubr.bf16.mxu0 0
      %2979 = vmatmul.mubr.bf16.gmra.mrb[0].mxu0 %v2847
      %v2980 = vpop.f32.mrb[0].mxu0
      %v2981 = vadd.f32 0.0, %v2980
      %v2982 = vpop.f32.mrb[0].mxu0
      %v2983 = vpop.f32.mrb[0].mxu0
      %v2984 = vadd.f32 0.0, %v2983
      %v2985 = vpop.f32.mrb[0].mxu0
      %2986 = vmatprep.mubr.bf16.mxu0 0
      %2987 = vmatmul.mubr.bf16.gmra.mrb[0].mxu0 %v2848
      %v2988 = vpop.f32.mrb[0].mxu0
      %v2989 = vadd.f32 0.0, %v2988
      %v2990 = vpop.f32.mrb[0].mxu0
      %v2991 = vpop.f32.mrb[0].mxu0
      %v2992 = vadd.f32 0.0, %v2991
      %v2993 = vpop.f32.mrb[0].mxu0
      %2994 = vmatprep.mubr.bf16.mxu0 0
      %2995 = vmatmul.mubr.bf16.gmra.mrb[0].mxu0 %v2849
      %v2996 = vpop.f32.mrb[0].mxu0
      %v2997 = vadd.f32 0.0, %v2996
      %v2998 = vpop.f32.mrb[0].mxu0
      %v2999 = vpop.f32.mrb[0].mxu0
      %v3000 = vadd.f32 0.0, %v2999
      %v3001 = vpop.f32.mrb[0].mxu0
      %3002 = vmatprep.mubr.bf16.mxu0 0
      %3003 = vmatmul.mubr.bf16.gmra.mrb[0].mxu0 %v2850
      %v3004 = vpop.f32.mrb[0].mxu0
      %v3005 = vadd.f32 0.0, %v3004
      %v3006 = vpop.f32.mrb[0].mxu0
      %v3007 = vpop.f32.mrb[0].mxu0
      %v3008 = vadd.f32 0.0, %v3007
      %v3009 = vpop.f32.mrb[0].mxu0
      %3010 = vmatprep.mubr.bf16.mxu0 0
      %3011 = vmatmul.mubr.bf16.gmra.mrb[0].mxu0 %v2851
      %v3012 = vpop.f32.mrb[0].mxu0
      %v3013 = vadd.f32 0.0, %v3012
      %v3014 = vpop.f32.mrb[0].mxu0
      %v3015 = vpop.f32.mrb[0].mxu0
      %v3016 = vadd.f32 0.0, %v3015
      %v3017 = vpop.f32.mrb[0].mxu0
      %3018 = vmatprep.mubr.bf16.mxu0 0
      %3019 = vmatmul.mubr.bf16.gmra.mrb[0].mxu0 %v2852
      %v3020 = vpop.f32.mrb[0].mxu0
      %v3021 = vadd.f32 0.0, %v3020
      %v3022 = vpop.f32.mrb[0].mxu0
      %v3023 = vpop.f32.mrb[0].mxu0
      %v3024 = vadd.f32 0.0, %v3023
      %v3025 = vpop.f32.mrb[0].mxu0
      %3026 = vmatprep.mubr.bf16.mxu0 0
      %3027 = vmatmul.mubr.bf16.gmra.mrb[0].mxu0 %v2853
      %v3028 = vpop.f32.mrb[0].mxu0
      %v3029 = vadd.f32 0.0, %v3028
      %v3030 = vpop.f32.mrb[0].mxu0
      %v3031 = vpop.f32.mrb[0].mxu0
      %v3032 = vadd.f32 0.0, %v3031
      %v3033 = vpop.f32.mrb[0].mxu0
      %3034 = vmatprep.mubr.bf16.mxu0 0
      %3035 = vmatmul.mubr.bf16.gmra.mrb[0].mxu0 %v2854
      %v3036 = vpop.f32.mrb[0].mxu0
      %v3037 = vadd.f32 0.0, %v3036
      %v3038 = vpop.f32.mrb[0].mxu0
      %v3039 = vpop.f32.mrb[0].mxu0
      %v3040 = vadd.f32 0.0, %v3039
      %v3041 = vpop.f32.mrb[0].mxu0
      %3042 = vmatprep.mubr.bf16.mxu0 0
      %3043 = vmatmul.mubr.bf16.gmra.mrb[0].mxu0 %v2855
      %v3044 = vpop.f32.mrb[0].mxu0
      %v3045 = vadd.f32 0.0, %v3044
      %v3046 = vpop.f32.mrb[0].mxu0
      %v3047 = vpop.f32.mrb[0].mxu0
      %v3048 = vadd.f32 0.0, %v3047
      %v3049 = vpop.f32.mrb[0].mxu0
      %3050 = vmatprep.mubr.bf16.mxu0 0
      %3051 = vmatmul.mubr.bf16.gmra.mrb[0].mxu0 %v2856
      %v3052 = vpop.f32.mrb[0].mxu0
      %v3053 = vadd.f32 0.0, %v3052
      %v3054 = vpop.f32.mrb[0].mxu0
      %v3055 = vpop.f32.mrb[0].mxu0
      %v3056 = vadd.f32 0.0, %v3055
      %v3057 = vpop.f32.mrb[0].mxu0
      %3058 = vmatprep.mubr.bf16.mxu0 0
      %3059 = vmatmul.mubr.bf16.gmra.mrb[0].mxu0 %v2857
      %v3060 = vpop.f32.mrb[0].mxu0
      %v3061 = vadd.f32 0.0, %v3060
      %v3062 = vpop.f32.mrb[0].mxu0
      %v3063 = vpop.f32.mrb[0].mxu0
      %v3064 = vadd.f32 0.0, %v3063
      %v3065 = vpop.f32.mrb[0].mxu0
      %3066 = vdwg.mxu0
      %v3067 = vadd.f32 %v2788, %v2957
      %v3068 = vadd.f32 %v2789, %v2960
      %v3069 = vadd.f32 %v2790, %v2965
      %v3070 = vadd.f32 %v2791, %v2968
      %v3071 = vadd.f32 %v2792, %v2973
      %v3072 = vadd.f32 %v2793, %v2976
      %v3073 = vadd.f32 %v2794, %v2981
      %v3074 = vadd.f32 %v2795, %v2984
      %v3075 = vadd.f32 %v2796, %v2989
      %v3076 = vadd.f32 %v2797, %v2992
      %v3077 = vadd.f32 %v2798, %v2997
      %v3078 = vadd.f32 %v2799, %v3000
      %v3079 = vadd.f32 %v2800, %v3005
      %v3080 = vadd.f32 %v2801, %v3008
      %v3081 = vadd.f32 %v2802, %v3013
      %v3082 = vadd.f32 %v2803, %v3016
      %v3083 = vadd.f32 %v2804, %v3021
      %v3084 = vadd.f32 %v2805, %v3024
      %v3085 = vadd.f32 %v2806, %v3029
      %v3086 = vadd.f32 %v2807, %v3032
      %v3087 = vadd.f32 %v2808, %v3037
      %v3088 = vadd.f32 %v2809, %v3040
      %v3089 = vadd.f32 %v2810, %v3045
      %v3090 = vadd.f32 %v2811, %v3048
      %v3091 = vadd.f32 %v2812, %v3053
      %v3092 = vadd.f32 %v2813, %v3056
      %v3093 = vadd.f32 %v2814, %v3061
      %v3094 = vadd.f32 %v2815, %v3064
      %v3095 = vld [vmem:[%s4] sm:$0x1]
      %v3097 = vlaneseq
      %v3098 = vshrl.u32 %v3097, 7
      %v3099 = vsub.s32 0, %v3098
      %v3100 = vrot.slane %v3095, %v3099
      %v3102 = vadd.f32 %v3067, %v3100
      %v3103 = vadd.f32 %v3068, %v3100
      %v3104 = vadd.f32 %v3069, %v3100
      %v3105 = vadd.f32 %v3070, %v3100
      %v3106 = vadd.f32 %v3071, %v3100
      %v3107 = vadd.f32 %v3072, %v3100
      %v3108 = vadd.f32 %v3073, %v3100
      %v3109 = vadd.f32 %v3074, %v3100
      %v3110 = vadd.f32 %v3075, %v3100
      %v3111 = vadd.f32 %v3076, %v3100
      %v3112 = vadd.f32 %v3077, %v3100
      %v3113 = vadd.f32 %v3078, %v3100
      %v3114 = vadd.f32 %v3079, %v3100
      %v3115 = vadd.f32 %v3080, %v3100
      %v3116 = vadd.f32 %v3081, %v3100
      %v3117 = vadd.f32 %v3082, %v3100
      %v3118 = vadd.f32 %v3083, %v3100
      %v3119 = vadd.f32 %v3084, %v3100
      %v3120 = vadd.f32 %v3085, %v3100
      %v3121 = vadd.f32 %v3086, %v3100
      %v3122 = vadd.f32 %v3087, %v3100
      %v3123 = vadd.f32 %v3088, %v3100
      %v3124 = vadd.f32 %v3089, %v3100
      %v3125 = vadd.f32 %v3090, %v3100
      %v3126 = vadd.f32 %v3091, %v3100
      %v3127 = vadd.f32 %v3092, %v3100
      %v3128 = vadd.f32 %v3093, %v3100
      %v3129 = vadd.f32 %v3094, %v3100
      %3130 = vst [vmem:[#allocation3 + $0x4b] sm:$0xff] %v3102
      %3131 = vst [vmem:[#allocation3 + $0x53] sm:$0x3f] %v3103
      %3132 = vst [vmem:[#allocation3 + $0x63] sm:$0xff] %v3104
      %3133 = vst [vmem:[#allocation3 + $0x6b] sm:$0x3f] %v3105
      %3134 = vst [vmem:[#allocation3 + $0x7b] sm:$0xff] %v3106
      %3135 = vst [vmem:[#allocation3 + $0x83] sm:$0x3f] %v3107
      %3136 = vst [vmem:[#allocation3 + $0x93] sm:$0xff] %v3108
      %3137 = vst [vmem:[#allocation3 + $0x9b] sm:$0x3f] %v3109
      %3138 = vst [vmem:[#allocation3 + $0xab] sm:$0xff] %v3110
      %3139 = vst [vmem:[#allocation3 + $0xb3] sm:$0x3f] %v3111
      %3140 = vst [vmem:[#allocation3 + $0xc3] sm:$0xff] %v3112
      %3141 = vst [vmem:[#allocation3 + $0xcb] sm:$0x3f] %v3113
      %3142 = vst [vmem:[#allocation3 + $0xdb] sm:$0xff] %v3114
      %3143 = vst [vmem:[#allocation3 + $0xe3] sm:$0x3f] %v3115
      %3144 = vst [vmem:[#allocation3 + $0xf3] sm:$0xff] %v3116
      %3145 = vst [vmem:[#allocation3 + $0xfb] sm:$0x3f] %v3117
      %3146 = vst [vmem:[#allocation3 + $0x10b] sm:$0xff] %v3118
      %3147 = vst [vmem:[#allocation3 + $0x113] sm:$0x3f] %v3119
      %3148 = vst [vmem:[#allocation3 + $0x123] sm:$0xff] %v3120
      %3149 = vst [vmem:[#allocation3 + $0x12b] sm:$0x3f] %v3121
      %3150 = vst [vmem:[#allocation3 + $0x13b] sm:$0xff] %v3122
      %3151 = vst [vmem:[#allocation3 + $0x143] sm:$0x3f] %v3123
      %3152 = vst [vmem:[#allocation3 + $0x153] sm:$0xff] %v3124
      %3153 = vst [vmem:[#allocation3 + $0x15b] sm:$0x3f] %v3125
      %3154 = vst [vmem:[#allocation3 + $0x16b] sm:$0xff] %v3126
      %3155 = vst [vmem:[#allocation3 + $0x173] sm:$0x3f] %v3127
      %3156 = vst [vmem:[#allocation3 + $0x183] sm:$0xff] %v3128
      %3157 = vst [vmem:[#allocation3 + $0x18b] sm:$0x3f] %v3129
      %v3158 = vld [vmem:[#allocation3] sm:$0xff]
      %v3159 = vld [vmem:[#allocation3 + $0x8] sm:$0xff]
      %v3160 = vld [vmem:[#allocation3 + $0x10] sm:$0xff]
      %v3161 = vld [vmem:[#allocation3 + $0x18] sm:$0xff]
      %v3162 = vld [vmem:[#allocation3 + $0x20] sm:$0xff]
      %v3163 = vld [vmem:[#allocation3 + $0x28] sm:$0xff]
      %v3164 = vld [vmem:[#allocation3 + $0x30] sm:$0xff]
      %v3165 = vld [vmem:[#allocation3 + $0x38] sm:$0xff]
      %v3166 = vld [vmem:[#allocation3 + $0x40] sm:$0xff]
      %v3167 = vld [vmem:[#allocation3 + $0x48] sm:$0xff]
      %v3168 = vld [vmem:[#allocation3 + $0x50] sm:$0xff]
      %v3169 = vld [vmem:[#allocation3 + $0x58] sm:$0xff]
      %v3170 = vld [vmem:[#allocation3 + $0x60] sm:$0xff]
      %v3171 = vld [vmem:[#allocation3 + $0x68] sm:$0xff]
      %v3172 = vld [vmem:[#allocation3 + $0x70] sm:$0xff]
      %v3173 = vld [vmem:[#allocation3 + $0x78] sm:$0xff]
      %v3174 = vld [vmem:[#allocation3 + $0x80] sm:$0xff]
      %v3175 = vld [vmem:[#allocation3 + $0x88] sm:$0xff]
      %v3176 = vld [vmem:[#allocation3 + $0x90] sm:$0xff]
      %v3177 = vld [vmem:[#allocation3 + $0x98] sm:$0xff]
      %v3178 = vld [vmem:[#allocation3 + $0xa0] sm:$0xff]
      %v3179 = vld [vmem:[#allocation3 + $0xa8] sm:$0xff]
      %v3180 = vld [vmem:[#allocation3 + $0xb0] sm:$0xff]
      %v3181 = vld [vmem:[#allocation3 + $0xb8] sm:$0xff]
      %v3182 = vld [vmem:[#allocation3 + $0xc0] sm:$0xff]
      %v3183 = vld [vmem:[#allocation3 + $0xc8] sm:$0xff]
      %v3184 = vld [vmem:[#allocation3 + $0xd0] sm:$0xff]
      %v3185 = vld [vmem:[#allocation3 + $0xd8] sm:$0xff]
      %v3186 = vld [vmem:[#allocation3 + $0xe0] sm:$0xff]
      %v3187 = vld [vmem:[#allocation3 + $0xe8] sm:$0xff]
      %v3188 = vld [vmem:[#allocation3 + $0xf0] sm:$0xff]
      %v3189 = vld [vmem:[#allocation3 + $0xf8] sm:$0xff]
      %v3190 = vld [vmem:[#allocation3 + $0x100] sm:$0xff]
      %v3191 = vld [vmem:[#allocation3 + $0x108] sm:$0xff]
      %v3192 = vld [vmem:[#allocation3 + $0x110] sm:$0xff]
      %v3193 = vld [vmem:[#allocation3 + $0x118] sm:$0xff]
      %v3194 = vld [vmem:[#allocation3 + $0x120] sm:$0xff]
      %v3195 = vld [vmem:[#allocation3 + $0x128] sm:$0xff]
      %v3196 = vld [vmem:[#allocation3 + $0x130] sm:$0xff]
      %v3197 = vld [vmem:[#allocation3 + $0x138] sm:$0xff]
      %v3198 = vld [vmem:[#allocation3 + $0x140] sm:$0xff]
      %v3199 = vld [vmem:[#allocation3 + $0x148] sm:$0xff]
      %v3200 = vld [vmem:[#allocation3 + $0x150] sm:$0xff]
      %v3201 = vld [vmem:[#allocation3 + $0x158] sm:$0xff]
      %v3202 = vld [vmem:[#allocation3 + $0x160] sm:$0xff]
      %v3203 = vld [vmem:[#allocation3 + $0x168] sm:$0xff]
      %v3204 = vld [vmem:[#allocation3 + $0x170] sm:$0xff]
      %v3205 = vld [vmem:[#allocation3 + $0x178] sm:$0xff]
      %v3206 = vld [vmem:[#allocation3 + $0x180] sm:$0xff]
      %v3207 = vld [vmem:[#allocation3 + $0x188] sm:$0xff]
      %v3208 = vld [vmem:[#allocation3 + $0x190] sm:$0xff]
      %v3209 = vld [vmem:[#allocation3 + $0x198] sm:$0xff]
      %v3210 = vld [vmem:[#allocation3 + $0x1a0] sm:$0xff]
      %v3211 = vld [vmem:[#allocation3 + $0x1a8] sm:$0xff]
      %v3212 = vpack.c.bf16 %v3159, %v3158
      %v3213 = vpack.c.bf16 %v3161, %v3160
      %v3214 = vpack.c.bf16 %v3163, %v3162
      %v3215 = vpack.c.bf16 %v3165, %v3164
      %v3216 = vpack.c.bf16 %v3167, %v3166
      %v3217 = vpack.c.bf16 %v3169, %v3168
      %v3218 = vpack.c.bf16 %v3171, %v3170
      %v3219 = vpack.c.bf16 %v3173, %v3172
      %v3220 = vpack.c.bf16 %v3175, %v3174
      %v3221 = vpack.c.bf16 %v3177, %v3176
      %v3222 = vpack.c.bf16 %v3179, %v3178
      %v3223 = vpack.c.bf16 %v3181, %v3180
      %v3224 = vpack.c.bf16 %v3183, %v3182
      %v3225 = vpack.c.bf16 %v3185, %v3184
      %v3226 = vpack.c.bf16 %v3187, %v3186
      %v3227 = vpack.c.bf16 %v3189, %v3188
      %v3228 = vpack.c.bf16 %v3191, %v3190
      %v3229 = vpack.c.bf16 %v3193, %v3192
      %v3230 = vpack.c.bf16 %v3195, %v3194
      %v3231 = vpack.c.bf16 %v3197, %v3196
      %v3232 = vpack.c.bf16 %v3199, %v3198
      %v3233 = vpack.c.bf16 %v3201, %v3200
      %v3234 = vpack.c.bf16 %v3203, %v3202
      %v3235 = vpack.c.bf16 %v3205, %v3204
      %v3236 = vpack.c.bf16 %v3207, %v3206
      %v3237 = vpack.c.bf16 %v3209, %v3208
      %v3238 = vpack.c.bf16 %v3211, %v3210
      %v3239 = vld [vmem:[%s5] sm:$0xf]
      %v3240 = vld [vmem:[%s5 + $0x4] sm:$0xf]
      %v3241 = vld [vmem:[%s5 + $0x8] sm:$0xf]
      %v3242 = vld [vmem:[%s5 + $0xc] sm:$0xf]
      %v3243 = vld [vmem:[%s5 + $0x10] sm:$0xf]
      %v3244 = vld [vmem:[%s5 + $0x14] sm:$0xf]
      %v3245 = vld [vmem:[%s5 + $0x18] sm:$0xf]
      %v3246 = vld [vmem:[%s5 + $0x1c] sm:$0xf]
      %v3247 = vld [vmem:[%s5 + $0x20] sm:$0xf]
      %v3248 = vld [vmem:[%s5 + $0x24] sm:$0xf]
      %v3249 = vld [vmem:[%s5 + $0x28] sm:$0xf]
      %v3250 = vld [vmem:[%s5 + $0x2c] sm:$0xf]
      %v3251 = vld [vmem:[%s5 + $0x30] sm:$0xf]
      %v3252 = vld [vmem:[%s5 + $0x34] sm:$0xf]
      %v3253 = vld [vmem:[%s5 + $0x38] sm:$0xf]
      %v3254 = vld [vmem:[%s5 + $0x3c] sm:$0xf]
      %v3255 = vld [vmem:[#allocation3 + $0x1] sm:$0xff]
      %v3256 = vld [vmem:[#allocation3 + $0x9] sm:$0xff]
      %v3257 = vld [vmem:[#allocation3 + $0x11] sm:$0xff]
      %v3258 = vld [vmem:[#allocation3 + $0x19] sm:$0xff]
      %v3259 = vld [vmem:[#allocation3 + $0x21] sm:$0xff]
      %v3260 = vld [vmem:[#allocation3 + $0x29] sm:$0xff]
      %v3261 = vld [vmem:[#allocation3 + $0x31] sm:$0xff]
      %v3262 = vld [vmem:[#allocation3 + $0x39] sm:$0xff]
      %v3263 = vld [vmem:[#allocation3 + $0x41] sm:$0xff]
      %v3264 = vld [vmem:[#allocation3 + $0x49] sm:$0xff]
      %v3265 = vld [vmem:[#allocation3 + $0x51] sm:$0xff]
      %v3266 = vld [vmem:[#allocation3 + $0x59] sm:$0xff]
      %v3267 = vld [vmem:[#allocation3 + $0x61] sm:$0xff]
      %v3268 = vld [vmem:[#allocation3 + $0x69] sm:$0xff]
      %v3269 = vld [vmem:[#allocation3 + $0x71] sm:$0xff]
      %v3270 = vld [vmem:[#allocation3 + $0x79] sm:$0xff]
      %v3271 = vld [vmem:[#allocation3 + $0x81] sm:$0xff]
      %v3272 = vld [vmem:[#allocation3 + $0x89] sm:$0xff]
      %v3273 = vld [vmem:[#allocation3 + $0x91] sm:$0xff]
      %v3274 = vld [vmem:[#allocation3 + $0x99] sm:$0xff]
      %v3275 = vld [vmem:[#allocation3 + $0xa1] sm:$0xff]
      %v3276 = vld [vmem:[#allocation3 + $0xa9] sm:$0xff]
      %v3277 = vld [vmem:[#allocation3 + $0xb1] sm:$0xff]
      %v3278 = vld [vmem:[#allocation3 + $0xb9] sm:$0xff]
      %v3279 = vld [vmem:[#allocation3 + $0xc1] sm:$0xff]
      %v3280 = vld [vmem:[#allocation3 + $0xc9] sm:$0xff]
      %v3281 = vld [vmem:[#allocation3 + $0xd1] sm:$0xff]
      %v3282 = vld [vmem:[#allocation3 + $0xd9] sm:$0xff]
      %v3283 = vld [vmem:[#allocation3 + $0xe1] sm:$0xff]
      %v3284 = vld [vmem:[#allocation3 + $0xe9] sm:$0xff]
      %v3285 = vld [vmem:[#allocation3 + $0xf1] sm:$0xff]
      %v3286 = vld [vmem:[#allocation3 + $0xf9] sm:$0xff]
      %v3287 = vld [vmem:[#allocation3 + $0x101] sm:$0xff]
      %v3288 = vld [vmem:[#allocation3 + $0x109] sm:$0xff]
      %v3289 = vld [vmem:[#allocation3 + $0x111] sm:$0xff]
      %v3290 = vld [vmem:[#allocation3 + $0x119] sm:$0xff]
      %v3291 = vld [vmem:[#allocation3 + $0x121] sm:$0xff]
      %v3292 = vld [vmem:[#allocation3 + $0x129] sm:$0xff]
      %v3293 = vld [vmem:[#allocation3 + $0x131] sm:$0xff]
      %v3294 = vld [vmem:[#allocation3 + $0x139] sm:$0xff]
      %v3295 = vld [vmem:[#allocation3 + $0x141] sm:$0xff]
      %v3296 = vld [vmem:[#allocation3 + $0x149] sm:$0xff]
      %v3297 = vld [vmem:[#allocation3 + $0x151] sm:$0xff]
      %v3298 = vld [vmem:[#allocation3 + $0x159] sm:$0xff]
      %v3299 = vld [vmem:[#allocation3 + $0x161] sm:$0xff]
      %v3300 = vld [vmem:[#allocation3 + $0x169] sm:$0xff]
      %v3301 = vld [vmem:[#allocation3 + $0x171] sm:$0xff]
      %v3302 = vld [vmem:[#allocation3 + $0x179] sm:$0xff]
      %v3303 = vld [vmem:[#allocation3 + $0x181] sm:$0xff]
      %v3304 = vld [vmem:[#allocation3 + $0x189] sm:$0xff]
      %v3305 = vld [vmem:[#allocation3 + $0x191] sm:$0xff]
      %v3306 = vld [vmem:[#allocation3 + $0x199] sm:$0xff]
      %v3307 = vld [vmem:[#allocation3 + $0x1a1] sm:$0xff]
      %v3308 = vld [vmem:[#allocation3 + $0x1a9] sm:$0xff]
      %v3309 = vpack.c.bf16 %v3256, %v3255
      %v3310 = vpack.c.bf16 %v3258, %v3257
      %v3311 = vpack.c.bf16 %v3260, %v3259
      %v3312 = vpack.c.bf16 %v3262, %v3261
      %v3313 = vpack.c.bf16 %v3264, %v3263
      %v3314 = vpack.c.bf16 %v3266, %v3265
      %v3315 = vpack.c.bf16 %v3268, %v3267
      %v3316 = vpack.c.bf16 %v3270, %v3269
      %v3317 = vpack.c.bf16 %v3272, %v3271
      %v3318 = vpack.c.bf16 %v3274, %v3273
      %v3319 = vpack.c.bf16 %v3276, %v3275
      %v3320 = vpack.c.bf16 %v3278, %v3277
      %v3321 = vpack.c.bf16 %v3280, %v3279
      %v3322 = vpack.c.bf16 %v3282, %v3281
      %v3323 = vpack.c.bf16 %v3284, %v3283
      %v3324 = vpack.c.bf16 %v3286, %v3285
      %v3325 = vpack.c.bf16 %v3288, %v3287
      %v3326 = vpack.c.bf16 %v3290, %v3289
      %v3327 = vpack.c.bf16 %v3292, %v3291
      %v3328 = vpack.c.bf16 %v3294, %v3293
      %v3329 = vpack.c.bf16 %v3296, %v3295
      %v3330 = vpack.c.bf16 %v3298, %v3297
      %v3331 = vpack.c.bf16 %v3300, %v3299
      %v3332 = vpack.c.bf16 %v3302, %v3301
      %v3333 = vpack.c.bf16 %v3304, %v3303
      %v3334 = vpack.c.bf16 %v3306, %v3305
      %v3335 = vpack.c.bf16 %v3308, %v3307
      %v3336 = vld [vmem:[%s5 + $0x40] sm:$0xf]
      %v3337 = vld [vmem:[%s5 + $0x44] sm:$0xf]
      %v3338 = vld [vmem:[%s5 + $0x48] sm:$0xf]
      %v3339 = vld [vmem:[%s5 + $0x4c] sm:$0xf]
      %v3340 = vld [vmem:[%s5 + $0x50] sm:$0xf]
      %v3341 = vld [vmem:[%s5 + $0x54] sm:$0xf]
      %v3342 = vld [vmem:[%s5 + $0x58] sm:$0xf]
      %v3343 = vld [vmem:[%s5 + $0x5c] sm:$0xf]
      %v3344 = vld [vmem:[%s5 + $0x60] sm:$0xf]
      %v3345 = vld [vmem:[%s5 + $0x64] sm:$0xf]
      %v3346 = vld [vmem:[%s5 + $0x68] sm:$0xf]
      %v3347 = vld [vmem:[%s5 + $0x6c] sm:$0xf]
      %v3348 = vld [vmem:[%s5 + $0x70] sm:$0xf]
      %v3349 = vld [vmem:[%s5 + $0x74] sm:$0xf]
      %v3350 = vld [vmem:[%s5 + $0x78] sm:$0xf]
      %v3351 = vld [vmem:[%s5 + $0x7c] sm:$0xf]
      %v3368 = vunpack.c.l.b16 %v3336
      %v3369 = vunpack.c.l.b16 %v3337
      %v3370 = vunpack.c.l.b16 %v3338
      %v3371 = vunpack.c.l.b16 %v3339
      %v3372 = vunpack.c.l.b16 %v3340
      %v3373 = vunpack.c.l.b16 %v3341
      %v3374 = vunpack.c.l.b16 %v3342
      %v3375 = vunpack.c.l.b16 %v3343
      %v3376 = vunpack.c.l.b16 %v3344
      %v3377 = vunpack.c.l.b16 %v3345
      %v3378 = vunpack.c.l.b16 %v3346
      %v3379 = vunpack.c.l.b16 %v3347
      %v3380 = vunpack.c.l.b16 %v3348
      %v3381 = vunpack.c.l.b16 %v3349
      %v3382 = vunpack.c.l.b16 %v3350
      %v3383 = vunpack.c.l.b16 %v3351
      %v3384 = vpack.c.b16 %v3369, %v3368
      %v3385 = vpack.c.b16 %v3371, %v3370
      %v3386 = vpack.c.b16 %v3373, %v3372
      %v3387 = vpack.c.b16 %v3375, %v3374
      %v3388 = vpack.c.b16 %v3377, %v3376
      %v3389 = vpack.c.b16 %v3379, %v3378
      %v3390 = vpack.c.b16 %v3381, %v3380
      %v3391 = vpack.c.b16 %v3383, %v3382
      %3400 = vmatprep.subr.bf16.mxu0 0
      %3401 = vmatpush1.bf16.msra.mxu0 %v3384
      %3402 = vmatprep.subr.bf16.mxu0 0
      %3403 = vmatpush1.bf16.msra.mxu0 %v3385
      %3404 = vmatprep.subr.bf16.mxu0 0
      %3405 = vmatpush1.bf16.msra.mxu0 %v3386
      %3406 = vmatprep.subr.bf16.mxu0 0
      %3407 = vmatpush1.bf16.msra.mxu0 %v3387
      %3408 = vmatprep.subr.bf16.mxu0 0
      %3409 = vmatpush1.bf16.msra.mxu0 %v3388
      %3410 = vmatprep.subr.bf16.mxu0 0
      %3411 = vmatpush1.bf16.msra.mxu0 %v3389
      %3412 = vmatprep.subr.bf16.mxu0 0
      %3413 = vmatpush1.bf16.msra.mxu0 %v3390
      %3414 = vmatprep.subr.bf16.mxu0 0
      %3415 = vmatpush1.bf16.msra.mxu0 %v3391
      %3416 = vmatprep.subr.bf16.mxu0 0
      %3417 = vmatpush1.bf16.msra.mxu0 0
      %3418 = vmatprep.subr.bf16.mxu0 0
      %3419 = vmatpush1.bf16.msra.mxu0 0
      %3420 = vmatprep.subr.bf16.mxu0 0
      %3421 = vmatpush1.bf16.msra.mxu0 0
      %3422 = vmatprep.subr.bf16.mxu0 0
      %3423 = vmatpush1.bf16.msra.mxu0 0
      %3424 = vmatprep.subr.bf16.mxu0 0
      %3425 = vmatpush1.bf16.msra.mxu0 0
      %3426 = vmatprep.subr.bf16.mxu0 0
      %3427 = vmatpush1.bf16.msra.mxu0 0
      %3428 = vmatprep.subr.bf16.mxu0 0
      %3429 = vmatpush1.bf16.msra.mxu0 0
      %3430 = vmatprep.subr.bf16.mxu0 0
      %3431 = vmatpush1.bf16.msra.mxu0 0
      %3432 = vmatprep.mubr.bf16.mxu0 0
      %3433 = vmatmul.mubr.bf16.gmra.mrb[0].mxu0 %v3309
      %v3434 = vpop.f32.mrb[0].mxu0
      %v3435 = vadd.f32 0.0, %v3434
      %v3436 = vpop.f32.mrb[0].mxu0
      %v3437 = vpop.f32.mrb[0].mxu0
      %v3438 = vadd.f32 0.0, %v3437
      %v3439 = vpop.f32.mrb[0].mxu0
      %3440 = vmatprep.mubr.bf16.mxu0 0
      %3441 = vmatmul.mubr.bf16.gmra.mrb[0].mxu0 %v3310
      %v3442 = vpop.f32.mrb[0].mxu0
      %v3443 = vadd.f32 0.0, %v3442
      %v3444 = vpop.f32.mrb[0].mxu0
      %v3445 = vpop.f32.mrb[0].mxu0
      %v3446 = vadd.f32 0.0, %v3445
      %v3447 = vpop.f32.mrb[0].mxu0
      %3448 = vmatprep.mubr.bf16.mxu0 0
      %3449 = vmatmul.mubr.bf16.gmra.mrb[0].mxu0 %v3311
      %v3450 = vpop.f32.mrb[0].mxu0
      %v3451 = vadd.f32 0.0, %v3450
      %v3452 = vpop.f32.mrb[0].mxu0
      %v3453 = vpop.f32.mrb[0].mxu0
      %v3454 = vadd.f32 0.0, %v3453
      %v3455 = vpop.f32.mrb[0].mxu0
      %3456 = vmatprep.mubr.bf16.mxu0 0
      %3457 = vmatmul.mubr.bf16.gmra.mrb[0].mxu0 %v3312
      %v3458 = vpop.f32.mrb[0].mxu0
      %v3459 = vadd.f32 0.0, %v3458
      %v3460 = vpop.f32.mrb[0].mxu0
      %v3461 = vpop.f32.mrb[0].mxu0
      %v3462 = vadd.f32 0.0, %v3461
      %v3463 = vpop.f32.mrb[0].mxu0
      %3464 = vmatprep.mubr.bf16.mxu0 0
      %3465 = vmatmul.mubr.bf16.gmra.mrb[0].mxu0 %v3313
      %v3466 = vpop.f32.mrb[0].mxu0
      %v3467 = vadd.f32 0.0, %v3466
      %v3468 = vpop.f32.mrb[0].mxu0
      %v3469 = vpop.f32.mrb[0].mxu0
      %v3470 = vadd.f32 0.0, %v3469
      %v3471 = vpop.f32.mrb[0].mxu0
      %3472 = vmatprep.mubr.bf16.mxu0 0
      %3473 = vmatmul.mubr.bf16.gmra.mrb[0].mxu0 %v3314
      %v3474 = vpop.f32.mrb[0].mxu0
      %v3475 = vadd.f32 0.0, %v3474
      %v3476 = vpop.f32.mrb[0].mxu0
      %v3477 = vpop.f32.mrb[0].mxu0
      %v3478 = vadd.f32 0.0, %v3477
      %v3479 = vpop.f32.mrb[0].mxu0
      %3480 = vmatprep.mubr.bf16.mxu0 0
      %3481 = vmatmul.mubr.bf16.gmra.mrb[0].mxu0 %v3315
      %v3482 = vpop.f32.mrb[0].mxu0
      %v3483 = vadd.f32 0.0, %v3482
      %v3484 = vpop.f32.mrb[0].mxu0
      %v3485 = vpop.f32.mrb[0].mxu0
      %v3486 = vadd.f32 0.0, %v3485
      %v3487 = vpop.f32.mrb[0].mxu0
      %3488 = vmatprep.mubr.bf16.mxu0 0
      %3489 = vmatmul.mubr.bf16.gmra.mrb[0].mxu0 %v3316
      %v3490 = vpop.f32.mrb[0].mxu0
      %v3491 = vadd.f32 0.0, %v3490
      %v3492 = vpop.f32.mrb[0].mxu0
      %v3493 = vpop.f32.mrb[0].mxu0
      %v3494 = vadd.f32 0.0, %v3493
      %v3495 = vpop.f32.mrb[0].mxu0
      %3496 = vmatprep.mubr.bf16.mxu0 0
      %3497 = vmatmul.mubr.bf16.gmra.mrb[0].mxu0 %v3317
      %v3498 = vpop.f32.mrb[0].mxu0
      %v3499 = vadd.f32 0.0, %v3498
      %v3500 = vpop.f32.mrb[0].mxu0
      %v3501 = vpop.f32.mrb[0].mxu0
      %v3502 = vadd.f32 0.0, %v3501
      %v3503 = vpop.f32.mrb[0].mxu0
      %3504 = vmatprep.mubr.bf16.mxu0 0
      %3505 = vmatmul.mubr.bf16.gmra.mrb[0].mxu0 %v3318
      %v3506 = vpop.f32.mrb[0].mxu0
      %v3507 = vadd.f32 0.0, %v3506
      %v3508 = vpop.f32.mrb[0].mxu0
      %v3509 = vpop.f32.mrb[0].mxu0
      %v3510 = vadd.f32 0.0, %v3509
      %v3511 = vpop.f32.mrb[0].mxu0
      %3512 = vmatprep.mubr.bf16.mxu0 0
      %3513 = vmatmul.mubr.bf16.gmra.mrb[0].mxu0 %v3319
      %v3514 = vpop.f32.mrb[0].mxu0
      %v3515 = vadd.f32 0.0, %v3514
      %v3516 = vpop.f32.mrb[0].mxu0
      %v3517 = vpop.f32.mrb[0].mxu0
      %v3518 = vadd.f32 0.0, %v3517
      %v3519 = vpop.f32.mrb[0].mxu0
      %3520 = vmatprep.mubr.bf16.mxu0 0
      %3521 = vmatmul.mubr.bf16.gmra.mrb[0].mxu0 %v3320
      %v3522 = vpop.f32.mrb[0].mxu0
      %v3523 = vadd.f32 0.0, %v3522
      %v3524 = vpop.f32.mrb[0].mxu0
      %v3525 = vpop.f32.mrb[0].mxu0
      %v3526 = vadd.f32 0.0, %v3525
      %v3527 = vpop.f32.mrb[0].mxu0
      %3528 = vmatprep.mubr.bf16.mxu0 0
      %3529 = vmatmul.mubr.bf16.gmra.mrb[0].mxu0 %v3321
      %v3530 = vpop.f32.mrb[0].mxu0
      %v3531 = vadd.f32 0.0, %v3530
      %v3532 = vpop.f32.mrb[0].mxu0
      %v3533 = vpop.f32.mrb[0].mxu0
      %v3534 = vadd.f32 0.0, %v3533
      %v3535 = vpop.f32.mrb[0].mxu0
      %3536 = vmatprep.mubr.bf16.mxu0 0
      %3537 = vmatmul.mubr.bf16.gmra.mrb[0].mxu0 %v3322
      %v3538 = vpop.f32.mrb[0].mxu0
      %v3539 = vadd.f32 0.0, %v3538
      %v3540 = vpop.f32.mrb[0].mxu0
      %v3541 = vpop.f32.mrb[0].mxu0
      %v3542 = vadd.f32 0.0, %v3541
      %v3543 = vpop.f32.mrb[0].mxu0
      %3544 = vmatprep.mubr.bf16.mxu0 0
      %3545 = vmatmul.mubr.bf16.gmra.mrb[0].mxu0 %v3323
      %v3546 = vpop.f32.mrb[0].mxu0
      %v3547 = vadd.f32 0.0, %v3546
      %v3548 = vpop.f32.mrb[0].mxu0
      %v3549 = vpop.f32.mrb[0].mxu0
      %v3550 = vadd.f32 0.0, %v3549
      %v3551 = vpop.f32.mrb[0].mxu0
      %3552 = vmatprep.mubr.bf16.mxu0 0
      %3553 = vmatmul.mubr.bf16.gmra.mrb[0].mxu0 %v3324
      %v3554 = vpop.f32.mrb[0].mxu0
      %v3555 = vadd.f32 0.0, %v3554
      %v3556 = vpop.f32.mrb[0].mxu0
      %v3557 = vpop.f32.mrb[0].mxu0
      %v3558 = vadd.f32 0.0, %v3557
      %v3559 = vpop.f32.mrb[0].mxu0
      %3560 = vmatprep.mubr.bf16.mxu0 0
      %3561 = vmatmul.mubr.bf16.gmra.mrb[0].mxu0 %v3325
      %v3562 = vpop.f32.mrb[0].mxu0
      %v3563 = vadd.f32 0.0, %v3562
      %v3564 = vpop.f32.mrb[0].mxu0
      %v3565 = vpop.f32.mrb[0].mxu0
      %v3566 = vadd.f32 0.0, %v3565
      %v3567 = vpop.f32.mrb[0].mxu0
      %3568 = vmatprep.mubr.bf16.mxu0 0
      %3569 = vmatmul.mubr.bf16.gmra.mrb[0].mxu0 %v3326
      %v3570 = vpop.f32.mrb[0].mxu0
      %v3571 = vadd.f32 0.0, %v3570
      %v3572 = vpop.f32.mrb[0].mxu0
      %v3573 = vpop.f32.mrb[0].mxu0
      %v3574 = vadd.f32 0.0, %v3573
      %v3575 = vpop.f32.mrb[0].mxu0
      %3576 = vmatprep.mubr.bf16.mxu0 0
      %3577 = vmatmul.mubr.bf16.gmra.mrb[0].mxu0 %v3327
      %v3578 = vpop.f32.mrb[0].mxu0
      %v3579 = vadd.f32 0.0, %v3578
      %v3580 = vpop.f32.mrb[0].mxu0
      %v3581 = vpop.f32.mrb[0].mxu0
      %v3582 = vadd.f32 0.0, %v3581
      %v3583 = vpop.f32.mrb[0].mxu0
      %3584 = vmatprep.mubr.bf16.mxu0 0
      %3585 = vmatmul.mubr.bf16.gmra.mrb[0].mxu0 %v3328
      %v3586 = vpop.f32.mrb[0].mxu0
      %v3587 = vadd.f32 0.0, %v3586
      %v3588 = vpop.f32.mrb[0].mxu0
      %v3589 = vpop.f32.mrb[0].mxu0
      %v3590 = vadd.f32 0.0, %v3589
      %v3591 = vpop.f32.mrb[0].mxu0
      %3592 = vmatprep.mubr.bf16.mxu0 0
      %3593 = vmatmul.mubr.bf16.gmra.mrb[0].mxu0 %v3329
      %v3594 = vpop.f32.mrb[0].mxu0
      %v3595 = vadd.f32 0.0, %v3594
      %v3596 = vpop.f32.mrb[0].mxu0
      %v3597 = vpop.f32.mrb[0].mxu0
      %v3598 = vadd.f32 0.0, %v3597
      %v3599 = vpop.f32.mrb[0].mxu0
      %3600 = vmatprep.mubr.bf16.mxu0 0
      %3601 = vmatmul.mubr.bf16.gmra.mrb[0].mxu0 %v3330
      %v3602 = vpop.f32.mrb[0].mxu0
      %v3603 = vadd.f32 0.0, %v3602
      %v3604 = vpop.f32.mrb[0].mxu0
      %v3605 = vpop.f32.mrb[0].mxu0
      %v3606 = vadd.f32 0.0, %v3605
      %v3607 = vpop.f32.mrb[0].mxu0
      %3608 = vmatprep.mubr.bf16.mxu0 0
      %3609 = vmatmul.mubr.bf16.gmra.mrb[0].mxu0 %v3331
      %v3610 = vpop.f32.mrb[0].mxu0
      %v3611 = vadd.f32 0.0, %v3610
      %v3612 = vpop.f32.mrb[0].mxu0
      %v3613 = vpop.f32.mrb[0].mxu0
      %v3614 = vadd.f32 0.0, %v3613
      %v3615 = vpop.f32.mrb[0].mxu0
      %3616 = vmatprep.mubr.bf16.mxu0 0
      %3617 = vmatmul.mubr.bf16.gmra.mrb[0].mxu0 %v3332
      %v3618 = vpop.f32.mrb[0].mxu0
      %v3619 = vadd.f32 0.0, %v3618
      %v3620 = vpop.f32.mrb[0].mxu0
      %v3621 = vpop.f32.mrb[0].mxu0
      %v3622 = vadd.f32 0.0, %v3621
      %v3623 = vpop.f32.mrb[0].mxu0
      %3624 = vmatprep.mubr.bf16.mxu0 0
      %3625 = vmatmul.mubr.bf16.gmra.mrb[0].mxu0 %v3333
      %v3626 = vpop.f32.mrb[0].mxu0
      %v3627 = vadd.f32 0.0, %v3626
      %v3628 = vpop.f32.mrb[0].mxu0
      %v3629 = vpop.f32.mrb[0].mxu0
      %v3630 = vadd.f32 0.0, %v3629
      %v3631 = vpop.f32.mrb[0].mxu0
      %3632 = vmatprep.mubr.bf16.mxu0 0
      %3633 = vmatmul.mubr.bf16.gmra.mrb[0].mxu0 %v3334
      %v3634 = vpop.f32.mrb[0].mxu0
      %v3635 = vadd.f32 0.0, %v3634
      %v3636 = vpop.f32.mrb[0].mxu0
      %v3637 = vpop.f32.mrb[0].mxu0
      %v3638 = vadd.f32 0.0, %v3637
      %v3639 = vpop.f32.mrb[0].mxu0
      %3640 = vmatprep.mubr.bf16.mxu0 0
      %3641 = vmatmul.mubr.bf16.gmra.mrb[0].mxu0 %v3335
      %v3642 = vpop.f32.mrb[0].mxu0
      %v3643 = vadd.f32 0.0, %v3642
      %v3644 = vpop.f32.mrb[0].mxu0
      %v3645 = vpop.f32.mrb[0].mxu0
      %v3646 = vadd.f32 0.0, %v3645
      %v3647 = vpop.f32.mrb[0].mxu0
      %3648 = vdwg.mxu0
      %v3665 = vunpack.c.l.b16 %v3239
      %v3666 = vunpack.c.l.b16 %v3240
      %v3667 = vunpack.c.l.b16 %v3241
      %v3668 = vunpack.c.l.b16 %v3242
      %v3669 = vunpack.c.l.b16 %v3243
      %v3670 = vunpack.c.l.b16 %v3244
      %v3671 = vunpack.c.l.b16 %v3245
      %v3672 = vunpack.c.l.b16 %v3246
      %v3673 = vunpack.c.l.b16 %v3247
      %v3674 = vunpack.c.l.b16 %v3248
      %v3675 = vunpack.c.l.b16 %v3249
      %v3676 = vunpack.c.l.b16 %v3250
      %v3677 = vunpack.c.l.b16 %v3251
      %v3678 = vunpack.c.l.b16 %v3252
      %v3679 = vunpack.c.l.b16 %v3253
      %v3680 = vunpack.c.l.b16 %v3254
      %v3681 = vpack.c.b16 %v3666, %v3665
      %v3682 = vpack.c.b16 %v3668, %v3667
      %v3683 = vpack.c.b16 %v3670, %v3669
      %v3684 = vpack.c.b16 %v3672, %v3671
      %v3685 = vpack.c.b16 %v3674, %v3673
      %v3686 = vpack.c.b16 %v3676, %v3675
      %v3687 = vpack.c.b16 %v3678, %v3677
      %v3688 = vpack.c.b16 %v3680, %v3679
      %3697 = vmatprep.subr.bf16.mxu0 0
      %3698 = vmatpush1.bf16.msra.mxu0 %v3681
      %3699 = vmatprep.subr.bf16.mxu0 0
      %3700 = vmatpush1.bf16.msra.mxu0 %v3682
      %3701 = vmatprep.subr.bf16.mxu0 0
      %3702 = vmatpush1.bf16.msra.mxu0 %v3683
      %3703 = vmatprep.subr.bf16.mxu0 0
      %3704 = vmatpush1.bf16.msra.mxu0 %v3684
      %3705 = vmatprep.subr.bf16.mxu0 0
      %3706 = vmatpush1.bf16.msra.mxu0 %v3685
      %3707 = vmatprep.subr.bf16.mxu0 0
      %3708 = vmatpush1.bf16.msra.mxu0 %v3686
      %3709 = vmatprep.subr.bf16.mxu0 0
      %3710 = vmatpush1.bf16.msra.mxu0 %v3687
      %3711 = vmatprep.subr.bf16.mxu0 0
      %3712 = vmatpush1.bf16.msra.mxu0 %v3688
      %3713 = vmatprep.subr.bf16.mxu0 0
      %3714 = vmatpush1.bf16.msra.mxu0 0
      %3715 = vmatprep.subr.bf16.mxu0 0
      %3716 = vmatpush1.bf16.msra.mxu0 0
      %3717 = vmatprep.subr.bf16.mxu0 0
      %3718 = vmatpush1.bf16.msra.mxu0 0
      %3719 = vmatprep.subr.bf16.mxu0 0
      %3720 = vmatpush1.bf16.msra.mxu0 0
      %3721 = vmatprep.subr.bf16.mxu0 0
      %3722 = vmatpush1.bf16.msra.mxu0 0
      %3723 = vmatprep.subr.bf16.mxu0 0
      %3724 = vmatpush1.bf16.msra.mxu0 0
      %3725 = vmatprep.subr.bf16.mxu0 0
      %3726 = vmatpush1.bf16.msra.mxu0 0
      %3727 = vmatprep.subr.bf16.mxu0 0
      %3728 = vmatpush1.bf16.msra.mxu0 0
      %3729 = vmatprep.mubr.bf16.mxu0 0
      %3730 = vmatmul.mubr.bf16.gmra.mrb[0].mxu0 %v3212
      %v3731 = vpop.f32.mrb[0].mxu0
      %v3732 = vadd.f32 %v3435, %v3731
      %v3733 = vpop.f32.mrb[0].mxu0
      %v3734 = vpop.f32.mrb[0].mxu0
      %v3735 = vadd.f32 %v3438, %v3734
      %v3736 = vpop.f32.mrb[0].mxu0
      %3737 = vmatprep.mubr.bf16.mxu0 0
      %3738 = vmatmul.mubr.bf16.gmra.mrb[0].mxu0 %v3213
      %v3739 = vpop.f32.mrb[0].mxu0
      %v3740 = vadd.f32 %v3443, %v3739
      %v3741 = vpop.f32.mrb[0].mxu0
      %v3742 = vpop.f32.mrb[0].mxu0
      %v3743 = vadd.f32 %v3446, %v3742
      %v3744 = vpop.f32.mrb[0].mxu0
      %3745 = vmatprep.mubr.bf16.mxu0 0
      %3746 = vmatmul.mubr.bf16.gmra.mrb[0].mxu0 %v3214
      %v3747 = vpop.f32.mrb[0].mxu0
      %v3748 = vadd.f32 %v3451, %v3747
      %v3749 = vpop.f32.mrb[0].mxu0
      %v3750 = vpop.f32.mrb[0].mxu0
      %v3751 = vadd.f32 %v3454, %v3750
      %v3752 = vpop.f32.mrb[0].mxu0
      %3753 = vmatprep.mubr.bf16.mxu0 0
      %3754 = vmatmul.mubr.bf16.gmra.mrb[0].mxu0 %v3215
      %v3755 = vpop.f32.mrb[0].mxu0
      %v3756 = vadd.f32 %v3459, %v3755
      %v3757 = vpop.f32.mrb[0].mxu0
      %v3758 = vpop.f32.mrb[0].mxu0
      %v3759 = vadd.f32 %v3462, %v3758
      %v3760 = vpop.f32.mrb[0].mxu0
      %3761 = vmatprep.mubr.bf16.mxu0 0
      %3762 = vmatmul.mubr.bf16.gmra.mrb[0].mxu0 %v3216
      %v3763 = vpop.f32.mrb[0].mxu0
      %v3764 = vadd.f32 %v3467, %v3763
      %v3765 = vpop.f32.mrb[0].mxu0
      %v3766 = vpop.f32.mrb[0].mxu0
      %v3767 = vadd.f32 %v3470, %v3766
      %v3768 = vpop.f32.mrb[0].mxu0
      %3769 = vmatprep.mubr.bf16.mxu0 0
      %3770 = vmatmul.mubr.bf16.gmra.mrb[0].mxu0 %v3217
      %v3771 = vpop.f32.mrb[0].mxu0
      %v3772 = vadd.f32 %v3475, %v3771
      %v3773 = vpop.f32.mrb[0].mxu0
      %v3774 = vpop.f32.mrb[0].mxu0
      %v3775 = vadd.f32 %v3478, %v3774
      %v3776 = vpop.f32.mrb[0].mxu0
      %3777 = vmatprep.mubr.bf16.mxu0 0
      %3778 = vmatmul.mubr.bf16.gmra.mrb[0].mxu0 %v3218
      %v3779 = vpop.f32.mrb[0].mxu0
      %v3780 = vadd.f32 %v3483, %v3779
      %v3781 = vpop.f32.mrb[0].mxu0
      %v3782 = vpop.f32.mrb[0].mxu0
      %v3783 = vadd.f32 %v3486, %v3782
      %v3784 = vpop.f32.mrb[0].mxu0
      %3785 = vmatprep.mubr.bf16.mxu0 0
      %3786 = vmatmul.mubr.bf16.gmra.mrb[0].mxu0 %v3219
      %v3787 = vpop.f32.mrb[0].mxu0
      %v3788 = vadd.f32 %v3491, %v3787
      %v3789 = vpop.f32.mrb[0].mxu0
      %v3790 = vpop.f32.mrb[0].mxu0
      %v3791 = vadd.f32 %v3494, %v3790
      %v3792 = vpop.f32.mrb[0].mxu0
      %3793 = vmatprep.mubr.bf16.mxu0 0
      %3794 = vmatmul.mubr.bf16.gmra.mrb[0].mxu0 %v3220
      %v3795 = vpop.f32.mrb[0].mxu0
      %v3796 = vadd.f32 %v3499, %v3795
      %v3797 = vpop.f32.mrb[0].mxu0
      %v3798 = vpop.f32.mrb[0].mxu0
      %v3799 = vadd.f32 %v3502, %v3798
      %v3800 = vpop.f32.mrb[0].mxu0
      %3801 = vmatprep.mubr.bf16.mxu0 0
      %3802 = vmatmul.mubr.bf16.gmra.mrb[0].mxu0 %v3221
      %v3803 = vpop.f32.mrb[0].mxu0
      %v3804 = vadd.f32 %v3507, %v3803
      %v3805 = vpop.f32.mrb[0].mxu0
      %v3806 = vpop.f32.mrb[0].mxu0
      %v3807 = vadd.f32 %v3510, %v3806
      %v3808 = vpop.f32.mrb[0].mxu0
      %3809 = vmatprep.mubr.bf16.mxu0 0
      %3810 = vmatmul.mubr.bf16.gmra.mrb[0].mxu0 %v3222
      %v3811 = vpop.f32.mrb[0].mxu0
      %v3812 = vadd.f32 %v3515, %v3811
      %v3813 = vpop.f32.mrb[0].mxu0
      %v3814 = vpop.f32.mrb[0].mxu0
      %v3815 = vadd.f32 %v3518, %v3814
      %v3816 = vpop.f32.mrb[0].mxu0
      %3817 = vmatprep.mubr.bf16.mxu0 0
      %3818 = vmatmul.mubr.bf16.gmra.mrb[0].mxu0 %v3223
      %v3819 = vpop.f32.mrb[0].mxu0
      %v3820 = vadd.f32 %v3523, %v3819
      %v3821 = vpop.f32.mrb[0].mxu0
      %v3822 = vpop.f32.mrb[0].mxu0
      %v3823 = vadd.f32 %v3526, %v3822
      %v3824 = vpop.f32.mrb[0].mxu0
      %3825 = vmatprep.mubr.bf16.mxu0 0
      %3826 = vmatmul.mubr.bf16.gmra.mrb[0].mxu0 %v3224
      %v3827 = vpop.f32.mrb[0].mxu0
      %v3828 = vadd.f32 %v3531, %v3827
      %v3829 = vpop.f32.mrb[0].mxu0
      %v3830 = vpop.f32.mrb[0].mxu0
      %v3831 = vadd.f32 %v3534, %v3830
      %v3832 = vpop.f32.mrb[0].mxu0
      %3833 = vmatprep.mubr.bf16.mxu0 0
      %3834 = vmatmul.mubr.bf16.gmra.mrb[0].mxu0 %v3225
      %v3835 = vpop.f32.mrb[0].mxu0
      %v3836 = vadd.f32 %v3539, %v3835
      %v3837 = vpop.f32.mrb[0].mxu0
      %v3838 = vpop.f32.mrb[0].mxu0
      %v3839 = vadd.f32 %v3542, %v3838
      %v3840 = vpop.f32.mrb[0].mxu0
      %3841 = vmatprep.mubr.bf16.mxu0 0
      %3842 = vmatmul.mubr.bf16.gmra.mrb[0].mxu0 %v3226
      %v3843 = vpop.f32.mrb[0].mxu0
      %v3844 = vadd.f32 %v3547, %v3843
      %v3845 = vpop.f32.mrb[0].mxu0
      %v3846 = vpop.f32.mrb[0].mxu0
      %v3847 = vadd.f32 %v3550, %v3846
      %v3848 = vpop.f32.mrb[0].mxu0
      %3849 = vmatprep.mubr.bf16.mxu0 0
      %3850 = vmatmul.mubr.bf16.gmra.mrb[0].mxu0 %v3227
      %v3851 = vpop.f32.mrb[0].mxu0
      %v3852 = vadd.f32 %v3555, %v3851
      %v3853 = vpop.f32.mrb[0].mxu0
      %v3854 = vpop.f32.mrb[0].mxu0
      %v3855 = vadd.f32 %v3558, %v3854
      %v3856 = vpop.f32.mrb[0].mxu0
      %3857 = vmatprep.mubr.bf16.mxu0 0
      %3858 = vmatmul.mubr.bf16.gmra.mrb[0].mxu0 %v3228
      %v3859 = vpop.f32.mrb[0].mxu0
      %v3860 = vadd.f32 %v3563, %v3859
      %v3861 = vpop.f32.mrb[0].mxu0
      %v3862 = vpop.f32.mrb[0].mxu0
      %v3863 = vadd.f32 %v3566, %v3862
      %v3864 = vpop.f32.mrb[0].mxu0
      %3865 = vmatprep.mubr.bf16.mxu0 0
      %3866 = vmatmul.mubr.bf16.gmra.mrb[0].mxu0 %v3229
      %v3867 = vpop.f32.mrb[0].mxu0
      %v3868 = vadd.f32 %v3571, %v3867
      %v3869 = vpop.f32.mrb[0].mxu0
      %v3870 = vpop.f32.mrb[0].mxu0
      %v3871 = vadd.f32 %v3574, %v3870
      %v3872 = vpop.f32.mrb[0].mxu0
      %3873 = vmatprep.mubr.bf16.mxu0 0
      %3874 = vmatmul.mubr.bf16.gmra.mrb[0].mxu0 %v3230
      %v3875 = vpop.f32.mrb[0].mxu0
      %v3876 = vadd.f32 %v3579, %v3875
      %v3877 = vpop.f32.mrb[0].mxu0
      %v3878 = vpop.f32.mrb[0].mxu0
      %v3879 = vadd.f32 %v3582, %v3878
      %v3880 = vpop.f32.mrb[0].mxu0
      %3881 = vmatprep.mubr.bf16.mxu0 0
      %3882 = vmatmul.mubr.bf16.gmra.mrb[0].mxu0 %v3231
      %v3883 = vpop.f32.mrb[0].mxu0
      %v3884 = vadd.f32 %v3587, %v3883
      %v3885 = vpop.f32.mrb[0].mxu0
      %v3886 = vpop.f32.mrb[0].mxu0
      %v3887 = vadd.f32 %v3590, %v3886
      %v3888 = vpop.f32.mrb[0].mxu0
      %3889 = vmatprep.mubr.bf16.mxu0 0
      %3890 = vmatmul.mubr.bf16.gmra.mrb[0].mxu0 %v3232
      %v3891 = vpop.f32.mrb[0].mxu0
      %v3892 = vadd.f32 %v3595, %v3891
      %v3893 = vpop.f32.mrb[0].mxu0
      %v3894 = vpop.f32.mrb[0].mxu0
      %v3895 = vadd.f32 %v3598, %v3894
      %v3896 = vpop.f32.mrb[0].mxu0
      %3897 = vmatprep.mubr.bf16.mxu0 0
      %3898 = vmatmul.mubr.bf16.gmra.mrb[0].mxu0 %v3233
      %v3899 = vpop.f32.mrb[0].mxu0
      %v3900 = vadd.f32 %v3603, %v3899
      %v3901 = vpop.f32.mrb[0].mxu0
      %v3902 = vpop.f32.mrb[0].mxu0
      %v3903 = vadd.f32 %v3606, %v3902
      %v3904 = vpop.f32.mrb[0].mxu0
      %3905 = vmatprep.mubr.bf16.mxu0 0
      %3906 = vmatmul.mubr.bf16.gmra.mrb[0].mxu0 %v3234
      %v3907 = vpop.f32.mrb[0].mxu0
      %v3908 = vadd.f32 %v3611, %v3907
      %v3909 = vpop.f32.mrb[0].mxu0
      %v3910 = vpop.f32.mrb[0].mxu0
      %v3911 = vadd.f32 %v3614, %v3910
      %v3912 = vpop.f32.mrb[0].mxu0
      %3913 = vmatprep.mubr.bf16.mxu0 0
      %3914 = vmatmul.mubr.bf16.gmra.mrb[0].mxu0 %v3235
      %v3915 = vpop.f32.mrb[0].mxu0
      %v3916 = vadd.f32 %v3619, %v3915
      %v3917 = vpop.f32.mrb[0].mxu0
      %v3918 = vpop.f32.mrb[0].mxu0
      %v3919 = vadd.f32 %v3622, %v3918
      %v3920 = vpop.f32.mrb[0].mxu0
      %3921 = vmatprep.mubr.bf16.mxu0 0
      %3922 = vmatmul.mubr.bf16.gmra.mrb[0].mxu0 %v3236
      %v3923 = vpop.f32.mrb[0].mxu0
      %v3924 = vadd.f32 %v3627, %v3923
      %v3925 = vpop.f32.mrb[0].mxu0
      %v3926 = vpop.f32.mrb[0].mxu0
      %v3927 = vadd.f32 %v3630, %v3926
      %v3928 = vpop.f32.mrb[0].mxu0
      %3929 = vmatprep.mubr.bf16.mxu0 0
      %3930 = vmatmul.mubr.bf16.gmra.mrb[0].mxu0 %v3237
      %v3931 = vpop.f32.mrb[0].mxu0
      %v3932 = vadd.f32 %v3635, %v3931
      %v3933 = vpop.f32.mrb[0].mxu0
      %v3934 = vpop.f32.mrb[0].mxu0
      %v3935 = vadd.f32 %v3638, %v3934
      %v3936 = vpop.f32.mrb[0].mxu0
      %3937 = vmatprep.mubr.bf16.mxu0 0
      %3938 = vmatmul.mubr.bf16.gmra.mrb[0].mxu0 %v3238
      %v3939 = vpop.f32.mrb[0].mxu0
      %v3940 = vadd.f32 %v3643, %v3939
      %v3941 = vpop.f32.mrb[0].mxu0
      %v3942 = vpop.f32.mrb[0].mxu0
      %v3943 = vadd.f32 %v3646, %v3942
      %v3944 = vpop.f32.mrb[0].mxu0
      %3945 = vdwg.mxu0
      %v3946 = vld [vmem:[#allocation3 + $0x2] sm:$0xff]
      %v3947 = vld [vmem:[#allocation3 + $0xa] sm:$0xff]
      %v3948 = vld [vmem:[#allocation3 + $0x12] sm:$0xff]
      %v3949 = vld [vmem:[#allocation3 + $0x1a] sm:$0xff]
      %v3950 = vld [vmem:[#allocation3 + $0x22] sm:$0xff]
      %v3951 = vld [vmem:[#allocation3 + $0x2a] sm:$0xff]
      %v3952 = vld [vmem:[#allocation3 + $0x32] sm:$0xff]
      %v3953 = vld [vmem:[#allocation3 + $0x3a] sm:$0xff]
      %v3954 = vld [vmem:[#allocation3 + $0x42] sm:$0xff]
      %v3955 = vld [vmem:[#allocation3 + $0x4a] sm:$0xff]
      %v3956 = vld [vmem:[#allocation3 + $0x52] sm:$0xff]
      %v3957 = vld [vmem:[#allocation3 + $0x5a] sm:$0xff]
      %v3958 = vld [vmem:[#allocation3 + $0x62] sm:$0xff]
      %v3959 = vld [vmem:[#allocation3 + $0x6a] sm:$0xff]
      %v3960 = vld [vmem:[#allocation3 + $0x72] sm:$0xff]
      %v3961 = vld [vmem:[#allocation3 + $0x7a] sm:$0xff]
      %v3962 = vld [vmem:[#allocation3 + $0x82] sm:$0xff]
      %v3963 = vld [vmem:[#allocation3 + $0x8a] sm:$0xff]
      %v3964 = vld [vmem:[#allocation3 + $0x92] sm:$0xff]
      %v3965 = vld [vmem:[#allocation3 + $0x9a] sm:$0xff]
      %v3966 = vld [vmem:[#allocation3 + $0xa2] sm:$0xff]
      %v3967 = vld [vmem:[#allocation3 + $0xaa] sm:$0xff]
      %v3968 = vld [vmem:[#allocation3 + $0xb2] sm:$0xff]
      %v3969 = vld [vmem:[#allocation3 + $0xba] sm:$0xff]
      %v3970 = vld [vmem:[#allocation3 + $0xc2] sm:$0xff]
      %v3971 = vld [vmem:[#allocation3 + $0xca] sm:$0xff]
      %v3972 = vld [vmem:[#allocation3 + $0xd2] sm:$0xff]
      %v3973 = vld [vmem:[#allocation3 + $0xda] sm:$0xff]
      %v3974 = vld [vmem:[#allocation3 + $0xe2] sm:$0xff]
      %v3975 = vld [vmem:[#allocation3 + $0xea] sm:$0xff]
      %v3976 = vld [vmem:[#allocation3 + $0xf2] sm:$0xff]
      %v3977 = vld [vmem:[#allocation3 + $0xfa] sm:$0xff]
      %v3978 = vld [vmem:[#allocation3 + $0x102] sm:$0xff]
      %v3979 = vld [vmem:[#allocation3 + $0x10a] sm:$0xff]
      %v3980 = vld [vmem:[#allocation3 + $0x112] sm:$0xff]
      %v3981 = vld [vmem:[#allocation3 + $0x11a] sm:$0xff]
      %v3982 = vld [vmem:[#allocation3 + $0x122] sm:$0xff]
      %v3983 = vld [vmem:[#allocation3 + $0x12a] sm:$0xff]
      %v3984 = vld [vmem:[#allocation3 + $0x132] sm:$0xff]
      %v3985 = vld [vmem:[#allocation3 + $0x13a] sm:$0xff]
      %v3986 = vld [vmem:[#allocation3 + $0x142] sm:$0xff]
      %v3987 = vld [vmem:[#allocation3 + $0x14a] sm:$0xff]
      %v3988 = vld [vmem:[#allocation3 + $0x152] sm:$0xff]
      %v3989 = vld [vmem:[#allocation3 + $0x15a] sm:$0xff]
      %v3990 = vld [vmem:[#allocation3 + $0x162] sm:$0xff]
      %v3991 = vld [vmem:[#allocation3 + $0x16a] sm:$0xff]
      %v3992 = vld [vmem:[#allocation3 + $0x172] sm:$0xff]
      %v3993 = vld [vmem:[#allocation3 + $0x17a] sm:$0xff]
      %v3994 = vld [vmem:[#allocation3 + $0x182] sm:$0xff]
      %v3995 = vld [vmem:[#allocation3 + $0x18a] sm:$0xff]
      %v3996 = vld [vmem:[#allocation3 + $0x192] sm:$0xff]
      %v3997 = vld [vmem:[#allocation3 + $0x19a] sm:$0xff]
      %v3998 = vld [vmem:[#allocation3 + $0x1a2] sm:$0xff]
      %v3999 = vld [vmem:[#allocation3 + $0x1aa] sm:$0xff]
      %v4000 = vpack.c.bf16 %v3947, %v3946
      %v4001 = vpack.c.bf16 %v3949, %v3948
      %v4002 = vpack.c.bf16 %v3951, %v3950
      %v4003 = vpack.c.bf16 %v3953, %v3952
      %v4004 = vpack.c.bf16 %v3955, %v3954
      %v4005 = vpack.c.bf16 %v3957, %v3956
      %v4006 = vpack.c.bf16 %v3959, %v3958
      %v4007 = vpack.c.bf16 %v3961, %v3960
      %v4008 = vpack.c.bf16 %v3963, %v3962
      %v4009 = vpack.c.bf16 %v3965, %v3964
      %v4010 = vpack.c.bf16 %v3967, %v3966
      %v4011 = vpack.c.bf16 %v3969, %v3968
      %v4012 = vpack.c.bf16 %v3971, %v3970
      %v4013 = vpack.c.bf16 %v3973, %v3972
      %v4014 = vpack.c.bf16 %v3975, %v3974
      %v4015 = vpack.c.bf16 %v3977, %v3976
      %v4016 = vpack.c.bf16 %v3979, %v3978
      %v4017 = vpack.c.bf16 %v3981, %v3980
      %v4018 = vpack.c.bf16 %v3983, %v3982
      %v4019 = vpack.c.bf16 %v3985, %v3984
      %v4020 = vpack.c.bf16 %v3987, %v3986
      %v4021 = vpack.c.bf16 %v3989, %v3988
      %v4022 = vpack.c.bf16 %v3991, %v3990
      %v4023 = vpack.c.bf16 %v3993, %v3992
      %v4024 = vpack.c.bf16 %v3995, %v3994
      %v4025 = vpack.c.bf16 %v3997, %v3996
      %v4026 = vpack.c.bf16 %v3999, %v3998
      %v4027 = vld [vmem:[%s5 + $0x80] sm:$0xf]
      %v4028 = vld [vmem:[%s5 + $0x84] sm:$0xf]
      %v4029 = vld [vmem:[%s5 + $0x88] sm:$0xf]
      %v4030 = vld [vmem:[%s5 + $0x8c] sm:$0xf]
      %v4031 = vld [vmem:[%s5 + $0x90] sm:$0xf]
      %v4032 = vld [vmem:[%s5 + $0x94] sm:$0xf]
      %v4033 = vld [vmem:[%s5 + $0x98] sm:$0xf]
      %v4034 = vld [vmem:[%s5 + $0x9c] sm:$0xf]
      %v4035 = vld [vmem:[%s5 + $0xa0] sm:$0xf]
      %v4036 = vld [vmem:[%s5 + $0xa4] sm:$0xf]
      %v4037 = vld [vmem:[%s5 + $0xa8] sm:$0xf]
      %v4038 = vld [vmem:[%s5 + $0xac] sm:$0xf]
      %v4039 = vld [vmem:[%s5 + $0xb0] sm:$0xf]
      %v4040 = vld [vmem:[%s5 + $0xb4] sm:$0xf]
      %v4041 = vld [vmem:[%s5 + $0xb8] sm:$0xf]
      %v4042 = vld [vmem:[%s5 + $0xbc] sm:$0xf]
      %v4059 = vunpack.c.l.b16 %v4027
      %v4060 = vunpack.c.l.b16 %v4028
      %v4061 = vunpack.c.l.b16 %v4029
      %v4062 = vunpack.c.l.b16 %v4030
      %v4063 = vunpack.c.l.b16 %v4031
      %v4064 = vunpack.c.l.b16 %v4032
      %v4065 = vunpack.c.l.b16 %v4033
      %v4066 = vunpack.c.l.b16 %v4034
      %v4067 = vunpack.c.l.b16 %v4035
      %v4068 = vunpack.c.l.b16 %v4036
      %v4069 = vunpack.c.l.b16 %v4037
      %v4070 = vunpack.c.l.b16 %v4038
      %v4071 = vunpack.c.l.b16 %v4039
      %v4072 = vunpack.c.l.b16 %v4040
      %v4073 = vunpack.c.l.b16 %v4041
      %v4074 = vunpack.c.l.b16 %v4042
      %v4075 = vpack.c.b16 %v4060, %v4059
      %v4076 = vpack.c.b16 %v4062, %v4061
      %v4077 = vpack.c.b16 %v4064, %v4063
      %v4078 = vpack.c.b16 %v4066, %v4065
      %v4079 = vpack.c.b16 %v4068, %v4067
      %v4080 = vpack.c.b16 %v4070, %v4069
      %v4081 = vpack.c.b16 %v4072, %v4071
      %v4082 = vpack.c.b16 %v4074, %v4073
      %4091 = vmatprep.subr.bf16.mxu0 0
      %4092 = vmatpush1.bf16.msra.mxu0 %v4075
      %4093 = vmatprep.subr.bf16.mxu0 0
      %4094 = vmatpush1.bf16.msra.mxu0 %v4076
      %4095 = vmatprep.subr.bf16.mxu0 0
      %4096 = vmatpush1.bf16.msra.mxu0 %v4077
      %4097 = vmatprep.subr.bf16.mxu0 0
      %4098 = vmatpush1.bf16.msra.mxu0 %v4078
      %4099 = vmatprep.subr.bf16.mxu0 0
      %4100 = vmatpush1.bf16.msra.mxu0 %v4079
      %4101 = vmatprep.subr.bf16.mxu0 0
      %4102 = vmatpush1.bf16.msra.mxu0 %v4080
      %4103 = vmatprep.subr.bf16.mxu0 0
      %4104 = vmatpush1.bf16.msra.mxu0 %v4081
      %4105 = vmatprep.subr.bf16.mxu0 0
      %4106 = vmatpush1.bf16.msra.mxu0 %v4082
      %4107 = vmatprep.subr.bf16.mxu0 0
      %4108 = vmatpush1.bf16.msra.mxu0 0
      %4109 = vmatprep.subr.bf16.mxu0 0
      %4110 = vmatpush1.bf16.msra.mxu0 0
      %4111 = vmatprep.subr.bf16.mxu0 0
      %4112 = vmatpush1.bf16.msra.mxu0 0
      %4113 = vmatprep.subr.bf16.mxu0 0
      %4114 = vmatpush1.bf16.msra.mxu0 0
      %4115 = vmatprep.subr.bf16.mxu0 0
      %4116 = vmatpush1.bf16.msra.mxu0 0
      %4117 = vmatprep.subr.bf16.mxu0 0
      %4118 = vmatpush1.bf16.msra.mxu0 0
      %4119 = vmatprep.subr.bf16.mxu0 0
      %4120 = vmatpush1.bf16.msra.mxu0 0
      %4121 = vmatprep.subr.bf16.mxu0 0
      %4122 = vmatpush1.bf16.msra.mxu0 0
      %4123 = vmatprep.mubr.bf16.mxu0 0
      %4124 = vmatmul.mubr.bf16.gmra.mrb[0].mxu0 %v4000
      %v4125 = vpop.f32.mrb[0].mxu0
      %v4126 = vadd.f32 0.0, %v4125
      %v4127 = vpop.f32.mrb[0].mxu0
      %v4128 = vpop.f32.mrb[0].mxu0
      %v4129 = vadd.f32 0.0, %v4128
      %v4130 = vpop.f32.mrb[0].mxu0
      %4131 = vmatprep.mubr.bf16.mxu0 0
      %4132 = vmatmul.mubr.bf16.gmra.mrb[0].mxu0 %v4001
      %v4133 = vpop.f32.mrb[0].mxu0
      %v4134 = vadd.f32 0.0, %v4133
      %v4135 = vpop.f32.mrb[0].mxu0
      %v4136 = vpop.f32.mrb[0].mxu0
      %v4137 = vadd.f32 0.0, %v4136
      %v4138 = vpop.f32.mrb[0].mxu0
      %4139 = vmatprep.mubr.bf16.mxu0 0
      %4140 = vmatmul.mubr.bf16.gmra.mrb[0].mxu0 %v4002
      %v4141 = vpop.f32.mrb[0].mxu0
      %v4142 = vadd.f32 0.0, %v4141
      %v4143 = vpop.f32.mrb[0].mxu0
      %v4144 = vpop.f32.mrb[0].mxu0
      %v4145 = vadd.f32 0.0, %v4144
      %v4146 = vpop.f32.mrb[0].mxu0
      %4147 = vmatprep.mubr.bf16.mxu0 0
      %4148 = vmatmul.mubr.bf16.gmra.mrb[0].mxu0 %v4003
      %v4149 = vpop.f32.mrb[0].mxu0
      %v4150 = vadd.f32 0.0, %v4149
      %v4151 = vpop.f32.mrb[0].mxu0
      %v4152 = vpop.f32.mrb[0].mxu0
      %v4153 = vadd.f32 0.0, %v4152
      %v4154 = vpop.f32.mrb[0].mxu0
      %4155 = vmatprep.mubr.bf16.mxu0 0
      %4156 = vmatmul.mubr.bf16.gmra.mrb[0].mxu0 %v4004
      %v4157 = vpop.f32.mrb[0].mxu0
      %v4158 = vadd.f32 0.0, %v4157
      %v4159 = vpop.f32.mrb[0].mxu0
      %v4160 = vpop.f32.mrb[0].mxu0
      %v4161 = vadd.f32 0.0, %v4160
      %v4162 = vpop.f32.mrb[0].mxu0
      %4163 = vmatprep.mubr.bf16.mxu0 0
      %4164 = vmatmul.mubr.bf16.gmra.mrb[0].mxu0 %v4005
      %v4165 = vpop.f32.mrb[0].mxu0
      %v4166 = vadd.f32 0.0, %v4165
      %v4167 = vpop.f32.mrb[0].mxu0
      %v4168 = vpop.f32.mrb[0].mxu0
      %v4169 = vadd.f32 0.0, %v4168
      %v4170 = vpop.f32.mrb[0].mxu0
      %4171 = vmatprep.mubr.bf16.mxu0 0
      %4172 = vmatmul.mubr.bf16.gmra.mrb[0].mxu0 %v4006
      %v4173 = vpop.f32.mrb[0].mxu0
      %v4174 = vadd.f32 0.0, %v4173
      %v4175 = vpop.f32.mrb[0].mxu0
      %v4176 = vpop.f32.mrb[0].mxu0
      %v4177 = vadd.f32 0.0, %v4176
      %v4178 = vpop.f32.mrb[0].mxu0
      %4179 = vmatprep.mubr.bf16.mxu0 0
      %4180 = vmatmul.mubr.bf16.gmra.mrb[0].mxu0 %v4007
      %v4181 = vpop.f32.mrb[0].mxu0
      %v4182 = vadd.f32 0.0, %v4181
      %v4183 = vpop.f32.mrb[0].mxu0
      %v4184 = vpop.f32.mrb[0].mxu0
      %v4185 = vadd.f32 0.0, %v4184
      %v4186 = vpop.f32.mrb[0].mxu0
      %4187 = vmatprep.mubr.bf16.mxu0 0
      %4188 = vmatmul.mubr.bf16.gmra.mrb[0].mxu0 %v4008
      %v4189 = vpop.f32.mrb[0].mxu0
      %v4190 = vadd.f32 0.0, %v4189
      %v4191 = vpop.f32.mrb[0].mxu0
      %v4192 = vpop.f32.mrb[0].mxu0
      %v4193 = vadd.f32 0.0, %v4192
      %v4194 = vpop.f32.mrb[0].mxu0
      %4195 = vmatprep.mubr.bf16.mxu0 0
      %4196 = vmatmul.mubr.bf16.gmra.mrb[0].mxu0 %v4009
      %v4197 = vpop.f32.mrb[0].mxu0
      %v4198 = vadd.f32 0.0, %v4197
      %v4199 = vpop.f32.mrb[0].mxu0
      %v4200 = vpop.f32.mrb[0].mxu0
      %v4201 = vadd.f32 0.0, %v4200
      %v4202 = vpop.f32.mrb[0].mxu0
      %4203 = vmatprep.mubr.bf16.mxu0 0
      %4204 = vmatmul.mubr.bf16.gmra.mrb[0].mxu0 %v4010
      %v4205 = vpop.f32.mrb[0].mxu0
      %v4206 = vadd.f32 0.0, %v4205
      %v4207 = vpop.f32.mrb[0].mxu0
      %v4208 = vpop.f32.mrb[0].mxu0
      %v4209 = vadd.f32 0.0, %v4208
      %v4210 = vpop.f32.mrb[0].mxu0
      %4211 = vmatprep.mubr.bf16.mxu0 0
      %4212 = vmatmul.mubr.bf16.gmra.mrb[0].mxu0 %v4011
      %v4213 = vpop.f32.mrb[0].mxu0
      %v4214 = vadd.f32 0.0, %v4213
      %v4215 = vpop.f32.mrb[0].mxu0
      %v4216 = vpop.f32.mrb[0].mxu0
      %v4217 = vadd.f32 0.0, %v4216
      %v4218 = vpop.f32.mrb[0].mxu0
      %4219 = vmatprep.mubr.bf16.mxu0 0
      %4220 = vmatmul.mubr.bf16.gmra.mrb[0].mxu0 %v4012
      %v4221 = vpop.f32.mrb[0].mxu0
      %v4222 = vadd.f32 0.0, %v4221
      %v4223 = vpop.f32.mrb[0].mxu0
      %v4224 = vpop.f32.mrb[0].mxu0
      %v4225 = vadd.f32 0.0, %v4224
      %v4226 = vpop.f32.mrb[0].mxu0
      %4227 = vmatprep.mubr.bf16.mxu0 0
      %4228 = vmatmul.mubr.bf16.gmra.mrb[0].mxu0 %v4013
      %v4229 = vpop.f32.mrb[0].mxu0
      %v4230 = vadd.f32 0.0, %v4229
      %v4231 = vpop.f32.mrb[0].mxu0
      %v4232 = vpop.f32.mrb[0].mxu0
      %v4233 = vadd.f32 0.0, %v4232
      %v4234 = vpop.f32.mrb[0].mxu0
      %4235 = vmatprep.mubr.bf16.mxu0 0
      %4236 = vmatmul.mubr.bf16.gmra.mrb[0].mxu0 %v4014
      %v4237 = vpop.f32.mrb[0].mxu0
      %v4238 = vadd.f32 0.0, %v4237
      %v4239 = vpop.f32.mrb[0].mxu0
      %v4240 = vpop.f32.mrb[0].mxu0
      %v4241 = vadd.f32 0.0, %v4240
      %v4242 = vpop.f32.mrb[0].mxu0
      %4243 = vmatprep.mubr.bf16.mxu0 0
      %4244 = vmatmul.mubr.bf16.gmra.mrb[0].mxu0 %v4015
      %v4245 = vpop.f32.mrb[0].mxu0
      %v4246 = vadd.f32 0.0, %v4245
      %v4247 = vpop.f32.mrb[0].mxu0
      %v4248 = vpop.f32.mrb[0].mxu0
      %v4249 = vadd.f32 0.0, %v4248
      %v4250 = vpop.f32.mrb[0].mxu0
      %4251 = vmatprep.mubr.bf16.mxu0 0
      %4252 = vmatmul.mubr.bf16.gmra.mrb[0].mxu0 %v4016
      %v4253 = vpop.f32.mrb[0].mxu0
      %v4254 = vadd.f32 0.0, %v4253
      %v4255 = vpop.f32.mrb[0].mxu0
      %v4256 = vpop.f32.mrb[0].mxu0
      %v4257 = vadd.f32 0.0, %v4256
      %v4258 = vpop.f32.mrb[0].mxu0
      %4259 = vmatprep.mubr.bf16.mxu0 0
      %4260 = vmatmul.mubr.bf16.gmra.mrb[0].mxu0 %v4017
      %v4261 = vpop.f32.mrb[0].mxu0
      %v4262 = vadd.f32 0.0, %v4261
      %v4263 = vpop.f32.mrb[0].mxu0
      %v4264 = vpop.f32.mrb[0].mxu0
      %v4265 = vadd.f32 0.0, %v4264
      %v4266 = vpop.f32.mrb[0].mxu0
      %4267 = vmatprep.mubr.bf16.mxu0 0
      %4268 = vmatmul.mubr.bf16.gmra.mrb[0].mxu0 %v4018
      %v4269 = vpop.f32.mrb[0].mxu0
      %v4270 = vadd.f32 0.0, %v4269
      %v4271 = vpop.f32.mrb[0].mxu0
      %v4272 = vpop.f32.mrb[0].mxu0
      %v4273 = vadd.f32 0.0, %v4272
      %v4274 = vpop.f32.mrb[0].mxu0
      %4275 = vmatprep.mubr.bf16.mxu0 0
      %4276 = vmatmul.mubr.bf16.gmra.mrb[0].mxu0 %v4019
      %v4277 = vpop.f32.mrb[0].mxu0
      %v4278 = vadd.f32 0.0, %v4277
      %v4279 = vpop.f32.mrb[0].mxu0
      %v4280 = vpop.f32.mrb[0].mxu0
      %v4281 = vadd.f32 0.0, %v4280
      %v4282 = vpop.f32.mrb[0].mxu0
      %4283 = vmatprep.mubr.bf16.mxu0 0
      %4284 = vmatmul.mubr.bf16.gmra.mrb[0].mxu0 %v4020
      %v4285 = vpop.f32.mrb[0].mxu0
      %v4286 = vadd.f32 0.0, %v4285
      %v4287 = vpop.f32.mrb[0].mxu0
      %v4288 = vpop.f32.mrb[0].mxu0
      %v4289 = vadd.f32 0.0, %v4288
      %v4290 = vpop.f32.mrb[0].mxu0
      %4291 = vmatprep.mubr.bf16.mxu0 0
      %4292 = vmatmul.mubr.bf16.gmra.mrb[0].mxu0 %v4021
      %v4293 = vpop.f32.mrb[0].mxu0
      %v4294 = vadd.f32 0.0, %v4293
      %v4295 = vpop.f32.mrb[0].mxu0
      %v4296 = vpop.f32.mrb[0].mxu0
      %v4297 = vadd.f32 0.0, %v4296
      %v4298 = vpop.f32.mrb[0].mxu0
      %4299 = vmatprep.mubr.bf16.mxu0 0
      %4300 = vmatmul.mubr.bf16.gmra.mrb[0].mxu0 %v4022
      %v4301 = vpop.f32.mrb[0].mxu0
      %v4302 = vadd.f32 0.0, %v4301
      %v4303 = vpop.f32.mrb[0].mxu0
      %v4304 = vpop.f32.mrb[0].mxu0
      %v4305 = vadd.f32 0.0, %v4304
      %v4306 = vpop.f32.mrb[0].mxu0
      %4307 = vmatprep.mubr.bf16.mxu0 0
      %4308 = vmatmul.mubr.bf16.gmra.mrb[0].mxu0 %v4023
      %v4309 = vpop.f32.mrb[0].mxu0
      %v4310 = vadd.f32 0.0, %v4309
      %v4311 = vpop.f32.mrb[0].mxu0
      %v4312 = vpop.f32.mrb[0].mxu0
      %v4313 = vadd.f32 0.0, %v4312
      %v4314 = vpop.f32.mrb[0].mxu0
      %4315 = vmatprep.mubr.bf16.mxu0 0
      %4316 = vmatmul.mubr.bf16.gmra.mrb[0].mxu0 %v4024
      %v4317 = vpop.f32.mrb[0].mxu0
      %v4318 = vadd.f32 0.0, %v4317
      %v4319 = vpop.f32.mrb[0].mxu0
      %v4320 = vpop.f32.mrb[0].mxu0
      %v4321 = vadd.f32 0.0, %v4320
      %v4322 = vpop.f32.mrb[0].mxu0
      %4323 = vmatprep.mubr.bf16.mxu0 0
      %4324 = vmatmul.mubr.bf16.gmra.mrb[0].mxu0 %v4025
      %v4325 = vpop.f32.mrb[0].mxu0
      %v4326 = vadd.f32 0.0, %v4325
      %v4327 = vpop.f32.mrb[0].mxu0
      %v4328 = vpop.f32.mrb[0].mxu0
      %v4329 = vadd.f32 0.0, %v4328
      %v4330 = vpop.f32.mrb[0].mxu0
      %4331 = vmatprep.mubr.bf16.mxu0 0
      %4332 = vmatmul.mubr.bf16.gmra.mrb[0].mxu0 %v4026
      %v4333 = vpop.f32.mrb[0].mxu0
      %v4334 = vadd.f32 0.0, %v4333
      %v4335 = vpop.f32.mrb[0].mxu0
      %v4336 = vpop.f32.mrb[0].mxu0
      %v4337 = vadd.f32 0.0, %v4336
      %v4338 = vpop.f32.mrb[0].mxu0
      %4339 = vdwg.mxu0
      %v4340 = vadd.f32 %v3732, %v4126
      %v4341 = vadd.f32 %v3735, %v4129
      %v4342 = vadd.f32 %v3740, %v4134
      %v4343 = vadd.f32 %v3743, %v4137
      %v4344 = vadd.f32 %v3748, %v4142
      %v4345 = vadd.f32 %v3751, %v4145
      %v4346 = vadd.f32 %v3756, %v4150
      %v4347 = vadd.f32 %v3759, %v4153
      %v4348 = vadd.f32 %v3764, %v4158
      %v4349 = vadd.f32 %v3767, %v4161
      %v4350 = vadd.f32 %v3772, %v4166
      %v4351 = vadd.f32 %v3775, %v4169
      %v4352 = vadd.f32 %v3780, %v4174
      %v4353 = vadd.f32 %v3783, %v4177
      %v4354 = vadd.f32 %v3788, %v4182
      %v4355 = vadd.f32 %v3791, %v4185
      %v4356 = vadd.f32 %v3796, %v4190
      %v4357 = vadd.f32 %v3799, %v4193
      %v4358 = vadd.f32 %v3804, %v4198
      %v4359 = vadd.f32 %v3807, %v4201
      %v4360 = vadd.f32 %v3812, %v4206
      %v4361 = vadd.f32 %v3815, %v4209
      %v4362 = vadd.f32 %v3820, %v4214
      %v4363 = vadd.f32 %v3823, %v4217
      %v4364 = vadd.f32 %v3828, %v4222
      %v4365 = vadd.f32 %v3831, %v4225
      %v4366 = vadd.f32 %v3836, %v4230
      %v4367 = vadd.f32 %v3839, %v4233
      %v4368 = vadd.f32 %v3844, %v4238
      %v4369 = vadd.f32 %v3847, %v4241
      %v4370 = vadd.f32 %v3852, %v4246
      %v4371 = vadd.f32 %v3855, %v4249
      %v4372 = vadd.f32 %v3860, %v4254
      %v4373 = vadd.f32 %v3863, %v4257
      %v4374 = vadd.f32 %v3868, %v4262
      %v4375 = vadd.f32 %v3871, %v4265
      %v4376 = vadd.f32 %v3876, %v4270
      %v4377 = vadd.f32 %v3879, %v4273
      %v4378 = vadd.f32 %v3884, %v4278
      %v4379 = vadd.f32 %v3887, %v4281
      %v4380 = vadd.f32 %v3892, %v4286
      %v4381 = vadd.f32 %v3895, %v4289
      %v4382 = vadd.f32 %v3900, %v4294
      %v4383 = vadd.f32 %v3903, %v4297
      %v4384 = vadd.f32 %v3908, %v4302
      %v4385 = vadd.f32 %v3911, %v4305
      %v4386 = vadd.f32 %v3916, %v4310
      %v4387 = vadd.f32 %v3919, %v4313
      %v4388 = vadd.f32 %v3924, %v4318
      %v4389 = vadd.f32 %v3927, %v4321
      %v4390 = vadd.f32 %v3932, %v4326
      %v4391 = vadd.f32 %v3935, %v4329
      %v4392 = vadd.f32 %v3940, %v4334
      %v4393 = vadd.f32 %v3943, %v4337
      %v4394 = vld [vmem:[#allocation3 + $0x18] sm:$0xff]
      %v4395 = vld [vmem:[#allocation3 + $0x20] sm:$0xff]
      %v4396 = vld [vmem:[#allocation3 + $0x28] sm:$0xff]
      %v4397 = vld [vmem:[#allocation3 + $0x30] sm:$0xff]
      %v4398 = vld [vmem:[#allocation3 + $0x38] sm:$0xff]
      %v4399 = vld [vmem:[#allocation3 + $0x40] sm:$0xff]
      %v4400 = vld [vmem:[#allocation3 + $0x48] sm:$0xff]
      %v4401 = vld [vmem:[#allocation3 + $0x50] sm:$0xff]
      %v4402 = vld [vmem:[#allocation3 + $0x58] sm:$0xff]
      %v4403 = vld [vmem:[#allocation3 + $0x60] sm:$0xff]
      %v4404 = vld [vmem:[#allocation3 + $0x68] sm:$0xff]
      %v4405 = vld [vmem:[#allocation3 + $0x70] sm:$0xff]
      %v4406 = vld [vmem:[#allocation3 + $0x78] sm:$0xff]
      %v4407 = vld [vmem:[#allocation3 + $0x80] sm:$0xff]
      %v4408 = vld [vmem:[#allocation3 + $0x88] sm:$0xff]
      %v4409 = vld [vmem:[#allocation3 + $0x90] sm:$0xff]
      %v4410 = vld [vmem:[#allocation3 + $0x98] sm:$0xff]
      %v4411 = vld [vmem:[#allocation3 + $0xa0] sm:$0xff]
      %v4412 = vld [vmem:[#allocation3 + $0xa8] sm:$0xff]
      %v4413 = vld [vmem:[#allocation3 + $0xb0] sm:$0xff]
      %v4414 = vld [vmem:[#allocation3 + $0xb8] sm:$0xff]
      %v4415 = vld [vmem:[#allocation3 + $0xc0] sm:$0xff]
      %v4416 = vld [vmem:[#allocation3 + $0xc8] sm:$0xff]
      %v4417 = vld [vmem:[#allocation3 + $0xd0] sm:$0xff]
      %v4418 = vld [vmem:[#allocation3 + $0xd8] sm:$0xff]
      %v4419 = vld [vmem:[#allocation3 + $0xe0] sm:$0xff]
      %v4420 = vld [vmem:[#allocation3 + $0xe8] sm:$0xff]
      %v4421 = vld [vmem:[#allocation3 + $0xf0] sm:$0xff]
      %v4422 = vld [vmem:[#allocation3 + $0xf8] sm:$0xff]
      %v4423 = vld [vmem:[#allocation3 + $0x100] sm:$0xff]
      %v4424 = vld [vmem:[#allocation3 + $0x108] sm:$0xff]
      %v4425 = vld [vmem:[#allocation3 + $0x110] sm:$0xff]
      %v4426 = vld [vmem:[#allocation3 + $0x118] sm:$0xff]
      %v4427 = vld [vmem:[#allocation3 + $0x120] sm:$0xff]
      %v4428 = vld [vmem:[#allocation3 + $0x128] sm:$0xff]
      %v4429 = vld [vmem:[#allocation3 + $0x130] sm:$0xff]
      %v4430 = vld [vmem:[#allocation3 + $0x138] sm:$0xff]
      %v4431 = vld [vmem:[#allocation3 + $0x140] sm:$0xff]
      %v4432 = vld [vmem:[#allocation3 + $0x148] sm:$0xff]
      %v4433 = vld [vmem:[#allocation3 + $0x150] sm:$0xff]
      %v4434 = vld [vmem:[#allocation3 + $0x158] sm:$0xff]
      %v4435 = vld [vmem:[#allocation3 + $0x160] sm:$0xff]
      %v4436 = vld [vmem:[#allocation3 + $0x168] sm:$0xff]
      %v4437 = vld [vmem:[#allocation3 + $0x170] sm:$0xff]
      %v4438 = vld [vmem:[#allocation3 + $0x178] sm:$0xff]
      %v4439 = vld [vmem:[#allocation3 + $0x180] sm:$0xff]
      %v4440 = vld [vmem:[#allocation3 + $0x188] sm:$0xff]
      %v4441 = vld [vmem:[#allocation3 + $0x190] sm:$0xff]
      %v4442 = vld [vmem:[#allocation3 + $0x198] sm:$0xff]
      %v4443 = vld [vmem:[#allocation3 + $0x1a0] sm:$0xff]
      %v4444 = vld [vmem:[#allocation3 + $0x1a8] sm:$0xff]
      %v4445 = vld [vmem:[#allocation3 + $0x1b0] sm:$0xff]
      %v4446 = vld [vmem:[#allocation3 + $0x1b8] sm:$0xff]
      %v4447 = vld [vmem:[#allocation3 + $0x1c0] sm:$0xff]
      %v4448 = vpack.c.bf16 %v4395, %v4394
      %v4449 = vpack.c.bf16 %v4397, %v4396
      %v4450 = vpack.c.bf16 %v4399, %v4398
      %v4451 = vpack.c.bf16 %v4401, %v4400
      %v4452 = vpack.c.bf16 %v4403, %v4402
      %v4453 = vpack.c.bf16 %v4405, %v4404
      %v4454 = vpack.c.bf16 %v4407, %v4406
      %v4455 = vpack.c.bf16 %v4409, %v4408
      %v4456 = vpack.c.bf16 %v4411, %v4410
      %v4457 = vpack.c.bf16 %v4413, %v4412
      %v4458 = vpack.c.bf16 %v4415, %v4414
      %v4459 = vpack.c.bf16 %v4417, %v4416
      %v4460 = vpack.c.bf16 %v4419, %v4418
      %v4461 = vpack.c.bf16 %v4421, %v4420
      %v4462 = vpack.c.bf16 %v4423, %v4422
      %v4463 = vpack.c.bf16 %v4425, %v4424
      %v4464 = vpack.c.bf16 %v4427, %v4426
      %v4465 = vpack.c.bf16 %v4429, %v4428
      %v4466 = vpack.c.bf16 %v4431, %v4430
      %v4467 = vpack.c.bf16 %v4433, %v4432
      %v4468 = vpack.c.bf16 %v4435, %v4434
      %v4469 = vpack.c.bf16 %v4437, %v4436
      %v4470 = vpack.c.bf16 %v4439, %v4438
      %v4471 = vpack.c.bf16 %v4441, %v4440
      %v4472 = vpack.c.bf16 %v4443, %v4442
      %v4473 = vpack.c.bf16 %v4445, %v4444
      %v4474 = vpack.c.bf16 %v4447, %v4446
      %v4475 = vld [vmem:[%s5 + $0xc0] sm:$0xf]
      %v4476 = vld [vmem:[%s5 + $0xc4] sm:$0xf]
      %v4477 = vld [vmem:[%s5 + $0xc8] sm:$0xf]
      %v4478 = vld [vmem:[%s5 + $0xcc] sm:$0xf]
      %v4479 = vld [vmem:[%s5 + $0xd0] sm:$0xf]
      %v4480 = vld [vmem:[%s5 + $0xd4] sm:$0xf]
      %v4481 = vld [vmem:[%s5 + $0xd8] sm:$0xf]
      %v4482 = vld [vmem:[%s5 + $0xdc] sm:$0xf]
      %v4483 = vld [vmem:[%s5 + $0xe0] sm:$0xf]
      %v4484 = vld [vmem:[%s5 + $0xe4] sm:$0xf]
      %v4485 = vld [vmem:[%s5 + $0xe8] sm:$0xf]
      %v4486 = vld [vmem:[%s5 + $0xec] sm:$0xf]
      %v4487 = vld [vmem:[%s5 + $0xf0] sm:$0xf]
      %v4488 = vld [vmem:[%s5 + $0xf4] sm:$0xf]
      %v4489 = vld [vmem:[%s5 + $0xf8] sm:$0xf]
      %v4490 = vld [vmem:[%s5 + $0xfc] sm:$0xf]
      %v4507 = vunpack.c.l.b16 %v4475
      %v4508 = vunpack.c.l.b16 %v4476
      %v4509 = vunpack.c.l.b16 %v4477
      %v4510 = vunpack.c.l.b16 %v4478
      %v4511 = vunpack.c.l.b16 %v4479
      %v4512 = vunpack.c.l.b16 %v4480
      %v4513 = vunpack.c.l.b16 %v4481
      %v4514 = vunpack.c.l.b16 %v4482
      %v4515 = vunpack.c.l.b16 %v4483
      %v4516 = vunpack.c.l.b16 %v4484
      %v4517 = vunpack.c.l.b16 %v4485
      %v4518 = vunpack.c.l.b16 %v4486
      %v4519 = vunpack.c.l.b16 %v4487
      %v4520 = vunpack.c.l.b16 %v4488
      %v4521 = vunpack.c.l.b16 %v4489
      %v4522 = vunpack.c.l.b16 %v4490
      %v4523 = vpack.c.b16 %v4508, %v4507
      %v4524 = vpack.c.b16 %v4510, %v4509
      %v4525 = vpack.c.b16 %v4512, %v4511
      %v4526 = vpack.c.b16 %v4514, %v4513
      %v4527 = vpack.c.b16 %v4516, %v4515
      %v4528 = vpack.c.b16 %v4518, %v4517
      %v4529 = vpack.c.b16 %v4520, %v4519
      %v4530 = vpack.c.b16 %v4522, %v4521
      %4539 = vmatprep.subr.bf16.mxu0 0
      %4540 = vmatpush1.bf16.msra.mxu0 %v4523
      %4541 = vmatprep.subr.bf16.mxu0 0
      %4542 = vmatpush1.bf16.msra.mxu0 %v4524
      %4543 = vmatprep.subr.bf16.mxu0 0
      %4544 = vmatpush1.bf16.msra.mxu0 %v4525
      %4545 = vmatprep.subr.bf16.mxu0 0
      %4546 = vmatpush1.bf16.msra.mxu0 %v4526
      %4547 = vmatprep.subr.bf16.mxu0 0
      %4548 = vmatpush1.bf16.msra.mxu0 %v4527
      %4549 = vmatprep.subr.bf16.mxu0 0
      %4550 = vmatpush1.bf16.msra.mxu0 %v4528
      %4551 = vmatprep.subr.bf16.mxu0 0
      %4552 = vmatpush1.bf16.msra.mxu0 %v4529
      %4553 = vmatprep.subr.bf16.mxu0 0
      %4554 = vmatpush1.bf16.msra.mxu0 %v4530
      %4555 = vmatprep.subr.bf16.mxu0 0
      %4556 = vmatpush1.bf16.msra.mxu0 0
      %4557 = vmatprep.subr.bf16.mxu0 0
      %4558 = vmatpush1.bf16.msra.mxu0 0
      %4559 = vmatprep.subr.bf16.mxu0 0
      %4560 = vmatpush1.bf16.msra.mxu0 0
      %4561 = vmatprep.subr.bf16.mxu0 0
      %4562 = vmatpush1.bf16.msra.mxu0 0
      %4563 = vmatprep.subr.bf16.mxu0 0
      %4564 = vmatpush1.bf16.msra.mxu0 0
      %4565 = vmatprep.subr.bf16.mxu0 0
      %4566 = vmatpush1.bf16.msra.mxu0 0
      %4567 = vmatprep.subr.bf16.mxu0 0
      %4568 = vmatpush1.bf16.msra.mxu0 0
      %4569 = vmatprep.subr.bf16.mxu0 0
      %4570 = vmatpush1.bf16.msra.mxu0 0
      %4571 = vmatprep.mubr.bf16.mxu0 0
      %4572 = vmatmul.mubr.bf16.gmra.mrb[0].mxu0 %v4448
      %v4573 = vpop.f32.mrb[0].mxu0
      %v4574 = vadd.f32 0.0, %v4573
      %v4575 = vpop.f32.mrb[0].mxu0
      %v4576 = vpop.f32.mrb[0].mxu0
      %v4577 = vadd.f32 0.0, %v4576
      %v4578 = vpop.f32.mrb[0].mxu0
      %4579 = vmatprep.mubr.bf16.mxu0 0
      %4580 = vmatmul.mubr.bf16.gmra.mrb[0].mxu0 %v4449
      %v4581 = vpop.f32.mrb[0].mxu0
      %v4582 = vadd.f32 0.0, %v4581
      %v4583 = vpop.f32.mrb[0].mxu0
      %v4584 = vpop.f32.mrb[0].mxu0
      %v4585 = vadd.f32 0.0, %v4584
      %v4586 = vpop.f32.mrb[0].mxu0
      %4587 = vmatprep.mubr.bf16.mxu0 0
      %4588 = vmatmul.mubr.bf16.gmra.mrb[0].mxu0 %v4450
      %v4589 = vpop.f32.mrb[0].mxu0
      %v4590 = vadd.f32 0.0, %v4589
      %v4591 = vpop.f32.mrb[0].mxu0
      %v4592 = vpop.f32.mrb[0].mxu0
      %v4593 = vadd.f32 0.0, %v4592
      %v4594 = vpop.f32.mrb[0].mxu0
      %4595 = vmatprep.mubr.bf16.mxu0 0
      %4596 = vmatmul.mubr.bf16.gmra.mrb[0].mxu0 %v4451
      %v4597 = vpop.f32.mrb[0].mxu0
      %v4598 = vadd.f32 0.0, %v4597
      %v4599 = vpop.f32.mrb[0].mxu0
      %v4600 = vpop.f32.mrb[0].mxu0
      %v4601 = vadd.f32 0.0, %v4600
      %v4602 = vpop.f32.mrb[0].mxu0
      %4603 = vmatprep.mubr.bf16.mxu0 0
      %4604 = vmatmul.mubr.bf16.gmra.mrb[0].mxu0 %v4452
      %v4605 = vpop.f32.mrb[0].mxu0
      %v4606 = vadd.f32 0.0, %v4605
      %v4607 = vpop.f32.mrb[0].mxu0
      %v4608 = vpop.f32.mrb[0].mxu0
      %v4609 = vadd.f32 0.0, %v4608
      %v4610 = vpop.f32.mrb[0].mxu0
      %4611 = vmatprep.mubr.bf16.mxu0 0
      %4612 = vmatmul.mubr.bf16.gmra.mrb[0].mxu0 %v4453
      %v4613 = vpop.f32.mrb[0].mxu0
      %v4614 = vadd.f32 0.0, %v4613
      %v4615 = vpop.f32.mrb[0].mxu0
      %v4616 = vpop.f32.mrb[0].mxu0
      %v4617 = vadd.f32 0.0, %v4616
      %v4618 = vpop.f32.mrb[0].mxu0
      %4619 = vmatprep.mubr.bf16.mxu0 0
      %4620 = vmatmul.mubr.bf16.gmra.mrb[0].mxu0 %v4454
      %v4621 = vpop.f32.mrb[0].mxu0
      %v4622 = vadd.f32 0.0, %v4621
      %v4623 = vpop.f32.mrb[0].mxu0
      %v4624 = vpop.f32.mrb[0].mxu0
      %v4625 = vadd.f32 0.0, %v4624
      %v4626 = vpop.f32.mrb[0].mxu0
      %4627 = vmatprep.mubr.bf16.mxu0 0
      %4628 = vmatmul.mubr.bf16.gmra.mrb[0].mxu0 %v4455
      %v4629 = vpop.f32.mrb[0].mxu0
      %v4630 = vadd.f32 0.0, %v4629
      %v4631 = vpop.f32.mrb[0].mxu0
      %v4632 = vpop.f32.mrb[0].mxu0
      %v4633 = vadd.f32 0.0, %v4632
      %v4634 = vpop.f32.mrb[0].mxu0
      %4635 = vmatprep.mubr.bf16.mxu0 0
      %4636 = vmatmul.mubr.bf16.gmra.mrb[0].mxu0 %v4456
      %v4637 = vpop.f32.mrb[0].mxu0
      %v4638 = vadd.f32 0.0, %v4637
      %v4639 = vpop.f32.mrb[0].mxu0
      %v4640 = vpop.f32.mrb[0].mxu0
      %v4641 = vadd.f32 0.0, %v4640
      %v4642 = vpop.f32.mrb[0].mxu0
      %4643 = vmatprep.mubr.bf16.mxu0 0
      %4644 = vmatmul.mubr.bf16.gmra.mrb[0].mxu0 %v4457
      %v4645 = vpop.f32.mrb[0].mxu0
      %v4646 = vadd.f32 0.0, %v4645
      %v4647 = vpop.f32.mrb[0].mxu0
      %v4648 = vpop.f32.mrb[0].mxu0
      %v4649 = vadd.f32 0.0, %v4648
      %v4650 = vpop.f32.mrb[0].mxu0
      %4651 = vmatprep.mubr.bf16.mxu0 0
      %4652 = vmatmul.mubr.bf16.gmra.mrb[0].mxu0 %v4458
      %v4653 = vpop.f32.mrb[0].mxu0
      %v4654 = vadd.f32 0.0, %v4653
      %v4655 = vpop.f32.mrb[0].mxu0
      %v4656 = vpop.f32.mrb[0].mxu0
      %v4657 = vadd.f32 0.0, %v4656
      %v4658 = vpop.f32.mrb[0].mxu0
      %4659 = vmatprep.mubr.bf16.mxu0 0
      %4660 = vmatmul.mubr.bf16.gmra.mrb[0].mxu0 %v4459
      %v4661 = vpop.f32.mrb[0].mxu0
      %v4662 = vadd.f32 0.0, %v4661
      %v4663 = vpop.f32.mrb[0].mxu0
      %v4664 = vpop.f32.mrb[0].mxu0
      %v4665 = vadd.f32 0.0, %v4664
      %v4666 = vpop.f32.mrb[0].mxu0
      %4667 = vmatprep.mubr.bf16.mxu0 0
      %4668 = vmatmul.mubr.bf16.gmra.mrb[0].mxu0 %v4460
      %v4669 = vpop.f32.mrb[0].mxu0
      %v4670 = vadd.f32 0.0, %v4669
      %v4671 = vpop.f32.mrb[0].mxu0
      %v4672 = vpop.f32.mrb[0].mxu0
      %v4673 = vadd.f32 0.0, %v4672
      %v4674 = vpop.f32.mrb[0].mxu0
      %4675 = vmatprep.mubr.bf16.mxu0 0
      %4676 = vmatmul.mubr.bf16.gmra.mrb[0].mxu0 %v4461
      %v4677 = vpop.f32.mrb[0].mxu0
      %v4678 = vadd.f32 0.0, %v4677
      %v4679 = vpop.f32.mrb[0].mxu0
      %v4680 = vpop.f32.mrb[0].mxu0
      %v4681 = vadd.f32 0.0, %v4680
      %v4682 = vpop.f32.mrb[0].mxu0
      %4683 = vmatprep.mubr.bf16.mxu0 0
      %4684 = vmatmul.mubr.bf16.gmra.mrb[0].mxu0 %v4462
      %v4685 = vpop.f32.mrb[0].mxu0
      %v4686 = vadd.f32 0.0, %v4685
      %v4687 = vpop.f32.mrb[0].mxu0
      %v4688 = vpop.f32.mrb[0].mxu0
      %v4689 = vadd.f32 0.0, %v4688
      %v4690 = vpop.f32.mrb[0].mxu0
      %4691 = vmatprep.mubr.bf16.mxu0 0
      %4692 = vmatmul.mubr.bf16.gmra.mrb[0].mxu0 %v4463
      %v4693 = vpop.f32.mrb[0].mxu0
      %v4694 = vadd.f32 0.0, %v4693
      %v4695 = vpop.f32.mrb[0].mxu0
      %v4696 = vpop.f32.mrb[0].mxu0
      %v4697 = vadd.f32 0.0, %v4696
      %v4698 = vpop.f32.mrb[0].mxu0
      %4699 = vmatprep.mubr.bf16.mxu0 0
      %4700 = vmatmul.mubr.bf16.gmra.mrb[0].mxu0 %v4464
      %v4701 = vpop.f32.mrb[0].mxu0
      %v4702 = vadd.f32 0.0, %v4701
      %v4703 = vpop.f32.mrb[0].mxu0
      %v4704 = vpop.f32.mrb[0].mxu0
      %v4705 = vadd.f32 0.0, %v4704
      %v4706 = vpop.f32.mrb[0].mxu0
      %4707 = vmatprep.mubr.bf16.mxu0 0
      %4708 = vmatmul.mubr.bf16.gmra.mrb[0].mxu0 %v4465
      %v4709 = vpop.f32.mrb[0].mxu0
      %v4710 = vadd.f32 0.0, %v4709
      %v4711 = vpop.f32.mrb[0].mxu0
      %v4712 = vpop.f32.mrb[0].mxu0
      %v4713 = vadd.f32 0.0, %v4712
      %v4714 = vpop.f32.mrb[0].mxu0
      %4715 = vmatprep.mubr.bf16.mxu0 0
      %4716 = vmatmul.mubr.bf16.gmra.mrb[0].mxu0 %v4466
      %v4717 = vpop.f32.mrb[0].mxu0
      %v4718 = vadd.f32 0.0, %v4717
      %v4719 = vpop.f32.mrb[0].mxu0
      %v4720 = vpop.f32.mrb[0].mxu0
      %v4721 = vadd.f32 0.0, %v4720
      %v4722 = vpop.f32.mrb[0].mxu0
      %4723 = vmatprep.mubr.bf16.mxu0 0
      %4724 = vmatmul.mubr.bf16.gmra.mrb[0].mxu0 %v4467
      %v4725 = vpop.f32.mrb[0].mxu0
      %v4726 = vadd.f32 0.0, %v4725
      %v4727 = vpop.f32.mrb[0].mxu0
      %v4728 = vpop.f32.mrb[0].mxu0
      %v4729 = vadd.f32 0.0, %v4728
      %v4730 = vpop.f32.mrb[0].mxu0
      %4731 = vmatprep.mubr.bf16.mxu0 0
      %4732 = vmatmul.mubr.bf16.gmra.mrb[0].mxu0 %v4468
      %v4733 = vpop.f32.mrb[0].mxu0
      %v4734 = vadd.f32 0.0, %v4733
      %v4735 = vpop.f32.mrb[0].mxu0
      %v4736 = vpop.f32.mrb[0].mxu0
      %v4737 = vadd.f32 0.0, %v4736
      %v4738 = vpop.f32.mrb[0].mxu0
      %4739 = vmatprep.mubr.bf16.mxu0 0
      %4740 = vmatmul.mubr.bf16.gmra.mrb[0].mxu0 %v4469
      %v4741 = vpop.f32.mrb[0].mxu0
      %v4742 = vadd.f32 0.0, %v4741
      %v4743 = vpop.f32.mrb[0].mxu0
      %v4744 = vpop.f32.mrb[0].mxu0
      %v4745 = vadd.f32 0.0, %v4744
      %v4746 = vpop.f32.mrb[0].mxu0
      %4747 = vmatprep.mubr.bf16.mxu0 0
      %4748 = vmatmul.mubr.bf16.gmra.mrb[0].mxu0 %v4470
      %v4749 = vpop.f32.mrb[0].mxu0
      %v4750 = vadd.f32 0.0, %v4749
      %v4751 = vpop.f32.mrb[0].mxu0
      %v4752 = vpop.f32.mrb[0].mxu0
      %v4753 = vadd.f32 0.0, %v4752
      %v4754 = vpop.f32.mrb[0].mxu0
      %4755 = vmatprep.mubr.bf16.mxu0 0
      %4756 = vmatmul.mubr.bf16.gmra.mrb[0].mxu0 %v4471
      %v4757 = vpop.f32.mrb[0].mxu0
      %v4758 = vadd.f32 0.0, %v4757
      %v4759 = vpop.f32.mrb[0].mxu0
      %v4760 = vpop.f32.mrb[0].mxu0
      %v4761 = vadd.f32 0.0, %v4760
      %v4762 = vpop.f32.mrb[0].mxu0
      %4763 = vmatprep.mubr.bf16.mxu0 0
      %4764 = vmatmul.mubr.bf16.gmra.mrb[0].mxu0 %v4472
      %v4765 = vpop.f32.mrb[0].mxu0
      %v4766 = vadd.f32 0.0, %v4765
      %v4767 = vpop.f32.mrb[0].mxu0
      %v4768 = vpop.f32.mrb[0].mxu0
      %v4769 = vadd.f32 0.0, %v4768
      %v4770 = vpop.f32.mrb[0].mxu0
      %4771 = vmatprep.mubr.bf16.mxu0 0
      %4772 = vmatmul.mubr.bf16.gmra.mrb[0].mxu0 %v4473
      %v4773 = vpop.f32.mrb[0].mxu0
      %v4774 = vadd.f32 0.0, %v4773
      %v4775 = vpop.f32.mrb[0].mxu0
      %v4776 = vpop.f32.mrb[0].mxu0
      %v4777 = vadd.f32 0.0, %v4776
      %v4778 = vpop.f32.mrb[0].mxu0
      %4779 = vmatprep.mubr.bf16.mxu0 0
      %4780 = vmatmul.mubr.bf16.gmra.mrb[0].mxu0 %v4474
      %v4781 = vpop.f32.mrb[0].mxu0
      %v4782 = vadd.f32 0.0, %v4781
      %v4783 = vpop.f32.mrb[0].mxu0
      %v4784 = vpop.f32.mrb[0].mxu0
      %v4785 = vadd.f32 0.0, %v4784
      %v4786 = vpop.f32.mrb[0].mxu0
      %4787 = vdwg.mxu0
      %v4788 = vadd.f32 %v4340, %v4574
      %v4789 = vadd.f32 %v4341, %v4577
      %v4790 = vadd.f32 %v4342, %v4582
      %v4791 = vadd.f32 %v4343, %v4585
      %v4792 = vadd.f32 %v4344, %v4590
      %v4793 = vadd.f32 %v4345, %v4593
      %v4794 = vadd.f32 %v4346, %v4598
      %v4795 = vadd.f32 %v4347, %v4601
      %v4796 = vadd.f32 %v4348, %v4606
      %v4797 = vadd.f32 %v4349, %v4609
      %v4798 = vadd.f32 %v4350, %v4614
      %v4799 = vadd.f32 %v4351, %v4617
      %v4800 = vadd.f32 %v4352, %v4622
      %v4801 = vadd.f32 %v4353, %v4625
      %v4802 = vadd.f32 %v4354, %v4630
      %v4803 = vadd.f32 %v4355, %v4633
      %v4804 = vadd.f32 %v4356, %v4638
      %v4805 = vadd.f32 %v4357, %v4641
      %v4806 = vadd.f32 %v4358, %v4646
      %v4807 = vadd.f32 %v4359, %v4649
      %v4808 = vadd.f32 %v4360, %v4654
      %v4809 = vadd.f32 %v4361, %v4657
      %v4810 = vadd.f32 %v4362, %v4662
      %v4811 = vadd.f32 %v4363, %v4665
      %v4812 = vadd.f32 %v4364, %v4670
      %v4813 = vadd.f32 %v4365, %v4673
      %v4814 = vadd.f32 %v4366, %v4678
      %v4815 = vadd.f32 %v4367, %v4681
      %v4816 = vadd.f32 %v4368, %v4686
      %v4817 = vadd.f32 %v4369, %v4689
      %v4818 = vadd.f32 %v4370, %v4694
      %v4819 = vadd.f32 %v4371, %v4697
      %v4820 = vadd.f32 %v4372, %v4702
      %v4821 = vadd.f32 %v4373, %v4705
      %v4822 = vadd.f32 %v4374, %v4710
      %v4823 = vadd.f32 %v4375, %v4713
      %v4824 = vadd.f32 %v4376, %v4718
      %v4825 = vadd.f32 %v4377, %v4721
      %v4826 = vadd.f32 %v4378, %v4726
      %v4827 = vadd.f32 %v4379, %v4729
      %v4828 = vadd.f32 %v4380, %v4734
      %v4829 = vadd.f32 %v4381, %v4737
      %v4830 = vadd.f32 %v4382, %v4742
      %v4831 = vadd.f32 %v4383, %v4745
      %v4832 = vadd.f32 %v4384, %v4750
      %v4833 = vadd.f32 %v4385, %v4753
      %v4834 = vadd.f32 %v4386, %v4758
      %v4835 = vadd.f32 %v4387, %v4761
      %v4836 = vadd.f32 %v4388, %v4766
      %v4837 = vadd.f32 %v4389, %v4769
      %v4838 = vadd.f32 %v4390, %v4774
      %v4839 = vadd.f32 %v4391, %v4777
      %v4840 = vadd.f32 %v4392, %v4782
      %v4841 = vadd.f32 %v4393, %v4785
      %v4842 = vld [vmem:[#allocation3 + $0x19] sm:$0xff]
      %v4843 = vld [vmem:[#allocation3 + $0x21] sm:$0xff]
      %v4844 = vld [vmem:[#allocation3 + $0x29] sm:$0xff]
      %v4845 = vld [vmem:[#allocation3 + $0x31] sm:$0xff]
      %v4846 = vld [vmem:[#allocation3 + $0x39] sm:$0xff]
      %v4847 = vld [vmem:[#allocation3 + $0x41] sm:$0xff]
      %v4848 = vld [vmem:[#allocation3 + $0x49] sm:$0xff]
      %v4849 = vld [vmem:[#allocation3 + $0x51] sm:$0xff]
      %v4850 = vld [vmem:[#allocation3 + $0x59] sm:$0xff]
      %v4851 = vld [vmem:[#allocation3 + $0x61] sm:$0xff]
      %v4852 = vld [vmem:[#allocation3 + $0x69] sm:$0xff]
      %v4853 = vld [vmem:[#allocation3 + $0x71] sm:$0xff]
      %v4854 = vld [vmem:[#allocation3 + $0x79] sm:$0xff]
      %v4855 = vld [vmem:[#allocation3 + $0x81] sm:$0xff]
      %v4856 = vld [vmem:[#allocation3 + $0x89] sm:$0xff]
      %v4857 = vld [vmem:[#allocation3 + $0x91] sm:$0xff]
      %v4858 = vld [vmem:[#allocation3 + $0x99] sm:$0xff]
      %v4859 = vld [vmem:[#allocation3 + $0xa1] sm:$0xff]
      %v4860 = vld [vmem:[#allocation3 + $0xa9] sm:$0xff]
      %v4861 = vld [vmem:[#allocation3 + $0xb1] sm:$0xff]
      %v4862 = vld [vmem:[#allocation3 + $0xb9] sm:$0xff]
      %v4863 = vld [vmem:[#allocation3 + $0xc1] sm:$0xff]
      %v4864 = vld [vmem:[#allocation3 + $0xc9] sm:$0xff]
      %v4865 = vld [vmem:[#allocation3 + $0xd1] sm:$0xff]
      %v4866 = vld [vmem:[#allocation3 + $0xd9] sm:$0xff]
      %v4867 = vld [vmem:[#allocation3 + $0xe1] sm:$0xff]
      %v4868 = vld [vmem:[#allocation3 + $0xe9] sm:$0xff]
      %v4869 = vld [vmem:[#allocation3 + $0xf1] sm:$0xff]
      %v4870 = vld [vmem:[#allocation3 + $0xf9] sm:$0xff]
      %v4871 = vld [vmem:[#allocation3 + $0x101] sm:$0xff]
      %v4872 = vld [vmem:[#allocation3 + $0x109] sm:$0xff]
      %v4873 = vld [vmem:[#allocation3 + $0x111] sm:$0xff]
      %v4874 = vld [vmem:[#allocation3 + $0x119] sm:$0xff]
      %v4875 = vld [vmem:[#allocation3 + $0x121] sm:$0xff]
      %v4876 = vld [vmem:[#allocation3 + $0x129] sm:$0xff]
      %v4877 = vld [vmem:[#allocation3 + $0x131] sm:$0xff]
      %v4878 = vld [vmem:[#allocation3 + $0x139] sm:$0xff]
      %v4879 = vld [vmem:[#allocation3 + $0x141] sm:$0xff]
      %v4880 = vld [vmem:[#allocation3 + $0x149] sm:$0xff]
      %v4881 = vld [vmem:[#allocation3 + $0x151] sm:$0xff]
      %v4882 = vld [vmem:[#allocation3 + $0x159] sm:$0xff]
      %v4883 = vld [vmem:[#allocation3 + $0x161] sm:$0xff]
      %v4884 = vld [vmem:[#allocation3 + $0x169] sm:$0xff]
      %v4885 = vld [vmem:[#allocation3 + $0x171] sm:$0xff]
      %v4886 = vld [vmem:[#allocation3 + $0x179] sm:$0xff]
      %v4887 = vld [vmem:[#allocation3 + $0x181] sm:$0xff]
      %v4888 = vld [vmem:[#allocation3 + $0x189] sm:$0xff]
      %v4889 = vld [vmem:[#allocation3 + $0x191] sm:$0xff]
      %v4890 = vld [vmem:[#allocation3 + $0x199] sm:$0xff]
      %v4891 = vld [vmem:[#allocation3 + $0x1a1] sm:$0xff]
      %v4892 = vld [vmem:[#allocation3 + $0x1a9] sm:$0xff]
      %v4893 = vld [vmem:[#allocation3 + $0x1b1] sm:$0xff]
      %v4894 = vld [vmem:[#allocation3 + $0x1b9] sm:$0xff]
      %v4895 = vld [vmem:[#allocation3 + $0x1c1] sm:$0xff]
      %v4896 = vpack.c.bf16 %v4843, %v4842
      %v4897 = vpack.c.bf16 %v4845, %v4844
      %v4898 = vpack.c.bf16 %v4847, %v4846
      %v4899 = vpack.c.bf16 %v4849, %v4848
      %v4900 = vpack.c.bf16 %v4851, %v4850
      %v4901 = vpack.c.bf16 %v4853, %v4852
      %v4902 = vpack.c.bf16 %v4855, %v4854
      %v4903 = vpack.c.bf16 %v4857, %v4856
      %v4904 = vpack.c.bf16 %v4859, %v4858
      %v4905 = vpack.c.bf16 %v4861, %v4860
      %v4906 = vpack.c.bf16 %v4863, %v4862
      %v4907 = vpack.c.bf16 %v4865, %v4864
      %v4908 = vpack.c.bf16 %v4867, %v4866
      %v4909 = vpack.c.bf16 %v4869, %v4868
      %v4910 = vpack.c.bf16 %v4871, %v4870
      %v4911 = vpack.c.bf16 %v4873, %v4872
      %v4912 = vpack.c.bf16 %v4875, %v4874
      %v4913 = vpack.c.bf16 %v4877, %v4876
      %v4914 = vpack.c.bf16 %v4879, %v4878
      %v4915 = vpack.c.bf16 %v4881, %v4880
      %v4916 = vpack.c.bf16 %v4883, %v4882
      %v4917 = vpack.c.bf16 %v4885, %v4884
      %v4918 = vpack.c.bf16 %v4887, %v4886
      %v4919 = vpack.c.bf16 %v4889, %v4888
      %v4920 = vpack.c.bf16 %v4891, %v4890
      %v4921 = vpack.c.bf16 %v4893, %v4892
      %v4922 = vpack.c.bf16 %v4895, %v4894
      %v4923 = vld [vmem:[%s5 + $0x100] sm:$0xf]
      %v4924 = vld [vmem:[%s5 + $0x104] sm:$0xf]
      %v4925 = vld [vmem:[%s5 + $0x108] sm:$0xf]
      %v4926 = vld [vmem:[%s5 + $0x10c] sm:$0xf]
      %v4927 = vld [vmem:[%s5 + $0x110] sm:$0xf]
      %v4928 = vld [vmem:[%s5 + $0x114] sm:$0xf]
      %v4929 = vld [vmem:[%s5 + $0x118] sm:$0xf]
      %v4930 = vld [vmem:[%s5 + $0x11c] sm:$0xf]
      %v4931 = vld [vmem:[%s5 + $0x120] sm:$0xf]
      %v4932 = vld [vmem:[%s5 + $0x124] sm:$0xf]
      %v4933 = vld [vmem:[%s5 + $0x128] sm:$0xf]
      %v4934 = vld [vmem:[%s5 + $0x12c] sm:$0xf]
      %v4935 = vld [vmem:[%s5 + $0x130] sm:$0xf]
      %v4936 = vld [vmem:[%s5 + $0x134] sm:$0xf]
      %v4937 = vld [vmem:[%s5 + $0x138] sm:$0xf]
      %v4938 = vld [vmem:[%s5 + $0x13c] sm:$0xf]
      %v4955 = vunpack.c.l.b16 %v4923
      %v4956 = vunpack.c.l.b16 %v4924
      %v4957 = vunpack.c.l.b16 %v4925
      %v4958 = vunpack.c.l.b16 %v4926
      %v4959 = vunpack.c.l.b16 %v4927
      %v4960 = vunpack.c.l.b16 %v4928
      %v4961 = vunpack.c.l.b16 %v4929
      %v4962 = vunpack.c.l.b16 %v4930
      %v4963 = vunpack.c.l.b16 %v4931
      %v4964 = vunpack.c.l.b16 %v4932
      %v4965 = vunpack.c.l.b16 %v4933
      %v4966 = vunpack.c.l.b16 %v4934
      %v4967 = vunpack.c.l.b16 %v4935
      %v4968 = vunpack.c.l.b16 %v4936
      %v4969 = vunpack.c.l.b16 %v4937
      %v4970 = vunpack.c.l.b16 %v4938
      %v4971 = vpack.c.b16 %v4956, %v4955
      %v4972 = vpack.c.b16 %v4958, %v4957
      %v4973 = vpack.c.b16 %v4960, %v4959
      %v4974 = vpack.c.b16 %v4962, %v4961
      %v4975 = vpack.c.b16 %v4964, %v4963
      %v4976 = vpack.c.b16 %v4966, %v4965
      %v4977 = vpack.c.b16 %v4968, %v4967
      %v4978 = vpack.c.b16 %v4970, %v4969
      %4987 = vmatprep.subr.bf16.mxu0 0
      %4988 = vmatpush1.bf16.msra.mxu0 %v4971
      %4989 = vmatprep.subr.bf16.mxu0 0
      %4990 = vmatpush1.bf16.msra.mxu0 %v4972
      %4991 = vmatprep.subr.bf16.mxu0 0
      %4992 = vmatpush1.bf16.msra.mxu0 %v4973
      %4993 = vmatprep.subr.bf16.mxu0 0
      %4994 = vmatpush1.bf16.msra.mxu0 %v4974
      %4995 = vmatprep.subr.bf16.mxu0 0
      %4996 = vmatpush1.bf16.msra.mxu0 %v4975
      %4997 = vmatprep.subr.bf16.mxu0 0
      %4998 = vmatpush1.bf16.msra.mxu0 %v4976
      %4999 = vmatprep.subr.bf16.mxu0 0
      %5000 = vmatpush1.bf16.msra.mxu0 %v4977
      %5001 = vmatprep.subr.bf16.mxu0 0
      %5002 = vmatpush1.bf16.msra.mxu0 %v4978
      %5003 = vmatprep.subr.bf16.mxu0 0
      %5004 = vmatpush1.bf16.msra.mxu0 0
      %5005 = vmatprep.subr.bf16.mxu0 0
      %5006 = vmatpush1.bf16.msra.mxu0 0
      %5007 = vmatprep.subr.bf16.mxu0 0
      %5008 = vmatpush1.bf16.msra.mxu0 0
      %5009 = vmatprep.subr.bf16.mxu0 0
      %5010 = vmatpush1.bf16.msra.mxu0 0
      %5011 = vmatprep.subr.bf16.mxu0 0
      %5012 = vmatpush1.bf16.msra.mxu0 0
      %5013 = vmatprep.subr.bf16.mxu0 0
      %5014 = vmatpush1.bf16.msra.mxu0 0
      %5015 = vmatprep.subr.bf16.mxu0 0
      %5016 = vmatpush1.bf16.msra.mxu0 0
      %5017 = vmatprep.subr.bf16.mxu0 0
      %5018 = vmatpush1.bf16.msra.mxu0 0
      %5019 = vmatprep.mubr.bf16.mxu0 0
      %5020 = vmatmul.mubr.bf16.gmra.mrb[0].mxu0 %v4896
      %v5021 = vpop.f32.mrb[0].mxu0
      %v5022 = vadd.f32 0.0, %v5021
      %v5023 = vpop.f32.mrb[0].mxu0
      %v5024 = vpop.f32.mrb[0].mxu0
      %v5025 = vadd.f32 0.0, %v5024
      %v5026 = vpop.f32.mrb[0].mxu0
      %5027 = vmatprep.mubr.bf16.mxu0 0
      %5028 = vmatmul.mubr.bf16.gmra.mrb[0].mxu0 %v4897
      %v5029 = vpop.f32.mrb[0].mxu0
      %v5030 = vadd.f32 0.0, %v5029
      %v5031 = vpop.f32.mrb[0].mxu0
      %v5032 = vpop.f32.mrb[0].mxu0
      %v5033 = vadd.f32 0.0, %v5032
      %v5034 = vpop.f32.mrb[0].mxu0
      %5035 = vmatprep.mubr.bf16.mxu0 0
      %5036 = vmatmul.mubr.bf16.gmra.mrb[0].mxu0 %v4898
      %v5037 = vpop.f32.mrb[0].mxu0
      %v5038 = vadd.f32 0.0, %v5037
      %v5039 = vpop.f32.mrb[0].mxu0
      %v5040 = vpop.f32.mrb[0].mxu0
      %v5041 = vadd.f32 0.0, %v5040
      %v5042 = vpop.f32.mrb[0].mxu0
      %5043 = vmatprep.mubr.bf16.mxu0 0
      %5044 = vmatmul.mubr.bf16.gmra.mrb[0].mxu0 %v4899
      %v5045 = vpop.f32.mrb[0].mxu0
      %v5046 = vadd.f32 0.0, %v5045
      %v5047 = vpop.f32.mrb[0].mxu0
      %v5048 = vpop.f32.mrb[0].mxu0
      %v5049 = vadd.f32 0.0, %v5048
      %v5050 = vpop.f32.mrb[0].mxu0
      %5051 = vmatprep.mubr.bf16.mxu0 0
      %5052 = vmatmul.mubr.bf16.gmra.mrb[0].mxu0 %v4900
      %v5053 = vpop.f32.mrb[0].mxu0
      %v5054 = vadd.f32 0.0, %v5053
      %v5055 = vpop.f32.mrb[0].mxu0
      %v5056 = vpop.f32.mrb[0].mxu0
      %v5057 = vadd.f32 0.0, %v5056
      %v5058 = vpop.f32.mrb[0].mxu0
      %5059 = vmatprep.mubr.bf16.mxu0 0
      %5060 = vmatmul.mubr.bf16.gmra.mrb[0].mxu0 %v4901
      %v5061 = vpop.f32.mrb[0].mxu0
      %v5062 = vadd.f32 0.0, %v5061
      %v5063 = vpop.f32.mrb[0].mxu0
      %v5064 = vpop.f32.mrb[0].mxu0
      %v5065 = vadd.f32 0.0, %v5064
      %v5066 = vpop.f32.mrb[0].mxu0
      %5067 = vmatprep.mubr.bf16.mxu0 0
      %5068 = vmatmul.mubr.bf16.gmra.mrb[0].mxu0 %v4902
      %v5069 = vpop.f32.mrb[0].mxu0
      %v5070 = vadd.f32 0.0, %v5069
      %v5071 = vpop.f32.mrb[0].mxu0
      %v5072 = vpop.f32.mrb[0].mxu0
      %v5073 = vadd.f32 0.0, %v5072
      %v5074 = vpop.f32.mrb[0].mxu0
      %5075 = vmatprep.mubr.bf16.mxu0 0
      %5076 = vmatmul.mubr.bf16.gmra.mrb[0].mxu0 %v4903
      %v5077 = vpop.f32.mrb[0].mxu0
      %v5078 = vadd.f32 0.0, %v5077
      %v5079 = vpop.f32.mrb[0].mxu0
      %v5080 = vpop.f32.mrb[0].mxu0
      %v5081 = vadd.f32 0.0, %v5080
      %v5082 = vpop.f32.mrb[0].mxu0
      %5083 = vmatprep.mubr.bf16.mxu0 0
      %5084 = vmatmul.mubr.bf16.gmra.mrb[0].mxu0 %v4904
      %v5085 = vpop.f32.mrb[0].mxu0
      %v5086 = vadd.f32 0.0, %v5085
      %v5087 = vpop.f32.mrb[0].mxu0
      %v5088 = vpop.f32.mrb[0].mxu0
      %v5089 = vadd.f32 0.0, %v5088
      %v5090 = vpop.f32.mrb[0].mxu0
      %5091 = vmatprep.mubr.bf16.mxu0 0
      %5092 = vmatmul.mubr.bf16.gmra.mrb[0].mxu0 %v4905
      %v5093 = vpop.f32.mrb[0].mxu0
      %v5094 = vadd.f32 0.0, %v5093
      %v5095 = vpop.f32.mrb[0].mxu0
      %v5096 = vpop.f32.mrb[0].mxu0
      %v5097 = vadd.f32 0.0, %v5096
      %v5098 = vpop.f32.mrb[0].mxu0
      %5099 = vmatprep.mubr.bf16.mxu0 0
      %5100 = vmatmul.mubr.bf16.gmra.mrb[0].mxu0 %v4906
      %v5101 = vpop.f32.mrb[0].mxu0
      %v5102 = vadd.f32 0.0, %v5101
      %v5103 = vpop.f32.mrb[0].mxu0
      %v5104 = vpop.f32.mrb[0].mxu0
      %v5105 = vadd.f32 0.0, %v5104
      %v5106 = vpop.f32.mrb[0].mxu0
      %5107 = vmatprep.mubr.bf16.mxu0 0
      %5108 = vmatmul.mubr.bf16.gmra.mrb[0].mxu0 %v4907
      %v5109 = vpop.f32.mrb[0].mxu0
      %v5110 = vadd.f32 0.0, %v5109
      %v5111 = vpop.f32.mrb[0].mxu0
      %v5112 = vpop.f32.mrb[0].mxu0
      %v5113 = vadd.f32 0.0, %v5112
      %v5114 = vpop.f32.mrb[0].mxu0
      %5115 = vmatprep.mubr.bf16.mxu0 0
      %5116 = vmatmul.mubr.bf16.gmra.mrb[0].mxu0 %v4908
      %v5117 = vpop.f32.mrb[0].mxu0
      %v5118 = vadd.f32 0.0, %v5117
      %v5119 = vpop.f32.mrb[0].mxu0
      %v5120 = vpop.f32.mrb[0].mxu0
      %v5121 = vadd.f32 0.0, %v5120
      %v5122 = vpop.f32.mrb[0].mxu0
      %5123 = vmatprep.mubr.bf16.mxu0 0
      %5124 = vmatmul.mubr.bf16.gmra.mrb[0].mxu0 %v4909
      %v5125 = vpop.f32.mrb[0].mxu0
      %v5126 = vadd.f32 0.0, %v5125
      %v5127 = vpop.f32.mrb[0].mxu0
      %v5128 = vpop.f32.mrb[0].mxu0
      %v5129 = vadd.f32 0.0, %v5128
      %v5130 = vpop.f32.mrb[0].mxu0
      %5131 = vmatprep.mubr.bf16.mxu0 0
      %5132 = vmatmul.mubr.bf16.gmra.mrb[0].mxu0 %v4910
      %v5133 = vpop.f32.mrb[0].mxu0
      %v5134 = vadd.f32 0.0, %v5133
      %v5135 = vpop.f32.mrb[0].mxu0
      %v5136 = vpop.f32.mrb[0].mxu0
      %v5137 = vadd.f32 0.0, %v5136
      %v5138 = vpop.f32.mrb[0].mxu0
      %5139 = vmatprep.mubr.bf16.mxu0 0
      %5140 = vmatmul.mubr.bf16.gmra.mrb[0].mxu0 %v4911
      %v5141 = vpop.f32.mrb[0].mxu0
      %v5142 = vadd.f32 0.0, %v5141
      %v5143 = vpop.f32.mrb[0].mxu0
      %v5144 = vpop.f32.mrb[0].mxu0
      %v5145 = vadd.f32 0.0, %v5144
      %v5146 = vpop.f32.mrb[0].mxu0
      %5147 = vmatprep.mubr.bf16.mxu0 0
      %5148 = vmatmul.mubr.bf16.gmra.mrb[0].mxu0 %v4912
      %v5149 = vpop.f32.mrb[0].mxu0
      %v5150 = vadd.f32 0.0, %v5149
      %v5151 = vpop.f32.mrb[0].mxu0
      %v5152 = vpop.f32.mrb[0].mxu0
      %v5153 = vadd.f32 0.0, %v5152
      %v5154 = vpop.f32.mrb[0].mxu0
      %5155 = vmatprep.mubr.bf16.mxu0 0
      %5156 = vmatmul.mubr.bf16.gmra.mrb[0].mxu0 %v4913
      %v5157 = vpop.f32.mrb[0].mxu0
      %v5158 = vadd.f32 0.0, %v5157
      %v5159 = vpop.f32.mrb[0].mxu0
      %v5160 = vpop.f32.mrb[0].mxu0
      %v5161 = vadd.f32 0.0, %v5160
      %v5162 = vpop.f32.mrb[0].mxu0
      %5163 = vmatprep.mubr.bf16.mxu0 0
      %5164 = vmatmul.mubr.bf16.gmra.mrb[0].mxu0 %v4914
      %v5165 = vpop.f32.mrb[0].mxu0
      %v5166 = vadd.f32 0.0, %v5165
      %v5167 = vpop.f32.mrb[0].mxu0
      %v5168 = vpop.f32.mrb[0].mxu0
      %v5169 = vadd.f32 0.0, %v5168
      %v5170 = vpop.f32.mrb[0].mxu0
      %5171 = vmatprep.mubr.bf16.mxu0 0
      %5172 = vmatmul.mubr.bf16.gmra.mrb[0].mxu0 %v4915
      %v5173 = vpop.f32.mrb[0].mxu0
      %v5174 = vadd.f32 0.0, %v5173
      %v5175 = vpop.f32.mrb[0].mxu0
      %v5176 = vpop.f32.mrb[0].mxu0
      %v5177 = vadd.f32 0.0, %v5176
      %v5178 = vpop.f32.mrb[0].mxu0
      %5179 = vmatprep.mubr.bf16.mxu0 0
      %5180 = vmatmul.mubr.bf16.gmra.mrb[0].mxu0 %v4916
      %v5181 = vpop.f32.mrb[0].mxu0
      %v5182 = vadd.f32 0.0, %v5181
      %v5183 = vpop.f32.mrb[0].mxu0
      %v5184 = vpop.f32.mrb[0].mxu0
      %v5185 = vadd.f32 0.0, %v5184
      %v5186 = vpop.f32.mrb[0].mxu0
      %5187 = vmatprep.mubr.bf16.mxu0 0
      %5188 = vmatmul.mubr.bf16.gmra.mrb[0].mxu0 %v4917
      %v5189 = vpop.f32.mrb[0].mxu0
      %v5190 = vadd.f32 0.0, %v5189
      %v5191 = vpop.f32.mrb[0].mxu0
      %v5192 = vpop.f32.mrb[0].mxu0
      %v5193 = vadd.f32 0.0, %v5192
      %v5194 = vpop.f32.mrb[0].mxu0
      %5195 = vmatprep.mubr.bf16.mxu0 0
      %5196 = vmatmul.mubr.bf16.gmra.mrb[0].mxu0 %v4918
      %v5197 = vpop.f32.mrb[0].mxu0
      %v5198 = vadd.f32 0.0, %v5197
      %v5199 = vpop.f32.mrb[0].mxu0
      %v5200 = vpop.f32.mrb[0].mxu0
      %v5201 = vadd.f32 0.0, %v5200
      %v5202 = vpop.f32.mrb[0].mxu0
      %5203 = vmatprep.mubr.bf16.mxu0 0
      %5204 = vmatmul.mubr.bf16.gmra.mrb[0].mxu0 %v4919
      %v5205 = vpop.f32.mrb[0].mxu0
      %v5206 = vadd.f32 0.0, %v5205
      %v5207 = vpop.f32.mrb[0].mxu0
      %v5208 = vpop.f32.mrb[0].mxu0
      %v5209 = vadd.f32 0.0, %v5208
      %v5210 = vpop.f32.mrb[0].mxu0
      %5211 = vmatprep.mubr.bf16.mxu0 0
      %5212 = vmatmul.mubr.bf16.gmra.mrb[0].mxu0 %v4920
      %v5213 = vpop.f32.mrb[0].mxu0
      %v5214 = vadd.f32 0.0, %v5213
      %v5215 = vpop.f32.mrb[0].mxu0
      %v5216 = vpop.f32.mrb[0].mxu0
      %v5217 = vadd.f32 0.0, %v5216
      %v5218 = vpop.f32.mrb[0].mxu0
      %5219 = vmatprep.mubr.bf16.mxu0 0
      %5220 = vmatmul.mubr.bf16.gmra.mrb[0].mxu0 %v4921
      %v5221 = vpop.f32.mrb[0].mxu0
      %v5222 = vadd.f32 0.0, %v5221
      %v5223 = vpop.f32.mrb[0].mxu0
      %v5224 = vpop.f32.mrb[0].mxu0
      %v5225 = vadd.f32 0.0, %v5224
      %v5226 = vpop.f32.mrb[0].mxu0
      %5227 = vmatprep.mubr.bf16.mxu0 0
      %5228 = vmatmul.mubr.bf16.gmra.mrb[0].mxu0 %v4922
      %v5229 = vpop.f32.mrb[0].mxu0
      %v5230 = vadd.f32 0.0, %v5229
      %v5231 = vpop.f32.mrb[0].mxu0
      %v5232 = vpop.f32.mrb[0].mxu0
      %v5233 = vadd.f32 0.0, %v5232
      %v5234 = vpop.f32.mrb[0].mxu0
      %5235 = vdwg.mxu0
      %v5236 = vadd.f32 %v4788, %v5022
      %v5237 = vadd.f32 %v4789, %v5025
      %v5238 = vadd.f32 %v4790, %v5030
      %v5239 = vadd.f32 %v4791, %v5033
      %v5240 = vadd.f32 %v4792, %v5038
      %v5241 = vadd.f32 %v4793, %v5041
      %v5242 = vadd.f32 %v4794, %v5046
      %v5243 = vadd.f32 %v4795, %v5049
      %v5244 = vadd.f32 %v4796, %v5054
      %v5245 = vadd.f32 %v4797, %v5057
      %v5246 = vadd.f32 %v4798, %v5062
      %v5247 = vadd.f32 %v4799, %v5065
      %v5248 = vadd.f32 %v4800, %v5070
      %v5249 = vadd.f32 %v4801, %v5073
      %v5250 = vadd.f32 %v4802, %v5078
      %v5251 = vadd.f32 %v4803, %v5081
      %v5252 = vadd.f32 %v4804, %v5086
      %v5253 = vadd.f32 %v4805, %v5089
      %v5254 = vadd.f32 %v4806, %v5094
      %v5255 = vadd.f32 %v4807, %v5097
      %v5256 = vadd.f32 %v4808, %v5102
      %v5257 = vadd.f32 %v4809, %v5105
      %v5258 = vadd.f32 %v4810, %v5110
      %v5259 = vadd.f32 %v4811, %v5113
      %v5260 = vadd.f32 %v4812, %v5118
      %v5261 = vadd.f32 %v4813, %v5121
      %v5262 = vadd.f32 %v4814, %v5126
      %v5263 = vadd.f32 %v4815, %v5129
      %v5264 = vadd.f32 %v4816, %v5134
      %v5265 = vadd.f32 %v4817, %v5137
      %v5266 = vadd.f32 %v4818, %v5142
      %v5267 = vadd.f32 %v4819, %v5145
      %v5268 = vadd.f32 %v4820, %v5150
      %v5269 = vadd.f32 %v4821, %v5153
      %v5270 = vadd.f32 %v4822, %v5158
      %v5271 = vadd.f32 %v4823, %v5161
      %v5272 = vadd.f32 %v4824, %v5166
      %v5273 = vadd.f32 %v4825, %v5169
      %v5274 = vadd.f32 %v4826, %v5174
      %v5275 = vadd.f32 %v4827, %v5177
      %v5276 = vadd.f32 %v4828, %v5182
      %v5277 = vadd.f32 %v4829, %v5185
      %v5278 = vadd.f32 %v4830, %v5190
      %v5279 = vadd.f32 %v4831, %v5193
      %v5280 = vadd.f32 %v4832, %v5198
      %v5281 = vadd.f32 %v4833, %v5201
      %v5282 = vadd.f32 %v4834, %v5206
      %v5283 = vadd.f32 %v4835, %v5209
      %v5284 = vadd.f32 %v4836, %v5214
      %v5285 = vadd.f32 %v4837, %v5217
      %v5286 = vadd.f32 %v4838, %v5222
      %v5287 = vadd.f32 %v4839, %v5225
      %v5288 = vadd.f32 %v4840, %v5230
      %v5289 = vadd.f32 %v4841, %v5233
      %v5290 = vld [vmem:[#allocation3 + $0x1a] sm:$0xff]
      %v5291 = vld [vmem:[#allocation3 + $0x22] sm:$0xff]
      %v5292 = vld [vmem:[#allocation3 + $0x2a] sm:$0xff]
      %v5293 = vld [vmem:[#allocation3 + $0x32] sm:$0xff]
      %v5294 = vld [vmem:[#allocation3 + $0x3a] sm:$0xff]
      %v5295 = vld [vmem:[#allocation3 + $0x42] sm:$0xff]
      %v5296 = vld [vmem:[#allocation3 + $0x4a] sm:$0xff]
      %v5297 = vld [vmem:[#allocation3 + $0x52] sm:$0xff]
      %v5298 = vld [vmem:[#allocation3 + $0x5a] sm:$0xff]
      %v5299 = vld [vmem:[#allocation3 + $0x62] sm:$0xff]
      %v5300 = vld [vmem:[#allocation3 + $0x6a] sm:$0xff]
      %v5301 = vld [vmem:[#allocation3 + $0x72] sm:$0xff]
      %v5302 = vld [vmem:[#allocation3 + $0x7a] sm:$0xff]
      %v5303 = vld [vmem:[#allocation3 + $0x82] sm:$0xff]
      %v5304 = vld [vmem:[#allocation3 + $0x8a] sm:$0xff]
      %v5305 = vld [vmem:[#allocation3 + $0x92] sm:$0xff]
      %v5306 = vld [vmem:[#allocation3 + $0x9a] sm:$0xff]
      %v5307 = vld [vmem:[#allocation3 + $0xa2] sm:$0xff]
      %v5308 = vld [vmem:[#allocation3 + $0xaa] sm:$0xff]
      %v5309 = vld [vmem:[#allocation3 + $0xb2] sm:$0xff]
      %v5310 = vld [vmem:[#allocation3 + $0xba] sm:$0xff]
      %v5311 = vld [vmem:[#allocation3 + $0xc2] sm:$0xff]
      %v5312 = vld [vmem:[#allocation3 + $0xca] sm:$0xff]
      %v5313 = vld [vmem:[#allocation3 + $0xd2] sm:$0xff]
      %v5314 = vld [vmem:[#allocation3 + $0xda] sm:$0xff]
      %v5315 = vld [vmem:[#allocation3 + $0xe2] sm:$0xff]
      %v5316 = vld [vmem:[#allocation3 + $0xea] sm:$0xff]
      %v5317 = vld [vmem:[#allocation3 + $0xf2] sm:$0xff]
      %v5318 = vld [vmem:[#allocation3 + $0xfa] sm:$0xff]
      %v5319 = vld [vmem:[#allocation3 + $0x102] sm:$0xff]
      %v5320 = vld [vmem:[#allocation3 + $0x10a] sm:$0xff]
      %v5321 = vld [vmem:[#allocation3 + $0x112] sm:$0xff]
      %v5322 = vld [vmem:[#allocation3 + $0x11a] sm:$0xff]
      %v5323 = vld [vmem:[#allocation3 + $0x122] sm:$0xff]
      %v5324 = vld [vmem:[#allocation3 + $0x12a] sm:$0xff]
      %v5325 = vld [vmem:[#allocation3 + $0x132] sm:$0xff]
      %v5326 = vld [vmem:[#allocation3 + $0x13a] sm:$0xff]
      %v5327 = vld [vmem:[#allocation3 + $0x142] sm:$0xff]
      %v5328 = vld [vmem:[#allocation3 + $0x14a] sm:$0xff]
      %v5329 = vld [vmem:[#allocation3 + $0x152] sm:$0xff]
      %v5330 = vld [vmem:[#allocation3 + $0x15a] sm:$0xff]
      %v5331 = vld [vmem:[#allocation3 + $0x162] sm:$0xff]
      %v5332 = vld [vmem:[#allocation3 + $0x16a] sm:$0xff]
      %v5333 = vld [vmem:[#allocation3 + $0x172] sm:$0xff]
      %v5334 = vld [vmem:[#allocation3 + $0x17a] sm:$0xff]
      %v5335 = vld [vmem:[#allocation3 + $0x182] sm:$0xff]
      %v5336 = vld [vmem:[#allocation3 + $0x18a] sm:$0xff]
      %v5337 = vld [vmem:[#allocation3 + $0x192] sm:$0xff]
      %v5338 = vld [vmem:[#allocation3 + $0x19a] sm:$0xff]
      %v5339 = vld [vmem:[#allocation3 + $0x1a2] sm:$0xff]
      %v5340 = vld [vmem:[#allocation3 + $0x1aa] sm:$0xff]
      %v5341 = vld [vmem:[#allocation3 + $0x1b2] sm:$0xff]
      %v5342 = vld [vmem:[#allocation3 + $0x1ba] sm:$0xff]
      %v5343 = vld [vmem:[#allocation3 + $0x1c2] sm:$0xff]
      %v5344 = vpack.c.bf16 %v5291, %v5290
      %v5345 = vpack.c.bf16 %v5293, %v5292
      %v5346 = vpack.c.bf16 %v5295, %v5294
      %v5347 = vpack.c.bf16 %v5297, %v5296
      %v5348 = vpack.c.bf16 %v5299, %v5298
      %v5349 = vpack.c.bf16 %v5301, %v5300
      %v5350 = vpack.c.bf16 %v5303, %v5302
      %v5351 = vpack.c.bf16 %v5305, %v5304
      %v5352 = vpack.c.bf16 %v5307, %v5306
      %v5353 = vpack.c.bf16 %v5309, %v5308
      %v5354 = vpack.c.bf16 %v5311, %v5310
      %v5355 = vpack.c.bf16 %v5313, %v5312
      %v5356 = vpack.c.bf16 %v5315, %v5314
      %v5357 = vpack.c.bf16 %v5317, %v5316
      %v5358 = vpack.c.bf16 %v5319, %v5318
      %v5359 = vpack.c.bf16 %v5321, %v5320
      %v5360 = vpack.c.bf16 %v5323, %v5322
      %v5361 = vpack.c.bf16 %v5325, %v5324
      %v5362 = vpack.c.bf16 %v5327, %v5326
      %v5363 = vpack.c.bf16 %v5329, %v5328
      %v5364 = vpack.c.bf16 %v5331, %v5330
      %v5365 = vpack.c.bf16 %v5333, %v5332
      %v5366 = vpack.c.bf16 %v5335, %v5334
      %v5367 = vpack.c.bf16 %v5337, %v5336
      %v5368 = vpack.c.bf16 %v5339, %v5338
      %v5369 = vpack.c.bf16 %v5341, %v5340
      %v5370 = vpack.c.bf16 %v5343, %v5342
      %v5371 = vld [vmem:[%s5 + $0x140] sm:$0xf]
      %v5372 = vld [vmem:[%s5 + $0x144] sm:$0xf]
      %v5373 = vld [vmem:[%s5 + $0x148] sm:$0xf]
      %v5374 = vld [vmem:[%s5 + $0x14c] sm:$0xf]
      %v5375 = vld [vmem:[%s5 + $0x150] sm:$0xf]
      %v5376 = vld [vmem:[%s5 + $0x154] sm:$0xf]
      %v5377 = vld [vmem:[%s5 + $0x158] sm:$0xf]
      %v5378 = vld [vmem:[%s5 + $0x15c] sm:$0xf]
      %v5379 = vld [vmem:[%s5 + $0x160] sm:$0xf]
      %v5380 = vld [vmem:[%s5 + $0x164] sm:$0xf]
      %v5381 = vld [vmem:[%s5 + $0x168] sm:$0xf]
      %v5382 = vld [vmem:[%s5 + $0x16c] sm:$0xf]
      %v5383 = vld [vmem:[%s5 + $0x170] sm:$0xf]
      %v5384 = vld [vmem:[%s5 + $0x174] sm:$0xf]
      %v5385 = vld [vmem:[%s5 + $0x178] sm:$0xf]
      %v5386 = vld [vmem:[%s5 + $0x17c] sm:$0xf]
      %v5403 = vunpack.c.l.b16 %v5371
      %v5404 = vunpack.c.l.b16 %v5372
      %v5405 = vunpack.c.l.b16 %v5373
      %v5406 = vunpack.c.l.b16 %v5374
      %v5407 = vunpack.c.l.b16 %v5375
      %v5408 = vunpack.c.l.b16 %v5376
      %v5409 = vunpack.c.l.b16 %v5377
      %v5410 = vunpack.c.l.b16 %v5378
      %v5411 = vunpack.c.l.b16 %v5379
      %v5412 = vunpack.c.l.b16 %v5380
      %v5413 = vunpack.c.l.b16 %v5381
      %v5414 = vunpack.c.l.b16 %v5382
      %v5415 = vunpack.c.l.b16 %v5383
      %v5416 = vunpack.c.l.b16 %v5384
      %v5417 = vunpack.c.l.b16 %v5385
      %v5418 = vunpack.c.l.b16 %v5386
      %v5419 = vpack.c.b16 %v5404, %v5403
      %v5420 = vpack.c.b16 %v5406, %v5405
      %v5421 = vpack.c.b16 %v5408, %v5407
      %v5422 = vpack.c.b16 %v5410, %v5409
      %v5423 = vpack.c.b16 %v5412, %v5411
      %v5424 = vpack.c.b16 %v5414, %v5413
      %v5425 = vpack.c.b16 %v5416, %v5415
      %v5426 = vpack.c.b16 %v5418, %v5417
      %5435 = vmatprep.subr.bf16.mxu0 0
      %5436 = vmatpush1.bf16.msra.mxu0 %v5419
      %5437 = vmatprep.subr.bf16.mxu0 0
      %5438 = vmatpush1.bf16.msra.mxu0 %v5420
      %5439 = vmatprep.subr.bf16.mxu0 0
      %5440 = vmatpush1.bf16.msra.mxu0 %v5421
      %5441 = vmatprep.subr.bf16.mxu0 0
      %5442 = vmatpush1.bf16.msra.mxu0 %v5422
      %5443 = vmatprep.subr.bf16.mxu0 0
      %5444 = vmatpush1.bf16.msra.mxu0 %v5423
      %5445 = vmatprep.subr.bf16.mxu0 0
      %5446 = vmatpush1.bf16.msra.mxu0 %v5424
      %5447 = vmatprep.subr.bf16.mxu0 0
      %5448 = vmatpush1.bf16.msra.mxu0 %v5425
      %5449 = vmatprep.subr.bf16.mxu0 0
      %5450 = vmatpush1.bf16.msra.mxu0 %v5426
      %5451 = vmatprep.subr.bf16.mxu0 0
      %5452 = vmatpush1.bf16.msra.mxu0 0
      %5453 = vmatprep.subr.bf16.mxu0 0
      %5454 = vmatpush1.bf16.msra.mxu0 0
      %5455 = vmatprep.subr.bf16.mxu0 0
      %5456 = vmatpush1.bf16.msra.mxu0 0
      %5457 = vmatprep.subr.bf16.mxu0 0
      %5458 = vmatpush1.bf16.msra.mxu0 0
      %5459 = vmatprep.subr.bf16.mxu0 0
      %5460 = vmatpush1.bf16.msra.mxu0 0
      %5461 = vmatprep.subr.bf16.mxu0 0
      %5462 = vmatpush1.bf16.msra.mxu0 0
      %5463 = vmatprep.subr.bf16.mxu0 0
      %5464 = vmatpush1.bf16.msra.mxu0 0
      %5465 = vmatprep.subr.bf16.mxu0 0
      %5466 = vmatpush1.bf16.msra.mxu0 0
      %5467 = vmatprep.mubr.bf16.mxu0 0
      %5468 = vmatmul.mubr.bf16.gmra.mrb[0].mxu0 %v5344
      %v5469 = vpop.f32.mrb[0].mxu0
      %v5470 = vadd.f32 0.0, %v5469
      %v5471 = vpop.f32.mrb[0].mxu0
      %v5472 = vpop.f32.mrb[0].mxu0
      %v5473 = vadd.f32 0.0, %v5472
      %v5474 = vpop.f32.mrb[0].mxu0
      %5475 = vmatprep.mubr.bf16.mxu0 0
      %5476 = vmatmul.mubr.bf16.gmra.mrb[0].mxu0 %v5345
      %v5477 = vpop.f32.mrb[0].mxu0
      %v5478 = vadd.f32 0.0, %v5477
      %v5479 = vpop.f32.mrb[0].mxu0
      %v5480 = vpop.f32.mrb[0].mxu0
      %v5481 = vadd.f32 0.0, %v5480
      %v5482 = vpop.f32.mrb[0].mxu0
      %5483 = vmatprep.mubr.bf16.mxu0 0
      %5484 = vmatmul.mubr.bf16.gmra.mrb[0].mxu0 %v5346
      %v5485 = vpop.f32.mrb[0].mxu0
      %v5486 = vadd.f32 0.0, %v5485
      %v5487 = vpop.f32.mrb[0].mxu0
      %v5488 = vpop.f32.mrb[0].mxu0
      %v5489 = vadd.f32 0.0, %v5488
      %v5490 = vpop.f32.mrb[0].mxu0
      %5491 = vmatprep.mubr.bf16.mxu0 0
      %5492 = vmatmul.mubr.bf16.gmra.mrb[0].mxu0 %v5347
      %v5493 = vpop.f32.mrb[0].mxu0
      %v5494 = vadd.f32 0.0, %v5493
      %v5495 = vpop.f32.mrb[0].mxu0
      %v5496 = vpop.f32.mrb[0].mxu0
      %v5497 = vadd.f32 0.0, %v5496
      %v5498 = vpop.f32.mrb[0].mxu0
      %5499 = vmatprep.mubr.bf16.mxu0 0
      %5500 = vmatmul.mubr.bf16.gmra.mrb[0].mxu0 %v5348
      %v5501 = vpop.f32.mrb[0].mxu0
      %v5502 = vadd.f32 0.0, %v5501
      %v5503 = vpop.f32.mrb[0].mxu0
      %v5504 = vpop.f32.mrb[0].mxu0
      %v5505 = vadd.f32 0.0, %v5504
      %v5506 = vpop.f32.mrb[0].mxu0
      %5507 = vmatprep.mubr.bf16.mxu0 0
      %5508 = vmatmul.mubr.bf16.gmra.mrb[0].mxu0 %v5349
      %v5509 = vpop.f32.mrb[0].mxu0
      %v5510 = vadd.f32 0.0, %v5509
      %v5511 = vpop.f32.mrb[0].mxu0
      %v5512 = vpop.f32.mrb[0].mxu0
      %v5513 = vadd.f32 0.0, %v5512
      %v5514 = vpop.f32.mrb[0].mxu0
      %5515 = vmatprep.mubr.bf16.mxu0 0
      %5516 = vmatmul.mubr.bf16.gmra.mrb[0].mxu0 %v5350
      %v5517 = vpop.f32.mrb[0].mxu0
      %v5518 = vadd.f32 0.0, %v5517
      %v5519 = vpop.f32.mrb[0].mxu0
      %v5520 = vpop.f32.mrb[0].mxu0
      %v5521 = vadd.f32 0.0, %v5520
      %v5522 = vpop.f32.mrb[0].mxu0
      %5523 = vmatprep.mubr.bf16.mxu0 0
      %5524 = vmatmul.mubr.bf16.gmra.mrb[0].mxu0 %v5351
      %v5525 = vpop.f32.mrb[0].mxu0
      %v5526 = vadd.f32 0.0, %v5525
      %v5527 = vpop.f32.mrb[0].mxu0
      %v5528 = vpop.f32.mrb[0].mxu0
      %v5529 = vadd.f32 0.0, %v5528
      %v5530 = vpop.f32.mrb[0].mxu0
      %5531 = vmatprep.mubr.bf16.mxu0 0
      %5532 = vmatmul.mubr.bf16.gmra.mrb[0].mxu0 %v5352
      %v5533 = vpop.f32.mrb[0].mxu0
      %v5534 = vadd.f32 0.0, %v5533
      %v5535 = vpop.f32.mrb[0].mxu0
      %v5536 = vpop.f32.mrb[0].mxu0
      %v5537 = vadd.f32 0.0, %v5536
      %v5538 = vpop.f32.mrb[0].mxu0
      %5539 = vmatprep.mubr.bf16.mxu0 0
      %5540 = vmatmul.mubr.bf16.gmra.mrb[0].mxu0 %v5353
      %v5541 = vpop.f32.mrb[0].mxu0
      %v5542 = vadd.f32 0.0, %v5541
      %v5543 = vpop.f32.mrb[0].mxu0
      %v5544 = vpop.f32.mrb[0].mxu0
      %v5545 = vadd.f32 0.0, %v5544
      %v5546 = vpop.f32.mrb[0].mxu0
      %5547 = vmatprep.mubr.bf16.mxu0 0
      %5548 = vmatmul.mubr.bf16.gmra.mrb[0].mxu0 %v5354
      %v5549 = vpop.f32.mrb[0].mxu0
      %v5550 = vadd.f32 0.0, %v5549
      %v5551 = vpop.f32.mrb[0].mxu0
      %v5552 = vpop.f32.mrb[0].mxu0
      %v5553 = vadd.f32 0.0, %v5552
      %v5554 = vpop.f32.mrb[0].mxu0
      %5555 = vmatprep.mubr.bf16.mxu0 0
      %5556 = vmatmul.mubr.bf16.gmra.mrb[0].mxu0 %v5355
      %v5557 = vpop.f32.mrb[0].mxu0
      %v5558 = vadd.f32 0.0, %v5557
      %v5559 = vpop.f32.mrb[0].mxu0
      %v5560 = vpop.f32.mrb[0].mxu0
      %v5561 = vadd.f32 0.0, %v5560
      %v5562 = vpop.f32.mrb[0].mxu0
      %5563 = vmatprep.mubr.bf16.mxu0 0
      %5564 = vmatmul.mubr.bf16.gmra.mrb[0].mxu0 %v5356
      %v5565 = vpop.f32.mrb[0].mxu0
      %v5566 = vadd.f32 0.0, %v5565
      %v5567 = vpop.f32.mrb[0].mxu0
      %v5568 = vpop.f32.mrb[0].mxu0
      %v5569 = vadd.f32 0.0, %v5568
      %v5570 = vpop.f32.mrb[0].mxu0
      %5571 = vmatprep.mubr.bf16.mxu0 0
      %5572 = vmatmul.mubr.bf16.gmra.mrb[0].mxu0 %v5357
      %v5573 = vpop.f32.mrb[0].mxu0
      %v5574 = vadd.f32 0.0, %v5573
      %v5575 = vpop.f32.mrb[0].mxu0
      %v5576 = vpop.f32.mrb[0].mxu0
      %v5577 = vadd.f32 0.0, %v5576
      %v5578 = vpop.f32.mrb[0].mxu0
      %5579 = vmatprep.mubr.bf16.mxu0 0
      %5580 = vmatmul.mubr.bf16.gmra.mrb[0].mxu0 %v5358
      %v5581 = vpop.f32.mrb[0].mxu0
      %v5582 = vadd.f32 0.0, %v5581
      %v5583 = vpop.f32.mrb[0].mxu0
      %v5584 = vpop.f32.mrb[0].mxu0
      %v5585 = vadd.f32 0.0, %v5584
      %v5586 = vpop.f32.mrb[0].mxu0
      %5587 = vmatprep.mubr.bf16.mxu0 0
      %5588 = vmatmul.mubr.bf16.gmra.mrb[0].mxu0 %v5359
      %v5589 = vpop.f32.mrb[0].mxu0
      %v5590 = vadd.f32 0.0, %v5589
      %v5591 = vpop.f32.mrb[0].mxu0
      %v5592 = vpop.f32.mrb[0].mxu0
      %v5593 = vadd.f32 0.0, %v5592
      %v5594 = vpop.f32.mrb[0].mxu0
      %5595 = vmatprep.mubr.bf16.mxu0 0
      %5596 = vmatmul.mubr.bf16.gmra.mrb[0].mxu0 %v5360
      %v5597 = vpop.f32.mrb[0].mxu0
      %v5598 = vadd.f32 0.0, %v5597
      %v5599 = vpop.f32.mrb[0].mxu0
      %v5600 = vpop.f32.mrb[0].mxu0
      %v5601 = vadd.f32 0.0, %v5600
      %v5602 = vpop.f32.mrb[0].mxu0
      %5603 = vmatprep.mubr.bf16.mxu0 0
      %5604 = vmatmul.mubr.bf16.gmra.mrb[0].mxu0 %v5361
      %v5605 = vpop.f32.mrb[0].mxu0
      %v5606 = vadd.f32 0.0, %v5605
      %v5607 = vpop.f32.mrb[0].mxu0
      %v5608 = vpop.f32.mrb[0].mxu0
      %v5609 = vadd.f32 0.0, %v5608
      %v5610 = vpop.f32.mrb[0].mxu0
      %5611 = vmatprep.mubr.bf16.mxu0 0
      %5612 = vmatmul.mubr.bf16.gmra.mrb[0].mxu0 %v5362
      %v5613 = vpop.f32.mrb[0].mxu0
      %v5614 = vadd.f32 0.0, %v5613
      %v5615 = vpop.f32.mrb[0].mxu0
      %v5616 = vpop.f32.mrb[0].mxu0
      %v5617 = vadd.f32 0.0, %v5616
      %v5618 = vpop.f32.mrb[0].mxu0
      %5619 = vmatprep.mubr.bf16.mxu0 0
      %5620 = vmatmul.mubr.bf16.gmra.mrb[0].mxu0 %v5363
      %v5621 = vpop.f32.mrb[0].mxu0
      %v5622 = vadd.f32 0.0, %v5621
      %v5623 = vpop.f32.mrb[0].mxu0
      %v5624 = vpop.f32.mrb[0].mxu0
      %v5625 = vadd.f32 0.0, %v5624
      %v5626 = vpop.f32.mrb[0].mxu0
      %5627 = vmatprep.mubr.bf16.mxu0 0
      %5628 = vmatmul.mubr.bf16.gmra.mrb[0].mxu0 %v5364
      %v5629 = vpop.f32.mrb[0].mxu0
      %v5630 = vadd.f32 0.0, %v5629
      %v5631 = vpop.f32.mrb[0].mxu0
      %v5632 = vpop.f32.mrb[0].mxu0
      %v5633 = vadd.f32 0.0, %v5632
      %v5634 = vpop.f32.mrb[0].mxu0
      %5635 = vmatprep.mubr.bf16.mxu0 0
      %5636 = vmatmul.mubr.bf16.gmra.mrb[0].mxu0 %v5365
      %v5637 = vpop.f32.mrb[0].mxu0
      %v5638 = vadd.f32 0.0, %v5637
      %v5639 = vpop.f32.mrb[0].mxu0
      %v5640 = vpop.f32.mrb[0].mxu0
      %v5641 = vadd.f32 0.0, %v5640
      %v5642 = vpop.f32.mrb[0].mxu0
      %5643 = vmatprep.mubr.bf16.mxu0 0
      %5644 = vmatmul.mubr.bf16.gmra.mrb[0].mxu0 %v5366
      %v5645 = vpop.f32.mrb[0].mxu0
      %v5646 = vadd.f32 0.0, %v5645
      %v5647 = vpop.f32.mrb[0].mxu0
      %v5648 = vpop.f32.mrb[0].mxu0
      %v5649 = vadd.f32 0.0, %v5648
      %v5650 = vpop.f32.mrb[0].mxu0
      %5651 = vmatprep.mubr.bf16.mxu0 0
      %5652 = vmatmul.mubr.bf16.gmra.mrb[0].mxu0 %v5367
      %v5653 = vpop.f32.mrb[0].mxu0
      %v5654 = vadd.f32 0.0, %v5653
      %v5655 = vpop.f32.mrb[0].mxu0
      %v5656 = vpop.f32.mrb[0].mxu0
      %v5657 = vadd.f32 0.0, %v5656
      %v5658 = vpop.f32.mrb[0].mxu0
      %5659 = vmatprep.mubr.bf16.mxu0 0
      %5660 = vmatmul.mubr.bf16.gmra.mrb[0].mxu0 %v5368
      %v5661 = vpop.f32.mrb[0].mxu0
      %v5662 = vadd.f32 0.0, %v5661
      %v5663 = vpop.f32.mrb[0].mxu0
      %v5664 = vpop.f32.mrb[0].mxu0
      %v5665 = vadd.f32 0.0, %v5664
      %v5666 = vpop.f32.mrb[0].mxu0
      %5667 = vmatprep.mubr.bf16.mxu0 0
      %5668 = vmatmul.mubr.bf16.gmra.mrb[0].mxu0 %v5369
      %v5669 = vpop.f32.mrb[0].mxu0
      %v5670 = vadd.f32 0.0, %v5669
      %v5671 = vpop.f32.mrb[0].mxu0
      %v5672 = vpop.f32.mrb[0].mxu0
      %v5673 = vadd.f32 0.0, %v5672
      %v5674 = vpop.f32.mrb[0].mxu0
      %5675 = vmatprep.mubr.bf16.mxu0 0
      %5676 = vmatmul.mubr.bf16.gmra.mrb[0].mxu0 %v5370
      %v5677 = vpop.f32.mrb[0].mxu0
      %v5678 = vadd.f32 0.0, %v5677
      %v5679 = vpop.f32.mrb[0].mxu0
      %v5680 = vpop.f32.mrb[0].mxu0
      %v5681 = vadd.f32 0.0, %v5680
      %v5682 = vpop.f32.mrb[0].mxu0
      %5683 = vdwg.mxu0
      %v5684 = vadd.f32 %v5236, %v5470
      %v5685 = vadd.f32 %v5237, %v5473
      %v5686 = vadd.f32 %v5238, %v5478
      %v5687 = vadd.f32 %v5239, %v5481
      %v5688 = vadd.f32 %v5240, %v5486
      %v5689 = vadd.f32 %v5241, %v5489
      %v5690 = vadd.f32 %v5242, %v5494
      %v5691 = vadd.f32 %v5243, %v5497
      %v5692 = vadd.f32 %v5244, %v5502
      %v5693 = vadd.f32 %v5245, %v5505
      %v5694 = vadd.f32 %v5246, %v5510
      %v5695 = vadd.f32 %v5247, %v5513
      %v5696 = vadd.f32 %v5248, %v5518
      %v5697 = vadd.f32 %v5249, %v5521
      %v5698 = vadd.f32 %v5250, %v5526
      %v5699 = vadd.f32 %v5251, %v5529
      %v5700 = vadd.f32 %v5252, %v5534
      %v5701 = vadd.f32 %v5253, %v5537
      %v5702 = vadd.f32 %v5254, %v5542
      %v5703 = vadd.f32 %v5255, %v5545
      %v5704 = vadd.f32 %v5256, %v5550
      %v5705 = vadd.f32 %v5257, %v5553
      %v5706 = vadd.f32 %v5258, %v5558
      %v5707 = vadd.f32 %v5259, %v5561
      %v5708 = vadd.f32 %v5260, %v5566
      %v5709 = vadd.f32 %v5261, %v5569
      %v5710 = vadd.f32 %v5262, %v5574
      %v5711 = vadd.f32 %v5263, %v5577
      %v5712 = vadd.f32 %v5264, %v5582
      %v5713 = vadd.f32 %v5265, %v5585
      %v5714 = vadd.f32 %v5266, %v5590
      %v5715 = vadd.f32 %v5267, %v5593
      %v5716 = vadd.f32 %v5268, %v5598
      %v5717 = vadd.f32 %v5269, %v5601
      %v5718 = vadd.f32 %v5270, %v5606
      %v5719 = vadd.f32 %v5271, %v5609
      %v5720 = vadd.f32 %v5272, %v5614
      %v5721 = vadd.f32 %v5273, %v5617
      %v5722 = vadd.f32 %v5274, %v5622
      %v5723 = vadd.f32 %v5275, %v5625
      %v5724 = vadd.f32 %v5276, %v5630
      %v5725 = vadd.f32 %v5277, %v5633
      %v5726 = vadd.f32 %v5278, %v5638
      %v5727 = vadd.f32 %v5279, %v5641
      %v5728 = vadd.f32 %v5280, %v5646
      %v5729 = vadd.f32 %v5281, %v5649
      %v5730 = vadd.f32 %v5282, %v5654
      %v5731 = vadd.f32 %v5283, %v5657
      %v5732 = vadd.f32 %v5284, %v5662
      %v5733 = vadd.f32 %v5285, %v5665
      %v5734 = vadd.f32 %v5286, %v5670
      %v5735 = vadd.f32 %v5287, %v5673
      %v5736 = vadd.f32 %v5288, %v5678
      %v5737 = vadd.f32 %v5289, %v5681
      %v5738 = vld [vmem:[#allocation3 + $0x30] sm:$0xff]
      %v5739 = vld [vmem:[#allocation3 + $0x38] sm:$0xff]
      %v5740 = vld [vmem:[#allocation3 + $0x40] sm:$0xff]
      %v5741 = vld [vmem:[#allocation3 + $0x48] sm:$0xff]
      %v5742 = vld [vmem:[#allocation3 + $0x50] sm:$0xff]
      %v5743 = vld [vmem:[#allocation3 + $0x58] sm:$0xff]
      %v5744 = vld [vmem:[#allocation3 + $0x60] sm:$0xff]
      %v5745 = vld [vmem:[#allocation3 + $0x68] sm:$0xff]
      %v5746 = vld [vmem:[#allocation3 + $0x70] sm:$0xff]
      %v5747 = vld [vmem:[#allocation3 + $0x78] sm:$0xff]
      %v5748 = vld [vmem:[#allocation3 + $0x80] sm:$0xff]
      %v5749 = vld [vmem:[#allocation3 + $0x88] sm:$0xff]
      %v5750 = vld [vmem:[#allocation3 + $0x90] sm:$0xff]
      %v5751 = vld [vmem:[#allocation3 + $0x98] sm:$0xff]
      %v5752 = vld [vmem:[#allocation3 + $0xa0] sm:$0xff]
      %v5753 = vld [vmem:[#allocation3 + $0xa8] sm:$0xff]
      %v5754 = vld [vmem:[#allocation3 + $0xb0] sm:$0xff]
      %v5755 = vld [vmem:[#allocation3 + $0xb8] sm:$0xff]
      %v5756 = vld [vmem:[#allocation3 + $0xc0] sm:$0xff]
      %v5757 = vld [vmem:[#allocation3 + $0xc8] sm:$0xff]
      %v5758 = vld [vmem:[#allocation3 + $0xd0] sm:$0xff]
      %v5759 = vld [vmem:[#allocation3 + $0xd8] sm:$0xff]
      %v5760 = vld [vmem:[#allocation3 + $0xe0] sm:$0xff]
      %v5761 = vld [vmem:[#allocation3 + $0xe8] sm:$0xff]
      %v5762 = vld [vmem:[#allocation3 + $0xf0] sm:$0xff]
      %v5763 = vld [vmem:[#allocation3 + $0xf8] sm:$0xff]
      %v5764 = vld [vmem:[#allocation3 + $0x100] sm:$0xff]
      %v5765 = vld [vmem:[#allocation3 + $0x108] sm:$0xff]
      %v5766 = vld [vmem:[#allocation3 + $0x110] sm:$0xff]
      %v5767 = vld [vmem:[#allocation3 + $0x118] sm:$0xff]
      %v5768 = vld [vmem:[#allocation3 + $0x120] sm:$0xff]
      %v5769 = vld [vmem:[#allocation3 + $0x128] sm:$0xff]
      %v5770 = vld [vmem:[#allocation3 + $0x130] sm:$0xff]
      %v5771 = vld [vmem:[#allocation3 + $0x138] sm:$0xff]
      %v5772 = vld [vmem:[#allocation3 + $0x140] sm:$0xff]
      %v5773 = vld [vmem:[#allocation3 + $0x148] sm:$0xff]
      %v5774 = vld [vmem:[#allocation3 + $0x150] sm:$0xff]
      %v5775 = vld [vmem:[#allocation3 + $0x158] sm:$0xff]
      %v5776 = vld [vmem:[#allocation3 + $0x160] sm:$0xff]
      %v5777 = vld [vmem:[#allocation3 + $0x168] sm:$0xff]
      %v5778 = vld [vmem:[#allocation3 + $0x170] sm:$0xff]
      %v5779 = vld [vmem:[#allocation3 + $0x178] sm:$0xff]
      %v5780 = vld [vmem:[#allocation3 + $0x180] sm:$0xff]
      %v5781 = vld [vmem:[#allocation3 + $0x188] sm:$0xff]
      %v5782 = vld [vmem:[#allocation3 + $0x190] sm:$0xff]
      %v5783 = vld [vmem:[#allocation3 + $0x198] sm:$0xff]
      %v5784 = vld [vmem:[#allocation3 + $0x1a0] sm:$0xff]
      %v5785 = vld [vmem:[#allocation3 + $0x1a8] sm:$0xff]
      %v5786 = vld [vmem:[#allocation3 + $0x1b0] sm:$0xff]
      %v5787 = vld [vmem:[#allocation3 + $0x1b8] sm:$0xff]
      %v5788 = vld [vmem:[#allocation3 + $0x1c0] sm:$0xff]
      %v5789 = vld [vmem:[#allocation3 + $0x1c8] sm:$0xff]
      %v5790 = vld [vmem:[#allocation3 + $0x1d0] sm:$0xff]
      %v5791 = vld [vmem:[#allocation3 + $0x1d8] sm:$0xff]
      %v5792 = vpack.c.bf16 %v5739, %v5738
      %v5793 = vpack.c.bf16 %v5741, %v5740
      %v5794 = vpack.c.bf16 %v5743, %v5742
      %v5795 = vpack.c.bf16 %v5745, %v5744
      %v5796 = vpack.c.bf16 %v5747, %v5746
      %v5797 = vpack.c.bf16 %v5749, %v5748
      %v5798 = vpack.c.bf16 %v5751, %v5750
      %v5799 = vpack.c.bf16 %v5753, %v5752
      %v5800 = vpack.c.bf16 %v5755, %v5754
      %v5801 = vpack.c.bf16 %v5757, %v5756
      %v5802 = vpack.c.bf16 %v5759, %v5758
      %v5803 = vpack.c.bf16 %v5761, %v5760
      %v5804 = vpack.c.bf16 %v5763, %v5762
      %v5805 = vpack.c.bf16 %v5765, %v5764
      %v5806 = vpack.c.bf16 %v5767, %v5766
      %v5807 = vpack.c.bf16 %v5769, %v5768
      %v5808 = vpack.c.bf16 %v5771, %v5770
      %v5809 = vpack.c.bf16 %v5773, %v5772
      %v5810 = vpack.c.bf16 %v5775, %v5774
      %v5811 = vpack.c.bf16 %v5777, %v5776
      %v5812 = vpack.c.bf16 %v5779, %v5778
      %v5813 = vpack.c.bf16 %v5781, %v5780
      %v5814 = vpack.c.bf16 %v5783, %v5782
      %v5815 = vpack.c.bf16 %v5785, %v5784
      %v5816 = vpack.c.bf16 %v5787, %v5786
      %v5817 = vpack.c.bf16 %v5789, %v5788
      %v5818 = vpack.c.bf16 %v5791, %v5790
      %v5819 = vld [vmem:[%s5 + $0x180] sm:$0xf]
      %v5820 = vld [vmem:[%s5 + $0x184] sm:$0xf]
      %v5821 = vld [vmem:[%s5 + $0x188] sm:$0xf]
      %v5822 = vld [vmem:[%s5 + $0x18c] sm:$0xf]
      %v5823 = vld [vmem:[%s5 + $0x190] sm:$0xf]
      %v5824 = vld [vmem:[%s5 + $0x194] sm:$0xf]
      %v5825 = vld [vmem:[%s5 + $0x198] sm:$0xf]
      %v5826 = vld [vmem:[%s5 + $0x19c] sm:$0xf]
      %v5827 = vld [vmem:[%s5 + $0x1a0] sm:$0xf]
      %v5828 = vld [vmem:[%s5 + $0x1a4] sm:$0xf]
      %v5829 = vld [vmem:[%s5 + $0x1a8] sm:$0xf]
      %v5830 = vld [vmem:[%s5 + $0x1ac] sm:$0xf]
      %v5831 = vld [vmem:[%s5 + $0x1b0] sm:$0xf]
      %v5832 = vld [vmem:[%s5 + $0x1b4] sm:$0xf]
      %v5833 = vld [vmem:[%s5 + $0x1b8] sm:$0xf]
      %v5834 = vld [vmem:[%s5 + $0x1bc] sm:$0xf]
      %v5851 = vunpack.c.l.b16 %v5819
      %v5852 = vunpack.c.l.b16 %v5820
      %v5853 = vunpack.c.l.b16 %v5821
      %v5854 = vunpack.c.l.b16 %v5822
      %v5855 = vunpack.c.l.b16 %v5823
      %v5856 = vunpack.c.l.b16 %v5824
      %v5857 = vunpack.c.l.b16 %v5825
      %v5858 = vunpack.c.l.b16 %v5826
      %v5859 = vunpack.c.l.b16 %v5827
      %v5860 = vunpack.c.l.b16 %v5828
      %v5861 = vunpack.c.l.b16 %v5829
      %v5862 = vunpack.c.l.b16 %v5830
      %v5863 = vunpack.c.l.b16 %v5831
      %v5864 = vunpack.c.l.b16 %v5832
      %v5865 = vunpack.c.l.b16 %v5833
      %v5866 = vunpack.c.l.b16 %v5834
      %v5867 = vpack.c.b16 %v5852, %v5851
      %v5868 = vpack.c.b16 %v5854, %v5853
      %v5869 = vpack.c.b16 %v5856, %v5855
      %v5870 = vpack.c.b16 %v5858, %v5857
      %v5871 = vpack.c.b16 %v5860, %v5859
      %v5872 = vpack.c.b16 %v5862, %v5861
      %v5873 = vpack.c.b16 %v5864, %v5863
      %v5874 = vpack.c.b16 %v5866, %v5865
      %5883 = vmatprep.subr.bf16.mxu0 0
      %5884 = vmatpush1.bf16.msra.mxu0 %v5867
      %5885 = vmatprep.subr.bf16.mxu0 0
      %5886 = vmatpush1.bf16.msra.mxu0 %v5868
      %5887 = vmatprep.subr.bf16.mxu0 0
      %5888 = vmatpush1.bf16.msra.mxu0 %v5869
      %5889 = vmatprep.subr.bf16.mxu0 0
      %5890 = vmatpush1.bf16.msra.mxu0 %v5870
      %5891 = vmatprep.subr.bf16.mxu0 0
      %5892 = vmatpush1.bf16.msra.mxu0 %v5871
      %5893 = vmatprep.subr.bf16.mxu0 0
      %5894 = vmatpush1.bf16.msra.mxu0 %v5872
      %5895 = vmatprep.subr.bf16.mxu0 0
      %5896 = vmatpush1.bf16.msra.mxu0 %v5873
      %5897 = vmatprep.subr.bf16.mxu0 0
      %5898 = vmatpush1.bf16.msra.mxu0 %v5874
      %5899 = vmatprep.subr.bf16.mxu0 0
      %5900 = vmatpush1.bf16.msra.mxu0 0
      %5901 = vmatprep.subr.bf16.mxu0 0
      %5902 = vmatpush1.bf16.msra.mxu0 0
      %5903 = vmatprep.subr.bf16.mxu0 0
      %5904 = vmatpush1.bf16.msra.mxu0 0
      %5905 = vmatprep.subr.bf16.mxu0 0
      %5906 = vmatpush1.bf16.msra.mxu0 0
      %5907 = vmatprep.subr.bf16.mxu0 0
      %5908 = vmatpush1.bf16.msra.mxu0 0
      %5909 = vmatprep.subr.bf16.mxu0 0
      %5910 = vmatpush1.bf16.msra.mxu0 0
      %5911 = vmatprep.subr.bf16.mxu0 0
      %5912 = vmatpush1.bf16.msra.mxu0 0
      %5913 = vmatprep.subr.bf16.mxu0 0
      %5914 = vmatpush1.bf16.msra.mxu0 0
      %5915 = vmatprep.mubr.bf16.mxu0 0
      %5916 = vmatmul.mubr.bf16.gmra.mrb[0].mxu0 %v5792
      %v5917 = vpop.f32.mrb[0].mxu0
      %v5918 = vadd.f32 0.0, %v5917
      %v5919 = vpop.f32.mrb[0].mxu0
      %v5920 = vpop.f32.mrb[0].mxu0
      %v5921 = vadd.f32 0.0, %v5920
      %v5922 = vpop.f32.mrb[0].mxu0
      %5923 = vmatprep.mubr.bf16.mxu0 0
      %5924 = vmatmul.mubr.bf16.gmra.mrb[0].mxu0 %v5793
      %v5925 = vpop.f32.mrb[0].mxu0
      %v5926 = vadd.f32 0.0, %v5925
      %v5927 = vpop.f32.mrb[0].mxu0
      %v5928 = vpop.f32.mrb[0].mxu0
      %v5929 = vadd.f32 0.0, %v5928
      %v5930 = vpop.f32.mrb[0].mxu0
      %5931 = vmatprep.mubr.bf16.mxu0 0
      %5932 = vmatmul.mubr.bf16.gmra.mrb[0].mxu0 %v5794
      %v5933 = vpop.f32.mrb[0].mxu0
      %v5934 = vadd.f32 0.0, %v5933
      %v5935 = vpop.f32.mrb[0].mxu0
      %v5936 = vpop.f32.mrb[0].mxu0
      %v5937 = vadd.f32 0.0, %v5936
      %v5938 = vpop.f32.mrb[0].mxu0
      %5939 = vmatprep.mubr.bf16.mxu0 0
      %5940 = vmatmul.mubr.bf16.gmra.mrb[0].mxu0 %v5795
      %v5941 = vpop.f32.mrb[0].mxu0
      %v5942 = vadd.f32 0.0, %v5941
      %v5943 = vpop.f32.mrb[0].mxu0
      %v5944 = vpop.f32.mrb[0].mxu0
      %v5945 = vadd.f32 0.0, %v5944
      %v5946 = vpop.f32.mrb[0].mxu0
      %5947 = vmatprep.mubr.bf16.mxu0 0
      %5948 = vmatmul.mubr.bf16.gmra.mrb[0].mxu0 %v5796
      %v5949 = vpop.f32.mrb[0].mxu0
      %v5950 = vadd.f32 0.0, %v5949
      %v5951 = vpop.f32.mrb[0].mxu0
      %v5952 = vpop.f32.mrb[0].mxu0
      %v5953 = vadd.f32 0.0, %v5952
      %v5954 = vpop.f32.mrb[0].mxu0
      %5955 = vmatprep.mubr.bf16.mxu0 0
      %5956 = vmatmul.mubr.bf16.gmra.mrb[0].mxu0 %v5797
      %v5957 = vpop.f32.mrb[0].mxu0
      %v5958 = vadd.f32 0.0, %v5957
      %v5959 = vpop.f32.mrb[0].mxu0
      %v5960 = vpop.f32.mrb[0].mxu0
      %v5961 = vadd.f32 0.0, %v5960
      %v5962 = vpop.f32.mrb[0].mxu0
      %5963 = vmatprep.mubr.bf16.mxu0 0
      %5964 = vmatmul.mubr.bf16.gmra.mrb[0].mxu0 %v5798
      %v5965 = vpop.f32.mrb[0].mxu0
      %v5966 = vadd.f32 0.0, %v5965
      %v5967 = vpop.f32.mrb[0].mxu0
      %v5968 = vpop.f32.mrb[0].mxu0
      %v5969 = vadd.f32 0.0, %v5968
      %v5970 = vpop.f32.mrb[0].mxu0
      %5971 = vmatprep.mubr.bf16.mxu0 0
      %5972 = vmatmul.mubr.bf16.gmra.mrb[0].mxu0 %v5799
      %v5973 = vpop.f32.mrb[0].mxu0
      %v5974 = vadd.f32 0.0, %v5973
      %v5975 = vpop.f32.mrb[0].mxu0
      %v5976 = vpop.f32.mrb[0].mxu0
      %v5977 = vadd.f32 0.0, %v5976
      %v5978 = vpop.f32.mrb[0].mxu0
      %5979 = vmatprep.mubr.bf16.mxu0 0
      %5980 = vmatmul.mubr.bf16.gmra.mrb[0].mxu0 %v5800
      %v5981 = vpop.f32.mrb[0].mxu0
      %v5982 = vadd.f32 0.0, %v5981
      %v5983 = vpop.f32.mrb[0].mxu0
      %v5984 = vpop.f32.mrb[0].mxu0
      %v5985 = vadd.f32 0.0, %v5984
      %v5986 = vpop.f32.mrb[0].mxu0
      %5987 = vmatprep.mubr.bf16.mxu0 0
      %5988 = vmatmul.mubr.bf16.gmra.mrb[0].mxu0 %v5801
      %v5989 = vpop.f32.mrb[0].mxu0
      %v5990 = vadd.f32 0.0, %v5989
      %v5991 = vpop.f32.mrb[0].mxu0
      %v5992 = vpop.f32.mrb[0].mxu0
      %v5993 = vadd.f32 0.0, %v5992
      %v5994 = vpop.f32.mrb[0].mxu0
      %5995 = vmatprep.mubr.bf16.mxu0 0
      %5996 = vmatmul.mubr.bf16.gmra.mrb[0].mxu0 %v5802
      %v5997 = vpop.f32.mrb[0].mxu0
      %v5998 = vadd.f32 0.0, %v5997
      %v5999 = vpop.f32.mrb[0].mxu0
      %v6000 = vpop.f32.mrb[0].mxu0
      %v6001 = vadd.f32 0.0, %v6000
      %v6002 = vpop.f32.mrb[0].mxu0
      %6003 = vmatprep.mubr.bf16.mxu0 0
      %6004 = vmatmul.mubr.bf16.gmra.mrb[0].mxu0 %v5803
      %v6005 = vpop.f32.mrb[0].mxu0
      %v6006 = vadd.f32 0.0, %v6005
      %v6007 = vpop.f32.mrb[0].mxu0
      %v6008 = vpop.f32.mrb[0].mxu0
      %v6009 = vadd.f32 0.0, %v6008
      %v6010 = vpop.f32.mrb[0].mxu0
      %6011 = vmatprep.mubr.bf16.mxu0 0
      %6012 = vmatmul.mubr.bf16.gmra.mrb[0].mxu0 %v5804
      %v6013 = vpop.f32.mrb[0].mxu0
      %v6014 = vadd.f32 0.0, %v6013
      %v6015 = vpop.f32.mrb[0].mxu0
      %v6016 = vpop.f32.mrb[0].mxu0
      %v6017 = vadd.f32 0.0, %v6016
      %v6018 = vpop.f32.mrb[0].mxu0
      %6019 = vmatprep.mubr.bf16.mxu0 0
      %6020 = vmatmul.mubr.bf16.gmra.mrb[0].mxu0 %v5805
      %v6021 = vpop.f32.mrb[0].mxu0
      %v6022 = vadd.f32 0.0, %v6021
      %v6023 = vpop.f32.mrb[0].mxu0
      %v6024 = vpop.f32.mrb[0].mxu0
      %v6025 = vadd.f32 0.0, %v6024
      %v6026 = vpop.f32.mrb[0].mxu0
      %6027 = vmatprep.mubr.bf16.mxu0 0
      %6028 = vmatmul.mubr.bf16.gmra.mrb[0].mxu0 %v5806
      %v6029 = vpop.f32.mrb[0].mxu0
      %v6030 = vadd.f32 0.0, %v6029
      %v6031 = vpop.f32.mrb[0].mxu0
      %v6032 = vpop.f32.mrb[0].mxu0
      %v6033 = vadd.f32 0.0, %v6032
      %v6034 = vpop.f32.mrb[0].mxu0
      %6035 = vmatprep.mubr.bf16.mxu0 0
      %6036 = vmatmul.mubr.bf16.gmra.mrb[0].mxu0 %v5807
      %v6037 = vpop.f32.mrb[0].mxu0
      %v6038 = vadd.f32 0.0, %v6037
      %v6039 = vpop.f32.mrb[0].mxu0
      %v6040 = vpop.f32.mrb[0].mxu0
      %v6041 = vadd.f32 0.0, %v6040
      %v6042 = vpop.f32.mrb[0].mxu0
      %6043 = vmatprep.mubr.bf16.mxu0 0
      %6044 = vmatmul.mubr.bf16.gmra.mrb[0].mxu0 %v5808
      %v6045 = vpop.f32.mrb[0].mxu0
      %v6046 = vadd.f32 0.0, %v6045
      %v6047 = vpop.f32.mrb[0].mxu0
      %v6048 = vpop.f32.mrb[0].mxu0
      %v6049 = vadd.f32 0.0, %v6048
      %v6050 = vpop.f32.mrb[0].mxu0
      %6051 = vmatprep.mubr.bf16.mxu0 0
      %6052 = vmatmul.mubr.bf16.gmra.mrb[0].mxu0 %v5809
      %v6053 = vpop.f32.mrb[0].mxu0
      %v6054 = vadd.f32 0.0, %v6053
      %v6055 = vpop.f32.mrb[0].mxu0
      %v6056 = vpop.f32.mrb[0].mxu0
      %v6057 = vadd.f32 0.0, %v6056
      %v6058 = vpop.f32.mrb[0].mxu0
      %6059 = vmatprep.mubr.bf16.mxu0 0
      %6060 = vmatmul.mubr.bf16.gmra.mrb[0].mxu0 %v5810
      %v6061 = vpop.f32.mrb[0].mxu0
      %v6062 = vadd.f32 0.0, %v6061
      %v6063 = vpop.f32.mrb[0].mxu0
      %v6064 = vpop.f32.mrb[0].mxu0
      %v6065 = vadd.f32 0.0, %v6064
      %v6066 = vpop.f32.mrb[0].mxu0
      %6067 = vmatprep.mubr.bf16.mxu0 0
      %6068 = vmatmul.mubr.bf16.gmra.mrb[0].mxu0 %v5811
      %v6069 = vpop.f32.mrb[0].mxu0
      %v6070 = vadd.f32 0.0, %v6069
      %v6071 = vpop.f32.mrb[0].mxu0
      %v6072 = vpop.f32.mrb[0].mxu0
      %v6073 = vadd.f32 0.0, %v6072
      %v6074 = vpop.f32.mrb[0].mxu0
      %6075 = vmatprep.mubr.bf16.mxu0 0
      %6076 = vmatmul.mubr.bf16.gmra.mrb[0].mxu0 %v5812
      %v6077 = vpop.f32.mrb[0].mxu0
      %v6078 = vadd.f32 0.0, %v6077
      %v6079 = vpop.f32.mrb[0].mxu0
      %v6080 = vpop.f32.mrb[0].mxu0
      %v6081 = vadd.f32 0.0, %v6080
      %v6082 = vpop.f32.mrb[0].mxu0
      %6083 = vmatprep.mubr.bf16.mxu0 0
      %6084 = vmatmul.mubr.bf16.gmra.mrb[0].mxu0 %v5813
      %v6085 = vpop.f32.mrb[0].mxu0
      %v6086 = vadd.f32 0.0, %v6085
      %v6087 = vpop.f32.mrb[0].mxu0
      %v6088 = vpop.f32.mrb[0].mxu0
      %v6089 = vadd.f32 0.0, %v6088
      %v6090 = vpop.f32.mrb[0].mxu0
      %6091 = vmatprep.mubr.bf16.mxu0 0
      %6092 = vmatmul.mubr.bf16.gmra.mrb[0].mxu0 %v5814
      %v6093 = vpop.f32.mrb[0].mxu0
      %v6094 = vadd.f32 0.0, %v6093
      %v6095 = vpop.f32.mrb[0].mxu0
      %v6096 = vpop.f32.mrb[0].mxu0
      %v6097 = vadd.f32 0.0, %v6096
      %v6098 = vpop.f32.mrb[0].mxu0
      %6099 = vmatprep.mubr.bf16.mxu0 0
      %6100 = vmatmul.mubr.bf16.gmra.mrb[0].mxu0 %v5815
      %v6101 = vpop.f32.mrb[0].mxu0
      %v6102 = vadd.f32 0.0, %v6101
      %v6103 = vpop.f32.mrb[0].mxu0
      %v6104 = vpop.f32.mrb[0].mxu0
      %v6105 = vadd.f32 0.0, %v6104
      %v6106 = vpop.f32.mrb[0].mxu0
      %6107 = vmatprep.mubr.bf16.mxu0 0
      %6108 = vmatmul.mubr.bf16.gmra.mrb[0].mxu0 %v5816
      %v6109 = vpop.f32.mrb[0].mxu0
      %v6110 = vadd.f32 0.0, %v6109
      %v6111 = vpop.f32.mrb[0].mxu0
      %v6112 = vpop.f32.mrb[0].mxu0
      %v6113 = vadd.f32 0.0, %v6112
      %v6114 = vpop.f32.mrb[0].mxu0
      %6115 = vmatprep.mubr.bf16.mxu0 0
      %6116 = vmatmul.mubr.bf16.gmra.mrb[0].mxu0 %v5817
      %v6117 = vpop.f32.mrb[0].mxu0
      %v6118 = vadd.f32 0.0, %v6117
      %v6119 = vpop.f32.mrb[0].mxu0
      %v6120 = vpop.f32.mrb[0].mxu0
      %v6121 = vadd.f32 0.0, %v6120
      %v6122 = vpop.f32.mrb[0].mxu0
      %6123 = vmatprep.mubr.bf16.mxu0 0
      %6124 = vmatmul.mubr.bf16.gmra.mrb[0].mxu0 %v5818
      %v6125 = vpop.f32.mrb[0].mxu0
      %v6126 = vadd.f32 0.0, %v6125
      %v6127 = vpop.f32.mrb[0].mxu0
      %v6128 = vpop.f32.mrb[0].mxu0
      %v6129 = vadd.f32 0.0, %v6128
      %v6130 = vpop.f32.mrb[0].mxu0
      %6131 = vdwg.mxu0
      %v6132 = vadd.f32 %v5684, %v5918
      %v6133 = vadd.f32 %v5685, %v5921
      %v6134 = vadd.f32 %v5686, %v5926
      %v6135 = vadd.f32 %v5687, %v5929
      %v6136 = vadd.f32 %v5688, %v5934
      %v6137 = vadd.f32 %v5689, %v5937
      %v6138 = vadd.f32 %v5690, %v5942
      %v6139 = vadd.f32 %v5691, %v5945
      %v6140 = vadd.f32 %v5692, %v5950
      %v6141 = vadd.f32 %v5693, %v5953
      %v6142 = vadd.f32 %v5694, %v5958
      %v6143 = vadd.f32 %v5695, %v5961
      %v6144 = vadd.f32 %v5696, %v5966
      %v6145 = vadd.f32 %v5697, %v5969
      %v6146 = vadd.f32 %v5698, %v5974
      %v6147 = vadd.f32 %v5699, %v5977
      %v6148 = vadd.f32 %v5700, %v5982
      %v6149 = vadd.f32 %v5701, %v5985
      %v6150 = vadd.f32 %v5702, %v5990
      %v6151 = vadd.f32 %v5703, %v5993
      %v6152 = vadd.f32 %v5704, %v5998
      %v6153 = vadd.f32 %v5705, %v6001
      %v6154 = vadd.f32 %v5706, %v6006
      %v6155 = vadd.f32 %v5707, %v6009
      %v6156 = vadd.f32 %v5708, %v6014
      %v6157 = vadd.f32 %v5709, %v6017
      %v6158 = vadd.f32 %v5710, %v6022
      %v6159 = vadd.f32 %v5711, %v6025
      %v6160 = vadd.f32 %v5712, %v6030
      %v6161 = vadd.f32 %v5713, %v6033
      %v6162 = vadd.f32 %v5714, %v6038
      %v6163 = vadd.f32 %v5715, %v6041
      %v6164 = vadd.f32 %v5716, %v6046
      %v6165 = vadd.f32 %v5717, %v6049
      %v6166 = vadd.f32 %v5718, %v6054
      %v6167 = vadd.f32 %v5719, %v6057
      %v6168 = vadd.f32 %v5720, %v6062
      %v6169 = vadd.f32 %v5721, %v6065
      %v6170 = vadd.f32 %v5722, %v6070
      %v6171 = vadd.f32 %v5723, %v6073
      %v6172 = vadd.f32 %v5724, %v6078
      %v6173 = vadd.f32 %v5725, %v6081
      %v6174 = vadd.f32 %v5726, %v6086
      %v6175 = vadd.f32 %v5727, %v6089
      %v6176 = vadd.f32 %v5728, %v6094
      %v6177 = vadd.f32 %v5729, %v6097
      %v6178 = vadd.f32 %v5730, %v6102
      %v6179 = vadd.f32 %v5731, %v6105
      %v6180 = vadd.f32 %v5732, %v6110
      %v6181 = vadd.f32 %v5733, %v6113
      %v6182 = vadd.f32 %v5734, %v6118
      %v6183 = vadd.f32 %v5735, %v6121
      %v6184 = vadd.f32 %v5736, %v6126
      %v6185 = vadd.f32 %v5737, %v6129
      %v6186 = vld [vmem:[#allocation3 + $0x31] sm:$0xff]
      %v6187 = vld [vmem:[#allocation3 + $0x39] sm:$0xff]
      %v6188 = vld [vmem:[#allocation3 + $0x41] sm:$0xff]
      %v6189 = vld [vmem:[#allocation3 + $0x49] sm:$0xff]
      %v6190 = vld [vmem:[#allocation3 + $0x51] sm:$0xff]
      %v6191 = vld [vmem:[#allocation3 + $0x59] sm:$0xff]
      %v6192 = vld [vmem:[#allocation3 + $0x61] sm:$0xff]
      %v6193 = vld [vmem:[#allocation3 + $0x69] sm:$0xff]
      %v6194 = vld [vmem:[#allocation3 + $0x71] sm:$0xff]
      %v6195 = vld [vmem:[#allocation3 + $0x79] sm:$0xff]
      %v6196 = vld [vmem:[#allocation3 + $0x81] sm:$0xff]
      %v6197 = vld [vmem:[#allocation3 + $0x89] sm:$0xff]
      %v6198 = vld [vmem:[#allocation3 + $0x91] sm:$0xff]
      %v6199 = vld [vmem:[#allocation3 + $0x99] sm:$0xff]
      %v6200 = vld [vmem:[#allocation3 + $0xa1] sm:$0xff]
      %v6201 = vld [vmem:[#allocation3 + $0xa9] sm:$0xff]
      %v6202 = vld [vmem:[#allocation3 + $0xb1] sm:$0xff]
      %v6203 = vld [vmem:[#allocation3 + $0xb9] sm:$0xff]
      %v6204 = vld [vmem:[#allocation3 + $0xc1] sm:$0xff]
      %v6205 = vld [vmem:[#allocation3 + $0xc9] sm:$0xff]
      %v6206 = vld [vmem:[#allocation3 + $0xd1] sm:$0xff]
      %v6207 = vld [vmem:[#allocation3 + $0xd9] sm:$0xff]
      %v6208 = vld [vmem:[#allocation3 + $0xe1] sm:$0xff]
      %v6209 = vld [vmem:[#allocation3 + $0xe9] sm:$0xff]
      %v6210 = vld [vmem:[#allocation3 + $0xf1] sm:$0xff]
      %v6211 = vld [vmem:[#allocation3 + $0xf9] sm:$0xff]
      %v6212 = vld [vmem:[#allocation3 + $0x101] sm:$0xff]
      %v6213 = vld [vmem:[#allocation3 + $0x109] sm:$0xff]
      %v6214 = vld [vmem:[#allocation3 + $0x111] sm:$0xff]
      %v6215 = vld [vmem:[#allocation3 + $0x119] sm:$0xff]
      %v6216 = vld [vmem:[#allocation3 + $0x121] sm:$0xff]
      %v6217 = vld [vmem:[#allocation3 + $0x129] sm:$0xff]
      %v6218 = vld [vmem:[#allocation3 + $0x131] sm:$0xff]
      %v6219 = vld [vmem:[#allocation3 + $0x139] sm:$0xff]
      %v6220 = vld [vmem:[#allocation3 + $0x141] sm:$0xff]
      %v6221 = vld [vmem:[#allocation3 + $0x149] sm:$0xff]
      %v6222 = vld [vmem:[#allocation3 + $0x151] sm:$0xff]
      %v6223 = vld [vmem:[#allocation3 + $0x159] sm:$0xff]
      %v6224 = vld [vmem:[#allocation3 + $0x161] sm:$0xff]
      %v6225 = vld [vmem:[#allocation3 + $0x169] sm:$0xff]
      %v6226 = vld [vmem:[#allocation3 + $0x171] sm:$0xff]
      %v6227 = vld [vmem:[#allocation3 + $0x179] sm:$0xff]
      %v6228 = vld [vmem:[#allocation3 + $0x181] sm:$0xff]
      %v6229 = vld [vmem:[#allocation3 + $0x189] sm:$0xff]
      %v6230 = vld [vmem:[#allocation3 + $0x191] sm:$0xff]
      %v6231 = vld [vmem:[#allocation3 + $0x199] sm:$0xff]
      %v6232 = vld [vmem:[#allocation3 + $0x1a1] sm:$0xff]
      %v6233 = vld [vmem:[#allocation3 + $0x1a9] sm:$0xff]
      %v6234 = vld [vmem:[#allocation3 + $0x1b1] sm:$0xff]
      %v6235 = vld [vmem:[#allocation3 + $0x1b9] sm:$0xff]
      %v6236 = vld [vmem:[#allocation3 + $0x1c1] sm:$0xff]
      %v6237 = vld [vmem:[#allocation3 + $0x1c9] sm:$0xff]
      %v6238 = vld [vmem:[#allocation3 + $0x1d1] sm:$0xff]
      %v6239 = vld [vmem:[#allocation3 + $0x1d9] sm:$0xff]
      %v6240 = vpack.c.bf16 %v6187, %v6186
      %v6241 = vpack.c.bf16 %v6189, %v6188
      %v6242 = vpack.c.bf16 %v6191, %v6190
      %v6243 = vpack.c.bf16 %v6193, %v6192
      %v6244 = vpack.c.bf16 %v6195, %v6194
      %v6245 = vpack.c.bf16 %v6197, %v6196
      %v6246 = vpack.c.bf16 %v6199, %v6198
      %v6247 = vpack.c.bf16 %v6201, %v6200
      %v6248 = vpack.c.bf16 %v6203, %v6202
      %v6249 = vpack.c.bf16 %v6205, %v6204
      %v6250 = vpack.c.bf16 %v6207, %v6206
      %v6251 = vpack.c.bf16 %v6209, %v6208
      %v6252 = vpack.c.bf16 %v6211, %v6210
      %v6253 = vpack.c.bf16 %v6213, %v6212
      %v6254 = vpack.c.bf16 %v6215, %v6214
      %v6255 = vpack.c.bf16 %v6217, %v6216
      %v6256 = vpack.c.bf16 %v6219, %v6218
      %v6257 = vpack.c.bf16 %v6221, %v6220
      %v6258 = vpack.c.bf16 %v6223, %v6222
      %v6259 = vpack.c.bf16 %v6225, %v6224
      %v6260 = vpack.c.bf16 %v6227, %v6226
      %v6261 = vpack.c.bf16 %v6229, %v6228
      %v6262 = vpack.c.bf16 %v6231, %v6230
      %v6263 = vpack.c.bf16 %v6233, %v6232
      %v6264 = vpack.c.bf16 %v6235, %v6234
      %v6265 = vpack.c.bf16 %v6237, %v6236
      %v6266 = vpack.c.bf16 %v6239, %v6238
      %v6267 = vld [vmem:[%s5 + $0x1c0] sm:$0xf]
      %v6268 = vld [vmem:[%s5 + $0x1c4] sm:$0xf]
      %v6269 = vld [vmem:[%s5 + $0x1c8] sm:$0xf]
      %v6270 = vld [vmem:[%s5 + $0x1cc] sm:$0xf]
      %v6271 = vld [vmem:[%s5 + $0x1d0] sm:$0xf]
      %v6272 = vld [vmem:[%s5 + $0x1d4] sm:$0xf]
      %v6273 = vld [vmem:[%s5 + $0x1d8] sm:$0xf]
      %v6274 = vld [vmem:[%s5 + $0x1dc] sm:$0xf]
      %v6275 = vld [vmem:[%s5 + $0x1e0] sm:$0xf]
      %v6276 = vld [vmem:[%s5 + $0x1e4] sm:$0xf]
      %v6277 = vld [vmem:[%s5 + $0x1e8] sm:$0xf]
      %v6278 = vld [vmem:[%s5 + $0x1ec] sm:$0xf]
      %v6279 = vld [vmem:[%s5 + $0x1f0] sm:$0xf]
      %v6280 = vld [vmem:[%s5 + $0x1f4] sm:$0xf]
      %v6281 = vld [vmem:[%s5 + $0x1f8] sm:$0xf]
      %v6282 = vld [vmem:[%s5 + $0x1fc] sm:$0xf]
      %v6299 = vunpack.c.l.b16 %v6267
      %v6300 = vunpack.c.l.b16 %v6268
      %v6301 = vunpack.c.l.b16 %v6269
      %v6302 = vunpack.c.l.b16 %v6270
      %v6303 = vunpack.c.l.b16 %v6271
      %v6304 = vunpack.c.l.b16 %v6272
      %v6305 = vunpack.c.l.b16 %v6273
      %v6306 = vunpack.c.l.b16 %v6274
      %v6307 = vunpack.c.l.b16 %v6275
      %v6308 = vunpack.c.l.b16 %v6276
      %v6309 = vunpack.c.l.b16 %v6277
      %v6310 = vunpack.c.l.b16 %v6278
      %v6311 = vunpack.c.l.b16 %v6279
      %v6312 = vunpack.c.l.b16 %v6280
      %v6313 = vunpack.c.l.b16 %v6281
      %v6314 = vunpack.c.l.b16 %v6282
      %v6315 = vpack.c.b16 %v6300, %v6299
      %v6316 = vpack.c.b16 %v6302, %v6301
      %v6317 = vpack.c.b16 %v6304, %v6303
      %v6318 = vpack.c.b16 %v6306, %v6305
      %v6319 = vpack.c.b16 %v6308, %v6307
      %v6320 = vpack.c.b16 %v6310, %v6309
      %v6321 = vpack.c.b16 %v6312, %v6311
      %v6322 = vpack.c.b16 %v6314, %v6313
      %6331 = vmatprep.subr.bf16.mxu0 0
      %6332 = vmatpush1.bf16.msra.mxu0 %v6315
      %6333 = vmatprep.subr.bf16.mxu0 0
      %6334 = vmatpush1.bf16.msra.mxu0 %v6316
      %6335 = vmatprep.subr.bf16.mxu0 0
      %6336 = vmatpush1.bf16.msra.mxu0 %v6317
      %6337 = vmatprep.subr.bf16.mxu0 0
      %6338 = vmatpush1.bf16.msra.mxu0 %v6318
      %6339 = vmatprep.subr.bf16.mxu0 0
      %6340 = vmatpush1.bf16.msra.mxu0 %v6319
      %6341 = vmatprep.subr.bf16.mxu0 0
      %6342 = vmatpush1.bf16.msra.mxu0 %v6320
      %6343 = vmatprep.subr.bf16.mxu0 0
      %6344 = vmatpush1.bf16.msra.mxu0 %v6321
      %6345 = vmatprep.subr.bf16.mxu0 0
      %6346 = vmatpush1.bf16.msra.mxu0 %v6322
      %6347 = vmatprep.subr.bf16.mxu0 0
      %6348 = vmatpush1.bf16.msra.mxu0 0
      %6349 = vmatprep.subr.bf16.mxu0 0
      %6350 = vmatpush1.bf16.msra.mxu0 0
      %6351 = vmatprep.subr.bf16.mxu0 0
      %6352 = vmatpush1.bf16.msra.mxu0 0
      %6353 = vmatprep.subr.bf16.mxu0 0
      %6354 = vmatpush1.bf16.msra.mxu0 0
      %6355 = vmatprep.subr.bf16.mxu0 0
      %6356 = vmatpush1.bf16.msra.mxu0 0
      %6357 = vmatprep.subr.bf16.mxu0 0
      %6358 = vmatpush1.bf16.msra.mxu0 0
      %6359 = vmatprep.subr.bf16.mxu0 0
      %6360 = vmatpush1.bf16.msra.mxu0 0
      %6361 = vmatprep.subr.bf16.mxu0 0
      %6362 = vmatpush1.bf16.msra.mxu0 0
      %6363 = vmatprep.mubr.bf16.mxu0 0
      %6364 = vmatmul.mubr.bf16.gmra.mrb[0].mxu0 %v6240
      %v6365 = vpop.f32.mrb[0].mxu0
      %v6366 = vadd.f32 0.0, %v6365
      %v6367 = vpop.f32.mrb[0].mxu0
      %v6368 = vpop.f32.mrb[0].mxu0
      %v6369 = vadd.f32 0.0, %v6368
      %v6370 = vpop.f32.mrb[0].mxu0
      %6371 = vmatprep.mubr.bf16.mxu0 0
      %6372 = vmatmul.mubr.bf16.gmra.mrb[0].mxu0 %v6241
      %v6373 = vpop.f32.mrb[0].mxu0
      %v6374 = vadd.f32 0.0, %v6373
      %v6375 = vpop.f32.mrb[0].mxu0
      %v6376 = vpop.f32.mrb[0].mxu0
      %v6377 = vadd.f32 0.0, %v6376
      %v6378 = vpop.f32.mrb[0].mxu0
      %6379 = vmatprep.mubr.bf16.mxu0 0
      %6380 = vmatmul.mubr.bf16.gmra.mrb[0].mxu0 %v6242
      %v6381 = vpop.f32.mrb[0].mxu0
      %v6382 = vadd.f32 0.0, %v6381
      %v6383 = vpop.f32.mrb[0].mxu0
      %v6384 = vpop.f32.mrb[0].mxu0
      %v6385 = vadd.f32 0.0, %v6384
      %v6386 = vpop.f32.mrb[0].mxu0
      %6387 = vmatprep.mubr.bf16.mxu0 0
      %6388 = vmatmul.mubr.bf16.gmra.mrb[0].mxu0 %v6243
      %v6389 = vpop.f32.mrb[0].mxu0
      %v6390 = vadd.f32 0.0, %v6389
      %v6391 = vpop.f32.mrb[0].mxu0
      %v6392 = vpop.f32.mrb[0].mxu0
      %v6393 = vadd.f32 0.0, %v6392
      %v6394 = vpop.f32.mrb[0].mxu0
      %6395 = vmatprep.mubr.bf16.mxu0 0
      %6396 = vmatmul.mubr.bf16.gmra.mrb[0].mxu0 %v6244
      %v6397 = vpop.f32.mrb[0].mxu0
      %v6398 = vadd.f32 0.0, %v6397
      %v6399 = vpop.f32.mrb[0].mxu0
      %v6400 = vpop.f32.mrb[0].mxu0
      %v6401 = vadd.f32 0.0, %v6400
      %v6402 = vpop.f32.mrb[0].mxu0
      %6403 = vmatprep.mubr.bf16.mxu0 0
      %6404 = vmatmul.mubr.bf16.gmra.mrb[0].mxu0 %v6245
      %v6405 = vpop.f32.mrb[0].mxu0
      %v6406 = vadd.f32 0.0, %v6405
      %v6407 = vpop.f32.mrb[0].mxu0
      %v6408 = vpop.f32.mrb[0].mxu0
      %v6409 = vadd.f32 0.0, %v6408
      %v6410 = vpop.f32.mrb[0].mxu0
      %6411 = vmatprep.mubr.bf16.mxu0 0
      %6412 = vmatmul.mubr.bf16.gmra.mrb[0].mxu0 %v6246
      %v6413 = vpop.f32.mrb[0].mxu0
      %v6414 = vadd.f32 0.0, %v6413
      %v6415 = vpop.f32.mrb[0].mxu0
      %v6416 = vpop.f32.mrb[0].mxu0
      %v6417 = vadd.f32 0.0, %v6416
      %v6418 = vpop.f32.mrb[0].mxu0
      %6419 = vmatprep.mubr.bf16.mxu0 0
      %6420 = vmatmul.mubr.bf16.gmra.mrb[0].mxu0 %v6247
      %v6421 = vpop.f32.mrb[0].mxu0
      %v6422 = vadd.f32 0.0, %v6421
      %v6423 = vpop.f32.mrb[0].mxu0
      %v6424 = vpop.f32.mrb[0].mxu0
      %v6425 = vadd.f32 0.0, %v6424
      %v6426 = vpop.f32.mrb[0].mxu0
      %6427 = vmatprep.mubr.bf16.mxu0 0
      %6428 = vmatmul.mubr.bf16.gmra.mrb[0].mxu0 %v6248
      %v6429 = vpop.f32.mrb[0].mxu0
      %v6430 = vadd.f32 0.0, %v6429
      %v6431 = vpop.f32.mrb[0].mxu0
      %v6432 = vpop.f32.mrb[0].mxu0
      %v6433 = vadd.f32 0.0, %v6432
      %v6434 = vpop.f32.mrb[0].mxu0
      %6435 = vmatprep.mubr.bf16.mxu0 0
      %6436 = vmatmul.mubr.bf16.gmra.mrb[0].mxu0 %v6249
      %v6437 = vpop.f32.mrb[0].mxu0
      %v6438 = vadd.f32 0.0, %v6437
      %v6439 = vpop.f32.mrb[0].mxu0
      %v6440 = vpop.f32.mrb[0].mxu0
      %v6441 = vadd.f32 0.0, %v6440
      %v6442 = vpop.f32.mrb[0].mxu0
      %6443 = vmatprep.mubr.bf16.mxu0 0
      %6444 = vmatmul.mubr.bf16.gmra.mrb[0].mxu0 %v6250
      %v6445 = vpop.f32.mrb[0].mxu0
      %v6446 = vadd.f32 0.0, %v6445
      %v6447 = vpop.f32.mrb[0].mxu0
      %v6448 = vpop.f32.mrb[0].mxu0
      %v6449 = vadd.f32 0.0, %v6448
      %v6450 = vpop.f32.mrb[0].mxu0
      %6451 = vmatprep.mubr.bf16.mxu0 0
      %6452 = vmatmul.mubr.bf16.gmra.mrb[0].mxu0 %v6251
      %v6453 = vpop.f32.mrb[0].mxu0
      %v6454 = vadd.f32 0.0, %v6453
      %v6455 = vpop.f32.mrb[0].mxu0
      %v6456 = vpop.f32.mrb[0].mxu0
      %v6457 = vadd.f32 0.0, %v6456
      %v6458 = vpop.f32.mrb[0].mxu0
      %6459 = vmatprep.mubr.bf16.mxu0 0
      %6460 = vmatmul.mubr.bf16.gmra.mrb[0].mxu0 %v6252
      %v6461 = vpop.f32.mrb[0].mxu0
      %v6462 = vadd.f32 0.0, %v6461
      %v6463 = vpop.f32.mrb[0].mxu0
      %v6464 = vpop.f32.mrb[0].mxu0
      %v6465 = vadd.f32 0.0, %v6464
      %v6466 = vpop.f32.mrb[0].mxu0
      %6467 = vmatprep.mubr.bf16.mxu0 0
      %6468 = vmatmul.mubr.bf16.gmra.mrb[0].mxu0 %v6253
      %v6469 = vpop.f32.mrb[0].mxu0
      %v6470 = vadd.f32 0.0, %v6469
      %v6471 = vpop.f32.mrb[0].mxu0
      %v6472 = vpop.f32.mrb[0].mxu0
      %v6473 = vadd.f32 0.0, %v6472
      %v6474 = vpop.f32.mrb[0].mxu0
      %6475 = vmatprep.mubr.bf16.mxu0 0
      %6476 = vmatmul.mubr.bf16.gmra.mrb[0].mxu0 %v6254
      %v6477 = vpop.f32.mrb[0].mxu0
      %v6478 = vadd.f32 0.0, %v6477
      %v6479 = vpop.f32.mrb[0].mxu0
      %v6480 = vpop.f32.mrb[0].mxu0
      %v6481 = vadd.f32 0.0, %v6480
      %v6482 = vpop.f32.mrb[0].mxu0
      %6483 = vmatprep.mubr.bf16.mxu0 0
      %6484 = vmatmul.mubr.bf16.gmra.mrb[0].mxu0 %v6255
      %v6485 = vpop.f32.mrb[0].mxu0
      %v6486 = vadd.f32 0.0, %v6485
      %v6487 = vpop.f32.mrb[0].mxu0
      %v6488 = vpop.f32.mrb[0].mxu0
      %v6489 = vadd.f32 0.0, %v6488
      %v6490 = vpop.f32.mrb[0].mxu0
      %6491 = vmatprep.mubr.bf16.mxu0 0
      %6492 = vmatmul.mubr.bf16.gmra.mrb[0].mxu0 %v6256
      %v6493 = vpop.f32.mrb[0].mxu0
      %v6494 = vadd.f32 0.0, %v6493
      %v6495 = vpop.f32.mrb[0].mxu0
      %v6496 = vpop.f32.mrb[0].mxu0
      %v6497 = vadd.f32 0.0, %v6496
      %v6498 = vpop.f32.mrb[0].mxu0
      %6499 = vmatprep.mubr.bf16.mxu0 0
      %6500 = vmatmul.mubr.bf16.gmra.mrb[0].mxu0 %v6257
      %v6501 = vpop.f32.mrb[0].mxu0
      %v6502 = vadd.f32 0.0, %v6501
      %v6503 = vpop.f32.mrb[0].mxu0
      %v6504 = vpop.f32.mrb[0].mxu0
      %v6505 = vadd.f32 0.0, %v6504
      %v6506 = vpop.f32.mrb[0].mxu0
      %6507 = vmatprep.mubr.bf16.mxu0 0
      %6508 = vmatmul.mubr.bf16.gmra.mrb[0].mxu0 %v6258
      %v6509 = vpop.f32.mrb[0].mxu0
      %v6510 = vadd.f32 0.0, %v6509
      %v6511 = vpop.f32.mrb[0].mxu0
      %v6512 = vpop.f32.mrb[0].mxu0
      %v6513 = vadd.f32 0.0, %v6512
      %v6514 = vpop.f32.mrb[0].mxu0
      %6515 = vmatprep.mubr.bf16.mxu0 0
      %6516 = vmatmul.mubr.bf16.gmra.mrb[0].mxu0 %v6259
      %v6517 = vpop.f32.mrb[0].mxu0
      %v6518 = vadd.f32 0.0, %v6517
      %v6519 = vpop.f32.mrb[0].mxu0
      %v6520 = vpop.f32.mrb[0].mxu0
      %v6521 = vadd.f32 0.0, %v6520
      %v6522 = vpop.f32.mrb[0].mxu0
      %6523 = vmatprep.mubr.bf16.mxu0 0
      %6524 = vmatmul.mubr.bf16.gmra.mrb[0].mxu0 %v6260
      %v6525 = vpop.f32.mrb[0].mxu0
      %v6526 = vadd.f32 0.0, %v6525
      %v6527 = vpop.f32.mrb[0].mxu0
      %v6528 = vpop.f32.mrb[0].mxu0
      %v6529 = vadd.f32 0.0, %v6528
      %v6530 = vpop.f32.mrb[0].mxu0
      %6531 = vmatprep.mubr.bf16.mxu0 0
      %6532 = vmatmul.mubr.bf16.gmra.mrb[0].mxu0 %v6261
      %v6533 = vpop.f32.mrb[0].mxu0
      %v6534 = vadd.f32 0.0, %v6533
      %v6535 = vpop.f32.mrb[0].mxu0
      %v6536 = vpop.f32.mrb[0].mxu0
      %v6537 = vadd.f32 0.0, %v6536
      %v6538 = vpop.f32.mrb[0].mxu0
      %6539 = vmatprep.mubr.bf16.mxu0 0
      %6540 = vmatmul.mubr.bf16.gmra.mrb[0].mxu0 %v6262
      %v6541 = vpop.f32.mrb[0].mxu0
      %v6542 = vadd.f32 0.0, %v6541
      %v6543 = vpop.f32.mrb[0].mxu0
      %v6544 = vpop.f32.mrb[0].mxu0
      %v6545 = vadd.f32 0.0, %v6544
      %v6546 = vpop.f32.mrb[0].mxu0
      %6547 = vmatprep.mubr.bf16.mxu0 0
      %6548 = vmatmul.mubr.bf16.gmra.mrb[0].mxu0 %v6263
      %v6549 = vpop.f32.mrb[0].mxu0
      %v6550 = vadd.f32 0.0, %v6549
      %v6551 = vpop.f32.mrb[0].mxu0
      %v6552 = vpop.f32.mrb[0].mxu0
      %v6553 = vadd.f32 0.0, %v6552
      %v6554 = vpop.f32.mrb[0].mxu0
      %6555 = vmatprep.mubr.bf16.mxu0 0
      %6556 = vmatmul.mubr.bf16.gmra.mrb[0].mxu0 %v6264
      %v6557 = vpop.f32.mrb[0].mxu0
      %v6558 = vadd.f32 0.0, %v6557
      %v6559 = vpop.f32.mrb[0].mxu0
      %v6560 = vpop.f32.mrb[0].mxu0
      %v6561 = vadd.f32 0.0, %v6560
      %v6562 = vpop.f32.mrb[0].mxu0
      %6563 = vmatprep.mubr.bf16.mxu0 0
      %6564 = vmatmul.mubr.bf16.gmra.mrb[0].mxu0 %v6265
      %v6565 = vpop.f32.mrb[0].mxu0
      %v6566 = vadd.f32 0.0, %v6565
      %v6567 = vpop.f32.mrb[0].mxu0
      %v6568 = vpop.f32.mrb[0].mxu0
      %v6569 = vadd.f32 0.0, %v6568
      %v6570 = vpop.f32.mrb[0].mxu0
      %6571 = vmatprep.mubr.bf16.mxu0 0
      %6572 = vmatmul.mubr.bf16.gmra.mrb[0].mxu0 %v6266
      %v6573 = vpop.f32.mrb[0].mxu0
      %v6574 = vadd.f32 0.0, %v6573
      %v6575 = vpop.f32.mrb[0].mxu0
      %v6576 = vpop.f32.mrb[0].mxu0
      %v6577 = vadd.f32 0.0, %v6576
      %v6578 = vpop.f32.mrb[0].mxu0
      %6579 = vdwg.mxu0
      %v6580 = vadd.f32 %v6132, %v6366
      %v6581 = vadd.f32 %v6133, %v6369
      %v6582 = vadd.f32 %v6134, %v6374
      %v6583 = vadd.f32 %v6135, %v6377
      %v6584 = vadd.f32 %v6136, %v6382
      %v6585 = vadd.f32 %v6137, %v6385
      %v6586 = vadd.f32 %v6138, %v6390
      %v6587 = vadd.f32 %v6139, %v6393
      %v6588 = vadd.f32 %v6140, %v6398
      %v6589 = vadd.f32 %v6141, %v6401
      %v6590 = vadd.f32 %v6142, %v6406
      %v6591 = vadd.f32 %v6143, %v6409
      %v6592 = vadd.f32 %v6144, %v6414
      %v6593 = vadd.f32 %v6145, %v6417
      %v6594 = vadd.f32 %v6146, %v6422
      %v6595 = vadd.f32 %v6147, %v6425
      %v6596 = vadd.f32 %v6148, %v6430
      %v6597 = vadd.f32 %v6149, %v6433
      %v6598 = vadd.f32 %v6150, %v6438
      %v6599 = vadd.f32 %v6151, %v6441
      %v6600 = vadd.f32 %v6152, %v6446
      %v6601 = vadd.f32 %v6153, %v6449
      %v6602 = vadd.f32 %v6154, %v6454
      %v6603 = vadd.f32 %v6155, %v6457
      %v6604 = vadd.f32 %v6156, %v6462
      %v6605 = vadd.f32 %v6157, %v6465
      %v6606 = vadd.f32 %v6158, %v6470
      %v6607 = vadd.f32 %v6159, %v6473
      %v6608 = vadd.f32 %v6160, %v6478
      %v6609 = vadd.f32 %v6161, %v6481
      %v6610 = vadd.f32 %v6162, %v6486
      %v6611 = vadd.f32 %v6163, %v6489
      %v6612 = vadd.f32 %v6164, %v6494
      %v6613 = vadd.f32 %v6165, %v6497
      %v6614 = vadd.f32 %v6166, %v6502
      %v6615 = vadd.f32 %v6167, %v6505
      %v6616 = vadd.f32 %v6168, %v6510
      %v6617 = vadd.f32 %v6169, %v6513
      %v6618 = vadd.f32 %v6170, %v6518
      %v6619 = vadd.f32 %v6171, %v6521
      %v6620 = vadd.f32 %v6172, %v6526
      %v6621 = vadd.f32 %v6173, %v6529
      %v6622 = vadd.f32 %v6174, %v6534
      %v6623 = vadd.f32 %v6175, %v6537
      %v6624 = vadd.f32 %v6176, %v6542
      %v6625 = vadd.f32 %v6177, %v6545
      %v6626 = vadd.f32 %v6178, %v6550
      %v6627 = vadd.f32 %v6179, %v6553
      %v6628 = vadd.f32 %v6180, %v6558
      %v6629 = vadd.f32 %v6181, %v6561
      %v6630 = vadd.f32 %v6182, %v6566
      %v6631 = vadd.f32 %v6183, %v6569
      %v6632 = vadd.f32 %v6184, %v6574
      %v6633 = vadd.f32 %v6185, %v6577
      %v6634 = vld [vmem:[#allocation3 + $0x32] sm:$0xff]
      %v6635 = vld [vmem:[#allocation3 + $0x3a] sm:$0xff]
      %v6636 = vld [vmem:[#allocation3 + $0x42] sm:$0xff]
      %v6637 = vld [vmem:[#allocation3 + $0x4a] sm:$0xff]
      %v6638 = vld [vmem:[#allocation3 + $0x52] sm:$0xff]
      %v6639 = vld [vmem:[#allocation3 + $0x5a] sm:$0xff]
      %v6640 = vld [vmem:[#allocation3 + $0x62] sm:$0xff]
      %v6641 = vld [vmem:[#allocation3 + $0x6a] sm:$0xff]
      %v6642 = vld [vmem:[#allocation3 + $0x72] sm:$0xff]
      %v6643 = vld [vmem:[#allocation3 + $0x7a] sm:$0xff]
      %v6644 = vld [vmem:[#allocation3 + $0x82] sm:$0xff]
      %v6645 = vld [vmem:[#allocation3 + $0x8a] sm:$0xff]
      %v6646 = vld [vmem:[#allocation3 + $0x92] sm:$0xff]
      %v6647 = vld [vmem:[#allocation3 + $0x9a] sm:$0xff]
      %v6648 = vld [vmem:[#allocation3 + $0xa2] sm:$0xff]
      %v6649 = vld [vmem:[#allocation3 + $0xaa] sm:$0xff]
      %v6650 = vld [vmem:[#allocation3 + $0xb2] sm:$0xff]
      %v6651 = vld [vmem:[#allocation3 + $0xba] sm:$0xff]
      %v6652 = vld [vmem:[#allocation3 + $0xc2] sm:$0xff]
      %v6653 = vld [vmem:[#allocation3 + $0xca] sm:$0xff]
      %v6654 = vld [vmem:[#allocation3 + $0xd2] sm:$0xff]
      %v6655 = vld [vmem:[#allocation3 + $0xda] sm:$0xff]
      %v6656 = vld [vmem:[#allocation3 + $0xe2] sm:$0xff]
      %v6657 = vld [vmem:[#allocation3 + $0xea] sm:$0xff]
      %v6658 = vld [vmem:[#allocation3 + $0xf2] sm:$0xff]
      %v6659 = vld [vmem:[#allocation3 + $0xfa] sm:$0xff]
      %v6660 = vld [vmem:[#allocation3 + $0x102] sm:$0xff]
      %v6661 = vld [vmem:[#allocation3 + $0x10a] sm:$0xff]
      %v6662 = vld [vmem:[#allocation3 + $0x112] sm:$0xff]
      %v6663 = vld [vmem:[#allocation3 + $0x11a] sm:$0xff]
      %v6664 = vld [vmem:[#allocation3 + $0x122] sm:$0xff]
      %v6665 = vld [vmem:[#allocation3 + $0x12a] sm:$0xff]
      %v6666 = vld [vmem:[#allocation3 + $0x132] sm:$0xff]
      %v6667 = vld [vmem:[#allocation3 + $0x13a] sm:$0xff]
      %v6668 = vld [vmem:[#allocation3 + $0x142] sm:$0xff]
      %v6669 = vld [vmem:[#allocation3 + $0x14a] sm:$0xff]
      %v6670 = vld [vmem:[#allocation3 + $0x152] sm:$0xff]
      %v6671 = vld [vmem:[#allocation3 + $0x15a] sm:$0xff]
      %v6672 = vld [vmem:[#allocation3 + $0x162] sm:$0xff]
      %v6673 = vld [vmem:[#allocation3 + $0x16a] sm:$0xff]
      %v6674 = vld [vmem:[#allocation3 + $0x172] sm:$0xff]
      %v6675 = vld [vmem:[#allocation3 + $0x17a] sm:$0xff]
      %v6676 = vld [vmem:[#allocation3 + $0x182] sm:$0xff]
      %v6677 = vld [vmem:[#allocation3 + $0x18a] sm:$0xff]
      %v6678 = vld [vmem:[#allocation3 + $0x192] sm:$0xff]
      %v6679 = vld [vmem:[#allocation3 + $0x19a] sm:$0xff]
      %v6680 = vld [vmem:[#allocation3 + $0x1a2] sm:$0xff]
      %v6681 = vld [vmem:[#allocation3 + $0x1aa] sm:$0xff]
      %v6682 = vld [vmem:[#allocation3 + $0x1b2] sm:$0xff]
      %v6683 = vld [vmem:[#allocation3 + $0x1ba] sm:$0xff]
      %v6684 = vld [vmem:[#allocation3 + $0x1c2] sm:$0xff]
      %v6685 = vld [vmem:[#allocation3 + $0x1ca] sm:$0xff]
      %v6686 = vld [vmem:[#allocation3 + $0x1d2] sm:$0xff]
      %v6687 = vld [vmem:[#allocation3 + $0x1da] sm:$0xff]
      %v6688 = vpack.c.bf16 %v6635, %v6634
      %v6689 = vpack.c.bf16 %v6637, %v6636
      %v6690 = vpack.c.bf16 %v6639, %v6638
      %v6691 = vpack.c.bf16 %v6641, %v6640
      %v6692 = vpack.c.bf16 %v6643, %v6642
      %v6693 = vpack.c.bf16 %v6645, %v6644
      %v6694 = vpack.c.bf16 %v6647, %v6646
      %v6695 = vpack.c.bf16 %v6649, %v6648
      %v6696 = vpack.c.bf16 %v6651, %v6650
      %v6697 = vpack.c.bf16 %v6653, %v6652
      %v6698 = vpack.c.bf16 %v6655, %v6654
      %v6699 = vpack.c.bf16 %v6657, %v6656
      %v6700 = vpack.c.bf16 %v6659, %v6658
      %v6701 = vpack.c.bf16 %v6661, %v6660
      %v6702 = vpack.c.bf16 %v6663, %v6662
      %v6703 = vpack.c.bf16 %v6665, %v6664
      %v6704 = vpack.c.bf16 %v6667, %v6666
      %v6705 = vpack.c.bf16 %v6669, %v6668
      %v6706 = vpack.c.bf16 %v6671, %v6670
      %v6707 = vpack.c.bf16 %v6673, %v6672
      %v6708 = vpack.c.bf16 %v6675, %v6674
      %v6709 = vpack.c.bf16 %v6677, %v6676
      %v6710 = vpack.c.bf16 %v6679, %v6678
      %v6711 = vpack.c.bf16 %v6681, %v6680
      %v6712 = vpack.c.bf16 %v6683, %v6682
      %v6713 = vpack.c.bf16 %v6685, %v6684
      %v6714 = vpack.c.bf16 %v6687, %v6686
      %v6715 = vld [vmem:[%s5 + $0x200] sm:$0xf]
      %v6716 = vld [vmem:[%s5 + $0x204] sm:$0xf]
      %v6717 = vld [vmem:[%s5 + $0x208] sm:$0xf]
      %v6718 = vld [vmem:[%s5 + $0x20c] sm:$0xf]
      %v6719 = vld [vmem:[%s5 + $0x210] sm:$0xf]
      %v6720 = vld [vmem:[%s5 + $0x214] sm:$0xf]
      %v6721 = vld [vmem:[%s5 + $0x218] sm:$0xf]
      %v6722 = vld [vmem:[%s5 + $0x21c] sm:$0xf]
      %v6723 = vld [vmem:[%s5 + $0x220] sm:$0xf]
      %v6724 = vld [vmem:[%s5 + $0x224] sm:$0xf]
      %v6725 = vld [vmem:[%s5 + $0x228] sm:$0xf]
      %v6726 = vld [vmem:[%s5 + $0x22c] sm:$0xf]
      %v6727 = vld [vmem:[%s5 + $0x230] sm:$0xf]
      %v6728 = vld [vmem:[%s5 + $0x234] sm:$0xf]
      %v6729 = vld [vmem:[%s5 + $0x238] sm:$0xf]
      %v6730 = vld [vmem:[%s5 + $0x23c] sm:$0xf]
      %v6747 = vunpack.c.l.b16 %v6715
      %v6748 = vunpack.c.l.b16 %v6716
      %v6749 = vunpack.c.l.b16 %v6717
      %v6750 = vunpack.c.l.b16 %v6718
      %v6751 = vunpack.c.l.b16 %v6719
      %v6752 = vunpack.c.l.b16 %v6720
      %v6753 = vunpack.c.l.b16 %v6721
      %v6754 = vunpack.c.l.b16 %v6722
      %v6755 = vunpack.c.l.b16 %v6723
      %v6756 = vunpack.c.l.b16 %v6724
      %v6757 = vunpack.c.l.b16 %v6725
      %v6758 = vunpack.c.l.b16 %v6726
      %v6759 = vunpack.c.l.b16 %v6727
      %v6760 = vunpack.c.l.b16 %v6728
      %v6761 = vunpack.c.l.b16 %v6729
      %v6762 = vunpack.c.l.b16 %v6730
      %v6763 = vpack.c.b16 %v6748, %v6747
      %v6764 = vpack.c.b16 %v6750, %v6749
      %v6765 = vpack.c.b16 %v6752, %v6751
      %v6766 = vpack.c.b16 %v6754, %v6753
      %v6767 = vpack.c.b16 %v6756, %v6755
      %v6768 = vpack.c.b16 %v6758, %v6757
      %v6769 = vpack.c.b16 %v6760, %v6759
      %v6770 = vpack.c.b16 %v6762, %v6761
      %6779 = vmatprep.subr.bf16.mxu0 0
      %6780 = vmatpush1.bf16.msra.mxu0 %v6763
      %6781 = vmatprep.subr.bf16.mxu0 0
      %6782 = vmatpush1.bf16.msra.mxu0 %v6764
      %6783 = vmatprep.subr.bf16.mxu0 0
      %6784 = vmatpush1.bf16.msra.mxu0 %v6765
      %6785 = vmatprep.subr.bf16.mxu0 0
      %6786 = vmatpush1.bf16.msra.mxu0 %v6766
      %6787 = vmatprep.subr.bf16.mxu0 0
      %6788 = vmatpush1.bf16.msra.mxu0 %v6767
      %6789 = vmatprep.subr.bf16.mxu0 0
      %6790 = vmatpush1.bf16.msra.mxu0 %v6768
      %6791 = vmatprep.subr.bf16.mxu0 0
      %6792 = vmatpush1.bf16.msra.mxu0 %v6769
      %6793 = vmatprep.subr.bf16.mxu0 0
      %6794 = vmatpush1.bf16.msra.mxu0 %v6770
      %6795 = vmatprep.subr.bf16.mxu0 0
      %6796 = vmatpush1.bf16.msra.mxu0 0
      %6797 = vmatprep.subr.bf16.mxu0 0
      %6798 = vmatpush1.bf16.msra.mxu0 0
      %6799 = vmatprep.subr.bf16.mxu0 0
      %6800 = vmatpush1.bf16.msra.mxu0 0
      %6801 = vmatprep.subr.bf16.mxu0 0
      %6802 = vmatpush1.bf16.msra.mxu0 0
      %6803 = vmatprep.subr.bf16.mxu0 0
      %6804 = vmatpush1.bf16.msra.mxu0 0
      %6805 = vmatprep.subr.bf16.mxu0 0
      %6806 = vmatpush1.bf16.msra.mxu0 0
      %6807 = vmatprep.subr.bf16.mxu0 0
      %6808 = vmatpush1.bf16.msra.mxu0 0
      %6809 = vmatprep.subr.bf16.mxu0 0
      %6810 = vmatpush1.bf16.msra.mxu0 0
      %6811 = vmatprep.mubr.bf16.mxu0 0
      %6812 = vmatmul.mubr.bf16.gmra.mrb[0].mxu0 %v6688
      %v6813 = vpop.f32.mrb[0].mxu0
      %v6814 = vadd.f32 0.0, %v6813
      %v6815 = vpop.f32.mrb[0].mxu0
      %v6816 = vpop.f32.mrb[0].mxu0
      %v6817 = vadd.f32 0.0, %v6816
      %v6818 = vpop.f32.mrb[0].mxu0
      %6819 = vmatprep.mubr.bf16.mxu0 0
      %6820 = vmatmul.mubr.bf16.gmra.mrb[0].mxu0 %v6689
      %v6821 = vpop.f32.mrb[0].mxu0
      %v6822 = vadd.f32 0.0, %v6821
      %v6823 = vpop.f32.mrb[0].mxu0
      %v6824 = vpop.f32.mrb[0].mxu0
      %v6825 = vadd.f32 0.0, %v6824
      %v6826 = vpop.f32.mrb[0].mxu0
      %6827 = vmatprep.mubr.bf16.mxu0 0
      %6828 = vmatmul.mubr.bf16.gmra.mrb[0].mxu0 %v6690
      %v6829 = vpop.f32.mrb[0].mxu0
      %v6830 = vadd.f32 0.0, %v6829
      %v6831 = vpop.f32.mrb[0].mxu0
      %v6832 = vpop.f32.mrb[0].mxu0
      %v6833 = vadd.f32 0.0, %v6832
      %v6834 = vpop.f32.mrb[0].mxu0
      %6835 = vmatprep.mubr.bf16.mxu0 0
      %6836 = vmatmul.mubr.bf16.gmra.mrb[0].mxu0 %v6691
      %v6837 = vpop.f32.mrb[0].mxu0
      %v6838 = vadd.f32 0.0, %v6837
      %v6839 = vpop.f32.mrb[0].mxu0
      %v6840 = vpop.f32.mrb[0].mxu0
      %v6841 = vadd.f32 0.0, %v6840
      %v6842 = vpop.f32.mrb[0].mxu0
      %6843 = vmatprep.mubr.bf16.mxu0 0
      %6844 = vmatmul.mubr.bf16.gmra.mrb[0].mxu0 %v6692
      %v6845 = vpop.f32.mrb[0].mxu0
      %v6846 = vadd.f32 0.0, %v6845
      %v6847 = vpop.f32.mrb[0].mxu0
      %v6848 = vpop.f32.mrb[0].mxu0
      %v6849 = vadd.f32 0.0, %v6848
      %v6850 = vpop.f32.mrb[0].mxu0
      %6851 = vmatprep.mubr.bf16.mxu0 0
      %6852 = vmatmul.mubr.bf16.gmra.mrb[0].mxu0 %v6693
      %v6853 = vpop.f32.mrb[0].mxu0
      %v6854 = vadd.f32 0.0, %v6853
      %v6855 = vpop.f32.mrb[0].mxu0
      %v6856 = vpop.f32.mrb[0].mxu0
      %v6857 = vadd.f32 0.0, %v6856
      %v6858 = vpop.f32.mrb[0].mxu0
      %6859 = vmatprep.mubr.bf16.mxu0 0
      %6860 = vmatmul.mubr.bf16.gmra.mrb[0].mxu0 %v6694
      %v6861 = vpop.f32.mrb[0].mxu0
      %v6862 = vadd.f32 0.0, %v6861
      %v6863 = vpop.f32.mrb[0].mxu0
      %v6864 = vpop.f32.mrb[0].mxu0
      %v6865 = vadd.f32 0.0, %v6864
      %v6866 = vpop.f32.mrb[0].mxu0
      %6867 = vmatprep.mubr.bf16.mxu0 0
      %6868 = vmatmul.mubr.bf16.gmra.mrb[0].mxu0 %v6695
      %v6869 = vpop.f32.mrb[0].mxu0
      %v6870 = vadd.f32 0.0, %v6869
      %v6871 = vpop.f32.mrb[0].mxu0
      %v6872 = vpop.f32.mrb[0].mxu0
      %v6873 = vadd.f32 0.0, %v6872
      %v6874 = vpop.f32.mrb[0].mxu0
      %6875 = vmatprep.mubr.bf16.mxu0 0
      %6876 = vmatmul.mubr.bf16.gmra.mrb[0].mxu0 %v6696
      %v6877 = vpop.f32.mrb[0].mxu0
      %v6878 = vadd.f32 0.0, %v6877
      %v6879 = vpop.f32.mrb[0].mxu0
      %v6880 = vpop.f32.mrb[0].mxu0
      %v6881 = vadd.f32 0.0, %v6880
      %v6882 = vpop.f32.mrb[0].mxu0
      %6883 = vmatprep.mubr.bf16.mxu0 0
      %6884 = vmatmul.mubr.bf16.gmra.mrb[0].mxu0 %v6697
      %v6885 = vpop.f32.mrb[0].mxu0
      %v6886 = vadd.f32 0.0, %v6885
      %v6887 = vpop.f32.mrb[0].mxu0
      %v6888 = vpop.f32.mrb[0].mxu0
      %v6889 = vadd.f32 0.0, %v6888
      %v6890 = vpop.f32.mrb[0].mxu0
      %6891 = vmatprep.mubr.bf16.mxu0 0
      %6892 = vmatmul.mubr.bf16.gmra.mrb[0].mxu0 %v6698
      %v6893 = vpop.f32.mrb[0].mxu0
      %v6894 = vadd.f32 0.0, %v6893
      %v6895 = vpop.f32.mrb[0].mxu0
      %v6896 = vpop.f32.mrb[0].mxu0
      %v6897 = vadd.f32 0.0, %v6896
      %v6898 = vpop.f32.mrb[0].mxu0
      %6899 = vmatprep.mubr.bf16.mxu0 0
      %6900 = vmatmul.mubr.bf16.gmra.mrb[0].mxu0 %v6699
      %v6901 = vpop.f32.mrb[0].mxu0
      %v6902 = vadd.f32 0.0, %v6901
      %v6903 = vpop.f32.mrb[0].mxu0
      %v6904 = vpop.f32.mrb[0].mxu0
      %v6905 = vadd.f32 0.0, %v6904
      %v6906 = vpop.f32.mrb[0].mxu0
      %6907 = vmatprep.mubr.bf16.mxu0 0
      %6908 = vmatmul.mubr.bf16.gmra.mrb[0].mxu0 %v6700
      %v6909 = vpop.f32.mrb[0].mxu0
      %v6910 = vadd.f32 0.0, %v6909
      %v6911 = vpop.f32.mrb[0].mxu0
      %v6912 = vpop.f32.mrb[0].mxu0
      %v6913 = vadd.f32 0.0, %v6912
      %v6914 = vpop.f32.mrb[0].mxu0
      %6915 = vmatprep.mubr.bf16.mxu0 0
      %6916 = vmatmul.mubr.bf16.gmra.mrb[0].mxu0 %v6701
      %v6917 = vpop.f32.mrb[0].mxu0
      %v6918 = vadd.f32 0.0, %v6917
      %v6919 = vpop.f32.mrb[0].mxu0
      %v6920 = vpop.f32.mrb[0].mxu0
      %v6921 = vadd.f32 0.0, %v6920
      %v6922 = vpop.f32.mrb[0].mxu0
      %6923 = vmatprep.mubr.bf16.mxu0 0
      %6924 = vmatmul.mubr.bf16.gmra.mrb[0].mxu0 %v6702
      %v6925 = vpop.f32.mrb[0].mxu0
      %v6926 = vadd.f32 0.0, %v6925
      %v6927 = vpop.f32.mrb[0].mxu0
      %v6928 = vpop.f32.mrb[0].mxu0
      %v6929 = vadd.f32 0.0, %v6928
      %v6930 = vpop.f32.mrb[0].mxu0
      %6931 = vmatprep.mubr.bf16.mxu0 0
      %6932 = vmatmul.mubr.bf16.gmra.mrb[0].mxu0 %v6703
      %v6933 = vpop.f32.mrb[0].mxu0
      %v6934 = vadd.f32 0.0, %v6933
      %v6935 = vpop.f32.mrb[0].mxu0
      %v6936 = vpop.f32.mrb[0].mxu0
      %v6937 = vadd.f32 0.0, %v6936
      %v6938 = vpop.f32.mrb[0].mxu0
      %6939 = vmatprep.mubr.bf16.mxu0 0
      %6940 = vmatmul.mubr.bf16.gmra.mrb[0].mxu0 %v6704
      %v6941 = vpop.f32.mrb[0].mxu0
      %v6942 = vadd.f32 0.0, %v6941
      %v6943 = vpop.f32.mrb[0].mxu0
      %v6944 = vpop.f32.mrb[0].mxu0
      %v6945 = vadd.f32 0.0, %v6944
      %v6946 = vpop.f32.mrb[0].mxu0
      %6947 = vmatprep.mubr.bf16.mxu0 0
      %6948 = vmatmul.mubr.bf16.gmra.mrb[0].mxu0 %v6705
      %v6949 = vpop.f32.mrb[0].mxu0
      %v6950 = vadd.f32 0.0, %v6949
      %v6951 = vpop.f32.mrb[0].mxu0
      %v6952 = vpop.f32.mrb[0].mxu0
      %v6953 = vadd.f32 0.0, %v6952
      %v6954 = vpop.f32.mrb[0].mxu0
      %6955 = vmatprep.mubr.bf16.mxu0 0
      %6956 = vmatmul.mubr.bf16.gmra.mrb[0].mxu0 %v6706
      %v6957 = vpop.f32.mrb[0].mxu0
      %v6958 = vadd.f32 0.0, %v6957
      %v6959 = vpop.f32.mrb[0].mxu0
      %v6960 = vpop.f32.mrb[0].mxu0
      %v6961 = vadd.f32 0.0, %v6960
      %v6962 = vpop.f32.mrb[0].mxu0
      %6963 = vmatprep.mubr.bf16.mxu0 0
      %6964 = vmatmul.mubr.bf16.gmra.mrb[0].mxu0 %v6707
      %v6965 = vpop.f32.mrb[0].mxu0
      %v6966 = vadd.f32 0.0, %v6965
      %v6967 = vpop.f32.mrb[0].mxu0
      %v6968 = vpop.f32.mrb[0].mxu0
      %v6969 = vadd.f32 0.0, %v6968
      %v6970 = vpop.f32.mrb[0].mxu0
      %6971 = vmatprep.mubr.bf16.mxu0 0
      %6972 = vmatmul.mubr.bf16.gmra.mrb[0].mxu0 %v6708
      %v6973 = vpop.f32.mrb[0].mxu0
      %v6974 = vadd.f32 0.0, %v6973
      %v6975 = vpop.f32.mrb[0].mxu0
      %v6976 = vpop.f32.mrb[0].mxu0
      %v6977 = vadd.f32 0.0, %v6976
      %v6978 = vpop.f32.mrb[0].mxu0
      %6979 = vmatprep.mubr.bf16.mxu0 0
      %6980 = vmatmul.mubr.bf16.gmra.mrb[0].mxu0 %v6709
      %v6981 = vpop.f32.mrb[0].mxu0
      %v6982 = vadd.f32 0.0, %v6981
      %v6983 = vpop.f32.mrb[0].mxu0
      %v6984 = vpop.f32.mrb[0].mxu0
      %v6985 = vadd.f32 0.0, %v6984
      %v6986 = vpop.f32.mrb[0].mxu0
      %6987 = vmatprep.mubr.bf16.mxu0 0
      %6988 = vmatmul.mubr.bf16.gmra.mrb[0].mxu0 %v6710
      %v6989 = vpop.f32.mrb[0].mxu0
      %v6990 = vadd.f32 0.0, %v6989
      %v6991 = vpop.f32.mrb[0].mxu0
      %v6992 = vpop.f32.mrb[0].mxu0
      %v6993 = vadd.f32 0.0, %v6992
      %v6994 = vpop.f32.mrb[0].mxu0
      %6995 = vmatprep.mubr.bf16.mxu0 0
      %6996 = vmatmul.mubr.bf16.gmra.mrb[0].mxu0 %v6711
      %v6997 = vpop.f32.mrb[0].mxu0
      %v6998 = vadd.f32 0.0, %v6997
      %v6999 = vpop.f32.mrb[0].mxu0
      %v7000 = vpop.f32.mrb[0].mxu0
      %v7001 = vadd.f32 0.0, %v7000
      %v7002 = vpop.f32.mrb[0].mxu0
      %7003 = vmatprep.mubr.bf16.mxu0 0
      %7004 = vmatmul.mubr.bf16.gmra.mrb[0].mxu0 %v6712
      %v7005 = vpop.f32.mrb[0].mxu0
      %v7006 = vadd.f32 0.0, %v7005
      %v7007 = vpop.f32.mrb[0].mxu0
      %v7008 = vpop.f32.mrb[0].mxu0
      %v7009 = vadd.f32 0.0, %v7008
      %v7010 = vpop.f32.mrb[0].mxu0
      %7011 = vmatprep.mubr.bf16.mxu0 0
      %7012 = vmatmul.mubr.bf16.gmra.mrb[0].mxu0 %v6713
      %v7013 = vpop.f32.mrb[0].mxu0
      %v7014 = vadd.f32 0.0, %v7013
      %v7015 = vpop.f32.mrb[0].mxu0
      %v7016 = vpop.f32.mrb[0].mxu0
      %v7017 = vadd.f32 0.0, %v7016
      %v7018 = vpop.f32.mrb[0].mxu0
      %7019 = vmatprep.mubr.bf16.mxu0 0
      %7020 = vmatmul.mubr.bf16.gmra.mrb[0].mxu0 %v6714
      %v7021 = vpop.f32.mrb[0].mxu0
      %v7022 = vadd.f32 0.0, %v7021
      %v7023 = vpop.f32.mrb[0].mxu0
      %v7024 = vpop.f32.mrb[0].mxu0
      %v7025 = vadd.f32 0.0, %v7024
      %v7026 = vpop.f32.mrb[0].mxu0
      %7027 = vdwg.mxu0
      %v7028 = vadd.f32 %v6580, %v6814
      %v7029 = vadd.f32 %v6581, %v6817
      %v7030 = vadd.f32 %v6582, %v6822
      %v7031 = vadd.f32 %v6583, %v6825
      %v7032 = vadd.f32 %v6584, %v6830
      %v7033 = vadd.f32 %v6585, %v6833
      %v7034 = vadd.f32 %v6586, %v6838
      %v7035 = vadd.f32 %v6587, %v6841
      %v7036 = vadd.f32 %v6588, %v6846
      %v7037 = vadd.f32 %v6589, %v6849
      %v7038 = vadd.f32 %v6590, %v6854
      %v7039 = vadd.f32 %v6591, %v6857
      %v7040 = vadd.f32 %v6592, %v6862
      %v7041 = vadd.f32 %v6593, %v6865
      %v7042 = vadd.f32 %v6594, %v6870
      %v7043 = vadd.f32 %v6595, %v6873
      %v7044 = vadd.f32 %v6596, %v6878
      %v7045 = vadd.f32 %v6597, %v6881
      %v7046 = vadd.f32 %v6598, %v6886
      %v7047 = vadd.f32 %v6599, %v6889
      %v7048 = vadd.f32 %v6600, %v6894
      %v7049 = vadd.f32 %v6601, %v6897
      %v7050 = vadd.f32 %v6602, %v6902
      %v7051 = vadd.f32 %v6603, %v6905
      %v7052 = vadd.f32 %v6604, %v6910
      %v7053 = vadd.f32 %v6605, %v6913
      %v7054 = vadd.f32 %v6606, %v6918
      %v7055 = vadd.f32 %v6607, %v6921
      %v7056 = vadd.f32 %v6608, %v6926
      %v7057 = vadd.f32 %v6609, %v6929
      %v7058 = vadd.f32 %v6610, %v6934
      %v7059 = vadd.f32 %v6611, %v6937
      %v7060 = vadd.f32 %v6612, %v6942
      %v7061 = vadd.f32 %v6613, %v6945
      %v7062 = vadd.f32 %v6614, %v6950
      %v7063 = vadd.f32 %v6615, %v6953
      %v7064 = vadd.f32 %v6616, %v6958
      %v7065 = vadd.f32 %v6617, %v6961
      %v7066 = vadd.f32 %v6618, %v6966
      %v7067 = vadd.f32 %v6619, %v6969
      %v7068 = vadd.f32 %v6620, %v6974
      %v7069 = vadd.f32 %v6621, %v6977
      %v7070 = vadd.f32 %v6622, %v6982
      %v7071 = vadd.f32 %v6623, %v6985
      %v7072 = vadd.f32 %v6624, %v6990
      %v7073 = vadd.f32 %v6625, %v6993
      %v7074 = vadd.f32 %v6626, %v6998
      %v7075 = vadd.f32 %v6627, %v7001
      %v7076 = vadd.f32 %v6628, %v7006
      %v7077 = vadd.f32 %v6629, %v7009
      %v7078 = vadd.f32 %v6630, %v7014
      %v7079 = vadd.f32 %v6631, %v7017
      %v7080 = vadd.f32 %v6632, %v7022
      %v7081 = vadd.f32 %v6633, %v7025
      %v7082 = vld [vmem:[%s6] sm:$0x1]
      %v7084 = vlaneseq
      %v7085 = vshrl.u32 %v7084, 7
      %v7086 = vsub.s32 0, %v7085
      %v7087 = vrot.slane %v7082, %v7086
      %v7089 = vadd.f32 %v7028, %v7087
      %v7090 = vadd.f32 %v7029, %v7087
      %v7091 = vadd.f32 %v7030, %v7087
      %v7092 = vadd.f32 %v7031, %v7087
      %v7093 = vadd.f32 %v7032, %v7087
      %v7094 = vadd.f32 %v7033, %v7087
      %v7095 = vadd.f32 %v7034, %v7087
      %v7096 = vadd.f32 %v7035, %v7087
      %v7097 = vadd.f32 %v7036, %v7087
      %v7098 = vadd.f32 %v7037, %v7087
      %v7099 = vadd.f32 %v7038, %v7087
      %v7100 = vadd.f32 %v7039, %v7087
      %v7101 = vadd.f32 %v7040, %v7087
      %v7102 = vadd.f32 %v7041, %v7087
      %v7103 = vadd.f32 %v7042, %v7087
      %v7104 = vadd.f32 %v7043, %v7087
      %v7105 = vadd.f32 %v7044, %v7087
      %v7106 = vadd.f32 %v7045, %v7087
      %v7107 = vadd.f32 %v7046, %v7087
      %v7108 = vadd.f32 %v7047, %v7087
      %v7109 = vadd.f32 %v7048, %v7087
      %v7110 = vadd.f32 %v7049, %v7087
      %v7111 = vadd.f32 %v7050, %v7087
      %v7112 = vadd.f32 %v7051, %v7087
      %v7113 = vadd.f32 %v7052, %v7087
      %v7114 = vadd.f32 %v7053, %v7087
      %v7115 = vadd.f32 %v7054, %v7087
      %v7116 = vadd.f32 %v7055, %v7087
      %v7117 = vadd.f32 %v7056, %v7087
      %v7118 = vadd.f32 %v7057, %v7087
      %v7119 = vadd.f32 %v7058, %v7087
      %v7120 = vadd.f32 %v7059, %v7087
      %v7121 = vadd.f32 %v7060, %v7087
      %v7122 = vadd.f32 %v7061, %v7087
      %v7123 = vadd.f32 %v7062, %v7087
      %v7124 = vadd.f32 %v7063, %v7087
      %v7125 = vadd.f32 %v7064, %v7087
      %v7126 = vadd.f32 %v7065, %v7087
      %v7127 = vadd.f32 %v7066, %v7087
      %v7128 = vadd.f32 %v7067, %v7087
      %v7129 = vadd.f32 %v7068, %v7087
      %v7130 = vadd.f32 %v7069, %v7087
      %v7131 = vadd.f32 %v7070, %v7087
      %v7132 = vadd.f32 %v7071, %v7087
      %v7133 = vadd.f32 %v7072, %v7087
      %v7134 = vadd.f32 %v7073, %v7087
      %v7135 = vadd.f32 %v7074, %v7087
      %v7136 = vadd.f32 %v7075, %v7087
      %v7137 = vadd.f32 %v7076, %v7087
      %v7138 = vadd.f32 %v7077, %v7087
      %v7139 = vadd.f32 %v7078, %v7087
      %v7140 = vadd.f32 %v7079, %v7087
      %v7141 = vadd.f32 %v7080, %v7087
      %v7142 = vadd.f32 %v7081, %v7087
      %7143 = vst [vmem:[#allocation4 + $0x19] sm:$0xff] %v7089
      %7144 = vst [vmem:[#allocation4 + $0x21] sm:$0xff] %v7090
      %7145 = vst [vmem:[#allocation4 + $0x29] sm:$0x3] %v7091
      %7146 = vst [vmem:[#allocation4 + $0x31] sm:$0xff] %v7092
      %7147 = vst [vmem:[#allocation4 + $0x39] sm:$0xff] %v7093
      %7148 = vst [vmem:[#allocation4 + $0x41] sm:$0x3] %v7094
      %7149 = vst [vmem:[#allocation4 + $0x49] sm:$0xff] %v7095
      %7150 = vst [vmem:[#allocation4 + $0x51] sm:$0xff] %v7096
      %7151 = vst [vmem:[#allocation4 + $0x59] sm:$0x3] %v7097
      %7152 = vst [vmem:[#allocation4 + $0x61] sm:$0xff] %v7098
      %7153 = vst [vmem:[#allocation4 + $0x69] sm:$0xff] %v7099
      %7154 = vst [vmem:[#allocation4 + $0x71] sm:$0x3] %v7100
      %7155 = vst [vmem:[#allocation4 + $0x79] sm:$0xff] %v7101
      %7156 = vst [vmem:[#allocation4 + $0x81] sm:$0xff] %v7102
      %7157 = vst [vmem:[#allocation4 + $0x89] sm:$0x3] %v7103
      %7158 = vst [vmem:[#allocation4 + $0x91] sm:$0xff] %v7104
      %7159 = vst [vmem:[#allocation4 + $0x99] sm:$0xff] %v7105
      %7160 = vst [vmem:[#allocation4 + $0xa1] sm:$0x3] %v7106
      %7161 = vst [vmem:[#allocation4 + $0xa9] sm:$0xff] %v7107
      %7162 = vst [vmem:[#allocation4 + $0xb1] sm:$0xff] %v7108
      %7163 = vst [vmem:[#allocation4 + $0xb9] sm:$0x3] %v7109
      %7164 = vst [vmem:[#allocation4 + $0xc1] sm:$0xff] %v7110
      %7165 = vst [vmem:[#allocation4 + $0xc9] sm:$0xff] %v7111
      %7166 = vst [vmem:[#allocation4 + $0xd1] sm:$0x3] %v7112
      %7167 = vst [vmem:[#allocation4 + $0xd9] sm:$0xff] %v7113
      %7168 = vst [vmem:[#allocation4 + $0xe1] sm:$0xff] %v7114
      %7169 = vst [vmem:[#allocation4 + $0xe9] sm:$0x3] %v7115
      %7170 = vst [vmem:[#allocation4 + $0xf1] sm:$0xff] %v7116
      %7171 = vst [vmem:[#allocation4 + $0xf9] sm:$0xff] %v7117
      %7172 = vst [vmem:[#allocation4 + $0x101] sm:$0x3] %v7118
      %7173 = vst [vmem:[#allocation4 + $0x109] sm:$0xff] %v7119
      %7174 = vst [vmem:[#allocation4 + $0x111] sm:$0xff] %v7120
      %7175 = vst [vmem:[#allocation4 + $0x119] sm:$0x3] %v7121
      %7176 = vst [vmem:[#allocation4 + $0x121] sm:$0xff] %v7122
      %7177 = vst [vmem:[#allocation4 + $0x129] sm:$0xff] %v7123
      %7178 = vst [vmem:[#allocation4 + $0x131] sm:$0x3] %v7124
      %7179 = vst [vmem:[#allocation4 + $0x139] sm:$0xff] %v7125
      %7180 = vst [vmem:[#allocation4 + $0x141] sm:$0xff] %v7126
      %7181 = vst [vmem:[#allocation4 + $0x149] sm:$0x3] %v7127
      %7182 = vst [vmem:[#allocation4 + $0x151] sm:$0xff] %v7128
      %7183 = vst [vmem:[#allocation4 + $0x159] sm:$0xff] %v7129
      %7184 = vst [vmem:[#allocation4 + $0x161] sm:$0x3] %v7130
      %7185 = vst [vmem:[#allocation4 + $0x169] sm:$0xff] %v7131
      %7186 = vst [vmem:[#allocation4 + $0x171] sm:$0xff] %v7132
      %7187 = vst [vmem:[#allocation4 + $0x179] sm:$0x3] %v7133
      %7188 = vst [vmem:[#allocation4 + $0x181] sm:$0xff] %v7134
      %7189 = vst [vmem:[#allocation4 + $0x189] sm:$0xff] %v7135
      %7190 = vst [vmem:[#allocation4 + $0x191] sm:$0x3] %v7136
      %7191 = vst [vmem:[#allocation4 + $0x199] sm:$0xff] %v7137
      %7192 = vst [vmem:[#allocation4 + $0x1a1] sm:$0xff] %v7138
      %7193 = vst [vmem:[#allocation4 + $0x1a9] sm:$0x3] %v7139
      %7194 = vst [vmem:[#allocation4 + $0x1b1] sm:$0xff] %v7140
      %7195 = vst [vmem:[#allocation4 + $0x1b9] sm:$0xff] %v7141
      %7196 = vst [vmem:[#allocation4 + $0x1c1] sm:$0x3] %v7142
      %v7197 = vld [vmem:[#allocation4] sm:$0xff]
      %v7198 = vld [vmem:[#allocation4 + $0x8] sm:$0xff]
      %v7199 = vld [vmem:[#allocation4 + $0x10] sm:$0xff]
      %v7200 = vld [vmem:[#allocation4 + $0x18] sm:$0xff]
      %v7201 = vld [vmem:[#allocation4 + $0x20] sm:$0xff]
      %v7202 = vld [vmem:[#allocation4 + $0x28] sm:$0xff]
      %v7203 = vld [vmem:[#allocation4 + $0x30] sm:$0xff]
      %v7204 = vld [vmem:[#allocation4 + $0x38] sm:$0xff]
      %v7205 = vld [vmem:[#allocation4 + $0x40] sm:$0xff]
      %v7206 = vld [vmem:[#allocation4 + $0x48] sm:$0xff]
      %v7207 = vld [vmem:[#allocation4 + $0x50] sm:$0xff]
      %v7208 = vld [vmem:[#allocation4 + $0x58] sm:$0xff]
      %v7209 = vld [vmem:[#allocation4 + $0x60] sm:$0xff]
      %v7210 = vld [vmem:[#allocation4 + $0x68] sm:$0xff]
      %v7211 = vld [vmem:[#allocation4 + $0x70] sm:$0xff]
      %v7212 = vld [vmem:[#allocation4 + $0x78] sm:$0xff]
      %v7213 = vld [vmem:[#allocation4 + $0x80] sm:$0xff]
      %v7214 = vld [vmem:[#allocation4 + $0x88] sm:$0xff]
      %v7215 = vld [vmem:[#allocation4 + $0x90] sm:$0xff]
      %v7216 = vld [vmem:[#allocation4 + $0x98] sm:$0xff]
      %v7217 = vld [vmem:[#allocation4 + $0xa0] sm:$0xff]
      %v7218 = vld [vmem:[#allocation4 + $0xa8] sm:$0xff]
      %v7219 = vld [vmem:[#allocation4 + $0xb0] sm:$0xff]
      %v7220 = vld [vmem:[#allocation4 + $0xb8] sm:$0xff]
      %v7221 = vld [vmem:[#allocation4 + $0xc0] sm:$0xff]
      %v7222 = vld [vmem:[#allocation4 + $0xc8] sm:$0xff]
      %v7223 = vld [vmem:[#allocation4 + $0xd0] sm:$0xff]
      %v7224 = vld [vmem:[#allocation4 + $0xd8] sm:$0xff]
      %v7225 = vld [vmem:[#allocation4 + $0xe0] sm:$0xff]
      %v7226 = vld [vmem:[#allocation4 + $0xe8] sm:$0xff]
      %v7227 = vld [vmem:[#allocation4 + $0xf0] sm:$0xff]
      %v7228 = vld [vmem:[#allocation4 + $0xf8] sm:$0xff]
      %v7229 = vld [vmem:[#allocation4 + $0x100] sm:$0xff]
      %v7230 = vld [vmem:[#allocation4 + $0x108] sm:$0xff]
      %v7231 = vld [vmem:[#allocation4 + $0x110] sm:$0xff]
      %v7232 = vld [vmem:[#allocation4 + $0x118] sm:$0xff]
      %v7233 = vld [vmem:[#allocation4 + $0x120] sm:$0xff]
      %v7234 = vld [vmem:[#allocation4 + $0x128] sm:$0xff]
      %v7235 = vld [vmem:[#allocation4 + $0x130] sm:$0xff]
      %v7236 = vld [vmem:[#allocation4 + $0x138] sm:$0xff]
      %v7237 = vld [vmem:[#allocation4 + $0x140] sm:$0xff]
      %v7238 = vld [vmem:[#allocation4 + $0x148] sm:$0xff]
      %v7239 = vld [vmem:[#allocation4 + $0x150] sm:$0xff]
      %v7240 = vld [vmem:[#allocation4 + $0x158] sm:$0xff]
      %v7241 = vld [vmem:[#allocation4 + $0x160] sm:$0xff]
      %v7242 = vld [vmem:[#allocation4 + $0x168] sm:$0xff]
      %v7243 = vld [vmem:[#allocation4 + $0x170] sm:$0xff]
      %v7244 = vld [vmem:[#allocation4 + $0x178] sm:$0xff]
      %v7245 = vld [vmem:[#allocation4 + $0x180] sm:$0xff]
      %v7246 = vld [vmem:[#allocation4 + $0x188] sm:$0xff]
      %v7247 = vld [vmem:[#allocation4 + $0x190] sm:$0xff]
      %v7248 = vld [vmem:[#allocation4 + $0x198] sm:$0xff]
      %v7249 = vld [vmem:[#allocation4 + $0x1a0] sm:$0xff]
      %v7250 = vld [vmem:[#allocation4 + $0x1a8] sm:$0xff]
      %v7251 = vld [vmem:[#allocation4 + $0x1b0] sm:$0xff]
      %v7252 = vld [vmem:[#allocation4 + $0x1b8] sm:$0xff]
      %v7253 = vld [vmem:[#allocation4 + $0x1c0] sm:$0xff]
      %v7254 = vld [vmem:[#allocation4 + $0x1c8] sm:$0xff]
      %v7255 = vld [vmem:[#allocation4 + $0x1d0] sm:$0xff]
      %v7256 = vld [vmem:[#allocation4 + $0x1d8] sm:$0xff]
      %v7257 = vld [vmem:[#allocation4 + $0x1e0] sm:$0xff]
      %v7258 = vld [vmem:[#allocation4 + $0x1e8] sm:$0xff]
      %v7259 = vld [vmem:[#allocation4 + $0x1f0] sm:$0xff]
      %v7260 = vld [vmem:[#allocation4 + $0x1f8] sm:$0xff]
      %v7261 = vpack.c.bf16 %v7198, %v7197
      %v7262 = vpack.c.bf16 %v7200, %v7199
      %v7263 = vpack.c.bf16 %v7202, %v7201
      %v7264 = vpack.c.bf16 %v7204, %v7203
      %v7265 = vpack.c.bf16 %v7206, %v7205
      %v7266 = vpack.c.bf16 %v7208, %v7207
      %v7267 = vpack.c.bf16 %v7210, %v7209
      %v7268 = vpack.c.bf16 %v7212, %v7211
      %v7269 = vpack.c.bf16 %v7214, %v7213
      %v7270 = vpack.c.bf16 %v7216, %v7215
      %v7271 = vpack.c.bf16 %v7218, %v7217
      %v7272 = vpack.c.bf16 %v7220, %v7219
      %v7273 = vpack.c.bf16 %v7222, %v7221
      %v7274 = vpack.c.bf16 %v7224, %v7223
      %v7275 = vpack.c.bf16 %v7226, %v7225
      %v7276 = vpack.c.bf16 %v7228, %v7227
      %v7277 = vpack.c.bf16 %v7230, %v7229
      %v7278 = vpack.c.bf16 %v7232, %v7231
      %v7279 = vpack.c.bf16 %v7234, %v7233
      %v7280 = vpack.c.bf16 %v7236, %v7235
      %v7281 = vpack.c.bf16 %v7238, %v7237
      %v7282 = vpack.c.bf16 %v7240, %v7239
      %v7283 = vpack.c.bf16 %v7242, %v7241
      %v7284 = vpack.c.bf16 %v7244, %v7243
      %v7285 = vpack.c.bf16 %v7246, %v7245
      %v7286 = vpack.c.bf16 %v7248, %v7247
      %v7287 = vpack.c.bf16 %v7250, %v7249
      %v7288 = vpack.c.bf16 %v7252, %v7251
      %v7289 = vpack.c.bf16 %v7254, %v7253
      %v7290 = vpack.c.bf16 %v7256, %v7255
      %v7291 = vpack.c.bf16 %v7258, %v7257
      %v7292 = vpack.c.bf16 %v7260, %v7259
      %v7293 = vld [vmem:[%s7] sm:$0xf]
      %v7294 = vld [vmem:[#allocation4 + $0x1] sm:$0xff]
      %v7295 = vld [vmem:[#allocation4 + $0x9] sm:$0xff]
      %v7296 = vld [vmem:[#allocation4 + $0x11] sm:$0xff]
      %v7297 = vld [vmem:[#allocation4 + $0x19] sm:$0xff]
      %v7298 = vld [vmem:[#allocation4 + $0x21] sm:$0xff]
      %v7299 = vld [vmem:[#allocation4 + $0x29] sm:$0xff]
      %v7300 = vld [vmem:[#allocation4 + $0x31] sm:$0xff]
      %v7301 = vld [vmem:[#allocation4 + $0x39] sm:$0xff]
      %v7302 = vld [vmem:[#allocation4 + $0x41] sm:$0xff]
      %v7303 = vld [vmem:[#allocation4 + $0x49] sm:$0xff]
      %v7304 = vld [vmem:[#allocation4 + $0x51] sm:$0xff]
      %v7305 = vld [vmem:[#allocation4 + $0x59] sm:$0xff]
      %v7306 = vld [vmem:[#allocation4 + $0x61] sm:$0xff]
      %v7307 = vld [vmem:[#allocation4 + $0x69] sm:$0xff]
      %v7308 = vld [vmem:[#allocation4 + $0x71] sm:$0xff]
      %v7309 = vld [vmem:[#allocation4 + $0x79] sm:$0xff]
      %v7310 = vld [vmem:[#allocation4 + $0x81] sm:$0xff]
      %v7311 = vld [vmem:[#allocation4 + $0x89] sm:$0xff]
      %v7312 = vld [vmem:[#allocation4 + $0x91] sm:$0xff]
      %v7313 = vld [vmem:[#allocation4 + $0x99] sm:$0xff]
      %v7314 = vld [vmem:[#allocation4 + $0xa1] sm:$0xff]
      %v7315 = vld [vmem:[#allocation4 + $0xa9] sm:$0xff]
      %v7316 = vld [vmem:[#allocation4 + $0xb1] sm:$0xff]
      %v7317 = vld [vmem:[#allocation4 + $0xb9] sm:$0xff]
      %v7318 = vld [vmem:[#allocation4 + $0xc1] sm:$0xff]
      %v7319 = vld [vmem:[#allocation4 + $0xc9] sm:$0xff]
      %v7320 = vld [vmem:[#allocation4 + $0xd1] sm:$0xff]
      %v7321 = vld [vmem:[#allocation4 + $0xd9] sm:$0xff]
      %v7322 = vld [vmem:[#allocation4 + $0xe1] sm:$0xff]
      %v7323 = vld [vmem:[#allocation4 + $0xe9] sm:$0xff]
      %v7324 = vld [vmem:[#allocation4 + $0xf1] sm:$0xff]
      %v7325 = vld [vmem:[#allocation4 + $0xf9] sm:$0xff]
      %v7326 = vld [vmem:[#allocation4 + $0x101] sm:$0xff]
      %v7327 = vld [vmem:[#allocation4 + $0x109] sm:$0xff]
      %v7328 = vld [vmem:[#allocation4 + $0x111] sm:$0xff]
      %v7329 = vld [vmem:[#allocation4 + $0x119] sm:$0xff]
      %v7330 = vld [vmem:[#allocation4 + $0x121] sm:$0xff]
      %v7331 = vld [vmem:[#allocation4 + $0x129] sm:$0xff]
      %v7332 = vld [vmem:[#allocation4 + $0x131] sm:$0xff]
      %v7333 = vld [vmem:[#allocation4 + $0x139] sm:$0xff]
      %v7334 = vld [vmem:[#allocation4 + $0x141] sm:$0xff]
      %v7335 = vld [vmem:[#allocation4 + $0x149] sm:$0xff]
      %v7336 = vld [vmem:[#allocation4 + $0x151] sm:$0xff]
      %v7337 = vld [vmem:[#allocation4 + $0x159] sm:$0xff]
      %v7338 = vld [vmem:[#allocation4 + $0x161] sm:$0xff]
      %v7339 = vld [vmem:[#allocation4 + $0x169] sm:$0xff]
      %v7340 = vld [vmem:[#allocation4 + $0x171] sm:$0xff]
      %v7341 = vld [vmem:[#allocation4 + $0x179] sm:$0xff]
      %v7342 = vld [vmem:[#allocation4 + $0x181] sm:$0xff]
      %v7343 = vld [vmem:[#allocation4 + $0x189] sm:$0xff]
      %v7344 = vld [vmem:[#allocation4 + $0x191] sm:$0xff]
      %v7345 = vld [vmem:[#allocation4 + $0x199] sm:$0xff]
      %v7346 = vld [vmem:[#allocation4 + $0x1a1] sm:$0xff]
      %v7347 = vld [vmem:[#allocation4 + $0x1a9] sm:$0xff]
      %v7348 = vld [vmem:[#allocation4 + $0x1b1] sm:$0xff]
      %v7349 = vld [vmem:[#allocation4 + $0x1b9] sm:$0xff]
      %v7350 = vld [vmem:[#allocation4 + $0x1c1] sm:$0xff]
      %v7351 = vld [vmem:[#allocation4 + $0x1c9] sm:$0xff]
      %v7352 = vld [vmem:[#allocation4 + $0x1d1] sm:$0xff]
      %v7353 = vld [vmem:[#allocation4 + $0x1d9] sm:$0xff]
      %v7354 = vld [vmem:[#allocation4 + $0x1e1] sm:$0xff]
      %v7355 = vld [vmem:[#allocation4 + $0x1e9] sm:$0xff]
      %v7356 = vld [vmem:[#allocation4 + $0x1f1] sm:$0xff]
      %v7357 = vld [vmem:[#allocation4 + $0x1f9] sm:$0xff]
      %v7358 = vpack.c.bf16 %v7295, %v7294
      %v7359 = vpack.c.bf16 %v7297, %v7296
      %v7360 = vpack.c.bf16 %v7299, %v7298
      %v7361 = vpack.c.bf16 %v7301, %v7300
      %v7362 = vpack.c.bf16 %v7303, %v7302
      %v7363 = vpack.c.bf16 %v7305, %v7304
      %v7364 = vpack.c.bf16 %v7307, %v7306
      %v7365 = vpack.c.bf16 %v7309, %v7308
      %v7366 = vpack.c.bf16 %v7311, %v7310
      %v7367 = vpack.c.bf16 %v7313, %v7312
      %v7368 = vpack.c.bf16 %v7315, %v7314
      %v7369 = vpack.c.bf16 %v7317, %v7316
      %v7370 = vpack.c.bf16 %v7319, %v7318
      %v7371 = vpack.c.bf16 %v7321, %v7320
      %v7372 = vpack.c.bf16 %v7323, %v7322
      %v7373 = vpack.c.bf16 %v7325, %v7324
      %v7374 = vpack.c.bf16 %v7327, %v7326
      %v7375 = vpack.c.bf16 %v7329, %v7328
      %v7376 = vpack.c.bf16 %v7331, %v7330
      %v7377 = vpack.c.bf16 %v7333, %v7332
      %v7378 = vpack.c.bf16 %v7335, %v7334
      %v7379 = vpack.c.bf16 %v7337, %v7336
      %v7380 = vpack.c.bf16 %v7339, %v7338
      %v7381 = vpack.c.bf16 %v7341, %v7340
      %v7382 = vpack.c.bf16 %v7343, %v7342
      %v7383 = vpack.c.bf16 %v7345, %v7344
      %v7384 = vpack.c.bf16 %v7347, %v7346
      %v7385 = vpack.c.bf16 %v7349, %v7348
      %v7386 = vpack.c.bf16 %v7351, %v7350
      %v7387 = vpack.c.bf16 %v7353, %v7352
      %v7388 = vpack.c.bf16 %v7355, %v7354
      %v7389 = vpack.c.bf16 %v7357, %v7356
      %v7390 = vld [vmem:[%s7 + $0x4] sm:$0xf]
      %7391 = vmatprep.subr.bf16.mxu0 0
      %7392 = vmatpush1.bf16.xpose.msra.mxu0 %v7358
      %7393 = vmatprep.subr.bf16.mxu0 0
      %7394 = vmatpush1.bf16.xpose.msra.mxu0 %v7359
      %7395 = vmatprep.subr.bf16.mxu0 0
      %7396 = vmatpush1.bf16.xpose.msra.mxu0 %v7360
      %7397 = vmatprep.subr.bf16.mxu0 0
      %7398 = vmatpush1.bf16.xpose.msra.mxu0 %v7361
      %7399 = vmatprep.subr.bf16.mxu0 0
      %7400 = vmatpush1.bf16.xpose.msra.mxu0 %v7362
      %7401 = vmatprep.subr.bf16.mxu0 0
      %7402 = vmatpush1.bf16.xpose.msra.mxu0 %v7363
      %7403 = vmatprep.subr.bf16.mxu0 0
      %7404 = vmatpush1.bf16.xpose.msra.mxu0 %v7364
      %7405 = vmatprep.subr.bf16.mxu0 0
      %7406 = vmatpush1.bf16.xpose.msra.mxu0 %v7365
      %7407 = vmatprep.subr.bf16.mxu0 0
      %7408 = vmatpush1.bf16.xpose.msra.mxu0 %v7366
      %7409 = vmatprep.subr.bf16.mxu0 0
      %7410 = vmatpush1.bf16.xpose.msra.mxu0 %v7367
      %7411 = vmatprep.subr.bf16.mxu0 0
      %7412 = vmatpush1.bf16.xpose.msra.mxu0 %v7368
      %7413 = vmatprep.subr.bf16.mxu0 0
      %7414 = vmatpush1.bf16.xpose.msra.mxu0 %v7369
      %7415 = vmatprep.subr.bf16.mxu0 0
      %7416 = vmatpush1.bf16.xpose.msra.mxu0 %v7370
      %7417 = vmatprep.subr.bf16.mxu0 0
      %7418 = vmatpush1.bf16.xpose.msra.mxu0 %v7371
      %7419 = vmatprep.subr.bf16.mxu0 0
      %7420 = vmatpush1.bf16.xpose.msra.mxu0 %v7372
      %7421 = vmatprep.subr.bf16.mxu0 0
      %7422 = vmatpush1.bf16.xpose.msra.mxu0 %v7373
      %7423 = vmatprep.mubr.bf16.mxu0 0
      %7424 = vmatmul.mubr.bf16.gmra.mrb[0].mxu0 %v7390
      %v7425 = vpop.f32.mrb[0].mxu0
      %v7426 = vadd.f32 0.0, %v7425
      %v7427 = vpop.f32.mrb[0].mxu0
      %v7428 = vadd.f32 0.0, %v7427
      %v7429 = vpop.f32.mrb[0].mxu0
      %v7430 = vpop.f32.mrb[0].mxu0
      %7431 = vdwg.mxu0
      %7432 = vmatprep.subr.bf16.mxu0 0
      %7433 = vmatpush1.bf16.xpose.msra.mxu0 %v7374
      %7434 = vmatprep.subr.bf16.mxu0 0
      %7435 = vmatpush1.bf16.xpose.msra.mxu0 %v7375
      %7436 = vmatprep.subr.bf16.mxu0 0
      %7437 = vmatpush1.bf16.xpose.msra.mxu0 %v7376
      %7438 = vmatprep.subr.bf16.mxu0 0
      %7439 = vmatpush1.bf16.xpose.msra.mxu0 %v7377
      %7440 = vmatprep.subr.bf16.mxu0 0
      %7441 = vmatpush1.bf16.xpose.msra.mxu0 %v7378
      %7442 = vmatprep.subr.bf16.mxu0 0
      %7443 = vmatpush1.bf16.xpose.msra.mxu0 %v7379
      %7444 = vmatprep.subr.bf16.mxu0 0
      %7445 = vmatpush1.bf16.xpose.msra.mxu0 %v7380
      %7446 = vmatprep.subr.bf16.mxu0 0
      %7447 = vmatpush1.bf16.xpose.msra.mxu0 %v7381
      %7448 = vmatprep.subr.bf16.mxu0 0
      %7449 = vmatpush1.bf16.xpose.msra.mxu0 %v7382
      %7450 = vmatprep.subr.bf16.mxu0 0
      %7451 = vmatpush1.bf16.xpose.msra.mxu0 %v7383
      %7452 = vmatprep.subr.bf16.mxu0 0
      %7453 = vmatpush1.bf16.xpose.msra.mxu0 %v7384
      %7454 = vmatprep.subr.bf16.mxu0 0
      %7455 = vmatpush1.bf16.xpose.msra.mxu0 %v7385
      %7456 = vmatprep.subr.bf16.mxu0 0
      %7457 = vmatpush1.bf16.xpose.msra.mxu0 %v7386
      %7458 = vmatprep.subr.bf16.mxu0 0
      %7459 = vmatpush1.bf16.xpose.msra.mxu0 %v7387
      %7460 = vmatprep.subr.bf16.mxu0 0
      %7461 = vmatpush1.bf16.xpose.msra.mxu0 %v7388
      %7462 = vmatprep.subr.bf16.mxu0 0
      %7463 = vmatpush1.bf16.xpose.msra.mxu0 %v7389
      %7464 = vmatprep.mubr.bf16.mxu0 0
      %7465 = vmatmul.mubr.bf16.gmra.mrb[0].mxu0 %v7390
      %v7466 = vpop.f32.mrb[0].mxu0
      %v7467 = vadd.f32 0.0, %v7466
      %v7468 = vpop.f32.mrb[0].mxu0
      %v7469 = vadd.f32 0.0, %v7468
      %v7470 = vpop.f32.mrb[0].mxu0
      %v7471 = vpop.f32.mrb[0].mxu0
      %7472 = vdwg.mxu0
      %7473 = vmatprep.subr.bf16.mxu0 0
      %7474 = vmatpush1.bf16.xpose.msra.mxu0 %v7261
      %7475 = vmatprep.subr.bf16.mxu0 0
      %7476 = vmatpush1.bf16.xpose.msra.mxu0 %v7262
      %7477 = vmatprep.subr.bf16.mxu0 0
      %7478 = vmatpush1.bf16.xpose.msra.mxu0 %v7263
      %7479 = vmatprep.subr.bf16.mxu0 0
      %7480 = vmatpush1.bf16.xpose.msra.mxu0 %v7264
      %7481 = vmatprep.subr.bf16.mxu0 0
      %7482 = vmatpush1.bf16.xpose.msra.mxu0 %v7265
      %7483 = vmatprep.subr.bf16.mxu0 0
      %7484 = vmatpush1.bf16.xpose.msra.mxu0 %v7266
      %7485 = vmatprep.subr.bf16.mxu0 0
      %7486 = vmatpush1.bf16.xpose.msra.mxu0 %v7267
      %7487 = vmatprep.subr.bf16.mxu0 0
      %7488 = vmatpush1.bf16.xpose.msra.mxu0 %v7268
      %7489 = vmatprep.subr.bf16.mxu0 0
      %7490 = vmatpush1.bf16.xpose.msra.mxu0 %v7269
      %7491 = vmatprep.subr.bf16.mxu0 0
      %7492 = vmatpush1.bf16.xpose.msra.mxu0 %v7270
      %7493 = vmatprep.subr.bf16.mxu0 0
      %7494 = vmatpush1.bf16.xpose.msra.mxu0 %v7271
      %7495 = vmatprep.subr.bf16.mxu0 0
      %7496 = vmatpush1.bf16.xpose.msra.mxu0 %v7272
      %7497 = vmatprep.subr.bf16.mxu0 0
      %7498 = vmatpush1.bf16.xpose.msra.mxu0 %v7273
      %7499 = vmatprep.subr.bf16.mxu0 0
      %7500 = vmatpush1.bf16.xpose.msra.mxu0 %v7274
      %7501 = vmatprep.subr.bf16.mxu0 0
      %7502 = vmatpush1.bf16.xpose.msra.mxu0 %v7275
      %7503 = vmatprep.subr.bf16.mxu0 0
      %7504 = vmatpush1.bf16.xpose.msra.mxu0 %v7276
      %7505 = vmatprep.mubr.bf16.mxu0 0
      %7506 = vmatmul.mubr.bf16.gmra.mrb[0].mxu0 %v7293
      %v7507 = vpop.f32.mrb[0].mxu0
      %v7508 = vadd.f32 %v7426, %v7507
      %v7509 = vpop.f32.mrb[0].mxu0
      %v7510 = vadd.f32 %v7428, %v7509
      %v7511 = vpop.f32.mrb[0].mxu0
      %v7512 = vpop.f32.mrb[0].mxu0
      %7513 = vdwg.mxu0
      %7514 = vmatprep.subr.bf16.mxu0 0
      %7515 = vmatpush1.bf16.xpose.msra.mxu0 %v7277
      %7516 = vmatprep.subr.bf16.mxu0 0
      %7517 = vmatpush1.bf16.xpose.msra.mxu0 %v7278
      %7518 = vmatprep.subr.bf16.mxu0 0
      %7519 = vmatpush1.bf16.xpose.msra.mxu0 %v7279
      %7520 = vmatprep.subr.bf16.mxu0 0
      %7521 = vmatpush1.bf16.xpose.msra.mxu0 %v7280
      %7522 = vmatprep.subr.bf16.mxu0 0
      %7523 = vmatpush1.bf16.xpose.msra.mxu0 %v7281
      %7524 = vmatprep.subr.bf16.mxu0 0
      %7525 = vmatpush1.bf16.xpose.msra.mxu0 %v7282
      %7526 = vmatprep.subr.bf16.mxu0 0
      %7527 = vmatpush1.bf16.xpose.msra.mxu0 %v7283
      %7528 = vmatprep.subr.bf16.mxu0 0
      %7529 = vmatpush1.bf16.xpose.msra.mxu0 %v7284
      %7530 = vmatprep.subr.bf16.mxu0 0
      %7531 = vmatpush1.bf16.xpose.msra.mxu0 %v7285
      %7532 = vmatprep.subr.bf16.mxu0 0
      %7533 = vmatpush1.bf16.xpose.msra.mxu0 %v7286
      %7534 = vmatprep.subr.bf16.mxu0 0
      %7535 = vmatpush1.bf16.xpose.msra.mxu0 %v7287
      %7536 = vmatprep.subr.bf16.mxu0 0
      %7537 = vmatpush1.bf16.xpose.msra.mxu0 %v7288
      %7538 = vmatprep.subr.bf16.mxu0 0
      %7539 = vmatpush1.bf16.xpose.msra.mxu0 %v7289
      %7540 = vmatprep.subr.bf16.mxu0 0
      %7541 = vmatpush1.bf16.xpose.msra.mxu0 %v7290
      %7542 = vmatprep.subr.bf16.mxu0 0
      %7543 = vmatpush1.bf16.xpose.msra.mxu0 %v7291
      %7544 = vmatprep.subr.bf16.mxu0 0
      %7545 = vmatpush1.bf16.xpose.msra.mxu0 %v7292
      %7546 = vmatprep.mubr.bf16.mxu0 0
      %7547 = vmatmul.mubr.bf16.gmra.mrb[0].mxu0 %v7293
      %v7548 = vpop.f32.mrb[0].mxu0
      %v7549 = vadd.f32 %v7467, %v7548
      %v7550 = vpop.f32.mrb[0].mxu0
      %v7551 = vadd.f32 %v7469, %v7550
      %v7552 = vpop.f32.mrb[0].mxu0
      %v7553 = vpop.f32.mrb[0].mxu0
      %7554 = vdwg.mxu0
      %v7555 = vld [vmem:[#allocation4 + $0x2] sm:$0xff]
      %v7556 = vld [vmem:[#allocation4 + $0xa] sm:$0xff]
      %v7557 = vld [vmem:[#allocation4 + $0x12] sm:$0xff]
      %v7558 = vld [vmem:[#allocation4 + $0x1a] sm:$0xff]
      %v7559 = vld [vmem:[#allocation4 + $0x22] sm:$0xff]
      %v7560 = vld [vmem:[#allocation4 + $0x2a] sm:$0xff]
      %v7561 = vld [vmem:[#allocation4 + $0x32] sm:$0xff]
      %v7562 = vld [vmem:[#allocation4 + $0x3a] sm:$0xff]
      %v7563 = vld [vmem:[#allocation4 + $0x42] sm:$0xff]
      %v7564 = vld [vmem:[#allocation4 + $0x4a] sm:$0xff]
      %v7565 = vld [vmem:[#allocation4 + $0x52] sm:$0xff]
      %v7566 = vld [vmem:[#allocation4 + $0x5a] sm:$0xff]
      %v7567 = vld [vmem:[#allocation4 + $0x62] sm:$0xff]
      %v7568 = vld [vmem:[#allocation4 + $0x6a] sm:$0xff]
      %v7569 = vld [vmem:[#allocation4 + $0x72] sm:$0xff]
      %v7570 = vld [vmem:[#allocation4 + $0x7a] sm:$0xff]
      %v7571 = vld [vmem:[#allocation4 + $0x82] sm:$0xff]
      %v7572 = vld [vmem:[#allocation4 + $0x8a] sm:$0xff]
      %v7573 = vld [vmem:[#allocation4 + $0x92] sm:$0xff]
      %v7574 = vld [vmem:[#allocation4 + $0x9a] sm:$0xff]
      %v7575 = vld [vmem:[#allocation4 + $0xa2] sm:$0xff]
      %v7576 = vld [vmem:[#allocation4 + $0xaa] sm:$0xff]
      %v7577 = vld [vmem:[#allocation4 + $0xb2] sm:$0xff]
      %v7578 = vld [vmem:[#allocation4 + $0xba] sm:$0xff]
      %v7579 = vld [vmem:[#allocation4 + $0xc2] sm:$0xff]
      %v7580 = vld [vmem:[#allocation4 + $0xca] sm:$0xff]
      %v7581 = vld [vmem:[#allocation4 + $0xd2] sm:$0xff]
      %v7582 = vld [vmem:[#allocation4 + $0xda] sm:$0xff]
      %v7583 = vld [vmem:[#allocation4 + $0xe2] sm:$0xff]
      %v7584 = vld [vmem:[#allocation4 + $0xea] sm:$0xff]
      %v7585 = vld [vmem:[#allocation4 + $0xf2] sm:$0xff]
      %v7586 = vld [vmem:[#allocation4 + $0xfa] sm:$0xff]
      %v7587 = vld [vmem:[#allocation4 + $0x102] sm:$0xff]
      %v7588 = vld [vmem:[#allocation4 + $0x10a] sm:$0xff]
      %v7589 = vld [vmem:[#allocation4 + $0x112] sm:$0xff]
      %v7590 = vld [vmem:[#allocation4 + $0x11a] sm:$0xff]
      %v7591 = vld [vmem:[#allocation4 + $0x122] sm:$0xff]
      %v7592 = vld [vmem:[#allocation4 + $0x12a] sm:$0xff]
      %v7593 = vld [vmem:[#allocation4 + $0x132] sm:$0xff]
      %v7594 = vld [vmem:[#allocation4 + $0x13a] sm:$0xff]
      %v7595 = vld [vmem:[#allocation4 + $0x142] sm:$0xff]
      %v7596 = vld [vmem:[#allocation4 + $0x14a] sm:$0xff]
      %v7597 = vld [vmem:[#allocation4 + $0x152] sm:$0xff]
      %v7598 = vld [vmem:[#allocation4 + $0x15a] sm:$0xff]
      %v7599 = vld [vmem:[#allocation4 + $0x162] sm:$0xff]
      %v7600 = vld [vmem:[#allocation4 + $0x16a] sm:$0xff]
      %v7601 = vld [vmem:[#allocation4 + $0x172] sm:$0xff]
      %v7602 = vld [vmem:[#allocation4 + $0x17a] sm:$0xff]
      %v7603 = vld [vmem:[#allocation4 + $0x182] sm:$0xff]
      %v7604 = vld [vmem:[#allocation4 + $0x18a] sm:$0xff]
      %v7605 = vld [vmem:[#allocation4 + $0x192] sm:$0xff]
      %v7606 = vld [vmem:[#allocation4 + $0x19a] sm:$0xff]
      %v7607 = vld [vmem:[#allocation4 + $0x1a2] sm:$0xff]
      %v7608 = vld [vmem:[#allocation4 + $0x1aa] sm:$0xff]
      %v7609 = vld [vmem:[#allocation4 + $0x1b2] sm:$0xff]
      %v7610 = vld [vmem:[#allocation4 + $0x1ba] sm:$0xff]
      %v7611 = vld [vmem:[#allocation4 + $0x1c2] sm:$0xff]
      %v7612 = vld [vmem:[#allocation4 + $0x1ca] sm:$0xff]
      %v7613 = vld [vmem:[#allocation4 + $0x1d2] sm:$0xff]
      %v7614 = vld [vmem:[#allocation4 + $0x1da] sm:$0xff]
      %v7615 = vld [vmem:[#allocation4 + $0x1e2] sm:$0xff]
      %v7616 = vld [vmem:[#allocation4 + $0x1ea] sm:$0xff]
      %v7617 = vld [vmem:[#allocation4 + $0x1f2] sm:$0xff]
      %v7618 = vld [vmem:[#allocation4 + $0x1fa] sm:$0xff]
      %v7619 = vpack.c.bf16 %v7556, %v7555
      %v7620 = vpack.c.bf16 %v7558, %v7557
      %v7621 = vpack.c.bf16 %v7560, %v7559
      %v7622 = vpack.c.bf16 %v7562, %v7561
      %v7623 = vpack.c.bf16 %v7564, %v7563
      %v7624 = vpack.c.bf16 %v7566, %v7565
      %v7625 = vpack.c.bf16 %v7568, %v7567
      %v7626 = vpack.c.bf16 %v7570, %v7569
      %v7627 = vpack.c.bf16 %v7572, %v7571
      %v7628 = vpack.c.bf16 %v7574, %v7573
      %v7629 = vpack.c.bf16 %v7576, %v7575
      %v7630 = vpack.c.bf16 %v7578, %v7577
      %v7631 = vpack.c.bf16 %v7580, %v7579
      %v7632 = vpack.c.bf16 %v7582, %v7581
      %v7633 = vpack.c.bf16 %v7584, %v7583
      %v7634 = vpack.c.bf16 %v7586, %v7585
      %v7635 = vpack.c.bf16 %v7588, %v7587
      %v7636 = vpack.c.bf16 %v7590, %v7589
      %v7637 = vpack.c.bf16 %v7592, %v7591
      %v7638 = vpack.c.bf16 %v7594, %v7593
      %v7639 = vpack.c.bf16 %v7596, %v7595
      %v7640 = vpack.c.bf16 %v7598, %v7597
      %v7641 = vpack.c.bf16 %v7600, %v7599
      %v7642 = vpack.c.bf16 %v7602, %v7601
      %v7643 = vpack.c.bf16 %v7604, %v7603
      %v7644 = vpack.c.bf16 %v7606, %v7605
      %v7645 = vpack.c.bf16 %v7608, %v7607
      %v7646 = vpack.c.bf16 %v7610, %v7609
      %v7647 = vpack.c.bf16 %v7612, %v7611
      %v7648 = vpack.c.bf16 %v7614, %v7613
      %v7649 = vpack.c.bf16 %v7616, %v7615
      %v7650 = vpack.c.bf16 %v7618, %v7617
      %v7651 = vld [vmem:[%s7 + $0x8] sm:$0xf]
      %7652 = vmatprep.subr.bf16.mxu0 0
      %7653 = vmatpush1.bf16.xpose.msra.mxu0 %v7619
      %7654 = vmatprep.subr.bf16.mxu0 0
      %7655 = vmatpush1.bf16.xpose.msra.mxu0 %v7620
      %7656 = vmatprep.subr.bf16.mxu0 0
      %7657 = vmatpush1.bf16.xpose.msra.mxu0 %v7621
      %7658 = vmatprep.subr.bf16.mxu0 0
      %7659 = vmatpush1.bf16.xpose.msra.mxu0 %v7622
      %7660 = vmatprep.subr.bf16.mxu0 0
      %7661 = vmatpush1.bf16.xpose.msra.mxu0 %v7623
      %7662 = vmatprep.subr.bf16.mxu0 0
      %7663 = vmatpush1.bf16.xpose.msra.mxu0 %v7624
      %7664 = vmatprep.subr.bf16.mxu0 0
      %7665 = vmatpush1.bf16.xpose.msra.mxu0 %v7625
      %7666 = vmatprep.subr.bf16.mxu0 0
      %7667 = vmatpush1.bf16.xpose.msra.mxu0 %v7626
      %7668 = vmatprep.subr.bf16.mxu0 0
      %7669 = vmatpush1.bf16.xpose.msra.mxu0 %v7627
      %7670 = vmatprep.subr.bf16.mxu0 0
      %7671 = vmatpush1.bf16.xpose.msra.mxu0 %v7628
      %7672 = vmatprep.subr.bf16.mxu0 0
      %7673 = vmatpush1.bf16.xpose.msra.mxu0 %v7629
      %7674 = vmatprep.subr.bf16.mxu0 0
      %7675 = vmatpush1.bf16.xpose.msra.mxu0 %v7630
      %7676 = vmatprep.subr.bf16.mxu0 0
      %7677 = vmatpush1.bf16.xpose.msra.mxu0 %v7631
      %7678 = vmatprep.subr.bf16.mxu0 0
      %7679 = vmatpush1.bf16.xpose.msra.mxu0 %v7632
      %7680 = vmatprep.subr.bf16.mxu0 0
      %7681 = vmatpush1.bf16.xpose.msra.mxu0 %v7633
      %7682 = vmatprep.subr.bf16.mxu0 0
      %7683 = vmatpush1.bf16.xpose.msra.mxu0 %v7634
      %7684 = vmatprep.mubr.bf16.mxu0 0
      %7685 = vmatmul.mubr.bf16.gmra.mrb[0].mxu0 %v7651
      %v7686 = vpop.f32.mrb[0].mxu0
      %v7687 = vadd.f32 0.0, %v7686
      %v7688 = vpop.f32.mrb[0].mxu0
      %v7689 = vadd.f32 0.0, %v7688
      %v7690 = vpop.f32.mrb[0].mxu0
      %v7691 = vpop.f32.mrb[0].mxu0
      %7692 = vdwg.mxu0
      %7693 = vmatprep.subr.bf16.mxu0 0
      %7694 = vmatpush1.bf16.xpose.msra.mxu0 %v7635
      %7695 = vmatprep.subr.bf16.mxu0 0
      %7696 = vmatpush1.bf16.xpose.msra.mxu0 %v7636
      %7697 = vmatprep.subr.bf16.mxu0 0
      %7698 = vmatpush1.bf16.xpose.msra.mxu0 %v7637
      %7699 = vmatprep.subr.bf16.mxu0 0
      %7700 = vmatpush1.bf16.xpose.msra.mxu0 %v7638
      %7701 = vmatprep.subr.bf16.mxu0 0
      %7702 = vmatpush1.bf16.xpose.msra.mxu0 %v7639
      %7703 = vmatprep.subr.bf16.mxu0 0
      %7704 = vmatpush1.bf16.xpose.msra.mxu0 %v7640
      %7705 = vmatprep.subr.bf16.mxu0 0
      %7706 = vmatpush1.bf16.xpose.msra.mxu0 %v7641
      %7707 = vmatprep.subr.bf16.mxu0 0
      %7708 = vmatpush1.bf16.xpose.msra.mxu0 %v7642
      %7709 = vmatprep.subr.bf16.mxu0 0
      %7710 = vmatpush1.bf16.xpose.msra.mxu0 %v7643
      %7711 = vmatprep.subr.bf16.mxu0 0
      %7712 = vmatpush1.bf16.xpose.msra.mxu0 %v7644
      %7713 = vmatprep.subr.bf16.mxu0 0
      %7714 = vmatpush1.bf16.xpose.msra.mxu0 %v7645
      %7715 = vmatprep.subr.bf16.mxu0 0
      %7716 = vmatpush1.bf16.xpose.msra.mxu0 %v7646
      %7717 = vmatprep.subr.bf16.mxu0 0
      %7718 = vmatpush1.bf16.xpose.msra.mxu0 %v7647
      %7719 = vmatprep.subr.bf16.mxu0 0
      %7720 = vmatpush1.bf16.xpose.msra.mxu0 %v7648
      %7721 = vmatprep.subr.bf16.mxu0 0
      %7722 = vmatpush1.bf16.xpose.msra.mxu0 %v7649
      %7723 = vmatprep.subr.bf16.mxu0 0
      %7724 = vmatpush1.bf16.xpose.msra.mxu0 %v7650
      %7725 = vmatprep.mubr.bf16.mxu0 0
      %7726 = vmatmul.mubr.bf16.gmra.mrb[0].mxu0 %v7651
      %v7727 = vpop.f32.mrb[0].mxu0
      %v7728 = vadd.f32 0.0, %v7727
      %v7729 = vpop.f32.mrb[0].mxu0
      %v7730 = vadd.f32 0.0, %v7729
      %v7731 = vpop.f32.mrb[0].mxu0
      %v7732 = vpop.f32.mrb[0].mxu0
      %7733 = vdwg.mxu0
      %v7734 = vadd.f32 %v7508, %v7687
      %v7735 = vadd.f32 %v7510, %v7689
      %v7736 = vadd.f32 %v7549, %v7728
      %v7737 = vadd.f32 %v7551, %v7730
      %v7738 = vld [vmem:[#allocation4 + $0x18] sm:$0xff]
      %v7739 = vld [vmem:[#allocation4 + $0x20] sm:$0xff]
      %v7740 = vld [vmem:[#allocation4 + $0x28] sm:$0xff]
      %v7741 = vld [vmem:[#allocation4 + $0x30] sm:$0xff]
      %v7742 = vld [vmem:[#allocation4 + $0x38] sm:$0xff]
      %v7743 = vld [vmem:[#allocation4 + $0x40] sm:$0xff]
      %v7744 = vld [vmem:[#allocation4 + $0x48] sm:$0xff]
      %v7745 = vld [vmem:[#allocation4 + $0x50] sm:$0xff]
      %v7746 = vld [vmem:[#allocation4 + $0x58] sm:$0xff]
      %v7747 = vld [vmem:[#allocation4 + $0x60] sm:$0xff]
      %v7748 = vld [vmem:[#allocation4 + $0x68] sm:$0xff]
      %v7749 = vld [vmem:[#allocation4 + $0x70] sm:$0xff]
      %v7750 = vld [vmem:[#allocation4 + $0x78] sm:$0xff]
      %v7751 = vld [vmem:[#allocation4 + $0x80] sm:$0xff]
      %v7752 = vld [vmem:[#allocation4 + $0x88] sm:$0xff]
      %v7753 = vld [vmem:[#allocation4 + $0x90] sm:$0xff]
      %v7754 = vld [vmem:[#allocation4 + $0x98] sm:$0xff]
      %v7755 = vld [vmem:[#allocation4 + $0xa0] sm:$0xff]
      %v7756 = vld [vmem:[#allocation4 + $0xa8] sm:$0xff]
      %v7757 = vld [vmem:[#allocation4 + $0xb0] sm:$0xff]
      %v7758 = vld [vmem:[#allocation4 + $0xb8] sm:$0xff]
      %v7759 = vld [vmem:[#allocation4 + $0xc0] sm:$0xff]
      %v7760 = vld [vmem:[#allocation4 + $0xc8] sm:$0xff]
      %v7761 = vld [vmem:[#allocation4 + $0xd0] sm:$0xff]
      %v7762 = vld [vmem:[#allocation4 + $0xd8] sm:$0xff]
      %v7763 = vld [vmem:[#allocation4 + $0xe0] sm:$0xff]
      %v7764 = vld [vmem:[#allocation4 + $0xe8] sm:$0xff]
      %v7765 = vld [vmem:[#allocation4 + $0xf0] sm:$0xff]
      %v7766 = vld [vmem:[#allocation4 + $0xf8] sm:$0xff]
      %v7767 = vld [vmem:[#allocation4 + $0x100] sm:$0xff]
      %v7768 = vld [vmem:[#allocation4 + $0x108] sm:$0xff]
      %v7769 = vld [vmem:[#allocation4 + $0x110] sm:$0xff]
      %v7770 = vld [vmem:[#allocation4 + $0x118] sm:$0xff]
      %v7771 = vld [vmem:[#allocation4 + $0x120] sm:$0xff]
      %v7772 = vld [vmem:[#allocation4 + $0x128] sm:$0xff]
      %v7773 = vld [vmem:[#allocation4 + $0x130] sm:$0xff]
      %v7774 = vld [vmem:[#allocation4 + $0x138] sm:$0xff]
      %v7775 = vld [vmem:[#allocation4 + $0x140] sm:$0xff]
      %v7776 = vld [vmem:[#allocation4 + $0x148] sm:$0xff]
      %v7777 = vld [vmem:[#allocation4 + $0x150] sm:$0xff]
      %v7778 = vld [vmem:[#allocation4 + $0x158] sm:$0xff]
      %v7779 = vld [vmem:[#allocation4 + $0x160] sm:$0xff]
      %v7780 = vld [vmem:[#allocation4 + $0x168] sm:$0xff]
      %v7781 = vld [vmem:[#allocation4 + $0x170] sm:$0xff]
      %v7782 = vld [vmem:[#allocation4 + $0x178] sm:$0xff]
      %v7783 = vld [vmem:[#allocation4 + $0x180] sm:$0xff]
      %v7784 = vld [vmem:[#allocation4 + $0x188] sm:$0xff]
      %v7785 = vld [vmem:[#allocation4 + $0x190] sm:$0xff]
      %v7786 = vld [vmem:[#allocation4 + $0x198] sm:$0xff]
      %v7787 = vld [vmem:[#allocation4 + $0x1a0] sm:$0xff]
      %v7788 = vld [vmem:[#allocation4 + $0x1a8] sm:$0xff]
      %v7789 = vld [vmem:[#allocation4 + $0x1b0] sm:$0xff]
      %v7790 = vld [vmem:[#allocation4 + $0x1b8] sm:$0xff]
      %v7791 = vld [vmem:[#allocation4 + $0x1c0] sm:$0xff]
      %v7792 = vld [vmem:[#allocation4 + $0x1c8] sm:$0xff]
      %v7793 = vld [vmem:[#allocation4 + $0x1d0] sm:$0xff]
      %v7794 = vld [vmem:[#allocation4 + $0x1d8] sm:$0xff]
      %v7795 = vld [vmem:[#allocation4 + $0x1e0] sm:$0xff]
      %v7796 = vld [vmem:[#allocation4 + $0x1e8] sm:$0xff]
      %v7797 = vld [vmem:[#allocation4 + $0x1f0] sm:$0xff]
      %v7798 = vld [vmem:[#allocation4 + $0x1f8] sm:$0xff]
      %v7799 = vld [vmem:[#allocation4 + $0x200] sm:$0xff]
      %v7800 = vld [vmem:[#allocation4 + $0x208] sm:$0xff]
      %v7801 = vld [vmem:[#allocation4 + $0x210] sm:$0xff]
      %v7802 = vpack.c.bf16 %v7739, %v7738
      %v7803 = vpack.c.bf16 %v7741, %v7740
      %v7804 = vpack.c.bf16 %v7743, %v7742
      %v7805 = vpack.c.bf16 %v7745, %v7744
      %v7806 = vpack.c.bf16 %v7747, %v7746
      %v7807 = vpack.c.bf16 %v7749, %v7748
      %v7808 = vpack.c.bf16 %v7751, %v7750
      %v7809 = vpack.c.bf16 %v7753, %v7752
      %v7810 = vpack.c.bf16 %v7755, %v7754
      %v7811 = vpack.c.bf16 %v7757, %v7756
      %v7812 = vpack.c.bf16 %v7759, %v7758
      %v7813 = vpack.c.bf16 %v7761, %v7760
      %v7814 = vpack.c.bf16 %v7763, %v7762
      %v7815 = vpack.c.bf16 %v7765, %v7764
      %v7816 = vpack.c.bf16 %v7767, %v7766
      %v7817 = vpack.c.bf16 %v7769, %v7768
      %v7818 = vpack.c.bf16 %v7771, %v7770
      %v7819 = vpack.c.bf16 %v7773, %v7772
      %v7820 = vpack.c.bf16 %v7775, %v7774
      %v7821 = vpack.c.bf16 %v7777, %v7776
      %v7822 = vpack.c.bf16 %v7779, %v7778
      %v7823 = vpack.c.bf16 %v7781, %v7780
      %v7824 = vpack.c.bf16 %v7783, %v7782
      %v7825 = vpack.c.bf16 %v7785, %v7784
      %v7826 = vpack.c.bf16 %v7787, %v7786
      %v7827 = vpack.c.bf16 %v7789, %v7788
      %v7828 = vpack.c.bf16 %v7791, %v7790
      %v7829 = vpack.c.bf16 %v7793, %v7792
      %v7830 = vpack.c.bf16 %v7795, %v7794
      %v7831 = vpack.c.bf16 %v7797, %v7796
      %v7832 = vpack.c.bf16 %v7799, %v7798
      %v7833 = vpack.c.bf16 %v7801, %v7800
      %v7834 = vld [vmem:[%s7 + $0xc] sm:$0xf]
      %7835 = vmatprep.subr.bf16.mxu0 0
      %7836 = vmatpush1.bf16.xpose.msra.mxu0 %v7802
      %7837 = vmatprep.subr.bf16.mxu0 0
      %7838 = vmatpush1.bf16.xpose.msra.mxu0 %v7803
      %7839 = vmatprep.subr.bf16.mxu0 0
      %7840 = vmatpush1.bf16.xpose.msra.mxu0 %v7804
      %7841 = vmatprep.subr.bf16.mxu0 0
      %7842 = vmatpush1.bf16.xpose.msra.mxu0 %v7805
      %7843 = vmatprep.subr.bf16.mxu0 0
      %7844 = vmatpush1.bf16.xpose.msra.mxu0 %v7806
      %7845 = vmatprep.subr.bf16.mxu0 0
      %7846 = vmatpush1.bf16.xpose.msra.mxu0 %v7807
      %7847 = vmatprep.subr.bf16.mxu0 0
      %7848 = vmatpush1.bf16.xpose.msra.mxu0 %v7808
      %7849 = vmatprep.subr.bf16.mxu0 0
      %7850 = vmatpush1.bf16.xpose.msra.mxu0 %v7809
      %7851 = vmatprep.subr.bf16.mxu0 0
      %7852 = vmatpush1.bf16.xpose.msra.mxu0 %v7810
      %7853 = vmatprep.subr.bf16.mxu0 0
      %7854 = vmatpush1.bf16.xpose.msra.mxu0 %v7811
      %7855 = vmatprep.subr.bf16.mxu0 0
      %7856 = vmatpush1.bf16.xpose.msra.mxu0 %v7812
      %7857 = vmatprep.subr.bf16.mxu0 0
      %7858 = vmatpush1.bf16.xpose.msra.mxu0 %v7813
      %7859 = vmatprep.subr.bf16.mxu0 0
      %7860 = vmatpush1.bf16.xpose.msra.mxu0 %v7814
      %7861 = vmatprep.subr.bf16.mxu0 0
      %7862 = vmatpush1.bf16.xpose.msra.mxu0 %v7815
      %7863 = vmatprep.subr.bf16.mxu0 0
      %7864 = vmatpush1.bf16.xpose.msra.mxu0 %v7816
      %7865 = vmatprep.subr.bf16.mxu0 0
      %7866 = vmatpush1.bf16.xpose.msra.mxu0 %v7817
      %7867 = vmatprep.mubr.bf16.mxu0 0
      %7868 = vmatmul.mubr.bf16.gmra.mrb[0].mxu0 %v7834
      %v7869 = vpop.f32.mrb[0].mxu0
      %v7870 = vadd.f32 0.0, %v7869
      %v7871 = vpop.f32.mrb[0].mxu0
      %v7872 = vadd.f32 0.0, %v7871
      %v7873 = vpop.f32.mrb[0].mxu0
      %v7874 = vpop.f32.mrb[0].mxu0
      %7875 = vdwg.mxu0
      %7876 = vmatprep.subr.bf16.mxu0 0
      %7877 = vmatpush1.bf16.xpose.msra.mxu0 %v7818
      %7878 = vmatprep.subr.bf16.mxu0 0
      %7879 = vmatpush1.bf16.xpose.msra.mxu0 %v7819
      %7880 = vmatprep.subr.bf16.mxu0 0
      %7881 = vmatpush1.bf16.xpose.msra.mxu0 %v7820
      %7882 = vmatprep.subr.bf16.mxu0 0
      %7883 = vmatpush1.bf16.xpose.msra.mxu0 %v7821
      %7884 = vmatprep.subr.bf16.mxu0 0
      %7885 = vmatpush1.bf16.xpose.msra.mxu0 %v7822
      %7886 = vmatprep.subr.bf16.mxu0 0
      %7887 = vmatpush1.bf16.xpose.msra.mxu0 %v7823
      %7888 = vmatprep.subr.bf16.mxu0 0
      %7889 = vmatpush1.bf16.xpose.msra.mxu0 %v7824
      %7890 = vmatprep.subr.bf16.mxu0 0
      %7891 = vmatpush1.bf16.xpose.msra.mxu0 %v7825
      %7892 = vmatprep.subr.bf16.mxu0 0
      %7893 = vmatpush1.bf16.xpose.msra.mxu0 %v7826
      %7894 = vmatprep.subr.bf16.mxu0 0
      %7895 = vmatpush1.bf16.xpose.msra.mxu0 %v7827
      %7896 = vmatprep.subr.bf16.mxu0 0
      %7897 = vmatpush1.bf16.xpose.msra.mxu0 %v7828
      %7898 = vmatprep.subr.bf16.mxu0 0
      %7899 = vmatpush1.bf16.xpose.msra.mxu0 %v7829
      %7900 = vmatprep.subr.bf16.mxu0 0
      %7901 = vmatpush1.bf16.xpose.msra.mxu0 %v7830
      %7902 = vmatprep.subr.bf16.mxu0 0
      %7903 = vmatpush1.bf16.xpose.msra.mxu0 %v7831
      %7904 = vmatprep.subr.bf16.mxu0 0
      %7905 = vmatpush1.bf16.xpose.msra.mxu0 %v7832
      %7906 = vmatprep.subr.bf16.mxu0 0
      %7907 = vmatpush1.bf16.xpose.msra.mxu0 %v7833
      %7908 = vmatprep.mubr.bf16.mxu0 0
      %7909 = vmatmul.mubr.bf16.gmra.mrb[0].mxu0 %v7834
      %v7910 = vpop.f32.mrb[0].mxu0
      %v7911 = vadd.f32 0.0, %v7910
      %v7912 = vpop.f32.mrb[0].mxu0
      %v7913 = vadd.f32 0.0, %v7912
      %v7914 = vpop.f32.mrb[0].mxu0
      %v7915 = vpop.f32.mrb[0].mxu0
      %7916 = vdwg.mxu0
      %v7917 = vadd.f32 %v7734, %v7870
      %v7918 = vadd.f32 %v7735, %v7872
      %v7919 = vadd.f32 %v7736, %v7911
      %v7920 = vadd.f32 %v7737, %v7913
      %v7921 = vld [vmem:[#allocation4 + $0x19] sm:$0xff]
      %v7922 = vld [vmem:[#allocation4 + $0x21] sm:$0xff]
      %v7923 = vld [vmem:[#allocation4 + $0x29] sm:$0xff]
      %v7924 = vld [vmem:[#allocation4 + $0x31] sm:$0xff]
      %v7925 = vld [vmem:[#allocation4 + $0x39] sm:$0xff]
      %v7926 = vld [vmem:[#allocation4 + $0x41] sm:$0xff]
      %v7927 = vld [vmem:[#allocation4 + $0x49] sm:$0xff]
      %v7928 = vld [vmem:[#allocation4 + $0x51] sm:$0xff]
      %v7929 = vld [vmem:[#allocation4 + $0x59] sm:$0xff]
      %v7930 = vld [vmem:[#allocation4 + $0x61] sm:$0xff]
      %v7931 = vld [vmem:[#allocation4 + $0x69] sm:$0xff]
      %v7932 = vld [vmem:[#allocation4 + $0x71] sm:$0xff]
      %v7933 = vld [vmem:[#allocation4 + $0x79] sm:$0xff]
      %v7934 = vld [vmem:[#allocation4 + $0x81] sm:$0xff]
      %v7935 = vld [vmem:[#allocation4 + $0x89] sm:$0xff]
      %v7936 = vld [vmem:[#allocation4 + $0x91] sm:$0xff]
      %v7937 = vld [vmem:[#allocation4 + $0x99] sm:$0xff]
      %v7938 = vld [vmem:[#allocation4 + $0xa1] sm:$0xff]
      %v7939 = vld [vmem:[#allocation4 + $0xa9] sm:$0xff]
      %v7940 = vld [vmem:[#allocation4 + $0xb1] sm:$0xff]
      %v7941 = vld [vmem:[#allocation4 + $0xb9] sm:$0xff]
      %v7942 = vld [vmem:[#allocation4 + $0xc1] sm:$0xff]
      %v7943 = vld [vmem:[#allocation4 + $0xc9] sm:$0xff]
      %v7944 = vld [vmem:[#allocation4 + $0xd1] sm:$0xff]
      %v7945 = vld [vmem:[#allocation4 + $0xd9] sm:$0xff]
      %v7946 = vld [vmem:[#allocation4 + $0xe1] sm:$0xff]
      %v7947 = vld [vmem:[#allocation4 + $0xe9] sm:$0xff]
      %v7948 = vld [vmem:[#allocation4 + $0xf1] sm:$0xff]
      %v7949 = vld [vmem:[#allocation4 + $0xf9] sm:$0xff]
      %v7950 = vld [vmem:[#allocation4 + $0x101] sm:$0xff]
      %v7951 = vld [vmem:[#allocation4 + $0x109] sm:$0xff]
      %v7952 = vld [vmem:[#allocation4 + $0x111] sm:$0xff]
      %v7953 = vld [vmem:[#allocation4 + $0x119] sm:$0xff]
      %v7954 = vld [vmem:[#allocation4 + $0x121] sm:$0xff]
      %v7955 = vld [vmem:[#allocation4 + $0x129] sm:$0xff]
      %v7956 = vld [vmem:[#allocation4 + $0x131] sm:$0xff]
      %v7957 = vld [vmem:[#allocation4 + $0x139] sm:$0xff]
      %v7958 = vld [vmem:[#allocation4 + $0x141] sm:$0xff]
      %v7959 = vld [vmem:[#allocation4 + $0x149] sm:$0xff]
      %v7960 = vld [vmem:[#allocation4 + $0x151] sm:$0xff]
      %v7961 = vld [vmem:[#allocation4 + $0x159] sm:$0xff]
      %v7962 = vld [vmem:[#allocation4 + $0x161] sm:$0xff]
      %v7963 = vld [vmem:[#allocation4 + $0x169] sm:$0xff]
      %v7964 = vld [vmem:[#allocation4 + $0x171] sm:$0xff]
      %v7965 = vld [vmem:[#allocation4 + $0x179] sm:$0xff]
      %v7966 = vld [vmem:[#allocation4 + $0x181] sm:$0xff]
      %v7967 = vld [vmem:[#allocation4 + $0x189] sm:$0xff]
      %v7968 = vld [vmem:[#allocation4 + $0x191] sm:$0xff]
      %v7969 = vld [vmem:[#allocation4 + $0x199] sm:$0xff]
      %v7970 = vld [vmem:[#allocation4 + $0x1a1] sm:$0xff]
      %v7971 = vld [vmem:[#allocation4 + $0x1a9] sm:$0xff]
      %v7972 = vld [vmem:[#allocation4 + $0x1b1] sm:$0xff]
      %v7973 = vld [vmem:[#allocation4 + $0x1b9] sm:$0xff]
      %v7974 = vld [vmem:[#allocation4 + $0x1c1] sm:$0xff]
      %v7975 = vld [vmem:[#allocation4 + $0x1c9] sm:$0xff]
      %v7976 = vld [vmem:[#allocation4 + $0x1d1] sm:$0xff]
      %v7977 = vld [vmem:[#allocation4 + $0x1d9] sm:$0xff]
      %v7978 = vld [vmem:[#allocation4 + $0x1e1] sm:$0xff]
      %v7979 = vld [vmem:[#allocation4 + $0x1e9] sm:$0xff]
      %v7980 = vld [vmem:[#allocation4 + $0x1f1] sm:$0xff]
      %v7981 = vld [vmem:[#allocation4 + $0x1f9] sm:$0xff]
      %v7982 = vld [vmem:[#allocation4 + $0x201] sm:$0xff]
      %v7983 = vld [vmem:[#allocation4 + $0x209] sm:$0xff]
      %v7984 = vld [vmem:[#allocation4 + $0x211] sm:$0xff]
      %v7985 = vpack.c.bf16 %v7922, %v7921
      %v7986 = vpack.c.bf16 %v7924, %v7923
      %v7987 = vpack.c.bf16 %v7926, %v7925
      %v7988 = vpack.c.bf16 %v7928, %v7927
      %v7989 = vpack.c.bf16 %v7930, %v7929
      %v7990 = vpack.c.bf16 %v7932, %v7931
      %v7991 = vpack.c.bf16 %v7934, %v7933
      %v7992 = vpack.c.bf16 %v7936, %v7935
      %v7993 = vpack.c.bf16 %v7938, %v7937
      %v7994 = vpack.c.bf16 %v7940, %v7939
      %v7995 = vpack.c.bf16 %v7942, %v7941
      %v7996 = vpack.c.bf16 %v7944, %v7943
      %v7997 = vpack.c.bf16 %v7946, %v7945
      %v7998 = vpack.c.bf16 %v7948, %v7947
      %v7999 = vpack.c.bf16 %v7950, %v7949
      %v8000 = vpack.c.bf16 %v7952, %v7951
      %v8001 = vpack.c.bf16 %v7954, %v7953
      %v8002 = vpack.c.bf16 %v7956, %v7955
      %v8003 = vpack.c.bf16 %v7958, %v7957
      %v8004 = vpack.c.bf16 %v7960, %v7959
      %v8005 = vpack.c.bf16 %v7962, %v7961
      %v8006 = vpack.c.bf16 %v7964, %v7963
      %v8007 = vpack.c.bf16 %v7966, %v7965
      %v8008 = vpack.c.bf16 %v7968, %v7967
      %v8009 = vpack.c.bf16 %v7970, %v7969
      %v8010 = vpack.c.bf16 %v7972, %v7971
      %v8011 = vpack.c.bf16 %v7974, %v7973
      %v8012 = vpack.c.bf16 %v7976, %v7975
      %v8013 = vpack.c.bf16 %v7978, %v7977
      %v8014 = vpack.c.bf16 %v7980, %v7979
      %v8015 = vpack.c.bf16 %v7982, %v7981
      %v8016 = vpack.c.bf16 %v7984, %v7983
      %v8017 = vld [vmem:[%s7 + $0x10] sm:$0xf]
      %8018 = vmatprep.subr.bf16.mxu0 0
      %8019 = vmatpush1.bf16.xpose.msra.mxu0 %v7985
      %8020 = vmatprep.subr.bf16.mxu0 0
      %8021 = vmatpush1.bf16.xpose.msra.mxu0 %v7986
      %8022 = vmatprep.subr.bf16.mxu0 0
      %8023 = vmatpush1.bf16.xpose.msra.mxu0 %v7987
      %8024 = vmatprep.subr.bf16.mxu0 0
      %8025 = vmatpush1.bf16.xpose.msra.mxu0 %v7988
      %8026 = vmatprep.subr.bf16.mxu0 0
      %8027 = vmatpush1.bf16.xpose.msra.mxu0 %v7989
      %8028 = vmatprep.subr.bf16.mxu0 0
      %8029 = vmatpush1.bf16.xpose.msra.mxu0 %v7990
      %8030 = vmatprep.subr.bf16.mxu0 0
      %8031 = vmatpush1.bf16.xpose.msra.mxu0 %v7991
      %8032 = vmatprep.subr.bf16.mxu0 0
      %8033 = vmatpush1.bf16.xpose.msra.mxu0 %v7992
      %8034 = vmatprep.subr.bf16.mxu0 0
      %8035 = vmatpush1.bf16.xpose.msra.mxu0 %v7993
      %8036 = vmatprep.subr.bf16.mxu0 0
      %8037 = vmatpush1.bf16.xpose.msra.mxu0 %v7994
      %8038 = vmatprep.subr.bf16.mxu0 0
      %8039 = vmatpush1.bf16.xpose.msra.mxu0 %v7995
      %8040 = vmatprep.subr.bf16.mxu0 0
      %8041 = vmatpush1.bf16.xpose.msra.mxu0 %v7996
      %8042 = vmatprep.subr.bf16.mxu0 0
      %8043 = vmatpush1.bf16.xpose.msra.mxu0 %v7997
      %8044 = vmatprep.subr.bf16.mxu0 0
      %8045 = vmatpush1.bf16.xpose.msra.mxu0 %v7998
      %8046 = vmatprep.subr.bf16.mxu0 0
      %8047 = vmatpush1.bf16.xpose.msra.mxu0 %v7999
      %8048 = vmatprep.subr.bf16.mxu0 0
      %8049 = vmatpush1.bf16.xpose.msra.mxu0 %v8000
      %8050 = vmatprep.mubr.bf16.mxu0 0
      %8051 = vmatmul.mubr.bf16.gmra.mrb[0].mxu0 %v8017
      %v8052 = vpop.f32.mrb[0].mxu0
      %v8053 = vadd.f32 0.0, %v8052
      %v8054 = vpop.f32.mrb[0].mxu0
      %v8055 = vadd.f32 0.0, %v8054
      %v8056 = vpop.f32.mrb[0].mxu0
      %v8057 = vpop.f32.mrb[0].mxu0
      %8058 = vdwg.mxu0
      %8059 = vmatprep.subr.bf16.mxu0 0
      %8060 = vmatpush1.bf16.xpose.msra.mxu0 %v8001
      %8061 = vmatprep.subr.bf16.mxu0 0
      %8062 = vmatpush1.bf16.xpose.msra.mxu0 %v8002
      %8063 = vmatprep.subr.bf16.mxu0 0
      %8064 = vmatpush1.bf16.xpose.msra.mxu0 %v8003
      %8065 = vmatprep.subr.bf16.mxu0 0
      %8066 = vmatpush1.bf16.xpose.msra.mxu0 %v8004
      %8067 = vmatprep.subr.bf16.mxu0 0
      %8068 = vmatpush1.bf16.xpose.msra.mxu0 %v8005
      %8069 = vmatprep.subr.bf16.mxu0 0
      %8070 = vmatpush1.bf16.xpose.msra.mxu0 %v8006
      %8071 = vmatprep.subr.bf16.mxu0 0
      %8072 = vmatpush1.bf16.xpose.msra.mxu0 %v8007
      %8073 = vmatprep.subr.bf16.mxu0 0
      %8074 = vmatpush1.bf16.xpose.msra.mxu0 %v8008
      %8075 = vmatprep.subr.bf16.mxu0 0
      %8076 = vmatpush1.bf16.xpose.msra.mxu0 %v8009
      %8077 = vmatprep.subr.bf16.mxu0 0
      %8078 = vmatpush1.bf16.xpose.msra.mxu0 %v8010
      %8079 = vmatprep.subr.bf16.mxu0 0
      %8080 = vmatpush1.bf16.xpose.msra.mxu0 %v8011
      %8081 = vmatprep.subr.bf16.mxu0 0
      %8082 = vmatpush1.bf16.xpose.msra.mxu0 %v8012
      %8083 = vmatprep.subr.bf16.mxu0 0
      %8084 = vmatpush1.bf16.xpose.msra.mxu0 %v8013
      %8085 = vmatprep.subr.bf16.mxu0 0
      %8086 = vmatpush1.bf16.xpose.msra.mxu0 %v8014
      %8087 = vmatprep.subr.bf16.mxu0 0
      %8088 = vmatpush1.bf16.xpose.msra.mxu0 %v8015
      %8089 = vmatprep.subr.bf16.mxu0 0
      %8090 = vmatpush1.bf16.xpose.msra.mxu0 %v8016
      %8091 = vmatprep.mubr.bf16.mxu0 0
      %8092 = vmatmul.mubr.bf16.gmra.mrb[0].mxu0 %v8017
      %v8093 = vpop.f32.mrb[0].mxu0
      %v8094 = vadd.f32 0.0, %v8093
      %v8095 = vpop.f32.mrb[0].mxu0
      %v8096 = vadd.f32 0.0, %v8095
      %v8097 = vpop.f32.mrb[0].mxu0
      %v8098 = vpop.f32.mrb[0].mxu0
      %8099 = vdwg.mxu0
      %v8100 = vadd.f32 %v7917, %v8053
      %v8101 = vadd.f32 %v7918, %v8055
      %v8102 = vadd.f32 %v7919, %v8094
      %v8103 = vadd.f32 %v7920, %v8096
      %v8104 = vld [vmem:[#allocation4 + $0x1a] sm:$0xff]
      %v8105 = vld [vmem:[#allocation4 + $0x22] sm:$0xff]
      %v8106 = vld [vmem:[#allocation4 + $0x2a] sm:$0xff]
      %v8107 = vld [vmem:[#allocation4 + $0x32] sm:$0xff]
      %v8108 = vld [vmem:[#allocation4 + $0x3a] sm:$0xff]
      %v8109 = vld [vmem:[#allocation4 + $0x42] sm:$0xff]
      %v8110 = vld [vmem:[#allocation4 + $0x4a] sm:$0xff]
      %v8111 = vld [vmem:[#allocation4 + $0x52] sm:$0xff]
      %v8112 = vld [vmem:[#allocation4 + $0x5a] sm:$0xff]
      %v8113 = vld [vmem:[#allocation4 + $0x62] sm:$0xff]
      %v8114 = vld [vmem:[#allocation4 + $0x6a] sm:$0xff]
      %v8115 = vld [vmem:[#allocation4 + $0x72] sm:$0xff]
      %v8116 = vld [vmem:[#allocation4 + $0x7a] sm:$0xff]
      %v8117 = vld [vmem:[#allocation4 + $0x82] sm:$0xff]
      %v8118 = vld [vmem:[#allocation4 + $0x8a] sm:$0xff]
      %v8119 = vld [vmem:[#allocation4 + $0x92] sm:$0xff]
      %v8120 = vld [vmem:[#allocation4 + $0x9a] sm:$0xff]
      %v8121 = vld [vmem:[#allocation4 + $0xa2] sm:$0xff]
      %v8122 = vld [vmem:[#allocation4 + $0xaa] sm:$0xff]
      %v8123 = vld [vmem:[#allocation4 + $0xb2] sm:$0xff]
      %v8124 = vld [vmem:[#allocation4 + $0xba] sm:$0xff]
      %v8125 = vld [vmem:[#allocation4 + $0xc2] sm:$0xff]
      %v8126 = vld [vmem:[#allocation4 + $0xca] sm:$0xff]
      %v8127 = vld [vmem:[#allocation4 + $0xd2] sm:$0xff]
      %v8128 = vld [vmem:[#allocation4 + $0xda] sm:$0xff]
      %v8129 = vld [vmem:[#allocation4 + $0xe2] sm:$0xff]
      %v8130 = vld [vmem:[#allocation4 + $0xea] sm:$0xff]
      %v8131 = vld [vmem:[#allocation4 + $0xf2] sm:$0xff]
      %v8132 = vld [vmem:[#allocation4 + $0xfa] sm:$0xff]
      %v8133 = vld [vmem:[#allocation4 + $0x102] sm:$0xff]
      %v8134 = vld [vmem:[#allocation4 + $0x10a] sm:$0xff]
      %v8135 = vld [vmem:[#allocation4 + $0x112] sm:$0xff]
      %v8136 = vld [vmem:[#allocation4 + $0x11a] sm:$0xff]
      %v8137 = vld [vmem:[#allocation4 + $0x122] sm:$0xff]
      %v8138 = vld [vmem:[#allocation4 + $0x12a] sm:$0xff]
      %v8139 = vld [vmem:[#allocation4 + $0x132] sm:$0xff]
      %v8140 = vld [vmem:[#allocation4 + $0x13a] sm:$0xff]
      %v8141 = vld [vmem:[#allocation4 + $0x142] sm:$0xff]
      %v8142 = vld [vmem:[#allocation4 + $0x14a] sm:$0xff]
      %v8143 = vld [vmem:[#allocation4 + $0x152] sm:$0xff]
      %v8144 = vld [vmem:[#allocation4 + $0x15a] sm:$0xff]
      %v8145 = vld [vmem:[#allocation4 + $0x162] sm:$0xff]
      %v8146 = vld [vmem:[#allocation4 + $0x16a] sm:$0xff]
      %v8147 = vld [vmem:[#allocation4 + $0x172] sm:$0xff]
      %v8148 = vld [vmem:[#allocation4 + $0x17a] sm:$0xff]
      %v8149 = vld [vmem:[#allocation4 + $0x182] sm:$0xff]
      %v8150 = vld [vmem:[#allocation4 + $0x18a] sm:$0xff]
      %v8151 = vld [vmem:[#allocation4 + $0x192] sm:$0xff]
      %v8152 = vld [vmem:[#allocation4 + $0x19a] sm:$0xff]
      %v8153 = vld [vmem:[#allocation4 + $0x1a2] sm:$0xff]
      %v8154 = vld [vmem:[#allocation4 + $0x1aa] sm:$0xff]
      %v8155 = vld [vmem:[#allocation4 + $0x1b2] sm:$0xff]
      %v8156 = vld [vmem:[#allocation4 + $0x1ba] sm:$0xff]
      %v8157 = vld [vmem:[#allocation4 + $0x1c2] sm:$0xff]
      %v8158 = vld [vmem:[#allocation4 + $0x1ca] sm:$0xff]
      %v8159 = vld [vmem:[#allocation4 + $0x1d2] sm:$0xff]
      %v8160 = vld [vmem:[#allocation4 + $0x1da] sm:$0xff]
      %v8161 = vld [vmem:[#allocation4 + $0x1e2] sm:$0xff]
      %v8162 = vld [vmem:[#allocation4 + $0x1ea] sm:$0xff]
      %v8163 = vld [vmem:[#allocation4 + $0x1f2] sm:$0xff]
      %v8164 = vld [vmem:[#allocation4 + $0x1fa] sm:$0xff]
      %v8165 = vld [vmem:[#allocation4 + $0x202] sm:$0xff]
      %v8166 = vld [vmem:[#allocation4 + $0x20a] sm:$0xff]
      %v8167 = vld [vmem:[#allocation4 + $0x212] sm:$0xff]
      %v8168 = vpack.c.bf16 %v8105, %v8104
      %v8169 = vpack.c.bf16 %v8107, %v8106
      %v8170 = vpack.c.bf16 %v8109, %v8108
      %v8171 = vpack.c.bf16 %v8111, %v8110
      %v8172 = vpack.c.bf16 %v8113, %v8112
      %v8173 = vpack.c.bf16 %v8115, %v8114
      %v8174 = vpack.c.bf16 %v8117, %v8116
      %v8175 = vpack.c.bf16 %v8119, %v8118
      %v8176 = vpack.c.bf16 %v8121, %v8120
      %v8177 = vpack.c.bf16 %v8123, %v8122
      %v8178 = vpack.c.bf16 %v8125, %v8124
      %v8179 = vpack.c.bf16 %v8127, %v8126
      %v8180 = vpack.c.bf16 %v8129, %v8128
      %v8181 = vpack.c.bf16 %v8131, %v8130
      %v8182 = vpack.c.bf16 %v8133, %v8132
      %v8183 = vpack.c.bf16 %v8135, %v8134
      %v8184 = vpack.c.bf16 %v8137, %v8136
      %v8185 = vpack.c.bf16 %v8139, %v8138
      %v8186 = vpack.c.bf16 %v8141, %v8140
      %v8187 = vpack.c.bf16 %v8143, %v8142
      %v8188 = vpack.c.bf16 %v8145, %v8144
      %v8189 = vpack.c.bf16 %v8147, %v8146
      %v8190 = vpack.c.bf16 %v8149, %v8148
      %v8191 = vpack.c.bf16 %v8151, %v8150
      %v8192 = vpack.c.bf16 %v8153, %v8152
      %v8193 = vpack.c.bf16 %v8155, %v8154
      %v8194 = vpack.c.bf16 %v8157, %v8156
      %v8195 = vpack.c.bf16 %v8159, %v8158
      %v8196 = vpack.c.bf16 %v8161, %v8160
      %v8197 = vpack.c.bf16 %v8163, %v8162
      %v8198 = vpack.c.bf16 %v8165, %v8164
      %v8199 = vpack.c.bf16 %v8167, %v8166
      %v8200 = vld [vmem:[%s7 + $0x14] sm:$0xf]
      %8201 = vmatprep.subr.bf16.mxu0 0
      %8202 = vmatpush1.bf16.xpose.msra.mxu0 %v8168
      %8203 = vmatprep.subr.bf16.mxu0 0
      %8204 = vmatpush1.bf16.xpose.msra.mxu0 %v8169
      %8205 = vmatprep.subr.bf16.mxu0 0
      %8206 = vmatpush1.bf16.xpose.msra.mxu0 %v8170
      %8207 = vmatprep.subr.bf16.mxu0 0
      %8208 = vmatpush1.bf16.xpose.msra.mxu0 %v8171
      %8209 = vmatprep.subr.bf16.mxu0 0
      %8210 = vmatpush1.bf16.xpose.msra.mxu0 %v8172
      %8211 = vmatprep.subr.bf16.mxu0 0
      %8212 = vmatpush1.bf16.xpose.msra.mxu0 %v8173
      %8213 = vmatprep.subr.bf16.mxu0 0
      %8214 = vmatpush1.bf16.xpose.msra.mxu0 %v8174
      %8215 = vmatprep.subr.bf16.mxu0 0
      %8216 = vmatpush1.bf16.xpose.msra.mxu0 %v8175
      %8217 = vmatprep.subr.bf16.mxu0 0
      %8218 = vmatpush1.bf16.xpose.msra.mxu0 %v8176
      %8219 = vmatprep.subr.bf16.mxu0 0
      %8220 = vmatpush1.bf16.xpose.msra.mxu0 %v8177
      %8221 = vmatprep.subr.bf16.mxu0 0
      %8222 = vmatpush1.bf16.xpose.msra.mxu0 %v8178
      %8223 = vmatprep.subr.bf16.mxu0 0
      %8224 = vmatpush1.bf16.xpose.msra.mxu0 %v8179
      %8225 = vmatprep.subr.bf16.mxu0 0
      %8226 = vmatpush1.bf16.xpose.msra.mxu0 %v8180
      %8227 = vmatprep.subr.bf16.mxu0 0
      %8228 = vmatpush1.bf16.xpose.msra.mxu0 %v8181
      %8229 = vmatprep.subr.bf16.mxu0 0
      %8230 = vmatpush1.bf16.xpose.msra.mxu0 %v8182
      %8231 = vmatprep.subr.bf16.mxu0 0
      %8232 = vmatpush1.bf16.xpose.msra.mxu0 %v8183
      %8233 = vmatprep.mubr.bf16.mxu0 0
      %8234 = vmatmul.mubr.bf16.gmra.mrb[0].mxu0 %v8200
      %v8235 = vpop.f32.mrb[0].mxu0
      %v8236 = vadd.f32 0.0, %v8235
      %v8237 = vpop.f32.mrb[0].mxu0
      %v8238 = vadd.f32 0.0, %v8237
      %v8239 = vpop.f32.mrb[0].mxu0
      %v8240 = vpop.f32.mrb[0].mxu0
      %8241 = vdwg.mxu0
      %8242 = vmatprep.subr.bf16.mxu0 0
      %8243 = vmatpush1.bf16.xpose.msra.mxu0 %v8184
      %8244 = vmatprep.subr.bf16.mxu0 0
      %8245 = vmatpush1.bf16.xpose.msra.mxu0 %v8185
      %8246 = vmatprep.subr.bf16.mxu0 0
      %8247 = vmatpush1.bf16.xpose.msra.mxu0 %v8186
      %8248 = vmatprep.subr.bf16.mxu0 0
      %8249 = vmatpush1.bf16.xpose.msra.mxu0 %v8187
      %8250 = vmatprep.subr.bf16.mxu0 0
      %8251 = vmatpush1.bf16.xpose.msra.mxu0 %v8188
      %8252 = vmatprep.subr.bf16.mxu0 0
      %8253 = vmatpush1.bf16.xpose.msra.mxu0 %v8189
      %8254 = vmatprep.subr.bf16.mxu0 0
      %8255 = vmatpush1.bf16.xpose.msra.mxu0 %v8190
      %8256 = vmatprep.subr.bf16.mxu0 0
      %8257 = vmatpush1.bf16.xpose.msra.mxu0 %v8191
      %8258 = vmatprep.subr.bf16.mxu0 0
      %8259 = vmatpush1.bf16.xpose.msra.mxu0 %v8192
      %8260 = vmatprep.subr.bf16.mxu0 0
      %8261 = vmatpush1.bf16.xpose.msra.mxu0 %v8193
      %8262 = vmatprep.subr.bf16.mxu0 0
      %8263 = vmatpush1.bf16.xpose.msra.mxu0 %v8194
      %8264 = vmatprep.subr.bf16.mxu0 0
      %8265 = vmatpush1.bf16.xpose.msra.mxu0 %v8195
      %8266 = vmatprep.subr.bf16.mxu0 0
      %8267 = vmatpush1.bf16.xpose.msra.mxu0 %v8196
      %8268 = vmatprep.subr.bf16.mxu0 0
      %8269 = vmatpush1.bf16.xpose.msra.mxu0 %v8197
      %8270 = vmatprep.subr.bf16.mxu0 0
      %8271 = vmatpush1.bf16.xpose.msra.mxu0 %v8198
      %8272 = vmatprep.subr.bf16.mxu0 0
      %8273 = vmatpush1.bf16.xpose.msra.mxu0 %v8199
      %8274 = vmatprep.mubr.bf16.mxu0 0
      %8275 = vmatmul.mubr.bf16.gmra.mrb[0].mxu0 %v8200
      %v8276 = vpop.f32.mrb[0].mxu0
      %v8277 = vadd.f32 0.0, %v8276
      %v8278 = vpop.f32.mrb[0].mxu0
      %v8279 = vadd.f32 0.0, %v8278
      %v8280 = vpop.f32.mrb[0].mxu0
      %v8281 = vpop.f32.mrb[0].mxu0
      %8282 = vdwg.mxu0
      %v8283 = vadd.f32 %v8100, %v8236
      %v8284 = vadd.f32 %v8101, %v8238
      %v8285 = vadd.f32 %v8102, %v8277
      %v8286 = vadd.f32 %v8103, %v8279
      %v8287 = vld [vmem:[#allocation4 + $0x30] sm:$0xff]
      %v8288 = vld [vmem:[#allocation4 + $0x38] sm:$0xff]
      %v8289 = vld [vmem:[#allocation4 + $0x40] sm:$0xff]
      %v8290 = vld [vmem:[#allocation4 + $0x48] sm:$0xff]
      %v8291 = vld [vmem:[#allocation4 + $0x50] sm:$0xff]
      %v8292 = vld [vmem:[#allocation4 + $0x58] sm:$0xff]
      %v8293 = vld [vmem:[#allocation4 + $0x60] sm:$0xff]
      %v8294 = vld [vmem:[#allocation4 + $0x68] sm:$0xff]
      %v8295 = vld [vmem:[#allocation4 + $0x70] sm:$0xff]
      %v8296 = vld [vmem:[#allocation4 + $0x78] sm:$0xff]
      %v8297 = vld [vmem:[#allocation4 + $0x80] sm:$0xff]
      %v8298 = vld [vmem:[#allocation4 + $0x88] sm:$0xff]
      %v8299 = vld [vmem:[#allocation4 + $0x90] sm:$0xff]
      %v8300 = vld [vmem:[#allocation4 + $0x98] sm:$0xff]
      %v8301 = vld [vmem:[#allocation4 + $0xa0] sm:$0xff]
      %v8302 = vld [vmem:[#allocation4 + $0xa8] sm:$0xff]
      %v8303 = vld [vmem:[#allocation4 + $0xb0] sm:$0xff]
      %v8304 = vld [vmem:[#allocation4 + $0xb8] sm:$0xff]
      %v8305 = vld [vmem:[#allocation4 + $0xc0] sm:$0xff]
      %v8306 = vld [vmem:[#allocation4 + $0xc8] sm:$0xff]
      %v8307 = vld [vmem:[#allocation4 + $0xd0] sm:$0xff]
      %v8308 = vld [vmem:[#allocation4 + $0xd8] sm:$0xff]
      %v8309 = vld [vmem:[#allocation4 + $0xe0] sm:$0xff]
      %v8310 = vld [vmem:[#allocation4 + $0xe8] sm:$0xff]
      %v8311 = vld [vmem:[#allocation4 + $0xf0] sm:$0xff]
      %v8312 = vld [vmem:[#allocation4 + $0xf8] sm:$0xff]
      %v8313 = vld [vmem:[#allocation4 + $0x100] sm:$0xff]
      %v8314 = vld [vmem:[#allocation4 + $0x108] sm:$0xff]
      %v8315 = vld [vmem:[#allocation4 + $0x110] sm:$0xff]
      %v8316 = vld [vmem:[#allocation4 + $0x118] sm:$0xff]
      %v8317 = vld [vmem:[#allocation4 + $0x120] sm:$0xff]
      %v8318 = vld [vmem:[#allocation4 + $0x128] sm:$0xff]
      %v8319 = vld [vmem:[#allocation4 + $0x130] sm:$0xff]
      %v8320 = vld [vmem:[#allocation4 + $0x138] sm:$0xff]
      %v8321 = vld [vmem:[#allocation4 + $0x140] sm:$0xff]
      %v8322 = vld [vmem:[#allocation4 + $0x148] sm:$0xff]
      %v8323 = vld [vmem:[#allocation4 + $0x150] sm:$0xff]
      %v8324 = vld [vmem:[#allocation4 + $0x158] sm:$0xff]
      %v8325 = vld [vmem:[#allocation4 + $0x160] sm:$0xff]
      %v8326 = vld [vmem:[#allocation4 + $0x168] sm:$0xff]
      %v8327 = vld [vmem:[#allocation4 + $0x170] sm:$0xff]
      %v8328 = vld [vmem:[#allocation4 + $0x178] sm:$0xff]
      %v8329 = vld [vmem:[#allocation4 + $0x180] sm:$0xff]
      %v8330 = vld [vmem:[#allocation4 + $0x188] sm:$0xff]
      %v8331 = vld [vmem:[#allocation4 + $0x190] sm:$0xff]
      %v8332 = vld [vmem:[#allocation4 + $0x198] sm:$0xff]
      %v8333 = vld [vmem:[#allocation4 + $0x1a0] sm:$0xff]
      %v8334 = vld [vmem:[#allocation4 + $0x1a8] sm:$0xff]
      %v8335 = vld [vmem:[#allocation4 + $0x1b0] sm:$0xff]
      %v8336 = vld [vmem:[#allocation4 + $0x1b8] sm:$0xff]
      %v8337 = vld [vmem:[#allocation4 + $0x1c0] sm:$0xff]
      %v8338 = vld [vmem:[#allocation4 + $0x1c8] sm:$0xff]
      %v8339 = vld [vmem:[#allocation4 + $0x1d0] sm:$0xff]
      %v8340 = vld [vmem:[#allocation4 + $0x1d8] sm:$0xff]
      %v8341 = vld [vmem:[#allocation4 + $0x1e0] sm:$0xff]
      %v8342 = vld [vmem:[#allocation4 + $0x1e8] sm:$0xff]
      %v8343 = vld [vmem:[#allocation4 + $0x1f0] sm:$0xff]
      %v8344 = vld [vmem:[#allocation4 + $0x1f8] sm:$0xff]
      %v8345 = vld [vmem:[#allocation4 + $0x200] sm:$0xff]
      %v8346 = vld [vmem:[#allocation4 + $0x208] sm:$0xff]
      %v8347 = vld [vmem:[#allocation4 + $0x210] sm:$0xff]
      %v8348 = vld [vmem:[#allocation4 + $0x218] sm:$0xff]
      %v8349 = vld [vmem:[#allocation4 + $0x220] sm:$0xff]
      %v8350 = vld [vmem:[#allocation4 + $0x228] sm:$0xff]
      %v8351 = vpack.c.bf16 %v8288, %v8287
      %v8352 = vpack.c.bf16 %v8290, %v8289
      %v8353 = vpack.c.bf16 %v8292, %v8291
      %v8354 = vpack.c.bf16 %v8294, %v8293
      %v8355 = vpack.c.bf16 %v8296, %v8295
      %v8356 = vpack.c.bf16 %v8298, %v8297
      %v8357 = vpack.c.bf16 %v8300, %v8299
      %v8358 = vpack.c.bf16 %v8302, %v8301
      %v8359 = vpack.c.bf16 %v8304, %v8303
      %v8360 = vpack.c.bf16 %v8306, %v8305
      %v8361 = vpack.c.bf16 %v8308, %v8307
      %v8362 = vpack.c.bf16 %v8310, %v8309
      %v8363 = vpack.c.bf16 %v8312, %v8311
      %v8364 = vpack.c.bf16 %v8314, %v8313
      %v8365 = vpack.c.bf16 %v8316, %v8315
      %v8366 = vpack.c.bf16 %v8318, %v8317
      %v8367 = vpack.c.bf16 %v8320, %v8319
      %v8368 = vpack.c.bf16 %v8322, %v8321
      %v8369 = vpack.c.bf16 %v8324, %v8323
      %v8370 = vpack.c.bf16 %v8326, %v8325
      %v8371 = vpack.c.bf16 %v8328, %v8327
      %v8372 = vpack.c.bf16 %v8330, %v8329
      %v8373 = vpack.c.bf16 %v8332, %v8331
      %v8374 = vpack.c.bf16 %v8334, %v8333
      %v8375 = vpack.c.bf16 %v8336, %v8335
      %v8376 = vpack.c.bf16 %v8338, %v8337
      %v8377 = vpack.c.bf16 %v8340, %v8339
      %v8378 = vpack.c.bf16 %v8342, %v8341
      %v8379 = vpack.c.bf16 %v8344, %v8343
      %v8380 = vpack.c.bf16 %v8346, %v8345
      %v8381 = vpack.c.bf16 %v8348, %v8347
      %v8382 = vpack.c.bf16 %v8350, %v8349
      %v8383 = vld [vmem:[%s7 + $0x18] sm:$0xf]
      %8384 = vmatprep.subr.bf16.mxu0 0
      %8385 = vmatpush1.bf16.xpose.msra.mxu0 %v8351
      %8386 = vmatprep.subr.bf16.mxu0 0
      %8387 = vmatpush1.bf16.xpose.msra.mxu0 %v8352
      %8388 = vmatprep.subr.bf16.mxu0 0
      %8389 = vmatpush1.bf16.xpose.msra.mxu0 %v8353
      %8390 = vmatprep.subr.bf16.mxu0 0
      %8391 = vmatpush1.bf16.xpose.msra.mxu0 %v8354
      %8392 = vmatprep.subr.bf16.mxu0 0
      %8393 = vmatpush1.bf16.xpose.msra.mxu0 %v8355
      %8394 = vmatprep.subr.bf16.mxu0 0
      %8395 = vmatpush1.bf16.xpose.msra.mxu0 %v8356
      %8396 = vmatprep.subr.bf16.mxu0 0
      %8397 = vmatpush1.bf16.xpose.msra.mxu0 %v8357
      %8398 = vmatprep.subr.bf16.mxu0 0
      %8399 = vmatpush1.bf16.xpose.msra.mxu0 %v8358
      %8400 = vmatprep.subr.bf16.mxu0 0
      %8401 = vmatpush1.bf16.xpose.msra.mxu0 %v8359
      %8402 = vmatprep.subr.bf16.mxu0 0
      %8403 = vmatpush1.bf16.xpose.msra.mxu0 %v8360
      %8404 = vmatprep.subr.bf16.mxu0 0
      %8405 = vmatpush1.bf16.xpose.msra.mxu0 %v8361
      %8406 = vmatprep.subr.bf16.mxu0 0
      %8407 = vmatpush1.bf16.xpose.msra.mxu0 %v8362
      %8408 = vmatprep.subr.bf16.mxu0 0
      %8409 = vmatpush1.bf16.xpose.msra.mxu0 %v8363
      %8410 = vmatprep.subr.bf16.mxu0 0
      %8411 = vmatpush1.bf16.xpose.msra.mxu0 %v8364
      %8412 = vmatprep.subr.bf16.mxu0 0
      %8413 = vmatpush1.bf16.xpose.msra.mxu0 %v8365
      %8414 = vmatprep.subr.bf16.mxu0 0
      %8415 = vmatpush1.bf16.xpose.msra.mxu0 %v8366
      %8416 = vmatprep.mubr.bf16.mxu0 0
      %8417 = vmatmul.mubr.bf16.gmra.mrb[0].mxu0 %v8383
      %v8418 = vpop.f32.mrb[0].mxu0
      %v8419 = vadd.f32 0.0, %v8418
      %v8420 = vpop.f32.mrb[0].mxu0
      %v8421 = vadd.f32 0.0, %v8420
      %v8422 = vpop.f32.mrb[0].mxu0
      %v8423 = vpop.f32.mrb[0].mxu0
      %8424 = vdwg.mxu0
      %8425 = vmatprep.subr.bf16.mxu0 0
      %8426 = vmatpush1.bf16.xpose.msra.mxu0 %v8367
      %8427 = vmatprep.subr.bf16.mxu0 0
      %8428 = vmatpush1.bf16.xpose.msra.mxu0 %v8368
      %8429 = vmatprep.subr.bf16.mxu0 0
      %8430 = vmatpush1.bf16.xpose.msra.mxu0 %v8369
      %8431 = vmatprep.subr.bf16.mxu0 0
      %8432 = vmatpush1.bf16.xpose.msra.mxu0 %v8370
      %8433 = vmatprep.subr.bf16.mxu0 0
      %8434 = vmatpush1.bf16.xpose.msra.mxu0 %v8371
      %8435 = vmatprep.subr.bf16.mxu0 0
      %8436 = vmatpush1.bf16.xpose.msra.mxu0 %v8372
      %8437 = vmatprep.subr.bf16.mxu0 0
      %8438 = vmatpush1.bf16.xpose.msra.mxu0 %v8373
      %8439 = vmatprep.subr.bf16.mxu0 0
      %8440 = vmatpush1.bf16.xpose.msra.mxu0 %v8374
      %8441 = vmatprep.subr.bf16.mxu0 0
      %8442 = vmatpush1.bf16.xpose.msra.mxu0 %v8375
      %8443 = vmatprep.subr.bf16.mxu0 0
      %8444 = vmatpush1.bf16.xpose.msra.mxu0 %v8376
      %8445 = vmatprep.subr.bf16.mxu0 0
      %8446 = vmatpush1.bf16.xpose.msra.mxu0 %v8377
      %8447 = vmatprep.subr.bf16.mxu0 0
      %8448 = vmatpush1.bf16.xpose.msra.mxu0 %v8378
      %8449 = vmatprep.subr.bf16.mxu0 0
      %8450 = vmatpush1.bf16.xpose.msra.mxu0 %v8379
      %8451 = vmatprep.subr.bf16.mxu0 0
      %8452 = vmatpush1.bf16.xpose.msra.mxu0 %v8380
      %8453 = vmatprep.subr.bf16.mxu0 0
      %8454 = vmatpush1.bf16.xpose.msra.mxu0 %v8381
      %8455 = vmatprep.subr.bf16.mxu0 0
      %8456 = vmatpush1.bf16.xpose.msra.mxu0 %v8382
      %8457 = vmatprep.mubr.bf16.mxu0 0
      %8458 = vmatmul.mubr.bf16.gmra.mrb[0].mxu0 %v8383
      %v8459 = vpop.f32.mrb[0].mxu0
      %v8460 = vadd.f32 0.0, %v8459
      %v8461 = vpop.f32.mrb[0].mxu0
      %v8462 = vadd.f32 0.0, %v8461
      %v8463 = vpop.f32.mrb[0].mxu0
      %v8464 = vpop.f32.mrb[0].mxu0
      %8465 = vdwg.mxu0
      %v8466 = vadd.f32 %v8283, %v8419
      %v8467 = vadd.f32 %v8284, %v8421
      %v8468 = vadd.f32 %v8285, %v8460
      %v8469 = vadd.f32 %v8286, %v8462
      %v8470 = vld [vmem:[#allocation4 + $0x31] sm:$0xff]
      %v8471 = vld [vmem:[#allocation4 + $0x39] sm:$0xff]
      %v8472 = vld [vmem:[#allocation4 + $0x41] sm:$0xff]
      %v8473 = vld [vmem:[#allocation4 + $0x49] sm:$0xff]
      %v8474 = vld [vmem:[#allocation4 + $0x51] sm:$0xff]
      %v8475 = vld [vmem:[#allocation4 + $0x59] sm:$0xff]
      %v8476 = vld [vmem:[#allocation4 + $0x61] sm:$0xff]
      %v8477 = vld [vmem:[#allocation4 + $0x69] sm:$0xff]
      %v8478 = vld [vmem:[#allocation4 + $0x71] sm:$0xff]
      %v8479 = vld [vmem:[#allocation4 + $0x79] sm:$0xff]
      %v8480 = vld [vmem:[#allocation4 + $0x81] sm:$0xff]
      %v8481 = vld [vmem:[#allocation4 + $0x89] sm:$0xff]
      %v8482 = vld [vmem:[#allocation4 + $0x91] sm:$0xff]
      %v8483 = vld [vmem:[#allocation4 + $0x99] sm:$0xff]
      %v8484 = vld [vmem:[#allocation4 + $0xa1] sm:$0xff]
      %v8485 = vld [vmem:[#allocation4 + $0xa9] sm:$0xff]
      %v8486 = vld [vmem:[#allocation4 + $0xb1] sm:$0xff]
      %v8487 = vld [vmem:[#allocation4 + $0xb9] sm:$0xff]
      %v8488 = vld [vmem:[#allocation4 + $0xc1] sm:$0xff]
      %v8489 = vld [vmem:[#allocation4 + $0xc9] sm:$0xff]
      %v8490 = vld [vmem:[#allocation4 + $0xd1] sm:$0xff]
      %v8491 = vld [vmem:[#allocation4 + $0xd9] sm:$0xff]
      %v8492 = vld [vmem:[#allocation4 + $0xe1] sm:$0xff]
      %v8493 = vld [vmem:[#allocation4 + $0xe9] sm:$0xff]
      %v8494 = vld [vmem:[#allocation4 + $0xf1] sm:$0xff]
      %v8495 = vld [vmem:[#allocation4 + $0xf9] sm:$0xff]
      %v8496 = vld [vmem:[#allocation4 + $0x101] sm:$0xff]
      %v8497 = vld [vmem:[#allocation4 + $0x109] sm:$0xff]
      %v8498 = vld [vmem:[#allocation4 + $0x111] sm:$0xff]
      %v8499 = vld [vmem:[#allocation4 + $0x119] sm:$0xff]
      %v8500 = vld [vmem:[#allocation4 + $0x121] sm:$0xff]
      %v8501 = vld [vmem:[#allocation4 + $0x129] sm:$0xff]
      %v8502 = vld [vmem:[#allocation4 + $0x131] sm:$0xff]
      %v8503 = vld [vmem:[#allocation4 + $0x139] sm:$0xff]
      %v8504 = vld [vmem:[#allocation4 + $0x141] sm:$0xff]
      %v8505 = vld [vmem:[#allocation4 + $0x149] sm:$0xff]
      %v8506 = vld [vmem:[#allocation4 + $0x151] sm:$0xff]
      %v8507 = vld [vmem:[#allocation4 + $0x159] sm:$0xff]
      %v8508 = vld [vmem:[#allocation4 + $0x161] sm:$0xff]
      %v8509 = vld [vmem:[#allocation4 + $0x169] sm:$0xff]
      %v8510 = vld [vmem:[#allocation4 + $0x171] sm:$0xff]
      %v8511 = vld [vmem:[#allocation4 + $0x179] sm:$0xff]
      %v8512 = vld [vmem:[#allocation4 + $0x181] sm:$0xff]
      %v8513 = vld [vmem:[#allocation4 + $0x189] sm:$0xff]
      %v8514 = vld [vmem:[#allocation4 + $0x191] sm:$0xff]
      %v8515 = vld [vmem:[#allocation4 + $0x199] sm:$0xff]
      %v8516 = vld [vmem:[#allocation4 + $0x1a1] sm:$0xff]
      %v8517 = vld [vmem:[#allocation4 + $0x1a9] sm:$0xff]
      %v8518 = vld [vmem:[#allocation4 + $0x1b1] sm:$0xff]
      %v8519 = vld [vmem:[#allocation4 + $0x1b9] sm:$0xff]
      %v8520 = vld [vmem:[#allocation4 + $0x1c1] sm:$0xff]
      %v8521 = vld [vmem:[#allocation4 + $0x1c9] sm:$0xff]
      %v8522 = vld [vmem:[#allocation4 + $0x1d1] sm:$0xff]
      %v8523 = vld [vmem:[#allocation4 + $0x1d9] sm:$0xff]
      %v8524 = vld [vmem:[#allocation4 + $0x1e1] sm:$0xff]
      %v8525 = vld [vmem:[#allocation4 + $0x1e9] sm:$0xff]
      %v8526 = vld [vmem:[#allocation4 + $0x1f1] sm:$0xff]
      %v8527 = vld [vmem:[#allocation4 + $0x1f9] sm:$0xff]
      %v8528 = vld [vmem:[#allocation4 + $0x201] sm:$0xff]
      %v8529 = vld [vmem:[#allocation4 + $0x209] sm:$0xff]
      %v8530 = vld [vmem:[#allocation4 + $0x211] sm:$0xff]
      %v8531 = vld [vmem:[#allocation4 + $0x219] sm:$0xff]
      %v8532 = vld [vmem:[#allocation4 + $0x221] sm:$0xff]
      %v8533 = vld [vmem:[#allocation4 + $0x229] sm:$0xff]
      %v8534 = vpack.c.bf16 %v8471, %v8470
      %v8535 = vpack.c.bf16 %v8473, %v8472
      %v8536 = vpack.c.bf16 %v8475, %v8474
      %v8537 = vpack.c.bf16 %v8477, %v8476
      %v8538 = vpack.c.bf16 %v8479, %v8478
      %v8539 = vpack.c.bf16 %v8481, %v8480
      %v8540 = vpack.c.bf16 %v8483, %v8482
      %v8541 = vpack.c.bf16 %v8485, %v8484
      %v8542 = vpack.c.bf16 %v8487, %v8486
      %v8543 = vpack.c.bf16 %v8489, %v8488
      %v8544 = vpack.c.bf16 %v8491, %v8490
      %v8545 = vpack.c.bf16 %v8493, %v8492
      %v8546 = vpack.c.bf16 %v8495, %v8494
      %v8547 = vpack.c.bf16 %v8497, %v8496
      %v8548 = vpack.c.bf16 %v8499, %v8498
      %v8549 = vpack.c.bf16 %v8501, %v8500
      %v8550 = vpack.c.bf16 %v8503, %v8502
      %v8551 = vpack.c.bf16 %v8505, %v8504
      %v8552 = vpack.c.bf16 %v8507, %v8506
      %v8553 = vpack.c.bf16 %v8509, %v8508
      %v8554 = vpack.c.bf16 %v8511, %v8510
      %v8555 = vpack.c.bf16 %v8513, %v8512
      %v8556 = vpack.c.bf16 %v8515, %v8514
      %v8557 = vpack.c.bf16 %v8517, %v8516
      %v8558 = vpack.c.bf16 %v8519, %v8518
      %v8559 = vpack.c.bf16 %v8521, %v8520
      %v8560 = vpack.c.bf16 %v8523, %v8522
      %v8561 = vpack.c.bf16 %v8525, %v8524
      %v8562 = vpack.c.bf16 %v8527, %v8526
      %v8563 = vpack.c.bf16 %v8529, %v8528
      %v8564 = vpack.c.bf16 %v8531, %v8530
      %v8565 = vpack.c.bf16 %v8533, %v8532
      %v8566 = vld [vmem:[%s7 + $0x1c] sm:$0xf]
      %8567 = vmatprep.subr.bf16.mxu0 0
      %8568 = vmatpush1.bf16.xpose.msra.mxu0 %v8534
      %8569 = vmatprep.subr.bf16.mxu0 0
      %8570 = vmatpush1.bf16.xpose.msra.mxu0 %v8535
      %8571 = vmatprep.subr.bf16.mxu0 0
      %8572 = vmatpush1.bf16.xpose.msra.mxu0 %v8536
      %8573 = vmatprep.subr.bf16.mxu0 0
      %8574 = vmatpush1.bf16.xpose.msra.mxu0 %v8537
      %8575 = vmatprep.subr.bf16.mxu0 0
      %8576 = vmatpush1.bf16.xpose.msra.mxu0 %v8538
      %8577 = vmatprep.subr.bf16.mxu0 0
      %8578 = vmatpush1.bf16.xpose.msra.mxu0 %v8539
      %8579 = vmatprep.subr.bf16.mxu0 0
      %8580 = vmatpush1.bf16.xpose.msra.mxu0 %v8540
      %8581 = vmatprep.subr.bf16.mxu0 0
      %8582 = vmatpush1.bf16.xpose.msra.mxu0 %v8541
      %8583 = vmatprep.subr.bf16.mxu0 0
      %8584 = vmatpush1.bf16.xpose.msra.mxu0 %v8542
      %8585 = vmatprep.subr.bf16.mxu0 0
      %8586 = vmatpush1.bf16.xpose.msra.mxu0 %v8543
      %8587 = vmatprep.subr.bf16.mxu0 0
      %8588 = vmatpush1.bf16.xpose.msra.mxu0 %v8544
      %8589 = vmatprep.subr.bf16.mxu0 0
      %8590 = vmatpush1.bf16.xpose.msra.mxu0 %v8545
      %8591 = vmatprep.subr.bf16.mxu0 0
      %8592 = vmatpush1.bf16.xpose.msra.mxu0 %v8546
      %8593 = vmatprep.subr.bf16.mxu0 0
      %8594 = vmatpush1.bf16.xpose.msra.mxu0 %v8547
      %8595 = vmatprep.subr.bf16.mxu0 0
      %8596 = vmatpush1.bf16.xpose.msra.mxu0 %v8548
      %8597 = vmatprep.subr.bf16.mxu0 0
      %8598 = vmatpush1.bf16.xpose.msra.mxu0 %v8549
      %8599 = vmatprep.mubr.bf16.mxu0 0
      %8600 = vmatmul.mubr.bf16.gmra.mrb[0].mxu0 %v8566
      %v8601 = vpop.f32.mrb[0].mxu0
      %v8602 = vadd.f32 0.0, %v8601
      %v8603 = vpop.f32.mrb[0].mxu0
      %v8604 = vadd.f32 0.0, %v8603
      %v8605 = vpop.f32.mrb[0].mxu0
      %v8606 = vpop.f32.mrb[0].mxu0
      %8607 = vdwg.mxu0
      %8608 = vmatprep.subr.bf16.mxu0 0
      %8609 = vmatpush1.bf16.xpose.msra.mxu0 %v8550
      %8610 = vmatprep.subr.bf16.mxu0 0
      %8611 = vmatpush1.bf16.xpose.msra.mxu0 %v8551
      %8612 = vmatprep.subr.bf16.mxu0 0
      %8613 = vmatpush1.bf16.xpose.msra.mxu0 %v8552
      %8614 = vmatprep.subr.bf16.mxu0 0
      %8615 = vmatpush1.bf16.xpose.msra.mxu0 %v8553
      %8616 = vmatprep.subr.bf16.mxu0 0
      %8617 = vmatpush1.bf16.xpose.msra.mxu0 %v8554
      %8618 = vmatprep.subr.bf16.mxu0 0
      %8619 = vmatpush1.bf16.xpose.msra.mxu0 %v8555
      %8620 = vmatprep.subr.bf16.mxu0 0
      %8621 = vmatpush1.bf16.xpose.msra.mxu0 %v8556
      %8622 = vmatprep.subr.bf16.mxu0 0
      %8623 = vmatpush1.bf16.xpose.msra.mxu0 %v8557
      %8624 = vmatprep.subr.bf16.mxu0 0
      %8625 = vmatpush1.bf16.xpose.msra.mxu0 %v8558
      %8626 = vmatprep.subr.bf16.mxu0 0
      %8627 = vmatpush1.bf16.xpose.msra.mxu0 %v8559
      %8628 = vmatprep.subr.bf16.mxu0 0
      %8629 = vmatpush1.bf16.xpose.msra.mxu0 %v8560
      %8630 = vmatprep.subr.bf16.mxu0 0
      %8631 = vmatpush1.bf16.xpose.msra.mxu0 %v8561
      %8632 = vmatprep.subr.bf16.mxu0 0
      %8633 = vmatpush1.bf16.xpose.msra.mxu0 %v8562
      %8634 = vmatprep.subr.bf16.mxu0 0
      %8635 = vmatpush1.bf16.xpose.msra.mxu0 %v8563
      %8636 = vmatprep.subr.bf16.mxu0 0
      %8637 = vmatpush1.bf16.xpose.msra.mxu0 %v8564
      %8638 = vmatprep.subr.bf16.mxu0 0
      %8639 = vmatpush1.bf16.xpose.msra.mxu0 %v8565
      %8640 = vmatprep.mubr.bf16.mxu0 0
      %8641 = vmatmul.mubr.bf16.gmra.mrb[0].mxu0 %v8566
      %v8642 = vpop.f32.mrb[0].mxu0
      %v8643 = vadd.f32 0.0, %v8642
      %v8644 = vpop.f32.mrb[0].mxu0
      %v8645 = vadd.f32 0.0, %v8644
      %v8646 = vpop.f32.mrb[0].mxu0
      %v8647 = vpop.f32.mrb[0].mxu0
      %8648 = vdwg.mxu0
      %v8649 = vadd.f32 %v8466, %v8602
      %v8650 = vadd.f32 %v8467, %v8604
      %v8651 = vadd.f32 %v8468, %v8643
      %v8652 = vadd.f32 %v8469, %v8645
      %v8653 = vld [vmem:[#allocation4 + $0x32] sm:$0xff]
      %v8654 = vld [vmem:[#allocation4 + $0x3a] sm:$0xff]
      %v8655 = vld [vmem:[#allocation4 + $0x42] sm:$0xff]
      %v8656 = vld [vmem:[#allocation4 + $0x4a] sm:$0xff]
      %v8657 = vld [vmem:[#allocation4 + $0x52] sm:$0xff]
      %v8658 = vld [vmem:[#allocation4 + $0x5a] sm:$0xff]
      %v8659 = vld [vmem:[#allocation4 + $0x62] sm:$0xff]
      %v8660 = vld [vmem:[#allocation4 + $0x6a] sm:$0xff]
      %v8661 = vld [vmem:[#allocation4 + $0x72] sm:$0xff]
      %v8662 = vld [vmem:[#allocation4 + $0x7a] sm:$0xff]
      %v8663 = vld [vmem:[#allocation4 + $0x82] sm:$0xff]
      %v8664 = vld [vmem:[#allocation4 + $0x8a] sm:$0xff]
      %v8665 = vld [vmem:[#allocation4 + $0x92] sm:$0xff]
      %v8666 = vld [vmem:[#allocation4 + $0x9a] sm:$0xff]
      %v8667 = vld [vmem:[#allocation4 + $0xa2] sm:$0xff]
      %v8668 = vld [vmem:[#allocation4 + $0xaa] sm:$0xff]
      %v8669 = vld [vmem:[#allocation4 + $0xb2] sm:$0xff]
      %v8670 = vld [vmem:[#allocation4 + $0xba] sm:$0xff]
      %v8671 = vld [vmem:[#allocation4 + $0xc2] sm:$0xff]
      %v8672 = vld [vmem:[#allocation4 + $0xca] sm:$0xff]
      %v8673 = vld [vmem:[#allocation4 + $0xd2] sm:$0xff]
      %v8674 = vld [vmem:[#allocation4 + $0xda] sm:$0xff]
      %v8675 = vld [vmem:[#allocation4 + $0xe2] sm:$0xff]
      %v8676 = vld [vmem:[#allocation4 + $0xea] sm:$0xff]
      %v8677 = vld [vmem:[#allocation4 + $0xf2] sm:$0xff]
      %v8678 = vld [vmem:[#allocation4 + $0xfa] sm:$0xff]
      %v8679 = vld [vmem:[#allocation4 + $0x102] sm:$0xff]
      %v8680 = vld [vmem:[#allocation4 + $0x10a] sm:$0xff]
      %v8681 = vld [vmem:[#allocation4 + $0x112] sm:$0xff]
      %v8682 = vld [vmem:[#allocation4 + $0x11a] sm:$0xff]
      %v8683 = vld [vmem:[#allocation4 + $0x122] sm:$0xff]
      %v8684 = vld [vmem:[#allocation4 + $0x12a] sm:$0xff]
      %v8685 = vld [vmem:[#allocation4 + $0x132] sm:$0xff]
      %v8686 = vld [vmem:[#allocation4 + $0x13a] sm:$0xff]
      %v8687 = vld [vmem:[#allocation4 + $0x142] sm:$0xff]
      %v8688 = vld [vmem:[#allocation4 + $0x14a] sm:$0xff]
      %v8689 = vld [vmem:[#allocation4 + $0x152] sm:$0xff]
      %v8690 = vld [vmem:[#allocation4 + $0x15a] sm:$0xff]
      %v8691 = vld [vmem:[#allocation4 + $0x162] sm:$0xff]
      %v8692 = vld [vmem:[#allocation4 + $0x16a] sm:$0xff]
      %v8693 = vld [vmem:[#allocation4 + $0x172] sm:$0xff]
      %v8694 = vld [vmem:[#allocation4 + $0x17a] sm:$0xff]
      %v8695 = vld [vmem:[#allocation4 + $0x182] sm:$0xff]
      %v8696 = vld [vmem:[#allocation4 + $0x18a] sm:$0xff]
      %v8697 = vld [vmem:[#allocation4 + $0x192] sm:$0xff]
      %v8698 = vld [vmem:[#allocation4 + $0x19a] sm:$0xff]
      %v8699 = vld [vmem:[#allocation4 + $0x1a2] sm:$0xff]
      %v8700 = vld [vmem:[#allocation4 + $0x1aa] sm:$0xff]
      %v8701 = vld [vmem:[#allocation4 + $0x1b2] sm:$0xff]
      %v8702 = vld [vmem:[#allocation4 + $0x1ba] sm:$0xff]
      %v8703 = vld [vmem:[#allocation4 + $0x1c2] sm:$0xff]
      %v8704 = vld [vmem:[#allocation4 + $0x1ca] sm:$0xff]
      %v8705 = vld [vmem:[#allocation4 + $0x1d2] sm:$0xff]
      %v8706 = vld [vmem:[#allocation4 + $0x1da] sm:$0xff]
      %v8707 = vld [vmem:[#allocation4 + $0x1e2] sm:$0xff]
      %v8708 = vld [vmem:[#allocation4 + $0x1ea] sm:$0xff]
      %v8709 = vld [vmem:[#allocation4 + $0x1f2] sm:$0xff]
      %v8710 = vld [vmem:[#allocation4 + $0x1fa] sm:$0xff]
      %v8711 = vld [vmem:[#allocation4 + $0x202] sm:$0xff]
      %v8712 = vld [vmem:[#allocation4 + $0x20a] sm:$0xff]
      %v8713 = vld [vmem:[#allocation4 + $0x212] sm:$0xff]
      %v8714 = vld [vmem:[#allocation4 + $0x21a] sm:$0xff]
      %v8715 = vld [vmem:[#allocation4 + $0x222] sm:$0xff]
      %v8716 = vld [vmem:[#allocation4 + $0x22a] sm:$0xff]
      %v8717 = vpack.c.bf16 %v8654, %v8653
      %v8718 = vpack.c.bf16 %v8656, %v8655
      %v8719 = vpack.c.bf16 %v8658, %v8657
      %v8720 = vpack.c.bf16 %v8660, %v8659
      %v8721 = vpack.c.bf16 %v8662, %v8661
      %v8722 = vpack.c.bf16 %v8664, %v8663
      %v8723 = vpack.c.bf16 %v8666, %v8665
      %v8724 = vpack.c.bf16 %v8668, %v8667
      %v8725 = vpack.c.bf16 %v8670, %v8669
      %v8726 = vpack.c.bf16 %v8672, %v8671
      %v8727 = vpack.c.bf16 %v8674, %v8673
      %v8728 = vpack.c.bf16 %v8676, %v8675
      %v8729 = vpack.c.bf16 %v8678, %v8677
      %v8730 = vpack.c.bf16 %v8680, %v8679
      %v8731 = vpack.c.bf16 %v8682, %v8681
      %v8732 = vpack.c.bf16 %v8684, %v8683
      %v8733 = vpack.c.bf16 %v8686, %v8685
      %v8734 = vpack.c.bf16 %v8688, %v8687
      %v8735 = vpack.c.bf16 %v8690, %v8689
      %v8736 = vpack.c.bf16 %v8692, %v8691
      %v8737 = vpack.c.bf16 %v8694, %v8693
      %v8738 = vpack.c.bf16 %v8696, %v8695
      %v8739 = vpack.c.bf16 %v8698, %v8697
      %v8740 = vpack.c.bf16 %v8700, %v8699
      %v8741 = vpack.c.bf16 %v8702, %v8701
      %v8742 = vpack.c.bf16 %v8704, %v8703
      %v8743 = vpack.c.bf16 %v8706, %v8705
      %v8744 = vpack.c.bf16 %v8708, %v8707
      %v8745 = vpack.c.bf16 %v8710, %v8709
      %v8746 = vpack.c.bf16 %v8712, %v8711
      %v8747 = vpack.c.bf16 %v8714, %v8713
      %v8748 = vpack.c.bf16 %v8716, %v8715
      %v8749 = vld [vmem:[%s7 + $0x20] sm:$0xf]
      %8750 = vmatprep.subr.bf16.mxu0 0
      %8751 = vmatpush1.bf16.xpose.msra.mxu0 %v8717
      %8752 = vmatprep.subr.bf16.mxu0 0
      %8753 = vmatpush1.bf16.xpose.msra.mxu0 %v8718
      %8754 = vmatprep.subr.bf16.mxu0 0
      %8755 = vmatpush1.bf16.xpose.msra.mxu0 %v8719
      %8756 = vmatprep.subr.bf16.mxu0 0
      %8757 = vmatpush1.bf16.xpose.msra.mxu0 %v8720
      %8758 = vmatprep.subr.bf16.mxu0 0
      %8759 = vmatpush1.bf16.xpose.msra.mxu0 %v8721
      %8760 = vmatprep.subr.bf16.mxu0 0
      %8761 = vmatpush1.bf16.xpose.msra.mxu0 %v8722
      %8762 = vmatprep.subr.bf16.mxu0 0
      %8763 = vmatpush1.bf16.xpose.msra.mxu0 %v8723
      %8764 = vmatprep.subr.bf16.mxu0 0
      %8765 = vmatpush1.bf16.xpose.msra.mxu0 %v8724
      %8766 = vmatprep.subr.bf16.mxu0 0
      %8767 = vmatpush1.bf16.xpose.msra.mxu0 %v8725
      %8768 = vmatprep.subr.bf16.mxu0 0
      %8769 = vmatpush1.bf16.xpose.msra.mxu0 %v8726
      %8770 = vmatprep.subr.bf16.mxu0 0
      %8771 = vmatpush1.bf16.xpose.msra.mxu0 %v8727
      %8772 = vmatprep.subr.bf16.mxu0 0
      %8773 = vmatpush1.bf16.xpose.msra.mxu0 %v8728
      %8774 = vmatprep.subr.bf16.mxu0 0
      %8775 = vmatpush1.bf16.xpose.msra.mxu0 %v8729
      %8776 = vmatprep.subr.bf16.mxu0 0
      %8777 = vmatpush1.bf16.xpose.msra.mxu0 %v8730
      %8778 = vmatprep.subr.bf16.mxu0 0
      %8779 = vmatpush1.bf16.xpose.msra.mxu0 %v8731
      %8780 = vmatprep.subr.bf16.mxu0 0
      %8781 = vmatpush1.bf16.xpose.msra.mxu0 %v8732
      %8782 = vmatprep.mubr.bf16.mxu0 0
      %8783 = vmatmul.mubr.bf16.gmra.mrb[0].mxu0 %v8749
      %v8784 = vpop.f32.mrb[0].mxu0
      %v8785 = vadd.f32 0.0, %v8784
      %v8786 = vpop.f32.mrb[0].mxu0
      %v8787 = vadd.f32 0.0, %v8786
      %v8788 = vpop.f32.mrb[0].mxu0
      %v8789 = vpop.f32.mrb[0].mxu0
      %8790 = vdwg.mxu0
      %8791 = vmatprep.subr.bf16.mxu0 0
      %8792 = vmatpush1.bf16.xpose.msra.mxu0 %v8733
      %8793 = vmatprep.subr.bf16.mxu0 0
      %8794 = vmatpush1.bf16.xpose.msra.mxu0 %v8734
      %8795 = vmatprep.subr.bf16.mxu0 0
      %8796 = vmatpush1.bf16.xpose.msra.mxu0 %v8735
      %8797 = vmatprep.subr.bf16.mxu0 0
      %8798 = vmatpush1.bf16.xpose.msra.mxu0 %v8736
      %8799 = vmatprep.subr.bf16.mxu0 0
      %8800 = vmatpush1.bf16.xpose.msra.mxu0 %v8737
      %8801 = vmatprep.subr.bf16.mxu0 0
      %8802 = vmatpush1.bf16.xpose.msra.mxu0 %v8738
      %8803 = vmatprep.subr.bf16.mxu0 0
      %8804 = vmatpush1.bf16.xpose.msra.mxu0 %v8739
      %8805 = vmatprep.subr.bf16.mxu0 0
      %8806 = vmatpush1.bf16.xpose.msra.mxu0 %v8740
      %8807 = vmatprep.subr.bf16.mxu0 0
      %8808 = vmatpush1.bf16.xpose.msra.mxu0 %v8741
      %8809 = vmatprep.subr.bf16.mxu0 0
      %8810 = vmatpush1.bf16.xpose.msra.mxu0 %v8742
      %8811 = vmatprep.subr.bf16.mxu0 0
      %8812 = vmatpush1.bf16.xpose.msra.mxu0 %v8743
      %8813 = vmatprep.subr.bf16.mxu0 0
      %8814 = vmatpush1.bf16.xpose.msra.mxu0 %v8744
      %8815 = vmatprep.subr.bf16.mxu0 0
      %8816 = vmatpush1.bf16.xpose.msra.mxu0 %v8745
      %8817 = vmatprep.subr.bf16.mxu0 0
      %8818 = vmatpush1.bf16.xpose.msra.mxu0 %v8746
      %8819 = vmatprep.subr.bf16.mxu0 0
      %8820 = vmatpush1.bf16.xpose.msra.mxu0 %v8747
      %8821 = vmatprep.subr.bf16.mxu0 0
      %8822 = vmatpush1.bf16.xpose.msra.mxu0 %v8748
      %8823 = vmatprep.mubr.bf16.mxu0 0
      %8824 = vmatmul.mubr.bf16.gmra.mrb[0].mxu0 %v8749
      %v8825 = vpop.f32.mrb[0].mxu0
      %v8826 = vadd.f32 0.0, %v8825
      %v8827 = vpop.f32.mrb[0].mxu0
      %v8828 = vadd.f32 0.0, %v8827
      %v8829 = vpop.f32.mrb[0].mxu0
      %v8830 = vpop.f32.mrb[0].mxu0
      %8831 = vdwg.mxu0
      %v8832 = vadd.f32 %v8649, %v8785
      %v8833 = vadd.f32 %v8650, %v8787
      %v8834 = vadd.f32 %v8651, %v8826
      %v8835 = vadd.f32 %v8652, %v8828
      %v8836 = vld [vmem:[%s8] sm:$0xff]
      %8838 = vset.pattern.permute.xlu0 0
      %8839 = vperm.xlu0 %8838, %v8836
      %v8840 = vpop.permute.xlu0 %8839
      %v8842 = vadd.f32 %v8832, %v8840
      %v8843 = vadd.f32 %v8833, %v8840
      %v8844 = vadd.f32 %v8834, %v8840
      %v8845 = vadd.f32 %v8835, %v8840
      %8846 = vst [vmem:[%s332] sm:$0xff] %v8842
      %8847 = vst [vmem:[%s332 + $0x8] sm:$0xff] %v8843
      %8848 = vst [vmem:[%s332 + $0x10] sm:$0xff] %v8844
      %8849 = vst [vmem:[%s332 + $0x18] sm:$0xff] %v8845
      %p8850 = scmp.lt.s32.totalorder %s20, 1
      %s8851 = scalar_select %p8850, %s20, 1
      %s8852 = smul.addr %s8851, 4
      %s8853 = smul.addr %s8852, 8
      %s8854 = scalar_lea.vmem %s9, %s8853
      // Predicated region
      $region61: #{model_forward.1} parent=55 // pred_check
        %p8855 = pneg %p232
      $region62: #{model_forward.1} parent=55 // pred_check_branch
        %8857 = sbr.rel (%p8855) target = $region64
      $region63: #{model_forward.1} parent=55 // pred_region
        _
      $region64: #{model_forward.1} parent=55 // pred_fallthru
        _
    $region56: #{model_forward.1} parent=5 // pred_fallthru
      _
    %p8858 = scmp.le.s32.totalorder 2, %s15
    // Predicated region
    $region65: #{model_forward.1} parent=5 // pred_check
      %p8859 = pneg %p8858
    $region66: #{model_forward.1} parent=5 // pred_check_branch
      %8861 = sbr.rel (%p8859) target = $region68
    $region67: #{model_forward.1} parent=5 // pred_region
      %s8862 = ssub.s32 %s15, 2
      // Predicated region
      $region69: #{model_forward.1} parent=67 // pred_check
        %p8863 = pneg %p238
      $region70: #{model_forward.1} parent=67 // pred_check_branch
        %8865 = sbr.rel (%p8863) target = $region72
      $region71: #{model_forward.1} parent=67 // pred_region
        %p8866 = scmp.lt.s32.totalorder %s21, 1
        %s8867 = scalar_select %p8866, %s21, 1
        %s8868 = smul.addr %s8867, 4
        %s8869 = smul.addr %s8868, 8
        %s8870 = scalar_lea.vmem %s9, %s8869
      $region72: #{model_forward.1} parent=67 // pred_fallthru
        _
    $region68: #{model_forward.1} parent=5 // pred_fallthru
      _
  $region6: #{model_forward.1} parent=0 // loop_footer
    %s19 = sadd.s32 1, %s15
  $region7: #{model_forward.1} parent=0 // loop_footer_branch
    %14 = sbr.rel target = $region3
  $region8: #{model_forward.1} parent=0 // loop_exit
    _

</llo_original>
